<compile_context>
chip_gen: v6e
topology: v6e:2x2x1
jax: 0.10.0
libtpu: 0.0.40
codegen_flags: <defaults>
</compile_context>

<pallas_src>
import math
from functools import partial

import numpy as np
import jax
import jax.numpy as jnp
from jax import lax
from jax.experimental import pallas as pl
from jax.experimental.pallas import tpu as pltpu


def _round_up(x, m):
    return (x + m - 1) // m * m


def _cdiv(a, b):
    return -(-a // b)


# ----------------------------------------------------------------------------
# Generation-aware tile budget (per-chip table keyed on device_kind)
# ----------------------------------------------------------------------------
def _b_tile_budget_bytes():
    try:
        kind = jax.devices()[0].device_kind.lower()
    except Exception:
        kind = ""
    if any(g in kind for g in ("v6", "v7")) or "v5p" in kind:
        return 8 * 1024 * 1024      # 32 MiB scoped default: 2x8 MiB B + A/out fits
    return 4 * 1024 * 1024          # v5e (16 MiB scoped default) / unknown: conservative


def _choose_kn_tiles(K, N, b_budget):
    """Padding-aware tk/tn: minimal K inflation, B tile <= budget, >= 2 parallel N blocks."""
    Kp0 = _round_up(max(K, 1), 128)
    nk = _cdiv(Kp0, 2048)
    tk = _round_up(_cdiv(Kp0, nk), 128)
    Kp = tk * nk
    max_tn = max(128, (b_budget // (tk * 2)) // 128 * 128)
    Np0 = _round_up(max(N, 1), 128)
    nn = max(1, _cdiv(Np0, max_tn))
    if Np0 >= 256:
        nn = max(nn, 2)             # keep both TensorCores (v7x megacore) streaming
    tn = _round_up(_cdiv(Np0, nn), 128)
    Np = tn * nn
    return tk, tn, Kp, Np


# ----------------------------------------------------------------------------
# Pallas matmul kernels: bf16 x bf16 -> f32
# ----------------------------------------------------------------------------
def _matmul_kernel_single_k(a_ref, b_ref, o_ref):
    # Kp//tk == 1: single shot, no zero-init / accumulate read-modify-write.
    o_ref[...] = jnp.dot(a_ref[...], b_ref[...], preferred_element_type=jnp.float32)


def _matmul_kernel_acc(a_ref, b_ref, o_ref):
    @pl.when(pl.program_id(2) == 0)
    def _():
        o_ref[...] = jnp.zeros_like(o_ref)

    o_ref[...] += jnp.dot(a_ref[...], b_ref[...], preferred_element_type=jnp.float32)


def _fused_matmul(a_p, b_p3, tm, tk, tn):
    """a_p (Mp,Kp) bf16  @  tile-major b_p3 (Np//tn, Kp, tn) bf16  ->  (Mp,Np) f32."""
    Mp, Kp = a_p.shape
    nn = b_p3.shape[0]
    assert b_p3.shape[1] == Kp and b_p3.shape[2] == tn
    nk = Kp // tk
    Np = nn * tn

    vmem_bytes = int(2 * (tm * tk * 2) + 2 * (tk * tn * 2) + 2 * (tm * tn * 4) + (2 << 20))
    vmem_bytes = min(vmem_bytes, 48 << 20)
    cost = pl.CostEstimate(flops=2 * Mp * Kp * Np,
                           transcendentals=0,
                           bytes_accessed=Mp * Kp * 2 + Kp * Np * 2 + Mp * Np * 4)

    if nk == 1:
        grid = (Mp // tm, nn)
        kernel = _matmul_kernel_single_k
        in_specs = [pl.BlockSpec((tm, tk), lambda i, j: (i, 0)),
                    pl.BlockSpec((None, tk, tn), lambda i, j: (j, 0, 0))]
        out_specs = pl.BlockSpec((tm, tn), lambda i, j: (i, j))
        dims = ("parallel", "parallel")
    else:
        grid = (Mp // tm, nn, nk)
        kernel = _matmul_kernel_acc
        in_specs = [pl.BlockSpec((tm, tk), lambda i, j, k: (i, k)),
                    pl.BlockSpec((None, tk, tn), lambda i, j, k: (j, k, 0))]
        out_specs = pl.BlockSpec((tm, tn), lambda i, j, k: (i, j))
        dims = ("parallel", "parallel", "arbitrary")

    return pl.pallas_call(
        kernel,
        out_shape=jax.ShapeDtypeStruct((Mp, Np), jnp.float32),
        grid_spec=pltpu.PrefetchScalarGridSpec(
            num_scalar_prefetch=0,
            grid=grid,
            in_specs=in_specs,
            out_specs=out_specs),
        compiler_params=pltpu.CompilerParams(
            dimension_semantics=dims,
            vmem_limit_bytes=vmem_bytes),
        cost_estimate=cost,
    )(a_p, b_p3)


# ----------------------------------------------------------------------------
# Host-side (numpy) construction of the per-band linear operators
# ----------------------------------------------------------------------------
def _fir_bandpass_taps_np(low_hz, high_hz, fs, numtaps=129):
    m = (numtaps - 1) / 2.0
    n = np.arange(numtaps)
    fl = low_hz / fs
    fh = high_hz / fs
    h = 2.0 * fh * np.sinc(2.0 * fh * (n - m)) - 2.0 * fl * np.sinc(2.0 * fl * (n - m))
    return h * np.hamming(numtaps)                       # float64 (numtaps,)


def _resample_matrix_np(n_in, orig_freq, new_freq, lowpass_filter_width=6, rolloff=0.99):
    """Dense windowed-sinc resampling operator R (n_out, n_in): z = R @ x."""
    n_out = int(math.ceil(n_in * new_freq / orig_freq))
    fc = 0.5 * min(orig_freq, new_freq) / orig_freq * rolloff
    half_width = lowpass_filter_width / (2.0 * fc)
    t_out = np.arange(n_out)[:, None] * (orig_freq / new_freq)
    t_in = np.arange(n_in)[None, :]
    t = t_in - t_out
    win = np.where(np.abs(t) < half_width,
                   0.5 * (1.0 + np.cos(np.pi * t / half_width)), 0.0)
    return 2.0 * fc * np.sinc(2.0 * fc * t) * win        # float64 (n_out, n_in)


def _compose_fir_then_resample_np(R, taps):
    """C = R @ T where T is the 'same' (zero-padded) FIR matrix, i.e.
    C @ x == R @ fir_same(x), without materializing the (n, n) Toeplitz."""
    L, n = R.shape
    numtaps = taps.shape[0]
    half = numtaps // 2
    Rp = np.pad(R, ((0, 0), (half, half)))
    C = np.zeros((L, n), dtype=R.dtype)
    for k in range(numtaps):
        C += taps[k] * Rp[:, 2 * half - k: 2 * half - k + n]
    return C


def _stft_basis_np(n_fft):
    """Windowed DFT basis (n_fft, 2*n_bins): [win*cos | -win*sin], periodic Hann."""
    n_bins = n_fft // 2 + 1
    n = np.arange(n_fft)[:, None].astype(np.float64)
    k = np.arange(n_bins)[None, :].astype(np.float64)
    ang = 2.0 * np.pi * n * k / n_fft
    win = 0.5 * (1.0 - np.cos(2.0 * np.pi * np.arange(n_fft) / n_fft))
    return np.concatenate([np.cos(ang), -np.sin(ang)], axis=1) * win[:, None]


def _reflect_index_np(q, L):
    """np.pad(mode='reflect') source index for (possibly out-of-range) position q."""
    if L == 1:
        return np.zeros_like(q)
    period = 2 * (L - 1)
    q = np.abs(q) % period
    return np.where(q >= L, period - q, q)


def _band_stft_operator_np(C, n_fft):
    """Given C (L, n) mapping x -> band signal, return Gb (n, n_frames*2*n_bins)
    mapping x -> flattened complex STFT (real||imag per frame, frames stacked)."""
    L, n = C.shape
    hop = n_fft // 2
    pad = n_fft // 2
    n_frames = 1 + L // hop
    n_bins = n_fft // 2 + 1
    basis = _stft_basis_np(n_fft).astype(np.float32)     # (n_fft, 2*n_bins)
    j = np.arange(n_fft)
    cols = []
    for t in range(n_frames):
        src = _reflect_index_np(t * hop + j - pad, L)    # framing with reflect padding
        cols.append(C[src, :].T @ basis)                 # (n, 2*n_bins)
    return np.concatenate(cols, axis=1), n_frames, n_bins


def _build_fused_operator(n, fs, bands):
    """Compose FIR band-pass o resample o framing o windowed-DFT for every band into one
    (n, N_total) operator; pad to MXU tiles, re-block tile-major along N (contiguous DMA
    slabs) and cast to bf16 ONCE on the host (cached on device)."""
    blocks, band_meta, off = [], [], 0
    for freq, fft in bands:
        taps = _fir_bandpass_taps_np(int(freq / 1.414), int(freq * 1.414), fs).astype(np.float32)
        R = _resample_matrix_np(n, fs, int(freq * 1.414 * 2)).astype(np.float32)
        C = _compose_fir_then_resample_np(R, taps)                 # (L, n)
        Gb, n_frames, n_bins = _band_stft_operator_np(C, fft)      # (n, Fb)
        blocks.append(Gb)
        band_meta.append((off, n_frames, n_bins))
        off += Gb.shape[1]
    G = np.concatenate(blocks, axis=1).astype(np.float32)
    Ntot = G.shape[1]
    tk, tn, Kp, Np = _choose_kn_tiles(n, Ntot, _b_tile_budget_bytes())
    Gp = np.zeros((Kp, Np), dtype=np.float32)
    Gp[:n, :Ntot] = G                                      # N padding stays at the tail
    nn = Np // tn
    g_dev = jnp.asarray(Gp.reshape(Kp, nn, tn).transpose(1, 0, 2), dtype=jnp.bfloat16)
    return g_dev, (Kp, tk, tn, Ntot, tuple(band_meta))


# ----------------------------------------------------------------------------
# Fused forward (single pallas_call per batch) + cached resample path
# ----------------------------------------------------------------------------
@partial(jax.jit, static_argnums=(2,))
def _fused_forward(x, g_p3, meta):
    """x (B, n) f32  ->  tuple of complex (B, n_bins, n_frames) spectrograms."""
    Kp, tk, tn, _Ntot, band_meta = meta
    M, n = x.shape
    tm = min(_round_up(max(M, 1), 16), 256)
    Mp = _round_up(M, tm)
    a = jnp.pad(x.astype(jnp.bfloat16), ((0, Mp - M), (0, Kp - n)))
    out = _fused_matmul(a, g_p3, tm, tk, tn)[:M]          # (M, Np) f32
    specs = []
    for off, n_frames, n_bins in band_meta:
        fb = n_frames * 2 * n_bins
        blk = out[:, off:off + fb].reshape(M, n_frames, 2 * n_bins)
        re = jnp.transpose(blk[:, :, :n_bins], (0, 2, 1))  # (M, freq, time)
        im = jnp.transpose(blk[:, :, n_bins:], (0, 2, 1))
        specs.append(lax.complex(re, im))
    return tuple(specs)


@partial(jax.jit, static_argnums=(2,))
def _apply_operator(x, b_p3, meta):
    """x (B, n) @ cached tile-major operator -> (B, n_out) f32."""
    Kp, tk, tn, n_out = meta
    M, n = x.shape
    tm = min(_round_up(max(M, 1), 16), 256)
    Mp = _round_up(M, tm)
    a = jnp.pad(x.astype(jnp.bfloat16), ((0, Mp - M), (0, Kp - n)))
    out = _fused_matmul(a, b_p3, tm, tk, tn)
    return out[:M, :n_out]


_RESAMPLE_OP_CACHE = {}


def resample(x, orig_freq, new_freq):
    """Windowed-sinc resample of 1-D/2-D signals via the cached tile-major Pallas matmul."""
    # TODO(synk): dense O(n_in*n_out) operator; replace with banded/polyphase for long chunks.
    if orig_freq == new_freq:
        return jnp.asarray(x, jnp.float32)
    x = jnp.asarray(x, jnp.float32)
    squeeze = (x.ndim == 1)
    x2 = x[None, :] if squeeze else x
    n = int(x2.shape[1])
    key = (n, int(orig_freq), int(new_freq))
    if key not in _RESAMPLE_OP_CACHE:
        R = _resample_matrix_np(n, orig_freq, new_freq).astype(np.float32)   # (n_out, n)
        n_out = R.shape[0]
        tk, tn, Kp, Np = _choose_kn_tiles(n, n_out, _b_tile_budget_bytes())
        Bp = np.zeros((Kp, Np), dtype=np.float32)
        Bp[:n, :n_out] = R.T
        nn = Np // tn
        b_dev = jnp.asarray(Bp.reshape(Kp, nn, tn).transpose(1, 0, 2), dtype=jnp.bfloat16)
        _RESAMPLE_OP_CACHE[key] = (b_dev, (Kp, tk, tn, n_out))
    b_dev, meta = _RESAMPLE_OP_CACHE[key]
    y = _apply_operator(x2, b_dev, meta)
    return y[0] if squeeze else y


# ----------------------------------------------------------------------------
# PipeLineNew
# ----------------------------------------------------------------------------
class PipeLineNew:
    BANDS = ((500, 256), (1000, 512), (2000, 1024), (4000, 2048))

    def __init__(self):
        self.n_fft = 512
        self.n_hop = 256
        self.freq = 16000
        self._op_cache = {}          # (n, fs) -> (device bf16 tile-major operator, meta)

    def _get_operator(self, n, fs):
        key = (int(n), int(fs))
        if key not in self._op_cache:
            self._op_cache[key] = _build_fused_operator(int(n), int(fs), self.BANDS)
        return self._op_cache[key]

    def _forward_2d(self, x2, fs):
        if fs != self.freq:
            # TODO(synk): reference then keeps using the ORIGINAL fs below (mirrored).
            x2 = resample(x2, fs, self.freq)
        n = int(x2.shape[1])
        g_dev, meta = self._get_operator(n, fs)
        return _fused_forward(x2, g_dev, meta)

    def __call__(self, chunk, fs):
        x = jnp.asarray(chunk, dtype=jnp.float32).squeeze()
        x2 = x[None, :] if x.ndim == 1 else x
        specs = self._forward_2d(x2, fs)
        return [jnp.squeeze(s) for s in specs]

    def forward_batch(self, chunks, fs):
        """Batch many equal-length chunks into one Pallas matmul (amortizes the G stream)."""
        x2 = jnp.stack([jnp.asarray(c, dtype=jnp.float32).reshape(-1) for c in chunks], axis=0)
        return list(self._forward_2d(x2, fs))


# ----------------------------------------------------------------------------
# Pure-numpy float64 reference of the same math (for a sanity check in __main__)
# ----------------------------------------------------------------------------
def _reference_numpy(x, fs, bands):
    outs = []
    for freq, fft in bands:
        taps = _fir_bandpass_taps_np(int(freq / 1.414), int(freq * 1.414), fs)
        half = taps.shape[0] // 2
        xp = np.pad(x, (half, half))
        y = np.lib.stride_tricks.sliding_window_view(xp, taps.shape[0]) @ taps
        R = _resample_matrix_np(x.shape[0], fs, int(freq * 1.414 * 2))
        z = R @ y
        L = z.shape[0]
        pad = fft // 2
        hop = fft // 2
        zp = z[_reflect_index_np(np.arange(-pad, L + pad), L)]
        n_frames = 1 + L // hop
        n_bins = fft // 2 + 1
        basis = _stft_basis_np(fft)
        F = np.stack([zp[t * hop: t * hop + fft] for t in range(n_frames)]) @ basis
        outs.append((F[:, :n_bins] + 1j * F[:, n_bins:]).T)
    return outs


if __name__ == "__main__":
    key = jax.random.PRNGKey(0)
    fs = 16000
    # a single mono audio chunk with a leading channel dim, like the dataloader
    chunk = np.asarray(jax.random.normal(key, (1, 2048), dtype=jnp.float32))

    pipe = PipeLineNew()
    outs = pipe(chunk, fs)
    for o in outs:
        jax.block_until_ready(o)

    # sanity: 4 complex (freq, time) spectrograms with the expected bin counts
    assert len(outs) == 4
    for o, (_, fft) in zip(outs, PipeLineNew.BANDS):
        assert o.dtype == jnp.complex64
        assert o.shape[0] == fft // 2 + 1
        assert o.shape[1] == 2

    # numerical sanity vs. an unfused float64 numpy implementation of the same math
    refs = _reference_numpy(np.asarray(chunk, dtype=np.float64).squeeze(), fs,
                            PipeLineNew.BANDS)
    for o, r in zip(outs, refs):
        err = np.max(np.abs(np.asarray(o) - r)) / np.max(np.abs(r))
        assert err < 5e-2, f"fused Pallas pipeline deviates from reference: {err}"

    # batched path: several chunks through ONE pallas_call (amortizes the G HBM stream)
    keys = jax.random.split(key, 3)
    batch = np.stack([np.asarray(jax.random.normal(k, (2048,), dtype=jnp.float32))
                      for k in keys])
    batch[0] = np.asarray(chunk, dtype=np.float32).squeeze()
    bouts = pipe.forward_batch(batch, fs)
    for bo in bouts:
        jax.block_until_ready(bo)
    for bo, (_, fft) in zip(bouts, PipeLineNew.BANDS):
        assert bo.shape == (3, fft // 2 + 1, 2)
    for bo, o in zip(bouts, outs):
        denom = max(float(np.max(np.abs(np.asarray(o)))), 1e-6)
        err = float(np.max(np.abs(np.asarray(bo[0]) - np.asarray(o)))) / denom
        assert err < 1e-3, f"batched path disagrees with single-chunk path: {err}"

    print("KERNEL_OK")
</pallas_src>

<mosaic_0001>
module attributes {stable_mosaic.version = 11 : i64} {
  func.func @_matmul_kernel_single_k(%arg0: i32, %arg1: i32, %arg2: memref<16x2048xbf16, #tpu.memory_space<vmem>>, %arg3: memref<1x2048x1024xbf16, #tpu.memory_space<vmem>>, %arg4: memref<16x1024xf32, #tpu.memory_space<vmem>>) attributes {dimension_semantics = [#tpu.dimension_semantics<parallel>, #tpu.dimension_semantics<parallel>], iteration_bounds = array<i64: 1, 8>, scalar_prefetch = 0 : i64, scratch_operands = 0 : i64, tpu.core_type = #tpu.core_type<tc>, window_params = [{transform_indices = @transform_0, window_bounds = array<i64: 16, 2048>}, {transform_indices = @transform_1, window_bounds = array<i64: 1, 2048, 1024>}, {transform_indices = @transform_2, window_bounds = array<i64: 16, 1024>}]} {
    %c0 = arith.constant 0 : index
    %c0_0 = arith.constant 0 : index
    %0 = vector.load %arg2[%c0, %c0_0] : memref<16x2048xbf16, #tpu.memory_space<vmem>>, vector<16x2048xbf16>
    %c0_1 = arith.constant 0 : index
    %c0_2 = arith.constant 0 : index
    %c0_3 = arith.constant 0 : index
    %1 = vector.load %arg3[%c0_1, %c0_2, %c0_3] : memref<1x2048x1024xbf16, #tpu.memory_space<vmem>>, vector<1x2048x1024xbf16>
    %2 = vector.shape_cast %1 : vector<1x2048x1024xbf16> to vector<2048x1024xbf16>
    %cst = arith.constant dense<0.000000e+00> : vector<16x1024xf32>
    %3 = tpu.matmul %0, %2, %cst {dimension_numbers = #tpu.dot_dimension_numbers<[1], [0], [0], [1], [0, 0, 1, 1], [], []>} : vector<16x2048xbf16>, vector<2048x1024xbf16>, vector<16x1024xf32> -> vector<16x1024xf32>
    %c0_4 = arith.constant 0 : index
    %c0_5 = arith.constant 0 : index
    %4 = vector.load %arg4[%c0_4, %c0_5] : memref<16x1024xf32, #tpu.memory_space<vmem>>, vector<16x1024xf32>
    tpu.vector_store %arg4[%c0_4, %c0_5], %3 {strides = array<i32>} : memref<16x1024xf32, #tpu.memory_space<vmem>>, vector<16x1024xf32>,
    return
  }
  func.func @transform_0(%arg0: i32, %arg1: i32) -> (i32, i32) {
    %c0_i32 = arith.constant 0 : i32
    %c0_i32_0 = arith.constant 0 : i32
    return %arg0, %c0_i32 : i32, i32
  }
  func.func @transform_1(%arg0: i32, %arg1: i32) -> (i32, i32, i32) {
    %c0_i32 = arith.constant 0 : i32
    %c0_i32_0 = arith.constant 0 : i32
    %c0_i32_1 = arith.constant 0 : i32
    return %arg1, %c0_i32, %c0_i32_0 : i32, i32, i32
  }
  func.func @transform_2(%arg0: i32, %arg1: i32) -> (i32, i32) {
    %c0_i32 = arith.constant 0 : i32
    return %arg0, %arg1 : i32, i32
  }
}

</mosaic_0001>

<llo_original>
// kernel: custom-call
$region0: #{custom-call}
  %s0 = inlined_call_operand.vmem [shape: f32[1,129,2], index: 0, kind: input, shape index: {}]
  %s1 = inlined_call_operand.vmem [shape: f32[1,129,2], index: 1, kind: input, shape index: {}]
  %s2 = inlined_call_operand.hbm [shape: c64[1,129,2], index: 2, kind: output, shape index: {}]
  %s3 = scalar_lea.hbm %s2, 64
  $region1: #{custom-call} parent=0
    #allocation0 [shape = 's32[1]{0}', space=sflag, size = 0x4, scoped, tag = 'scoped memory for custom-call']
    %4 = vsyncpa [#allocation0], 0
    %s5 = sshll.u32 %s0, 4
    %s6 = int_to_ptr.vmem [resolvable:$true] %s5
    %8 = dma.vmem_to_hbm [thread:$0]  %s6, 64, %s2, [#allocation0]
    %9 = dma.done [#allocation0], 64
    %10 = vsyncpa [#allocation0], 1
  $region2: #{custom-call} parent=0
    #allocation1 [shape = 's32[1]{0}', space=sflag, size = 0x4, scoped, tag = 'scoped memory for custom-call']
    %11 = vsyncpa [#allocation1], 0
    %s12 = sshll.u32 %s1, 4
    %s13 = int_to_ptr.vmem [resolvable:$true] %s12
    %15 = dma.vmem_to_hbm [thread:$0]  %s13, 64, %s3, [#allocation1]
    %16 = dma.done [#allocation1], 64
    %17 = vsyncpa [#allocation1], 1

// kernel: custom-call.1
$region0: #{custom-call.1}
  %s0 = inlined_call_operand.vmem [shape: f32[1,257,2], index: 0, kind: input, shape index: {}]
  %s1 = inlined_call_operand.vmem [shape: f32[1,257,2], index: 1, kind: input, shape index: {}]
  %s2 = inlined_call_operand.hbm [shape: c64[1,257,2], index: 2, kind: output, shape index: {}]
  %s3 = scalar_lea.hbm %s2, 96
  $region1: #{custom-call.1} parent=0
    #allocation0 [shape = 's32[1]{0}', space=sflag, size = 0x4, scoped, tag = 'scoped memory for custom-call.1']
    %4 = vsyncpa [#allocation0], 0
    %s5 = sshll.u32 %s0, 4
    %s6 = int_to_ptr.vmem [resolvable:$true] %s5
    %8 = dma.vmem_to_hbm [thread:$0]  %s6, 96, %s2, [#allocation0]
    %9 = dma.done [#allocation0], 96
    %10 = vsyncpa [#allocation0], 1
  $region2: #{custom-call.1} parent=0
    #allocation1 [shape = 's32[1]{0}', space=sflag, size = 0x4, scoped, tag = 'scoped memory for custom-call.1']
    %11 = vsyncpa [#allocation1], 0
    %s12 = sshll.u32 %s1, 4
    %s13 = int_to_ptr.vmem [resolvable:$true] %s12
    %15 = dma.vmem_to_hbm [thread:$0]  %s13, 96, %s3, [#allocation1]
    %16 = dma.done [#allocation1], 96
    %17 = vsyncpa [#allocation1], 1

// kernel: custom-call.2
$region0: #{custom-call.2}
  %s0 = inlined_call_operand.vmem [shape: f32[1,513,2], index: 0, kind: input, shape index: {}]
  %s1 = inlined_call_operand.vmem [shape: f32[1,513,2], index: 1, kind: input, shape index: {}]
  %s2 = inlined_call_operand.hbm [shape: c64[1,513,2], index: 2, kind: output, shape index: {}]
  %s3 = scalar_lea.hbm %s2, 160
  $region1: #{custom-call.2} parent=0
    #allocation0 [shape = 's32[1]{0}', space=sflag, size = 0x4, scoped, tag = 'scoped memory for custom-call.2']
    %4 = vsyncpa [#allocation0], 0
    %s5 = sshll.u32 %s0, 4
    %s6 = int_to_ptr.vmem [resolvable:$true] %s5
    %8 = dma.vmem_to_hbm [thread:$0]  %s6, 160, %s2, [#allocation0]
    %9 = dma.done [#allocation0], 160
    %10 = vsyncpa [#allocation0], 1
  $region2: #{custom-call.2} parent=0
    #allocation1 [shape = 's32[1]{0}', space=sflag, size = 0x4, scoped, tag = 'scoped memory for custom-call.2']
    %11 = vsyncpa [#allocation1], 0
    %s12 = sshll.u32 %s1, 4
    %s13 = int_to_ptr.vmem [resolvable:$true] %s12
    %15 = dma.vmem_to_hbm [thread:$0]  %s13, 160, %s3, [#allocation1]
    %16 = dma.done [#allocation1], 160
    %17 = vsyncpa [#allocation1], 1

// kernel: custom-call.3
$region0: #{custom-call.3}
  %s0 = inlined_call_operand.vmem [shape: f32[1,1025,2], index: 0, kind: input, shape index: {}]
  %s1 = inlined_call_operand.vmem [shape: f32[1,1025,2], index: 1, kind: input, shape index: {}]
  %s2 = inlined_call_operand.hbm [shape: c64[1,1025,2], index: 2, kind: output, shape index: {}]
  %s3 = scalar_lea.hbm %s2, 288
  $region1: #{custom-call.3} parent=0
    #allocation0 [shape = 's32[1]{0}', space=sflag, size = 0x4, scoped, tag = 'scoped memory for custom-call.3']
    %4 = vsyncpa [#allocation0], 0
    %s5 = sshll.u32 %s0, 4
    %s6 = int_to_ptr.vmem [resolvable:$true] %s5
    %8 = dma.vmem_to_hbm [thread:$0]  %s6, 288, %s2, [#allocation0]
    %9 = dma.done [#allocation0], 288
    %10 = vsyncpa [#allocation0], 1
  $region2: #{custom-call.3} parent=0
    #allocation1 [shape = 's32[1]{0}', space=sflag, size = 0x4, scoped, tag = 'scoped memory for custom-call.3']
    %11 = vsyncpa [#allocation1], 0
    %s12 = sshll.u32 %s1, 4
    %s13 = int_to_ptr.vmem [resolvable:$true] %s12
    %15 = dma.vmem_to_hbm [thread:$0]  %s13, 288, %s3, [#allocation1]
    %16 = dma.done [#allocation1], 288
    %17 = vsyncpa [#allocation1], 1

// kernel: _fused_forward.1
$region0: #{_fused_forward.1}
  #allocation0 [shape = 'u32[]', space=smem, size = 0x4, offset = 0x4, fixed_abs, tag = 'smem constant byte address 0x4 - core index']
  #allocation1 [shape = 'u32[144,128]{1,0:T(1,128)}', space=vmem, size = 0x12000, scoped, tag = 'internal scratch']
  %s0 = inlined_call_operand.vmem [shape: bf16[16,2048], index: 0, kind: input, shape index: {}]
  %s1 = inlined_call_operand.hbm [shape: bf16[8,2048,1024], index: 1, kind: input, shape index: {}]
  %s2 = inlined_call_operand.vmem [shape: f32[16,8192], index: 2, kind: output, shape index: {}]
  %s3 = sld [smem:[#allocation0]]
  $region64: #{_fused_forward.1} parent=0
    _
  %s5 = ssub.s32 1, %s3
  %s6 = scalar_select 0, %s5, %s3
  $region1: #{_fused_forward.1} parent=0
    #allocation2 [shape = 'u8[8388608]{0}', space=vmem, size = 0x800000, scoped, tag = 'input window, operand 1']
    #allocation3 [shape = 's32[2]{0}', space=sflag, size = 0x8, scoped, tag = 'scoped memory for _fused_forward.1']
    #allocation4 [shape = 'u8[131072]{0}', space=vmem, size = 0x20000, scoped, tag = 'output window, operand 0']
    %7 = vsyncpa [#allocation3], 0
    %s8 = scalar_lea.sflag [#allocation3], 1
    %9 = vsyncpa %s8, 0
    loop: start=0, step=1, limit=10
    $region2: #{_fused_forward.1} parent=1 // loop_pre_header
      _
    $region3: #{_fused_forward.1} parent=1 // loop_header
      %s11 = sphi 0, %s15
      %p12 = scmp.ge.s32.totalorder %s11, 10
      %s18 = sphi 0, %s30
      %s19 = sphi 0, %s26
      %s20 = sphi 0, %s18
      %s21 = sphi 0, %s19
      %s22 = sphi 0, %s20
      %s23 = sphi 0, %s21
      %s33 = sphi 0, %s35
      %s36 = sphi 0, %s33
      %s37 = sphi 0, %s36
      %s53 = sphi 0, %s37
      %s59 = sphi 0, %s61
      %s62 = sphi 0, %s59
      %s63 = sphi 0, %s62
      %s79 = sphi 0, %s63
      %s87 = sphi 0, %s89
      %s90 = sphi 0, %s87
      %s91 = sphi 0, %s90
      %s107 = sphi 0, %s91
    $region4: #{_fused_forward.1} parent=1 // loop_header_branch
      %14 = sbr.rel (%p12) target = $region8
    $region5: #{_fused_forward.1} parent=1 // loop_body
      %s16 = ssub.s32 %s11, 1
      %s17 = ssub.s32 %s11, 2
      %s24 = sadd.s32 1, %s19
      %p25 = scmp.ge.s32.totalorder %s24, 8
      %s26 = scalar_select %p25, 0, %s24
      %s27 = sadd.s32 1, %s18
      %s28 = scalar_select %p25, %s27, %s18
      %p29 = scmp.ge.s32.totalorder %s28, 1
      %s30 = scalar_select %p29, 0, %s28
      %s31 = ssub.s32 %s18, %s30
      %p32 = scmp.eq.s32.totalorder %s31, 0
      %s34 = sadd.s32 %s33, 1
      %s35 = scalar_select %p32, %s33, %s34
      %p38 = pneg %p32
      %p39 = scmp.eq.s32.totalorder %s11, 7
      %p40 = por %p38, %p39
      %p41 = scmp.ne.s32.totalorder %s33, %s36
      %p42 = scmp.eq.s32.totalorder %s11, 0
      %p43 = por %p41, %p42
      %p44 = scmp.ne.s32.totalorder %s33, %s36
      %p45 = scmp.eq.s32.totalorder %s16, 7
      %p46 = por %p44, %p45
      %p47 = scmp.ne.s32.totalorder %s36, %s37
      %p48 = scmp.eq.s32.totalorder %s16, 0
      %p49 = por %p47, %p48
      %p50 = scmp.ne.s32.totalorder %s36, %s37
      %p51 = scmp.eq.s32.totalorder %s17, 7
      %p52 = por %p50, %p51
      %p54 = scmp.ne.s32.totalorder %s37, %s53
      %p55 = scmp.eq.s32.totalorder %s17, 0
      %p56 = por %p54, %p55
      %s57 = ssub.s32 %s19, %s26
      %p58 = scmp.eq.s32.totalorder %s57, 0
      %s60 = sadd.s32 %s59, 1
      %s61 = scalar_select %p58, %s59, %s60
      %p64 = pneg %p58
      %p65 = scmp.eq.s32.totalorder %s11, 7
      %p66 = por %p64, %p65
      %p67 = scmp.ne.s32.totalorder %s59, %s62
      %p68 = scmp.eq.s32.totalorder %s11, 0
      %p69 = por %p67, %p68
      %p70 = scmp.ne.s32.totalorder %s59, %s62
      %p71 = scmp.eq.s32.totalorder %s16, 7
      %p72 = por %p70, %p71
      %p73 = scmp.ne.s32.totalorder %s62, %s63
      %p74 = scmp.eq.s32.totalorder %s16, 0
      %p75 = por %p73, %p74
      %p76 = scmp.ne.s32.totalorder %s62, %s63
      %p77 = scmp.eq.s32.totalorder %s17, 7
      %p78 = por %p76, %p77
      %p80 = scmp.ne.s32.totalorder %s63, %s79
      %p81 = scmp.eq.s32.totalorder %s17, 0
      %p82 = por %p80, %p81
      %s83 = ssub.s32 %s18, %s30
      %s84 = ssub.s32 %s19, %s26
      %s85 = sor.u32 %s83, %s84
      %p86 = scmp.eq.s32.totalorder %s85, 0
      %s88 = sadd.s32 %s87, 1
      %s89 = scalar_select %p86, %s87, %s88
      %p92 = pneg %p86
      %p93 = scmp.eq.s32.totalorder %s11, 7
      %p94 = por %p92, %p93
      %p95 = scmp.ne.s32.totalorder %s87, %s90
      %p96 = scmp.eq.s32.totalorder %s11, 0
      %p97 = por %p95, %p96
      %p98 = scmp.ne.s32.totalorder %s87, %s90
      %p99 = scmp.eq.s32.totalorder %s16, 7
      %p100 = por %p98, %p99
      %p101 = scmp.ne.s32.totalorder %s90, %s91
      %p102 = scmp.eq.s32.totalorder %s16, 0
      %p103 = por %p101, %p102
      %p104 = scmp.ne.s32.totalorder %s90, %s91
      %p105 = scmp.eq.s32.totalorder %s17, 7
      %p106 = por %p104, %p105
      %p108 = scmp.ne.s32.totalorder %s91, %s107
      %p109 = scmp.eq.s32.totalorder %s17, 0
      %p110 = por %p108, %p109
      %p111 = scmp.le.s32.totalorder 1, %s11
      %p112 = scmp.lt.s32.totalorder %s11, 9
      %p113 = pnand %p111, %p112
      %p114 = pneg %p113
      // Predicated region
      $region9: #{_fused_forward.1} parent=5 // pred_check
        _
      $region10: #{_fused_forward.1} parent=5 // pred_check_branch
        %116 = sbr.rel (%p113) target = $region12
      $region11: #{_fused_forward.1} parent=5 // pred_region
        %s117 = ssub.s32 %s11, 1
        // Predicated region
        $region13: #{_fused_forward.1} parent=11 // pred_check
          %p118 = pneg %p49
        $region14: #{_fused_forward.1} parent=11 // pred_check_branch
          %120 = sbr.rel (%p118) target = $region16
        $region15: #{_fused_forward.1} parent=11 // pred_region
          %s121 = smul.u32 2, %s20
          %p122 = scmp.lt.s32.totalorder %s121, 1
          %s123 = scalar_select %p122, %s121, 1
          %s124 = smul.addr %s123, 16
          %s125 = smul.addr %s124, 4
          %s126 = scalar_lea.vmem %s0, %s125
          %s127 = smul.u32 2, %s20
        $region16: #{_fused_forward.1} parent=11 // pred_fallthru
          _
      $region12: #{_fused_forward.1} parent=5 // pred_fallthru
        _
      %p128 = scmp.lt.s32.totalorder %s11, 8
      // Predicated region
      $region17: #{_fused_forward.1} parent=5 // pred_check
        %p129 = pneg %p128
      $region18: #{_fused_forward.1} parent=5 // pred_check_branch
        %131 = sbr.rel (%p129) target = $region20
      $region19: #{_fused_forward.1} parent=5 // pred_region
        // Predicated region
        $region21: #{_fused_forward.1} parent=19 // pred_check
          %p132 = pneg %p69
        $region22: #{_fused_forward.1} parent=19 // pred_check_branch
          %134 = sbr.rel (%p132) target = $region24
        $region23: #{_fused_forward.1} parent=19 // pred_region
          %s135 = sand.u32 %s59, 1
          %s136 = scalar_lea.sflag [#allocation3], %s135
          %s137 = sand.u32 %s59, 1
          %s138 = smul.addr %s137, 8192
          %s139 = scalar_lea.vmem [#allocation2], %s138
          %s141 = ssub.s32 131072, 131072
          %142 = vsyncadd %s136, %s141
          %s143 = smul.addr %s19, 2048
          %s144 = smul.addr %s143, 64
          %s145 = scalar_lea.hbm %s1, %s144
          %s146 = sshll.u32 %s139, 4
          %s147 = int_to_ptr.vmem [resolvable:$true] %s146
          %152 = dma.hbm_to_vmem [thread:$0]  %s145, 131072, %s147, %s136, 512, 512, 32
        $region24: #{_fused_forward.1} parent=19 // pred_fallthru
          _
      $region20: #{_fused_forward.1} parent=5 // pred_fallthru
        _
      %p153 = scmp.le.s32.totalorder 1, %s11
      %p154 = scmp.lt.s32.totalorder %s11, 9
      %p155 = pnand %p153, %p154
      %p156 = pneg %p155
      // Predicated region
      $region25: #{_fused_forward.1} parent=5 // pred_check
        _
      $region26: #{_fused_forward.1} parent=5 // pred_check_branch
        %158 = sbr.rel (%p155) target = $region28
      $region27: #{_fused_forward.1} parent=5 // pred_region
        %s159 = ssub.s32 %s11, 1
        %s160 = sand.u32 %s62, 1
        %s161 = scalar_lea.sflag [#allocation3], %s160
        %s162 = sand.u32 %s62, 1
        %s163 = smul.addr %s162, 8192
        %s164 = scalar_lea.vmem [#allocation2], %s163
        // Predicated region
        $region29: #{_fused_forward.1} parent=27 // pred_check
          %p165 = pneg %p75
        $region30: #{_fused_forward.1} parent=27 // pred_check_branch
          %167 = sbr.rel (%p165) target = $region32
        $region31: #{_fused_forward.1} parent=27 // pred_region
          %168 = dma.done %s161, 131072
        $region32: #{_fused_forward.1} parent=27 // pred_fallthru
          _
        %s169 = smul.u32 2, %s20
        %p170 = scmp.lt.s32.totalorder %s169, 1
        %s171 = scalar_select %p170, %s169, 1
        %s172 = smul.addr %s171, 16
        %s173 = smul.addr %s172, 4
        %s174 = scalar_lea.vmem %s0, %s173
        %p175 = pneg %p49
        %p176 = pneg %p46
        %s177 = sand.u32 %s62, 1
        %s178 = scalar_lea.sflag [#allocation3], %s177
        %s179 = sand.u32 %s62, 1
        %s180 = smul.addr %s179, 8192
        %s181 = scalar_lea.vmem [#allocation2], %s180
        %p182 = pneg %p75
        %p183 = pneg %p72
        %p184 = pneg %p103
        %p185 = pneg %p100
        %s186 = sand.u32 %s90, 1
        %s187 = sand.u32 %s90, 1
        %s188 = smul.addr %s187, 128
        %s189 = scalar_lea.vmem [#allocation4], %s188
        %s190 = smul.u32 2, %s20
        %p191 = scmp.lt.s32.totalorder %s190, 1
        %s192 = scalar_select %p191, %s190, 1
        %s193 = smul.addr %s192, 16
        %s194 = smul.addr %s193, 4
        %s195 = scalar_lea.vmem %s0, %s194
        %s196 = smul.u32 2, %s20
        %s197 = smul.u32 2, %s20
        %s198 = smul.u32 8, %s21
        %v199 = vld [vmem:[%s195] sm:$0xff]
        %v200 = vld [vmem:[%s195 + $0x8] sm:$0xff]
        %v201 = vld [vmem:[%s195 + $0x10] sm:$0xff]
        %v202 = vld [vmem:[%s195 + $0x18] sm:$0xff]
        %v203 = vld [vmem:[%s195 + $0x20] sm:$0xff]
        %v204 = vld [vmem:[%s195 + $0x28] sm:$0xff]
        %v205 = vld [vmem:[%s195 + $0x30] sm:$0xff]
        %v206 = vld [vmem:[%s195 + $0x38] sm:$0xff]
        %v207 = vld [vmem:[%s195 + $0x40] sm:$0xff]
        %v208 = vld [vmem:[%s195 + $0x48] sm:$0xff]
        %v209 = vld [vmem:[%s195 + $0x50] sm:$0xff]
        %v210 = vld [vmem:[%s195 + $0x58] sm:$0xff]
        %v211 = vld [vmem:[%s195 + $0x60] sm:$0xff]
        %v212 = vld [vmem:[%s195 + $0x68] sm:$0xff]
        %v213 = vld [vmem:[%s195 + $0x70] sm:$0xff]
        %v214 = vld [vmem:[%s195 + $0x78] sm:$0xff]
        %v215 = vld [vmem:[%s164] sm:$0xff]
        %v216 = vld [vmem:[%s164 + $0x8] sm:$0xff]
        %v217 = vld [vmem:[%s164 + $0x10] sm:$0xff]
        %v218 = vld [vmem:[%s164 + $0x18] sm:$0xff]
        %v219 = vld [vmem:[%s164 + $0x20] sm:$0xff]
        %v220 = vld [vmem:[%s164 + $0x28] sm:$0xff]
        %v221 = vld [vmem:[%s164 + $0x30] sm:$0xff]
        %v222 = vld [vmem:[%s164 + $0x38] sm:$0xff]
        %v223 = vld [vmem:[%s164 + $0x40] sm:$0xff]
        %v224 = vld [vmem:[%s164 + $0x48] sm:$0xff]
        %v225 = vld [vmem:[%s164 + $0x50] sm:$0xff]
        %v226 = vld [vmem:[%s164 + $0x58] sm:$0xff]
        %v227 = vld [vmem:[%s164 + $0x60] sm:$0xff]
        %v228 = vld [vmem:[%s164 + $0x68] sm:$0xff]
        %v229 = vld [vmem:[%s164 + $0x70] sm:$0xff]
        %v230 = vld [vmem:[%s164 + $0x78] sm:$0xff]
        %v231 = vld [vmem:[%s164 + $0x80] sm:$0xff]
        %v232 = vld [vmem:[%s164 + $0x88] sm:$0xff]
        %v233 = vld [vmem:[%s164 + $0x90] sm:$0xff]
        %v234 = vld [vmem:[%s164 + $0x98] sm:$0xff]
        %v235 = vld [vmem:[%s164 + $0xa0] sm:$0xff]
        %v236 = vld [vmem:[%s164 + $0xa8] sm:$0xff]
        %v237 = vld [vmem:[%s164 + $0xb0] sm:$0xff]
        %v238 = vld [vmem:[%s164 + $0xb8] sm:$0xff]
        %v239 = vld [vmem:[%s164 + $0xc0] sm:$0xff]
        %v240 = vld [vmem:[%s164 + $0xc8] sm:$0xff]
        %v241 = vld [vmem:[%s164 + $0xd0] sm:$0xff]
        %v242 = vld [vmem:[%s164 + $0xd8] sm:$0xff]
        %v243 = vld [vmem:[%s164 + $0xe0] sm:$0xff]
        %v244 = vld [vmem:[%s164 + $0xe8] sm:$0xff]
        %v245 = vld [vmem:[%s164 + $0xf0] sm:$0xff]
        %v246 = vld [vmem:[%s164 + $0xf8] sm:$0xff]
        %v247 = vld [vmem:[%s164 + $0x100] sm:$0xff]
        %v248 = vld [vmem:[%s164 + $0x108] sm:$0xff]
        %v249 = vld [vmem:[%s164 + $0x110] sm:$0xff]
        %v250 = vld [vmem:[%s164 + $0x118] sm:$0xff]
        %v251 = vld [vmem:[%s164 + $0x120] sm:$0xff]
        %v252 = vld [vmem:[%s164 + $0x128] sm:$0xff]
        %v253 = vld [vmem:[%s164 + $0x130] sm:$0xff]
        %v254 = vld [vmem:[%s164 + $0x138] sm:$0xff]
        %v255 = vld [vmem:[%s164 + $0x140] sm:$0xff]
        %v256 = vld [vmem:[%s164 + $0x148] sm:$0xff]
        %v257 = vld [vmem:[%s164 + $0x150] sm:$0xff]
        %v258 = vld [vmem:[%s164 + $0x158] sm:$0xff]
        %v259 = vld [vmem:[%s164 + $0x160] sm:$0xff]
        %v260 = vld [vmem:[%s164 + $0x168] sm:$0xff]
        %v261 = vld [vmem:[%s164 + $0x170] sm:$0xff]
        %v262 = vld [vmem:[%s164 + $0x178] sm:$0xff]
        %v263 = vld [vmem:[%s164 + $0x180] sm:$0xff]
        %v264 = vld [vmem:[%s164 + $0x188] sm:$0xff]
        %v265 = vld [vmem:[%s164 + $0x190] sm:$0xff]
        %v266 = vld [vmem:[%s164 + $0x198] sm:$0xff]
        %v267 = vld [vmem:[%s164 + $0x1a0] sm:$0xff]
        %v268 = vld [vmem:[%s164 + $0x1a8] sm:$0xff]
        %v269 = vld [vmem:[%s164 + $0x1b0] sm:$0xff]
        %v270 = vld [vmem:[%s164 + $0x1b8] sm:$0xff]
        %v271 = vld [vmem:[%s164 + $0x1c0] sm:$0xff]
        %v272 = vld [vmem:[%s164 + $0x1c8] sm:$0xff]
        %v273 = vld [vmem:[%s164 + $0x1d0] sm:$0xff]
        %v274 = vld [vmem:[%s164 + $0x1d8] sm:$0xff]
        %v275 = vld [vmem:[%s164 + $0x1e0] sm:$0xff]
        %v276 = vld [vmem:[%s164 + $0x1e8] sm:$0xff]
        %v277 = vld [vmem:[%s164 + $0x1f0] sm:$0xff]
        %v278 = vld [vmem:[%s164 + $0x1f8] sm:$0xff]
        %v279 = vld [vmem:[%s164 + $0x200] sm:$0xff]
        %v280 = vld [vmem:[%s164 + $0x208] sm:$0xff]
        %v281 = vld [vmem:[%s164 + $0x210] sm:$0xff]
        %v282 = vld [vmem:[%s164 + $0x218] sm:$0xff]
        %v283 = vld [vmem:[%s164 + $0x220] sm:$0xff]
        %v284 = vld [vmem:[%s164 + $0x228] sm:$0xff]
        %v285 = vld [vmem:[%s164 + $0x230] sm:$0xff]
        %v286 = vld [vmem:[%s164 + $0x238] sm:$0xff]
        %v287 = vld [vmem:[%s164 + $0x240] sm:$0xff]
        %v288 = vld [vmem:[%s164 + $0x248] sm:$0xff]
        %v289 = vld [vmem:[%s164 + $0x250] sm:$0xff]
        %v290 = vld [vmem:[%s164 + $0x258] sm:$0xff]
        %v291 = vld [vmem:[%s164 + $0x260] sm:$0xff]
        %v292 = vld [vmem:[%s164 + $0x268] sm:$0xff]
        %v293 = vld [vmem:[%s164 + $0x270] sm:$0xff]
        %v294 = vld [vmem:[%s164 + $0x278] sm:$0xff]
        %v295 = vld [vmem:[%s164 + $0x280] sm:$0xff]
        %v296 = vld [vmem:[%s164 + $0x288] sm:$0xff]
        %v297 = vld [vmem:[%s164 + $0x290] sm:$0xff]
        %v298 = vld [vmem:[%s164 + $0x298] sm:$0xff]
        %v299 = vld [vmem:[%s164 + $0x2a0] sm:$0xff]
        %v300 = vld [vmem:[%s164 + $0x2a8] sm:$0xff]
        %v301 = vld [vmem:[%s164 + $0x2b0] sm:$0xff]
        %v302 = vld [vmem:[%s164 + $0x2b8] sm:$0xff]
        %v303 = vld [vmem:[%s164 + $0x2c0] sm:$0xff]
        %v304 = vld [vmem:[%s164 + $0x2c8] sm:$0xff]
        %v305 = vld [vmem:[%s164 + $0x2d0] sm:$0xff]
        %v306 = vld [vmem:[%s164 + $0x2d8] sm:$0xff]
        %v307 = vld [vmem:[%s164 + $0x2e0] sm:$0xff]
        %v308 = vld [vmem:[%s164 + $0x2e8] sm:$0xff]
        %v309 = vld [vmem:[%s164 + $0x2f0] sm:$0xff]
        %v310 = vld [vmem:[%s164 + $0x2f8] sm:$0xff]
        %v311 = vld [vmem:[%s164 + $0x300] sm:$0xff]
        %v312 = vld [vmem:[%s164 + $0x308] sm:$0xff]
        %v313 = vld [vmem:[%s164 + $0x310] sm:$0xff]
        %v314 = vld [vmem:[%s164 + $0x318] sm:$0xff]
        %v315 = vld [vmem:[%s164 + $0x320] sm:$0xff]
        %v316 = vld [vmem:[%s164 + $0x328] sm:$0xff]
        %v317 = vld [vmem:[%s164 + $0x330] sm:$0xff]
        %v318 = vld [vmem:[%s164 + $0x338] sm:$0xff]
        %v319 = vld [vmem:[%s164 + $0x340] sm:$0xff]
        %v320 = vld [vmem:[%s164 + $0x348] sm:$0xff]
        %v321 = vld [vmem:[%s164 + $0x350] sm:$0xff]
        %v322 = vld [vmem:[%s164 + $0x358] sm:$0xff]
        %v323 = vld [vmem:[%s164 + $0x360] sm:$0xff]
        %v324 = vld [vmem:[%s164 + $0x368] sm:$0xff]
        %v325 = vld [vmem:[%s164 + $0x370] sm:$0xff]
        %v326 = vld [vmem:[%s164 + $0x378] sm:$0xff]
        %v327 = vld [vmem:[%s164 + $0x380] sm:$0xff]
        %v328 = vld [vmem:[%s164 + $0x388] sm:$0xff]
        %v329 = vld [vmem:[%s164 + $0x390] sm:$0xff]
        %v330 = vld [vmem:[%s164 + $0x398] sm:$0xff]
        %v331 = vld [vmem:[%s164 + $0x3a0] sm:$0xff]
        %v332 = vld [vmem:[%s164 + $0x3a8] sm:$0xff]
        %v333 = vld [vmem:[%s164 + $0x3b0] sm:$0xff]
        %v334 = vld [vmem:[%s164 + $0x3b8] sm:$0xff]
        %v335 = vld [vmem:[%s164 + $0x3c0] sm:$0xff]
        %v336 = vld [vmem:[%s164 + $0x3c8] sm:$0xff]
        %v337 = vld [vmem:[%s164 + $0x3d0] sm:$0xff]
        %v338 = vld [vmem:[%s164 + $0x3d8] sm:$0xff]
        %v339 = vld [vmem:[%s164 + $0x3e0] sm:$0xff]
        %v340 = vld [vmem:[%s164 + $0x3e8] sm:$0xff]
        %v341 = vld [vmem:[%s164 + $0x3f0] sm:$0xff]
        %v342 = vld [vmem:[%s164 + $0x3f8] sm:$0xff]
        %v343 = vld [vmem:[%s164 + $0x400] sm:$0xff]
        %v344 = vld [vmem:[%s164 + $0x408] sm:$0xff]
        %v345 = vld [vmem:[%s164 + $0x410] sm:$0xff]
        %v346 = vld [vmem:[%s164 + $0x418] sm:$0xff]
        %v347 = vld [vmem:[%s164 + $0x420] sm:$0xff]
        %v348 = vld [vmem:[%s164 + $0x428] sm:$0xff]
        %v349 = vld [vmem:[%s164 + $0x430] sm:$0xff]
        %v350 = vld [vmem:[%s164 + $0x438] sm:$0xff]
        %v351 = vld [vmem:[%s164 + $0x440] sm:$0xff]
        %v352 = vld [vmem:[%s164 + $0x448] sm:$0xff]
        %v353 = vld [vmem:[%s164 + $0x450] sm:$0xff]
        %v354 = vld [vmem:[%s164 + $0x458] sm:$0xff]
        %v355 = vld [vmem:[%s164 + $0x460] sm:$0xff]
        %v356 = vld [vmem:[%s164 + $0x468] sm:$0xff]
        %v357 = vld [vmem:[%s164 + $0x470] sm:$0xff]
        %v358 = vld [vmem:[%s164 + $0x478] sm:$0xff]
        %v359 = vld [vmem:[%s164 + $0x480] sm:$0xff]
        %v360 = vld [vmem:[%s164 + $0x488] sm:$0xff]
        %v361 = vld [vmem:[%s164 + $0x490] sm:$0xff]
        %v362 = vld [vmem:[%s164 + $0x498] sm:$0xff]
        %v363 = vld [vmem:[%s164 + $0x4a0] sm:$0xff]
        %v364 = vld [vmem:[%s164 + $0x4a8] sm:$0xff]
        %v365 = vld [vmem:[%s164 + $0x4b0] sm:$0xff]
        %v366 = vld [vmem:[%s164 + $0x4b8] sm:$0xff]
        %v367 = vld [vmem:[%s164 + $0x4c0] sm:$0xff]
        %v368 = vld [vmem:[%s164 + $0x4c8] sm:$0xff]
        %v369 = vld [vmem:[%s164 + $0x4d0] sm:$0xff]
        %v370 = vld [vmem:[%s164 + $0x4d8] sm:$0xff]
        %v371 = vld [vmem:[%s164 + $0x4e0] sm:$0xff]
        %v372 = vld [vmem:[%s164 + $0x4e8] sm:$0xff]
        %v373 = vld [vmem:[%s164 + $0x4f0] sm:$0xff]
        %v374 = vld [vmem:[%s164 + $0x4f8] sm:$0xff]
        %v375 = vld [vmem:[%s164 + $0x500] sm:$0xff]
        %v376 = vld [vmem:[%s164 + $0x508] sm:$0xff]
        %v377 = vld [vmem:[%s164 + $0x510] sm:$0xff]
        %v378 = vld [vmem:[%s164 + $0x518] sm:$0xff]
        %v379 = vld [vmem:[%s164 + $0x520] sm:$0xff]
        %v380 = vld [vmem:[%s164 + $0x528] sm:$0xff]
        %v381 = vld [vmem:[%s164 + $0x530] sm:$0xff]
        %v382 = vld [vmem:[%s164 + $0x538] sm:$0xff]
        %v383 = vld [vmem:[%s164 + $0x540] sm:$0xff]
        %v384 = vld [vmem:[%s164 + $0x548] sm:$0xff]
        %v385 = vld [vmem:[%s164 + $0x550] sm:$0xff]
        %v386 = vld [vmem:[%s164 + $0x558] sm:$0xff]
        %v387 = vld [vmem:[%s164 + $0x560] sm:$0xff]
        %v388 = vld [vmem:[%s164 + $0x568] sm:$0xff]
        %v389 = vld [vmem:[%s164 + $0x570] sm:$0xff]
        %v390 = vld [vmem:[%s164 + $0x578] sm:$0xff]
        %v391 = vld [vmem:[%s164 + $0x580] sm:$0xff]
        %v392 = vld [vmem:[%s164 + $0x588] sm:$0xff]
        %v393 = vld [vmem:[%s164 + $0x590] sm:$0xff]
        %v394 = vld [vmem:[%s164 + $0x598] sm:$0xff]
        %v395 = vld [vmem:[%s164 + $0x5a0] sm:$0xff]
        %v396 = vld [vmem:[%s164 + $0x5a8] sm:$0xff]
        %v397 = vld [vmem:[%s164 + $0x5b0] sm:$0xff]
        %v398 = vld [vmem:[%s164 + $0x5b8] sm:$0xff]
        %v399 = vld [vmem:[%s164 + $0x5c0] sm:$0xff]
        %v400 = vld [vmem:[%s164 + $0x5c8] sm:$0xff]
        %v401 = vld [vmem:[%s164 + $0x5d0] sm:$0xff]
        %v402 = vld [vmem:[%s164 + $0x5d8] sm:$0xff]
        %v403 = vld [vmem:[%s164 + $0x5e0] sm:$0xff]
        %v404 = vld [vmem:[%s164 + $0x5e8] sm:$0xff]
        %v405 = vld [vmem:[%s164 + $0x5f0] sm:$0xff]
        %v406 = vld [vmem:[%s164 + $0x5f8] sm:$0xff]
        %v407 = vld [vmem:[%s164 + $0x600] sm:$0xff]
        %v408 = vld [vmem:[%s164 + $0x608] sm:$0xff]
        %v409 = vld [vmem:[%s164 + $0x610] sm:$0xff]
        %v410 = vld [vmem:[%s164 + $0x618] sm:$0xff]
        %v411 = vld [vmem:[%s164 + $0x620] sm:$0xff]
        %v412 = vld [vmem:[%s164 + $0x628] sm:$0xff]
        %v413 = vld [vmem:[%s164 + $0x630] sm:$0xff]
        %v414 = vld [vmem:[%s164 + $0x638] sm:$0xff]
        %v415 = vld [vmem:[%s164 + $0x640] sm:$0xff]
        %v416 = vld [vmem:[%s164 + $0x648] sm:$0xff]
        %v417 = vld [vmem:[%s164 + $0x650] sm:$0xff]
        %v418 = vld [vmem:[%s164 + $0x658] sm:$0xff]
        %v419 = vld [vmem:[%s164 + $0x660] sm:$0xff]
        %v420 = vld [vmem:[%s164 + $0x668] sm:$0xff]
        %v421 = vld [vmem:[%s164 + $0x670] sm:$0xff]
        %v422 = vld [vmem:[%s164 + $0x678] sm:$0xff]
        %v423 = vld [vmem:[%s164 + $0x680] sm:$0xff]
        %v424 = vld [vmem:[%s164 + $0x688] sm:$0xff]
        %v425 = vld [vmem:[%s164 + $0x690] sm:$0xff]
        %v426 = vld [vmem:[%s164 + $0x698] sm:$0xff]
        %v427 = vld [vmem:[%s164 + $0x6a0] sm:$0xff]
        %v428 = vld [vmem:[%s164 + $0x6a8] sm:$0xff]
        %v429 = vld [vmem:[%s164 + $0x6b0] sm:$0xff]
        %v430 = vld [vmem:[%s164 + $0x6b8] sm:$0xff]
        %v431 = vld [vmem:[%s164 + $0x6c0] sm:$0xff]
        %v432 = vld [vmem:[%s164 + $0x6c8] sm:$0xff]
        %v433 = vld [vmem:[%s164 + $0x6d0] sm:$0xff]
        %v434 = vld [vmem:[%s164 + $0x6d8] sm:$0xff]
        %v435 = vld [vmem:[%s164 + $0x6e0] sm:$0xff]
        %v436 = vld [vmem:[%s164 + $0x6e8] sm:$0xff]
        %v437 = vld [vmem:[%s164 + $0x6f0] sm:$0xff]
        %v438 = vld [vmem:[%s164 + $0x6f8] sm:$0xff]
        %v439 = vld [vmem:[%s164 + $0x700] sm:$0xff]
        %v440 = vld [vmem:[%s164 + $0x708] sm:$0xff]
        %v441 = vld [vmem:[%s164 + $0x710] sm:$0xff]
        %v442 = vld [vmem:[%s164 + $0x718] sm:$0xff]
        %v443 = vld [vmem:[%s164 + $0x720] sm:$0xff]
        %v444 = vld [vmem:[%s164 + $0x728] sm:$0xff]
        %v445 = vld [vmem:[%s164 + $0x730] sm:$0xff]
        %v446 = vld [vmem:[%s164 + $0x738] sm:$0xff]
        %v447 = vld [vmem:[%s164 + $0x740] sm:$0xff]
        %v448 = vld [vmem:[%s164 + $0x748] sm:$0xff]
        %v449 = vld [vmem:[%s164 + $0x750] sm:$0xff]
        %v450 = vld [vmem:[%s164 + $0x758] sm:$0xff]
        %v451 = vld [vmem:[%s164 + $0x760] sm:$0xff]
        %v452 = vld [vmem:[%s164 + $0x768] sm:$0xff]
        %v453 = vld [vmem:[%s164 + $0x770] sm:$0xff]
        %v454 = vld [vmem:[%s164 + $0x778] sm:$0xff]
        %v455 = vld [vmem:[%s164 + $0x780] sm:$0xff]
        %v456 = vld [vmem:[%s164 + $0x788] sm:$0xff]
        %v457 = vld [vmem:[%s164 + $0x790] sm:$0xff]
        %v458 = vld [vmem:[%s164 + $0x798] sm:$0xff]
        %v459 = vld [vmem:[%s164 + $0x7a0] sm:$0xff]
        %v460 = vld [vmem:[%s164 + $0x7a8] sm:$0xff]
        %v461 = vld [vmem:[%s164 + $0x7b0] sm:$0xff]
        %v462 = vld [vmem:[%s164 + $0x7b8] sm:$0xff]
        %v463 = vld [vmem:[%s164 + $0x7c0] sm:$0xff]
        %v464 = vld [vmem:[%s164 + $0x7c8] sm:$0xff]
        %v465 = vld [vmem:[%s164 + $0x7d0] sm:$0xff]
        %v466 = vld [vmem:[%s164 + $0x7d8] sm:$0xff]
        %v467 = vld [vmem:[%s164 + $0x7e0] sm:$0xff]
        %v468 = vld [vmem:[%s164 + $0x7e8] sm:$0xff]
        %v469 = vld [vmem:[%s164 + $0x7f0] sm:$0xff]
        %v470 = vld [vmem:[%s164 + $0x7f8] sm:$0xff]
        %v471 = vld [vmem:[%s164 + $0x800] sm:$0xff]
        %v472 = vld [vmem:[%s164 + $0x808] sm:$0xff]
        %v473 = vld [vmem:[%s164 + $0x810] sm:$0xff]
        %v474 = vld [vmem:[%s164 + $0x818] sm:$0xff]
        %v475 = vld [vmem:[%s164 + $0x820] sm:$0xff]
        %v476 = vld [vmem:[%s164 + $0x828] sm:$0xff]
        %v477 = vld [vmem:[%s164 + $0x830] sm:$0xff]
        %v478 = vld [vmem:[%s164 + $0x838] sm:$0xff]
        %v479 = vld [vmem:[%s164 + $0x840] sm:$0xff]
        %v480 = vld [vmem:[%s164 + $0x848] sm:$0xff]
        %v481 = vld [vmem:[%s164 + $0x850] sm:$0xff]
        %v482 = vld [vmem:[%s164 + $0x858] sm:$0xff]
        %v483 = vld [vmem:[%s164 + $0x860] sm:$0xff]
        %v484 = vld [vmem:[%s164 + $0x868] sm:$0xff]
        %v485 = vld [vmem:[%s164 + $0x870] sm:$0xff]
        %v486 = vld [vmem:[%s164 + $0x878] sm:$0xff]
        %v487 = vld [vmem:[%s164 + $0x880] sm:$0xff]
        %v488 = vld [vmem:[%s164 + $0x888] sm:$0xff]
        %v489 = vld [vmem:[%s164 + $0x890] sm:$0xff]
        %v490 = vld [vmem:[%s164 + $0x898] sm:$0xff]
        %v491 = vld [vmem:[%s164 + $0x8a0] sm:$0xff]
        %v492 = vld [vmem:[%s164 + $0x8a8] sm:$0xff]
        %v493 = vld [vmem:[%s164 + $0x8b0] sm:$0xff]
        %v494 = vld [vmem:[%s164 + $0x8b8] sm:$0xff]
        %v495 = vld [vmem:[%s164 + $0x8c0] sm:$0xff]
        %v496 = vld [vmem:[%s164 + $0x8c8] sm:$0xff]
        %v497 = vld [vmem:[%s164 + $0x8d0] sm:$0xff]
        %v498 = vld [vmem:[%s164 + $0x8d8] sm:$0xff]
        %v499 = vld [vmem:[%s164 + $0x8e0] sm:$0xff]
        %v500 = vld [vmem:[%s164 + $0x8e8] sm:$0xff]
        %v501 = vld [vmem:[%s164 + $0x8f0] sm:$0xff]
        %v502 = vld [vmem:[%s164 + $0x8f8] sm:$0xff]
        %v503 = vld [vmem:[%s164 + $0x900] sm:$0xff]
        %v504 = vld [vmem:[%s164 + $0x908] sm:$0xff]
        %v505 = vld [vmem:[%s164 + $0x910] sm:$0xff]
        %v506 = vld [vmem:[%s164 + $0x918] sm:$0xff]
        %v507 = vld [vmem:[%s164 + $0x920] sm:$0xff]
        %v508 = vld [vmem:[%s164 + $0x928] sm:$0xff]
        %v509 = vld [vmem:[%s164 + $0x930] sm:$0xff]
        %v510 = vld [vmem:[%s164 + $0x938] sm:$0xff]
        %v511 = vld [vmem:[%s164 + $0x940] sm:$0xff]
        %v512 = vld [vmem:[%s164 + $0x948] sm:$0xff]
        %v513 = vld [vmem:[%s164 + $0x950] sm:$0xff]
        %v514 = vld [vmem:[%s164 + $0x958] sm:$0xff]
        %v515 = vld [vmem:[%s164 + $0x960] sm:$0xff]
        %v516 = vld [vmem:[%s164 + $0x968] sm:$0xff]
        %v517 = vld [vmem:[%s164 + $0x970] sm:$0xff]
        %v518 = vld [vmem:[%s164 + $0x978] sm:$0xff]
        %v519 = vld [vmem:[%s164 + $0x980] sm:$0xff]
        %v520 = vld [vmem:[%s164 + $0x988] sm:$0xff]
        %v521 = vld [vmem:[%s164 + $0x990] sm:$0xff]
        %v522 = vld [vmem:[%s164 + $0x998] sm:$0xff]
        %v523 = vld [vmem:[%s164 + $0x9a0] sm:$0xff]
        %v524 = vld [vmem:[%s164 + $0x9a8] sm:$0xff]
        %v525 = vld [vmem:[%s164 + $0x9b0] sm:$0xff]
        %v526 = vld [vmem:[%s164 + $0x9b8] sm:$0xff]
        %v527 = vld [vmem:[%s164 + $0x9c0] sm:$0xff]
        %v528 = vld [vmem:[%s164 + $0x9c8] sm:$0xff]
        %v529 = vld [vmem:[%s164 + $0x9d0] sm:$0xff]
        %v530 = vld [vmem:[%s164 + $0x9d8] sm:$0xff]
        %v531 = vld [vmem:[%s164 + $0x9e0] sm:$0xff]
        %v532 = vld [vmem:[%s164 + $0x9e8] sm:$0xff]
        %v533 = vld [vmem:[%s164 + $0x9f0] sm:$0xff]
        %v534 = vld [vmem:[%s164 + $0x9f8] sm:$0xff]
        %v535 = vld [vmem:[%s164 + $0xa00] sm:$0xff]
        %v536 = vld [vmem:[%s164 + $0xa08] sm:$0xff]
        %v537 = vld [vmem:[%s164 + $0xa10] sm:$0xff]
        %v538 = vld [vmem:[%s164 + $0xa18] sm:$0xff]
        %v539 = vld [vmem:[%s164 + $0xa20] sm:$0xff]
        %v540 = vld [vmem:[%s164 + $0xa28] sm:$0xff]
        %v541 = vld [vmem:[%s164 + $0xa30] sm:$0xff]
        %v542 = vld [vmem:[%s164 + $0xa38] sm:$0xff]
        %v543 = vld [vmem:[%s164 + $0xa40] sm:$0xff]
        %v544 = vld [vmem:[%s164 + $0xa48] sm:$0xff]
        %v545 = vld [vmem:[%s164 + $0xa50] sm:$0xff]
        %v546 = vld [vmem:[%s164 + $0xa58] sm:$0xff]
        %v547 = vld [vmem:[%s164 + $0xa60] sm:$0xff]
        %v548 = vld [vmem:[%s164 + $0xa68] sm:$0xff]
        %v549 = vld [vmem:[%s164 + $0xa70] sm:$0xff]
        %v550 = vld [vmem:[%s164 + $0xa78] sm:$0xff]
        %v551 = vld [vmem:[%s164 + $0xa80] sm:$0xff]
        %v552 = vld [vmem:[%s164 + $0xa88] sm:$0xff]
        %v553 = vld [vmem:[%s164 + $0xa90] sm:$0xff]
        %v554 = vld [vmem:[%s164 + $0xa98] sm:$0xff]
        %v555 = vld [vmem:[%s164 + $0xaa0] sm:$0xff]
        %v556 = vld [vmem:[%s164 + $0xaa8] sm:$0xff]
        %v557 = vld [vmem:[%s164 + $0xab0] sm:$0xff]
        %v558 = vld [vmem:[%s164 + $0xab8] sm:$0xff]
        %v559 = vld [vmem:[%s164 + $0xac0] sm:$0xff]
        %v560 = vld [vmem:[%s164 + $0xac8] sm:$0xff]
        %v561 = vld [vmem:[%s164 + $0xad0] sm:$0xff]
        %v562 = vld [vmem:[%s164 + $0xad8] sm:$0xff]
        %v563 = vld [vmem:[%s164 + $0xae0] sm:$0xff]
        %v564 = vld [vmem:[%s164 + $0xae8] sm:$0xff]
        %v565 = vld [vmem:[%s164 + $0xaf0] sm:$0xff]
        %v566 = vld [vmem:[%s164 + $0xaf8] sm:$0xff]
        %v567 = vld [vmem:[%s164 + $0xb00] sm:$0xff]
        %v568 = vld [vmem:[%s164 + $0xb08] sm:$0xff]
        %v569 = vld [vmem:[%s164 + $0xb10] sm:$0xff]
        %v570 = vld [vmem:[%s164 + $0xb18] sm:$0xff]
        %v571 = vld [vmem:[%s164 + $0xb20] sm:$0xff]
        %v572 = vld [vmem:[%s164 + $0xb28] sm:$0xff]
        %v573 = vld [vmem:[%s164 + $0xb30] sm:$0xff]
        %v574 = vld [vmem:[%s164 + $0xb38] sm:$0xff]
        %v575 = vld [vmem:[%s164 + $0xb40] sm:$0xff]
        %v576 = vld [vmem:[%s164 + $0xb48] sm:$0xff]
        %v577 = vld [vmem:[%s164 + $0xb50] sm:$0xff]
        %v578 = vld [vmem:[%s164 + $0xb58] sm:$0xff]
        %v579 = vld [vmem:[%s164 + $0xb60] sm:$0xff]
        %v580 = vld [vmem:[%s164 + $0xb68] sm:$0xff]
        %v581 = vld [vmem:[%s164 + $0xb70] sm:$0xff]
        %v582 = vld [vmem:[%s164 + $0xb78] sm:$0xff]
        %v583 = vld [vmem:[%s164 + $0xb80] sm:$0xff]
        %v584 = vld [vmem:[%s164 + $0xb88] sm:$0xff]
        %v585 = vld [vmem:[%s164 + $0xb90] sm:$0xff]
        %v586 = vld [vmem:[%s164 + $0xb98] sm:$0xff]
        %v587 = vld [vmem:[%s164 + $0xba0] sm:$0xff]
        %v588 = vld [vmem:[%s164 + $0xba8] sm:$0xff]
        %v589 = vld [vmem:[%s164 + $0xbb0] sm:$0xff]
        %v590 = vld [vmem:[%s164 + $0xbb8] sm:$0xff]
        %v591 = vld [vmem:[%s164 + $0xbc0] sm:$0xff]
        %v592 = vld [vmem:[%s164 + $0xbc8] sm:$0xff]
        %v593 = vld [vmem:[%s164 + $0xbd0] sm:$0xff]
        %v594 = vld [vmem:[%s164 + $0xbd8] sm:$0xff]
        %v595 = vld [vmem:[%s164 + $0xbe0] sm:$0xff]
        %v596 = vld [vmem:[%s164 + $0xbe8] sm:$0xff]
        %v597 = vld [vmem:[%s164 + $0xbf0] sm:$0xff]
        %v598 = vld [vmem:[%s164 + $0xbf8] sm:$0xff]
        %v599 = vld [vmem:[%s164 + $0xc00] sm:$0xff]
        %v600 = vld [vmem:[%s164 + $0xc08] sm:$0xff]
        %v601 = vld [vmem:[%s164 + $0xc10] sm:$0xff]
        %v602 = vld [vmem:[%s164 + $0xc18] sm:$0xff]
        %v603 = vld [vmem:[%s164 + $0xc20] sm:$0xff]
        %v604 = vld [vmem:[%s164 + $0xc28] sm:$0xff]
        %v605 = vld [vmem:[%s164 + $0xc30] sm:$0xff]
        %v606 = vld [vmem:[%s164 + $0xc38] sm:$0xff]
        %v607 = vld [vmem:[%s164 + $0xc40] sm:$0xff]
        %v608 = vld [vmem:[%s164 + $0xc48] sm:$0xff]
        %v609 = vld [vmem:[%s164 + $0xc50] sm:$0xff]
        %v610 = vld [vmem:[%s164 + $0xc58] sm:$0xff]
        %v611 = vld [vmem:[%s164 + $0xc60] sm:$0xff]
        %v612 = vld [vmem:[%s164 + $0xc68] sm:$0xff]
        %v613 = vld [vmem:[%s164 + $0xc70] sm:$0xff]
        %v614 = vld [vmem:[%s164 + $0xc78] sm:$0xff]
        %v615 = vld [vmem:[%s164 + $0xc80] sm:$0xff]
        %v616 = vld [vmem:[%s164 + $0xc88] sm:$0xff]
        %v617 = vld [vmem:[%s164 + $0xc90] sm:$0xff]
        %v618 = vld [vmem:[%s164 + $0xc98] sm:$0xff]
        %v619 = vld [vmem:[%s164 + $0xca0] sm:$0xff]
        %v620 = vld [vmem:[%s164 + $0xca8] sm:$0xff]
        %v621 = vld [vmem:[%s164 + $0xcb0] sm:$0xff]
        %v622 = vld [vmem:[%s164 + $0xcb8] sm:$0xff]
        %v623 = vld [vmem:[%s164 + $0xcc0] sm:$0xff]
        %v624 = vld [vmem:[%s164 + $0xcc8] sm:$0xff]
        %v625 = vld [vmem:[%s164 + $0xcd0] sm:$0xff]
        %v626 = vld [vmem:[%s164 + $0xcd8] sm:$0xff]
        %v627 = vld [vmem:[%s164 + $0xce0] sm:$0xff]
        %v628 = vld [vmem:[%s164 + $0xce8] sm:$0xff]
        %v629 = vld [vmem:[%s164 + $0xcf0] sm:$0xff]
        %v630 = vld [vmem:[%s164 + $0xcf8] sm:$0xff]
        %v631 = vld [vmem:[%s164 + $0xd00] sm:$0xff]
        %v632 = vld [vmem:[%s164 + $0xd08] sm:$0xff]
        %v633 = vld [vmem:[%s164 + $0xd10] sm:$0xff]
        %v634 = vld [vmem:[%s164 + $0xd18] sm:$0xff]
        %v635 = vld [vmem:[%s164 + $0xd20] sm:$0xff]
        %v636 = vld [vmem:[%s164 + $0xd28] sm:$0xff]
        %v637 = vld [vmem:[%s164 + $0xd30] sm:$0xff]
        %v638 = vld [vmem:[%s164 + $0xd38] sm:$0xff]
        %v639 = vld [vmem:[%s164 + $0xd40] sm:$0xff]
        %v640 = vld [vmem:[%s164 + $0xd48] sm:$0xff]
        %v641 = vld [vmem:[%s164 + $0xd50] sm:$0xff]
        %v642 = vld [vmem:[%s164 + $0xd58] sm:$0xff]
        %v643 = vld [vmem:[%s164 + $0xd60] sm:$0xff]
        %v644 = vld [vmem:[%s164 + $0xd68] sm:$0xff]
        %v645 = vld [vmem:[%s164 + $0xd70] sm:$0xff]
        %v646 = vld [vmem:[%s164 + $0xd78] sm:$0xff]
        %v647 = vld [vmem:[%s164 + $0xd80] sm:$0xff]
        %v648 = vld [vmem:[%s164 + $0xd88] sm:$0xff]
        %v649 = vld [vmem:[%s164 + $0xd90] sm:$0xff]
        %v650 = vld [vmem:[%s164 + $0xd98] sm:$0xff]
        %v651 = vld [vmem:[%s164 + $0xda0] sm:$0xff]
        %v652 = vld [vmem:[%s164 + $0xda8] sm:$0xff]
        %v653 = vld [vmem:[%s164 + $0xdb0] sm:$0xff]
        %v654 = vld [vmem:[%s164 + $0xdb8] sm:$0xff]
        %v655 = vld [vmem:[%s164 + $0xdc0] sm:$0xff]
        %v656 = vld [vmem:[%s164 + $0xdc8] sm:$0xff]
        %v657 = vld [vmem:[%s164 + $0xdd0] sm:$0xff]
        %v658 = vld [vmem:[%s164 + $0xdd8] sm:$0xff]
        %v659 = vld [vmem:[%s164 + $0xde0] sm:$0xff]
        %v660 = vld [vmem:[%s164 + $0xde8] sm:$0xff]
        %v661 = vld [vmem:[%s164 + $0xdf0] sm:$0xff]
        %v662 = vld [vmem:[%s164 + $0xdf8] sm:$0xff]
        %v663 = vld [vmem:[%s164 + $0xe00] sm:$0xff]
        %v664 = vld [vmem:[%s164 + $0xe08] sm:$0xff]
        %v665 = vld [vmem:[%s164 + $0xe10] sm:$0xff]
        %v666 = vld [vmem:[%s164 + $0xe18] sm:$0xff]
        %v667 = vld [vmem:[%s164 + $0xe20] sm:$0xff]
        %v668 = vld [vmem:[%s164 + $0xe28] sm:$0xff]
        %v669 = vld [vmem:[%s164 + $0xe30] sm:$0xff]
        %v670 = vld [vmem:[%s164 + $0xe38] sm:$0xff]
        %v671 = vld [vmem:[%s164 + $0xe40] sm:$0xff]
        %v672 = vld [vmem:[%s164 + $0xe48] sm:$0xff]
        %v673 = vld [vmem:[%s164 + $0xe50] sm:$0xff]
        %v674 = vld [vmem:[%s164 + $0xe58] sm:$0xff]
        %v675 = vld [vmem:[%s164 + $0xe60] sm:$0xff]
        %v676 = vld [vmem:[%s164 + $0xe68] sm:$0xff]
        %v677 = vld [vmem:[%s164 + $0xe70] sm:$0xff]
        %v678 = vld [vmem:[%s164 + $0xe78] sm:$0xff]
        %v679 = vld [vmem:[%s164 + $0xe80] sm:$0xff]
        %v680 = vld [vmem:[%s164 + $0xe88] sm:$0xff]
        %v681 = vld [vmem:[%s164 + $0xe90] sm:$0xff]
        %v682 = vld [vmem:[%s164 + $0xe98] sm:$0xff]
        %v683 = vld [vmem:[%s164 + $0xea0] sm:$0xff]
        %v684 = vld [vmem:[%s164 + $0xea8] sm:$0xff]
        %v685 = vld [vmem:[%s164 + $0xeb0] sm:$0xff]
        %v686 = vld [vmem:[%s164 + $0xeb8] sm:$0xff]
        %v687 = vld [vmem:[%s164 + $0xec0] sm:$0xff]
        %v688 = vld [vmem:[%s164 + $0xec8] sm:$0xff]
        %v689 = vld [vmem:[%s164 + $0xed0] sm:$0xff]
        %v690 = vld [vmem:[%s164 + $0xed8] sm:$0xff]
        %v691 = vld [vmem:[%s164 + $0xee0] sm:$0xff]
        %v692 = vld [vmem:[%s164 + $0xee8] sm:$0xff]
        %v693 = vld [vmem:[%s164 + $0xef0] sm:$0xff]
        %v694 = vld [vmem:[%s164 + $0xef8] sm:$0xff]
        %v695 = vld [vmem:[%s164 + $0xf00] sm:$0xff]
        %v696 = vld [vmem:[%s164 + $0xf08] sm:$0xff]
        %v697 = vld [vmem:[%s164 + $0xf10] sm:$0xff]
        %v698 = vld [vmem:[%s164 + $0xf18] sm:$0xff]
        %v699 = vld [vmem:[%s164 + $0xf20] sm:$0xff]
        %v700 = vld [vmem:[%s164 + $0xf28] sm:$0xff]
        %v701 = vld [vmem:[%s164 + $0xf30] sm:$0xff]
        %v702 = vld [vmem:[%s164 + $0xf38] sm:$0xff]
        %v703 = vld [vmem:[%s164 + $0xf40] sm:$0xff]
        %v704 = vld [vmem:[%s164 + $0xf48] sm:$0xff]
        %v705 = vld [vmem:[%s164 + $0xf50] sm:$0xff]
        %v706 = vld [vmem:[%s164 + $0xf58] sm:$0xff]
        %v707 = vld [vmem:[%s164 + $0xf60] sm:$0xff]
        %v708 = vld [vmem:[%s164 + $0xf68] sm:$0xff]
        %v709 = vld [vmem:[%s164 + $0xf70] sm:$0xff]
        %v710 = vld [vmem:[%s164 + $0xf78] sm:$0xff]
        %v711 = vld [vmem:[%s164 + $0xf80] sm:$0xff]
        %v712 = vld [vmem:[%s164 + $0xf88] sm:$0xff]
        %v713 = vld [vmem:[%s164 + $0xf90] sm:$0xff]
        %v714 = vld [vmem:[%s164 + $0xf98] sm:$0xff]
        %v715 = vld [vmem:[%s164 + $0xfa0] sm:$0xff]
        %v716 = vld [vmem:[%s164 + $0xfa8] sm:$0xff]
        %v717 = vld [vmem:[%s164 + $0xfb0] sm:$0xff]
        %v718 = vld [vmem:[%s164 + $0xfb8] sm:$0xff]
        %v719 = vld [vmem:[%s164 + $0xfc0] sm:$0xff]
        %v720 = vld [vmem:[%s164 + $0xfc8] sm:$0xff]
        %v721 = vld [vmem:[%s164 + $0xfd0] sm:$0xff]
        %v722 = vld [vmem:[%s164 + $0xfd8] sm:$0xff]
        %v723 = vld [vmem:[%s164 + $0xfe0] sm:$0xff]
        %v724 = vld [vmem:[%s164 + $0xfe8] sm:$0xff]
        %v725 = vld [vmem:[%s164 + $0xff0] sm:$0xff]
        %v726 = vld [vmem:[%s164 + $0xff8] sm:$0xff]
        %v727 = vld [vmem:[%s164 + $0x1000] sm:$0xff]
        %v728 = vld [vmem:[%s164 + $0x1008] sm:$0xff]
        %v729 = vld [vmem:[%s164 + $0x1010] sm:$0xff]
        %v730 = vld [vmem:[%s164 + $0x1018] sm:$0xff]
        %v731 = vld [vmem:[%s164 + $0x1020] sm:$0xff]
        %v732 = vld [vmem:[%s164 + $0x1028] sm:$0xff]
        %v733 = vld [vmem:[%s164 + $0x1030] sm:$0xff]
        %v734 = vld [vmem:[%s164 + $0x1038] sm:$0xff]
        %v735 = vld [vmem:[%s164 + $0x1040] sm:$0xff]
        %v736 = vld [vmem:[%s164 + $0x1048] sm:$0xff]
        %v737 = vld [vmem:[%s164 + $0x1050] sm:$0xff]
        %v738 = vld [vmem:[%s164 + $0x1058] sm:$0xff]
        %v739 = vld [vmem:[%s164 + $0x1060] sm:$0xff]
        %v740 = vld [vmem:[%s164 + $0x1068] sm:$0xff]
        %v741 = vld [vmem:[%s164 + $0x1070] sm:$0xff]
        %v742 = vld [vmem:[%s164 + $0x1078] sm:$0xff]
        %v743 = vld [vmem:[%s164 + $0x1080] sm:$0xff]
        %v744 = vld [vmem:[%s164 + $0x1088] sm:$0xff]
        %v745 = vld [vmem:[%s164 + $0x1090] sm:$0xff]
        %v746 = vld [vmem:[%s164 + $0x1098] sm:$0xff]
        %v747 = vld [vmem:[%s164 + $0x10a0] sm:$0xff]
        %v748 = vld [vmem:[%s164 + $0x10a8] sm:$0xff]
        %v749 = vld [vmem:[%s164 + $0x10b0] sm:$0xff]
        %v750 = vld [vmem:[%s164 + $0x10b8] sm:$0xff]
        %v751 = vld [vmem:[%s164 + $0x10c0] sm:$0xff]
        %v752 = vld [vmem:[%s164 + $0x10c8] sm:$0xff]
        %v753 = vld [vmem:[%s164 + $0x10d0] sm:$0xff]
        %v754 = vld [vmem:[%s164 + $0x10d8] sm:$0xff]
        %v755 = vld [vmem:[%s164 + $0x10e0] sm:$0xff]
        %v756 = vld [vmem:[%s164 + $0x10e8] sm:$0xff]
        %v757 = vld [vmem:[%s164 + $0x10f0] sm:$0xff]
        %v758 = vld [vmem:[%s164 + $0x10f8] sm:$0xff]
        %v759 = vld [vmem:[%s164 + $0x1100] sm:$0xff]
        %v760 = vld [vmem:[%s164 + $0x1108] sm:$0xff]
        %v761 = vld [vmem:[%s164 + $0x1110] sm:$0xff]
        %v762 = vld [vmem:[%s164 + $0x1118] sm:$0xff]
        %v763 = vld [vmem:[%s164 + $0x1120] sm:$0xff]
        %v764 = vld [vmem:[%s164 + $0x1128] sm:$0xff]
        %v765 = vld [vmem:[%s164 + $0x1130] sm:$0xff]
        %v766 = vld [vmem:[%s164 + $0x1138] sm:$0xff]
        %v767 = vld [vmem:[%s164 + $0x1140] sm:$0xff]
        %v768 = vld [vmem:[%s164 + $0x1148] sm:$0xff]
        %v769 = vld [vmem:[%s164 + $0x1150] sm:$0xff]
        %v770 = vld [vmem:[%s164 + $0x1158] sm:$0xff]
        %v771 = vld [vmem:[%s164 + $0x1160] sm:$0xff]
        %v772 = vld [vmem:[%s164 + $0x1168] sm:$0xff]
        %v773 = vld [vmem:[%s164 + $0x1170] sm:$0xff]
        %v774 = vld [vmem:[%s164 + $0x1178] sm:$0xff]
        %v775 = vld [vmem:[%s164 + $0x1180] sm:$0xff]
        %v776 = vld [vmem:[%s164 + $0x1188] sm:$0xff]
        %v777 = vld [vmem:[%s164 + $0x1190] sm:$0xff]
        %v778 = vld [vmem:[%s164 + $0x1198] sm:$0xff]
        %v779 = vld [vmem:[%s164 + $0x11a0] sm:$0xff]
        %v780 = vld [vmem:[%s164 + $0x11a8] sm:$0xff]
        %v781 = vld [vmem:[%s164 + $0x11b0] sm:$0xff]
        %v782 = vld [vmem:[%s164 + $0x11b8] sm:$0xff]
        %v783 = vld [vmem:[%s164 + $0x11c0] sm:$0xff]
        %v784 = vld [vmem:[%s164 + $0x11c8] sm:$0xff]
        %v785 = vld [vmem:[%s164 + $0x11d0] sm:$0xff]
        %v786 = vld [vmem:[%s164 + $0x11d8] sm:$0xff]
        %v787 = vld [vmem:[%s164 + $0x11e0] sm:$0xff]
        %v788 = vld [vmem:[%s164 + $0x11e8] sm:$0xff]
        %v789 = vld [vmem:[%s164 + $0x11f0] sm:$0xff]
        %v790 = vld [vmem:[%s164 + $0x11f8] sm:$0xff]
        %v791 = vld [vmem:[%s164 + $0x1200] sm:$0xff]
        %v792 = vld [vmem:[%s164 + $0x1208] sm:$0xff]
        %v793 = vld [vmem:[%s164 + $0x1210] sm:$0xff]
        %v794 = vld [vmem:[%s164 + $0x1218] sm:$0xff]
        %v795 = vld [vmem:[%s164 + $0x1220] sm:$0xff]
        %v796 = vld [vmem:[%s164 + $0x1228] sm:$0xff]
        %v797 = vld [vmem:[%s164 + $0x1230] sm:$0xff]
        %v798 = vld [vmem:[%s164 + $0x1238] sm:$0xff]
        %v799 = vld [vmem:[%s164 + $0x1240] sm:$0xff]
        %v800 = vld [vmem:[%s164 + $0x1248] sm:$0xff]
        %v801 = vld [vmem:[%s164 + $0x1250] sm:$0xff]
        %v802 = vld [vmem:[%s164 + $0x1258] sm:$0xff]
        %v803 = vld [vmem:[%s164 + $0x1260] sm:$0xff]
        %v804 = vld [vmem:[%s164 + $0x1268] sm:$0xff]
        %v805 = vld [vmem:[%s164 + $0x1270] sm:$0xff]
        %v806 = vld [vmem:[%s164 + $0x1278] sm:$0xff]
        %v807 = vld [vmem:[%s164 + $0x1280] sm:$0xff]
        %v808 = vld [vmem:[%s164 + $0x1288] sm:$0xff]
        %v809 = vld [vmem:[%s164 + $0x1290] sm:$0xff]
        %v810 = vld [vmem:[%s164 + $0x1298] sm:$0xff]
        %v811 = vld [vmem:[%s164 + $0x12a0] sm:$0xff]
        %v812 = vld [vmem:[%s164 + $0x12a8] sm:$0xff]
        %v813 = vld [vmem:[%s164 + $0x12b0] sm:$0xff]
        %v814 = vld [vmem:[%s164 + $0x12b8] sm:$0xff]
        %v815 = vld [vmem:[%s164 + $0x12c0] sm:$0xff]
        %v816 = vld [vmem:[%s164 + $0x12c8] sm:$0xff]
        %v817 = vld [vmem:[%s164 + $0x12d0] sm:$0xff]
        %v818 = vld [vmem:[%s164 + $0x12d8] sm:$0xff]
        %v819 = vld [vmem:[%s164 + $0x12e0] sm:$0xff]
        %v820 = vld [vmem:[%s164 + $0x12e8] sm:$0xff]
        %v821 = vld [vmem:[%s164 + $0x12f0] sm:$0xff]
        %v822 = vld [vmem:[%s164 + $0x12f8] sm:$0xff]
        %v823 = vld [vmem:[%s164 + $0x1300] sm:$0xff]
        %v824 = vld [vmem:[%s164 + $0x1308] sm:$0xff]
        %v825 = vld [vmem:[%s164 + $0x1310] sm:$0xff]
        %v826 = vld [vmem:[%s164 + $0x1318] sm:$0xff]
        %v827 = vld [vmem:[%s164 + $0x1320] sm:$0xff]
        %v828 = vld [vmem:[%s164 + $0x1328] sm:$0xff]
        %v829 = vld [vmem:[%s164 + $0x1330] sm:$0xff]
        %v830 = vld [vmem:[%s164 + $0x1338] sm:$0xff]
        %v831 = vld [vmem:[%s164 + $0x1340] sm:$0xff]
        %v832 = vld [vmem:[%s164 + $0x1348] sm:$0xff]
        %v833 = vld [vmem:[%s164 + $0x1350] sm:$0xff]
        %v834 = vld [vmem:[%s164 + $0x1358] sm:$0xff]
        %v835 = vld [vmem:[%s164 + $0x1360] sm:$0xff]
        %v836 = vld [vmem:[%s164 + $0x1368] sm:$0xff]
        %v837 = vld [vmem:[%s164 + $0x1370] sm:$0xff]
        %v838 = vld [vmem:[%s164 + $0x1378] sm:$0xff]
        %v839 = vld [vmem:[%s164 + $0x1380] sm:$0xff]
        %v840 = vld [vmem:[%s164 + $0x1388] sm:$0xff]
        %v841 = vld [vmem:[%s164 + $0x1390] sm:$0xff]
        %v842 = vld [vmem:[%s164 + $0x1398] sm:$0xff]
        %v843 = vld [vmem:[%s164 + $0x13a0] sm:$0xff]
        %v844 = vld [vmem:[%s164 + $0x13a8] sm:$0xff]
        %v845 = vld [vmem:[%s164 + $0x13b0] sm:$0xff]
        %v846 = vld [vmem:[%s164 + $0x13b8] sm:$0xff]
        %v847 = vld [vmem:[%s164 + $0x13c0] sm:$0xff]
        %v848 = vld [vmem:[%s164 + $0x13c8] sm:$0xff]
        %v849 = vld [vmem:[%s164 + $0x13d0] sm:$0xff]
        %v850 = vld [vmem:[%s164 + $0x13d8] sm:$0xff]
        %v851 = vld [vmem:[%s164 + $0x13e0] sm:$0xff]
        %v852 = vld [vmem:[%s164 + $0x13e8] sm:$0xff]
        %v853 = vld [vmem:[%s164 + $0x13f0] sm:$0xff]
        %v854 = vld [vmem:[%s164 + $0x13f8] sm:$0xff]
        %v855 = vld [vmem:[%s164 + $0x1400] sm:$0xff]
        %v856 = vld [vmem:[%s164 + $0x1408] sm:$0xff]
        %v857 = vld [vmem:[%s164 + $0x1410] sm:$0xff]
        %v858 = vld [vmem:[%s164 + $0x1418] sm:$0xff]
        %v859 = vld [vmem:[%s164 + $0x1420] sm:$0xff]
        %v860 = vld [vmem:[%s164 + $0x1428] sm:$0xff]
        %v861 = vld [vmem:[%s164 + $0x1430] sm:$0xff]
        %v862 = vld [vmem:[%s164 + $0x1438] sm:$0xff]
        %v863 = vld [vmem:[%s164 + $0x1440] sm:$0xff]
        %v864 = vld [vmem:[%s164 + $0x1448] sm:$0xff]
        %v865 = vld [vmem:[%s164 + $0x1450] sm:$0xff]
        %v866 = vld [vmem:[%s164 + $0x1458] sm:$0xff]
        %v867 = vld [vmem:[%s164 + $0x1460] sm:$0xff]
        %v868 = vld [vmem:[%s164 + $0x1468] sm:$0xff]
        %v869 = vld [vmem:[%s164 + $0x1470] sm:$0xff]
        %v870 = vld [vmem:[%s164 + $0x1478] sm:$0xff]
        %v871 = vld [vmem:[%s164 + $0x1480] sm:$0xff]
        %v872 = vld [vmem:[%s164 + $0x1488] sm:$0xff]
        %v873 = vld [vmem:[%s164 + $0x1490] sm:$0xff]
        %v874 = vld [vmem:[%s164 + $0x1498] sm:$0xff]
        %v875 = vld [vmem:[%s164 + $0x14a0] sm:$0xff]
        %v876 = vld [vmem:[%s164 + $0x14a8] sm:$0xff]
        %v877 = vld [vmem:[%s164 + $0x14b0] sm:$0xff]
        %v878 = vld [vmem:[%s164 + $0x14b8] sm:$0xff]
        %v879 = vld [vmem:[%s164 + $0x14c0] sm:$0xff]
        %v880 = vld [vmem:[%s164 + $0x14c8] sm:$0xff]
        %v881 = vld [vmem:[%s164 + $0x14d0] sm:$0xff]
        %v882 = vld [vmem:[%s164 + $0x14d8] sm:$0xff]
        %v883 = vld [vmem:[%s164 + $0x14e0] sm:$0xff]
        %v884 = vld [vmem:[%s164 + $0x14e8] sm:$0xff]
        %v885 = vld [vmem:[%s164 + $0x14f0] sm:$0xff]
        %v886 = vld [vmem:[%s164 + $0x14f8] sm:$0xff]
        %v887 = vld [vmem:[%s164 + $0x1500] sm:$0xff]
        %v888 = vld [vmem:[%s164 + $0x1508] sm:$0xff]
        %v889 = vld [vmem:[%s164 + $0x1510] sm:$0xff]
        %v890 = vld [vmem:[%s164 + $0x1518] sm:$0xff]
        %v891 = vld [vmem:[%s164 + $0x1520] sm:$0xff]
        %v892 = vld [vmem:[%s164 + $0x1528] sm:$0xff]
        %v893 = vld [vmem:[%s164 + $0x1530] sm:$0xff]
        %v894 = vld [vmem:[%s164 + $0x1538] sm:$0xff]
        %v895 = vld [vmem:[%s164 + $0x1540] sm:$0xff]
        %v896 = vld [vmem:[%s164 + $0x1548] sm:$0xff]
        %v897 = vld [vmem:[%s164 + $0x1550] sm:$0xff]
        %v898 = vld [vmem:[%s164 + $0x1558] sm:$0xff]
        %v899 = vld [vmem:[%s164 + $0x1560] sm:$0xff]
        %v900 = vld [vmem:[%s164 + $0x1568] sm:$0xff]
        %v901 = vld [vmem:[%s164 + $0x1570] sm:$0xff]
        %v902 = vld [vmem:[%s164 + $0x1578] sm:$0xff]
        %v903 = vld [vmem:[%s164 + $0x1580] sm:$0xff]
        %v904 = vld [vmem:[%s164 + $0x1588] sm:$0xff]
        %v905 = vld [vmem:[%s164 + $0x1590] sm:$0xff]
        %v906 = vld [vmem:[%s164 + $0x1598] sm:$0xff]
        %v907 = vld [vmem:[%s164 + $0x15a0] sm:$0xff]
        %v908 = vld [vmem:[%s164 + $0x15a8] sm:$0xff]
        %v909 = vld [vmem:[%s164 + $0x15b0] sm:$0xff]
        %v910 = vld [vmem:[%s164 + $0x15b8] sm:$0xff]
        %v911 = vld [vmem:[%s164 + $0x15c0] sm:$0xff]
        %v912 = vld [vmem:[%s164 + $0x15c8] sm:$0xff]
        %v913 = vld [vmem:[%s164 + $0x15d0] sm:$0xff]
        %v914 = vld [vmem:[%s164 + $0x15d8] sm:$0xff]
        %v915 = vld [vmem:[%s164 + $0x15e0] sm:$0xff]
        %v916 = vld [vmem:[%s164 + $0x15e8] sm:$0xff]
        %v917 = vld [vmem:[%s164 + $0x15f0] sm:$0xff]
        %v918 = vld [vmem:[%s164 + $0x15f8] sm:$0xff]
        %v919 = vld [vmem:[%s164 + $0x1600] sm:$0xff]
        %v920 = vld [vmem:[%s164 + $0x1608] sm:$0xff]
        %v921 = vld [vmem:[%s164 + $0x1610] sm:$0xff]
        %v922 = vld [vmem:[%s164 + $0x1618] sm:$0xff]
        %v923 = vld [vmem:[%s164 + $0x1620] sm:$0xff]
        %v924 = vld [vmem:[%s164 + $0x1628] sm:$0xff]
        %v925 = vld [vmem:[%s164 + $0x1630] sm:$0xff]
        %v926 = vld [vmem:[%s164 + $0x1638] sm:$0xff]
        %v927 = vld [vmem:[%s164 + $0x1640] sm:$0xff]
        %v928 = vld [vmem:[%s164 + $0x1648] sm:$0xff]
        %v929 = vld [vmem:[%s164 + $0x1650] sm:$0xff]
        %v930 = vld [vmem:[%s164 + $0x1658] sm:$0xff]
        %v931 = vld [vmem:[%s164 + $0x1660] sm:$0xff]
        %v932 = vld [vmem:[%s164 + $0x1668] sm:$0xff]
        %v933 = vld [vmem:[%s164 + $0x1670] sm:$0xff]
        %v934 = vld [vmem:[%s164 + $0x1678] sm:$0xff]
        %v935 = vld [vmem:[%s164 + $0x1680] sm:$0xff]
        %v936 = vld [vmem:[%s164 + $0x1688] sm:$0xff]
        %v937 = vld [vmem:[%s164 + $0x1690] sm:$0xff]
        %v938 = vld [vmem:[%s164 + $0x1698] sm:$0xff]
        %v939 = vld [vmem:[%s164 + $0x16a0] sm:$0xff]
        %v940 = vld [vmem:[%s164 + $0x16a8] sm:$0xff]
        %v941 = vld [vmem:[%s164 + $0x16b0] sm:$0xff]
        %v942 = vld [vmem:[%s164 + $0x16b8] sm:$0xff]
        %v943 = vld [vmem:[%s164 + $0x16c0] sm:$0xff]
        %v944 = vld [vmem:[%s164 + $0x16c8] sm:$0xff]
        %v945 = vld [vmem:[%s164 + $0x16d0] sm:$0xff]
        %v946 = vld [vmem:[%s164 + $0x16d8] sm:$0xff]
        %v947 = vld [vmem:[%s164 + $0x16e0] sm:$0xff]
        %v948 = vld [vmem:[%s164 + $0x16e8] sm:$0xff]
        %v949 = vld [vmem:[%s164 + $0x16f0] sm:$0xff]
        %v950 = vld [vmem:[%s164 + $0x16f8] sm:$0xff]
        %v951 = vld [vmem:[%s164 + $0x1700] sm:$0xff]
        %v952 = vld [vmem:[%s164 + $0x1708] sm:$0xff]
        %v953 = vld [vmem:[%s164 + $0x1710] sm:$0xff]
        %v954 = vld [vmem:[%s164 + $0x1718] sm:$0xff]
        %v955 = vld [vmem:[%s164 + $0x1720] sm:$0xff]
        %v956 = vld [vmem:[%s164 + $0x1728] sm:$0xff]
        %v957 = vld [vmem:[%s164 + $0x1730] sm:$0xff]
        %v958 = vld [vmem:[%s164 + $0x1738] sm:$0xff]
        %v959 = vld [vmem:[%s164 + $0x1740] sm:$0xff]
        %v960 = vld [vmem:[%s164 + $0x1748] sm:$0xff]
        %v961 = vld [vmem:[%s164 + $0x1750] sm:$0xff]
        %v962 = vld [vmem:[%s164 + $0x1758] sm:$0xff]
        %v963 = vld [vmem:[%s164 + $0x1760] sm:$0xff]
        %v964 = vld [vmem:[%s164 + $0x1768] sm:$0xff]
        %v965 = vld [vmem:[%s164 + $0x1770] sm:$0xff]
        %v966 = vld [vmem:[%s164 + $0x1778] sm:$0xff]
        %v967 = vld [vmem:[%s164 + $0x1780] sm:$0xff]
        %v968 = vld [vmem:[%s164 + $0x1788] sm:$0xff]
        %v969 = vld [vmem:[%s164 + $0x1790] sm:$0xff]
        %v970 = vld [vmem:[%s164 + $0x1798] sm:$0xff]
        %v971 = vld [vmem:[%s164 + $0x17a0] sm:$0xff]
        %v972 = vld [vmem:[%s164 + $0x17a8] sm:$0xff]
        %v973 = vld [vmem:[%s164 + $0x17b0] sm:$0xff]
        %v974 = vld [vmem:[%s164 + $0x17b8] sm:$0xff]
        %v975 = vld [vmem:[%s164 + $0x17c0] sm:$0xff]
        %v976 = vld [vmem:[%s164 + $0x17c8] sm:$0xff]
        %v977 = vld [vmem:[%s164 + $0x17d0] sm:$0xff]
        %v978 = vld [vmem:[%s164 + $0x17d8] sm:$0xff]
        %v979 = vld [vmem:[%s164 + $0x17e0] sm:$0xff]
        %v980 = vld [vmem:[%s164 + $0x17e8] sm:$0xff]
        %v981 = vld [vmem:[%s164 + $0x17f0] sm:$0xff]
        %v982 = vld [vmem:[%s164 + $0x17f8] sm:$0xff]
        %v983 = vld [vmem:[%s164 + $0x1800] sm:$0xff]
        %v984 = vld [vmem:[%s164 + $0x1808] sm:$0xff]
        %v985 = vld [vmem:[%s164 + $0x1810] sm:$0xff]
        %v986 = vld [vmem:[%s164 + $0x1818] sm:$0xff]
        %v987 = vld [vmem:[%s164 + $0x1820] sm:$0xff]
        %v988 = vld [vmem:[%s164 + $0x1828] sm:$0xff]
        %v989 = vld [vmem:[%s164 + $0x1830] sm:$0xff]
        %v990 = vld [vmem:[%s164 + $0x1838] sm:$0xff]
        %v991 = vld [vmem:[%s164 + $0x1840] sm:$0xff]
        %v992 = vld [vmem:[%s164 + $0x1848] sm:$0xff]
        %v993 = vld [vmem:[%s164 + $0x1850] sm:$0xff]
        %v994 = vld [vmem:[%s164 + $0x1858] sm:$0xff]
        %v995 = vld [vmem:[%s164 + $0x1860] sm:$0xff]
        %v996 = vld [vmem:[%s164 + $0x1868] sm:$0xff]
        %v997 = vld [vmem:[%s164 + $0x1870] sm:$0xff]
        %v998 = vld [vmem:[%s164 + $0x1878] sm:$0xff]
        %v999 = vld [vmem:[%s164 + $0x1880] sm:$0xff]
        %v1000 = vld [vmem:[%s164 + $0x1888] sm:$0xff]
        %v1001 = vld [vmem:[%s164 + $0x1890] sm:$0xff]
        %v1002 = vld [vmem:[%s164 + $0x1898] sm:$0xff]
        %v1003 = vld [vmem:[%s164 + $0x18a0] sm:$0xff]
        %v1004 = vld [vmem:[%s164 + $0x18a8] sm:$0xff]
        %v1005 = vld [vmem:[%s164 + $0x18b0] sm:$0xff]
        %v1006 = vld [vmem:[%s164 + $0x18b8] sm:$0xff]
        %v1007 = vld [vmem:[%s164 + $0x18c0] sm:$0xff]
        %v1008 = vld [vmem:[%s164 + $0x18c8] sm:$0xff]
        %v1009 = vld [vmem:[%s164 + $0x18d0] sm:$0xff]
        %v1010 = vld [vmem:[%s164 + $0x18d8] sm:$0xff]
        %v1011 = vld [vmem:[%s164 + $0x18e0] sm:$0xff]
        %v1012 = vld [vmem:[%s164 + $0x18e8] sm:$0xff]
        %v1013 = vld [vmem:[%s164 + $0x18f0] sm:$0xff]
        %v1014 = vld [vmem:[%s164 + $0x18f8] sm:$0xff]
        %v1015 = vld [vmem:[%s164 + $0x1900] sm:$0xff]
        %v1016 = vld [vmem:[%s164 + $0x1908] sm:$0xff]
        %v1017 = vld [vmem:[%s164 + $0x1910] sm:$0xff]
        %v1018 = vld [vmem:[%s164 + $0x1918] sm:$0xff]
        %v1019 = vld [vmem:[%s164 + $0x1920] sm:$0xff]
        %v1020 = vld [vmem:[%s164 + $0x1928] sm:$0xff]
        %v1021 = vld [vmem:[%s164 + $0x1930] sm:$0xff]
        %v1022 = vld [vmem:[%s164 + $0x1938] sm:$0xff]
        %v1023 = vld [vmem:[%s164 + $0x1940] sm:$0xff]
        %v1024 = vld [vmem:[%s164 + $0x1948] sm:$0xff]
        %v1025 = vld [vmem:[%s164 + $0x1950] sm:$0xff]
        %v1026 = vld [vmem:[%s164 + $0x1958] sm:$0xff]
        %v1027 = vld [vmem:[%s164 + $0x1960] sm:$0xff]
        %v1028 = vld [vmem:[%s164 + $0x1968] sm:$0xff]
        %v1029 = vld [vmem:[%s164 + $0x1970] sm:$0xff]
        %v1030 = vld [vmem:[%s164 + $0x1978] sm:$0xff]
        %v1031 = vld [vmem:[%s164 + $0x1980] sm:$0xff]
        %v1032 = vld [vmem:[%s164 + $0x1988] sm:$0xff]
        %v1033 = vld [vmem:[%s164 + $0x1990] sm:$0xff]
        %v1034 = vld [vmem:[%s164 + $0x1998] sm:$0xff]
        %v1035 = vld [vmem:[%s164 + $0x19a0] sm:$0xff]
        %v1036 = vld [vmem:[%s164 + $0x19a8] sm:$0xff]
        %v1037 = vld [vmem:[%s164 + $0x19b0] sm:$0xff]
        %v1038 = vld [vmem:[%s164 + $0x19b8] sm:$0xff]
        %v1039 = vld [vmem:[%s164 + $0x19c0] sm:$0xff]
        %v1040 = vld [vmem:[%s164 + $0x19c8] sm:$0xff]
        %v1041 = vld [vmem:[%s164 + $0x19d0] sm:$0xff]
        %v1042 = vld [vmem:[%s164 + $0x19d8] sm:$0xff]
        %v1043 = vld [vmem:[%s164 + $0x19e0] sm:$0xff]
        %v1044 = vld [vmem:[%s164 + $0x19e8] sm:$0xff]
        %v1045 = vld [vmem:[%s164 + $0x19f0] sm:$0xff]
        %v1046 = vld [vmem:[%s164 + $0x19f8] sm:$0xff]
        %v1047 = vld [vmem:[%s164 + $0x1a00] sm:$0xff]
        %v1048 = vld [vmem:[%s164 + $0x1a08] sm:$0xff]
        %v1049 = vld [vmem:[%s164 + $0x1a10] sm:$0xff]
        %v1050 = vld [vmem:[%s164 + $0x1a18] sm:$0xff]
        %v1051 = vld [vmem:[%s164 + $0x1a20] sm:$0xff]
        %v1052 = vld [vmem:[%s164 + $0x1a28] sm:$0xff]
        %v1053 = vld [vmem:[%s164 + $0x1a30] sm:$0xff]
        %v1054 = vld [vmem:[%s164 + $0x1a38] sm:$0xff]
        %v1055 = vld [vmem:[%s164 + $0x1a40] sm:$0xff]
        %v1056 = vld [vmem:[%s164 + $0x1a48] sm:$0xff]
        %v1057 = vld [vmem:[%s164 + $0x1a50] sm:$0xff]
        %v1058 = vld [vmem:[%s164 + $0x1a58] sm:$0xff]
        %v1059 = vld [vmem:[%s164 + $0x1a60] sm:$0xff]
        %v1060 = vld [vmem:[%s164 + $0x1a68] sm:$0xff]
        %v1061 = vld [vmem:[%s164 + $0x1a70] sm:$0xff]
        %v1062 = vld [vmem:[%s164 + $0x1a78] sm:$0xff]
        %v1063 = vld [vmem:[%s164 + $0x1a80] sm:$0xff]
        %v1064 = vld [vmem:[%s164 + $0x1a88] sm:$0xff]
        %v1065 = vld [vmem:[%s164 + $0x1a90] sm:$0xff]
        %v1066 = vld [vmem:[%s164 + $0x1a98] sm:$0xff]
        %v1067 = vld [vmem:[%s164 + $0x1aa0] sm:$0xff]
        %v1068 = vld [vmem:[%s164 + $0x1aa8] sm:$0xff]
        %v1069 = vld [vmem:[%s164 + $0x1ab0] sm:$0xff]
        %v1070 = vld [vmem:[%s164 + $0x1ab8] sm:$0xff]
        %v1071 = vld [vmem:[%s164 + $0x1ac0] sm:$0xff]
        %v1072 = vld [vmem:[%s164 + $0x1ac8] sm:$0xff]
        %v1073 = vld [vmem:[%s164 + $0x1ad0] sm:$0xff]
        %v1074 = vld [vmem:[%s164 + $0x1ad8] sm:$0xff]
        %v1075 = vld [vmem:[%s164 + $0x1ae0] sm:$0xff]
        %v1076 = vld [vmem:[%s164 + $0x1ae8] sm:$0xff]
        %v1077 = vld [vmem:[%s164 + $0x1af0] sm:$0xff]
        %v1078 = vld [vmem:[%s164 + $0x1af8] sm:$0xff]
        %v1079 = vld [vmem:[%s164 + $0x1b00] sm:$0xff]
        %v1080 = vld [vmem:[%s164 + $0x1b08] sm:$0xff]
        %v1081 = vld [vmem:[%s164 + $0x1b10] sm:$0xff]
        %v1082 = vld [vmem:[%s164 + $0x1b18] sm:$0xff]
        %v1083 = vld [vmem:[%s164 + $0x1b20] sm:$0xff]
        %v1084 = vld [vmem:[%s164 + $0x1b28] sm:$0xff]
        %v1085 = vld [vmem:[%s164 + $0x1b30] sm:$0xff]
        %v1086 = vld [vmem:[%s164 + $0x1b38] sm:$0xff]
        %v1087 = vld [vmem:[%s164 + $0x1b40] sm:$0xff]
        %v1088 = vld [vmem:[%s164 + $0x1b48] sm:$0xff]
        %v1089 = vld [vmem:[%s164 + $0x1b50] sm:$0xff]
        %v1090 = vld [vmem:[%s164 + $0x1b58] sm:$0xff]
        %v1091 = vld [vmem:[%s164 + $0x1b60] sm:$0xff]
        %v1092 = vld [vmem:[%s164 + $0x1b68] sm:$0xff]
        %v1093 = vld [vmem:[%s164 + $0x1b70] sm:$0xff]
        %v1094 = vld [vmem:[%s164 + $0x1b78] sm:$0xff]
        %v1095 = vld [vmem:[%s164 + $0x1b80] sm:$0xff]
        %v1096 = vld [vmem:[%s164 + $0x1b88] sm:$0xff]
        %v1097 = vld [vmem:[%s164 + $0x1b90] sm:$0xff]
        %v1098 = vld [vmem:[%s164 + $0x1b98] sm:$0xff]
        %v1099 = vld [vmem:[%s164 + $0x1ba0] sm:$0xff]
        %v1100 = vld [vmem:[%s164 + $0x1ba8] sm:$0xff]
        %v1101 = vld [vmem:[%s164 + $0x1bb0] sm:$0xff]
        %v1102 = vld [vmem:[%s164 + $0x1bb8] sm:$0xff]
        %v1103 = vld [vmem:[%s164 + $0x1bc0] sm:$0xff]
        %v1104 = vld [vmem:[%s164 + $0x1bc8] sm:$0xff]
        %v1105 = vld [vmem:[%s164 + $0x1bd0] sm:$0xff]
        %v1106 = vld [vmem:[%s164 + $0x1bd8] sm:$0xff]
        %v1107 = vld [vmem:[%s164 + $0x1be0] sm:$0xff]
        %v1108 = vld [vmem:[%s164 + $0x1be8] sm:$0xff]
        %v1109 = vld [vmem:[%s164 + $0x1bf0] sm:$0xff]
        %v1110 = vld [vmem:[%s164 + $0x1bf8] sm:$0xff]
        %v1111 = vld [vmem:[%s164 + $0x1c00] sm:$0xff]
        %v1112 = vld [vmem:[%s164 + $0x1c08] sm:$0xff]
        %v1113 = vld [vmem:[%s164 + $0x1c10] sm:$0xff]
        %v1114 = vld [vmem:[%s164 + $0x1c18] sm:$0xff]
        %v1115 = vld [vmem:[%s164 + $0x1c20] sm:$0xff]
        %v1116 = vld [vmem:[%s164 + $0x1c28] sm:$0xff]
        %v1117 = vld [vmem:[%s164 + $0x1c30] sm:$0xff]
        %v1118 = vld [vmem:[%s164 + $0x1c38] sm:$0xff]
        %v1119 = vld [vmem:[%s164 + $0x1c40] sm:$0xff]
        %v1120 = vld [vmem:[%s164 + $0x1c48] sm:$0xff]
        %v1121 = vld [vmem:[%s164 + $0x1c50] sm:$0xff]
        %v1122 = vld [vmem:[%s164 + $0x1c58] sm:$0xff]
        %v1123 = vld [vmem:[%s164 + $0x1c60] sm:$0xff]
        %v1124 = vld [vmem:[%s164 + $0x1c68] sm:$0xff]
        %v1125 = vld [vmem:[%s164 + $0x1c70] sm:$0xff]
        %v1126 = vld [vmem:[%s164 + $0x1c78] sm:$0xff]
        %v1127 = vld [vmem:[%s164 + $0x1c80] sm:$0xff]
        %v1128 = vld [vmem:[%s164 + $0x1c88] sm:$0xff]
        %v1129 = vld [vmem:[%s164 + $0x1c90] sm:$0xff]
        %v1130 = vld [vmem:[%s164 + $0x1c98] sm:$0xff]
        %v1131 = vld [vmem:[%s164 + $0x1ca0] sm:$0xff]
        %v1132 = vld [vmem:[%s164 + $0x1ca8] sm:$0xff]
        %v1133 = vld [vmem:[%s164 + $0x1cb0] sm:$0xff]
        %v1134 = vld [vmem:[%s164 + $0x1cb8] sm:$0xff]
        %v1135 = vld [vmem:[%s164 + $0x1cc0] sm:$0xff]
        %v1136 = vld [vmem:[%s164 + $0x1cc8] sm:$0xff]
        %v1137 = vld [vmem:[%s164 + $0x1cd0] sm:$0xff]
        %v1138 = vld [vmem:[%s164 + $0x1cd8] sm:$0xff]
        %v1139 = vld [vmem:[%s164 + $0x1ce0] sm:$0xff]
        %v1140 = vld [vmem:[%s164 + $0x1ce8] sm:$0xff]
        %v1141 = vld [vmem:[%s164 + $0x1cf0] sm:$0xff]
        %v1142 = vld [vmem:[%s164 + $0x1cf8] sm:$0xff]
        %v1143 = vld [vmem:[%s164 + $0x1d00] sm:$0xff]
        %v1144 = vld [vmem:[%s164 + $0x1d08] sm:$0xff]
        %v1145 = vld [vmem:[%s164 + $0x1d10] sm:$0xff]
        %v1146 = vld [vmem:[%s164 + $0x1d18] sm:$0xff]
        %v1147 = vld [vmem:[%s164 + $0x1d20] sm:$0xff]
        %v1148 = vld [vmem:[%s164 + $0x1d28] sm:$0xff]
        %v1149 = vld [vmem:[%s164 + $0x1d30] sm:$0xff]
        %v1150 = vld [vmem:[%s164 + $0x1d38] sm:$0xff]
        %v1151 = vld [vmem:[%s164 + $0x1d40] sm:$0xff]
        %v1152 = vld [vmem:[%s164 + $0x1d48] sm:$0xff]
        %v1153 = vld [vmem:[%s164 + $0x1d50] sm:$0xff]
        %v1154 = vld [vmem:[%s164 + $0x1d58] sm:$0xff]
        %v1155 = vld [vmem:[%s164 + $0x1d60] sm:$0xff]
        %v1156 = vld [vmem:[%s164 + $0x1d68] sm:$0xff]
        %v1157 = vld [vmem:[%s164 + $0x1d70] sm:$0xff]
        %v1158 = vld [vmem:[%s164 + $0x1d78] sm:$0xff]
        %v1159 = vld [vmem:[%s164 + $0x1d80] sm:$0xff]
        %v1160 = vld [vmem:[%s164 + $0x1d88] sm:$0xff]
        %v1161 = vld [vmem:[%s164 + $0x1d90] sm:$0xff]
        %v1162 = vld [vmem:[%s164 + $0x1d98] sm:$0xff]
        %v1163 = vld [vmem:[%s164 + $0x1da0] sm:$0xff]
        %v1164 = vld [vmem:[%s164 + $0x1da8] sm:$0xff]
        %v1165 = vld [vmem:[%s164 + $0x1db0] sm:$0xff]
        %v1166 = vld [vmem:[%s164 + $0x1db8] sm:$0xff]
        %v1167 = vld [vmem:[%s164 + $0x1dc0] sm:$0xff]
        %v1168 = vld [vmem:[%s164 + $0x1dc8] sm:$0xff]
        %v1169 = vld [vmem:[%s164 + $0x1dd0] sm:$0xff]
        %v1170 = vld [vmem:[%s164 + $0x1dd8] sm:$0xff]
        %v1171 = vld [vmem:[%s164 + $0x1de0] sm:$0xff]
        %v1172 = vld [vmem:[%s164 + $0x1de8] sm:$0xff]
        %v1173 = vld [vmem:[%s164 + $0x1df0] sm:$0xff]
        %v1174 = vld [vmem:[%s164 + $0x1df8] sm:$0xff]
        %v1175 = vld [vmem:[%s164 + $0x1e00] sm:$0xff]
        %v1176 = vld [vmem:[%s164 + $0x1e08] sm:$0xff]
        %v1177 = vld [vmem:[%s164 + $0x1e10] sm:$0xff]
        %v1178 = vld [vmem:[%s164 + $0x1e18] sm:$0xff]
        %v1179 = vld [vmem:[%s164 + $0x1e20] sm:$0xff]
        %v1180 = vld [vmem:[%s164 + $0x1e28] sm:$0xff]
        %v1181 = vld [vmem:[%s164 + $0x1e30] sm:$0xff]
        %v1182 = vld [vmem:[%s164 + $0x1e38] sm:$0xff]
        %v1183 = vld [vmem:[%s164 + $0x1e40] sm:$0xff]
        %v1184 = vld [vmem:[%s164 + $0x1e48] sm:$0xff]
        %v1185 = vld [vmem:[%s164 + $0x1e50] sm:$0xff]
        %v1186 = vld [vmem:[%s164 + $0x1e58] sm:$0xff]
        %v1187 = vld [vmem:[%s164 + $0x1e60] sm:$0xff]
        %v1188 = vld [vmem:[%s164 + $0x1e68] sm:$0xff]
        %v1189 = vld [vmem:[%s164 + $0x1e70] sm:$0xff]
        %v1190 = vld [vmem:[%s164 + $0x1e78] sm:$0xff]
        %v1191 = vld [vmem:[%s164 + $0x1e80] sm:$0xff]
        %v1192 = vld [vmem:[%s164 + $0x1e88] sm:$0xff]
        %v1193 = vld [vmem:[%s164 + $0x1e90] sm:$0xff]
        %v1194 = vld [vmem:[%s164 + $0x1e98] sm:$0xff]
        %v1195 = vld [vmem:[%s164 + $0x1ea0] sm:$0xff]
        %v1196 = vld [vmem:[%s164 + $0x1ea8] sm:$0xff]
        %v1197 = vld [vmem:[%s164 + $0x1eb0] sm:$0xff]
        %v1198 = vld [vmem:[%s164 + $0x1eb8] sm:$0xff]
        %v1199 = vld [vmem:[%s164 + $0x1ec0] sm:$0xff]
        %v1200 = vld [vmem:[%s164 + $0x1ec8] sm:$0xff]
        %v1201 = vld [vmem:[%s164 + $0x1ed0] sm:$0xff]
        %v1202 = vld [vmem:[%s164 + $0x1ed8] sm:$0xff]
        %v1203 = vld [vmem:[%s164 + $0x1ee0] sm:$0xff]
        %v1204 = vld [vmem:[%s164 + $0x1ee8] sm:$0xff]
        %v1205 = vld [vmem:[%s164 + $0x1ef0] sm:$0xff]
        %v1206 = vld [vmem:[%s164 + $0x1ef8] sm:$0xff]
        %v1207 = vld [vmem:[%s164 + $0x1f00] sm:$0xff]
        %v1208 = vld [vmem:[%s164 + $0x1f08] sm:$0xff]
        %v1209 = vld [vmem:[%s164 + $0x1f10] sm:$0xff]
        %v1210 = vld [vmem:[%s164 + $0x1f18] sm:$0xff]
        %v1211 = vld [vmem:[%s164 + $0x1f20] sm:$0xff]
        %v1212 = vld [vmem:[%s164 + $0x1f28] sm:$0xff]
        %v1213 = vld [vmem:[%s164 + $0x1f30] sm:$0xff]
        %v1214 = vld [vmem:[%s164 + $0x1f38] sm:$0xff]
        %v1215 = vld [vmem:[%s164 + $0x1f40] sm:$0xff]
        %v1216 = vld [vmem:[%s164 + $0x1f48] sm:$0xff]
        %v1217 = vld [vmem:[%s164 + $0x1f50] sm:$0xff]
        %v1218 = vld [vmem:[%s164 + $0x1f58] sm:$0xff]
        %v1219 = vld [vmem:[%s164 + $0x1f60] sm:$0xff]
        %v1220 = vld [vmem:[%s164 + $0x1f68] sm:$0xff]
        %v1221 = vld [vmem:[%s164 + $0x1f70] sm:$0xff]
        %v1222 = vld [vmem:[%s164 + $0x1f78] sm:$0xff]
        %v1223 = vld [vmem:[%s164 + $0x1f80] sm:$0xff]
        %v1224 = vld [vmem:[%s164 + $0x1f88] sm:$0xff]
        %v1225 = vld [vmem:[%s164 + $0x1f90] sm:$0xff]
        %v1226 = vld [vmem:[%s164 + $0x1f98] sm:$0xff]
        %v1227 = vld [vmem:[%s164 + $0x1fa0] sm:$0xff]
        %v1228 = vld [vmem:[%s164 + $0x1fa8] sm:$0xff]
        %v1229 = vld [vmem:[%s164 + $0x1fb0] sm:$0xff]
        %v1230 = vld [vmem:[%s164 + $0x1fb8] sm:$0xff]
        %v1231 = vld [vmem:[%s164 + $0x1fc0] sm:$0xff]
        %v1232 = vld [vmem:[%s164 + $0x1fc8] sm:$0xff]
        %v1233 = vld [vmem:[%s164 + $0x1fd0] sm:$0xff]
        %v1234 = vld [vmem:[%s164 + $0x1fd8] sm:$0xff]
        %v1235 = vld [vmem:[%s164 + $0x1fe0] sm:$0xff]
        %v1236 = vld [vmem:[%s164 + $0x1fe8] sm:$0xff]
        %v1237 = vld [vmem:[%s164 + $0x1ff0] sm:$0xff]
        %v1238 = vld [vmem:[%s164 + $0x1ff8] sm:$0xff]
        %v1255 = vunpack.c.l.b16 %v199
        %v1256 = vunpack.c.h.b16 %v199
        %v1257 = vunpack.c.l.b16 %v200
        %v1258 = vunpack.c.h.b16 %v200
        %v1259 = vunpack.c.l.b16 %v201
        %v1260 = vunpack.c.h.b16 %v201
        %v1261 = vunpack.c.l.b16 %v202
        %v1262 = vunpack.c.h.b16 %v202
        %v1263 = vunpack.c.l.b16 %v203
        %v1264 = vunpack.c.h.b16 %v203
        %v1265 = vunpack.c.l.b16 %v204
        %v1266 = vunpack.c.h.b16 %v204
        %v1267 = vunpack.c.l.b16 %v205
        %v1268 = vunpack.c.h.b16 %v205
        %v1269 = vunpack.c.l.b16 %v206
        %v1270 = vunpack.c.h.b16 %v206
        %v1271 = vunpack.c.l.b16 %v207
        %v1272 = vunpack.c.h.b16 %v207
        %v1273 = vunpack.c.l.b16 %v208
        %v1274 = vunpack.c.h.b16 %v208
        %v1275 = vunpack.c.l.b16 %v209
        %v1276 = vunpack.c.h.b16 %v209
        %v1277 = vunpack.c.l.b16 %v210
        %v1278 = vunpack.c.h.b16 %v210
        %v1279 = vunpack.c.l.b16 %v211
        %v1280 = vunpack.c.h.b16 %v211
        %v1281 = vunpack.c.l.b16 %v212
        %v1282 = vunpack.c.h.b16 %v212
        %v1283 = vunpack.c.l.b16 %v213
        %v1284 = vunpack.c.h.b16 %v213
        %v1285 = vunpack.c.l.b16 %v214
        %v1286 = vunpack.c.h.b16 %v214
        %v1287 = vpack.c.b16 %v1271, %v1255
        %v1288 = vpack.c.b16 %v1272, %v1256
        %v1289 = vpack.c.b16 %v1273, %v1257
        %v1290 = vpack.c.b16 %v1274, %v1258
        %v1291 = vpack.c.b16 %v1275, %v1259
        %v1292 = vpack.c.b16 %v1276, %v1260
        %v1293 = vpack.c.b16 %v1277, %v1261
        %v1294 = vpack.c.b16 %v1278, %v1262
        %v1295 = vpack.c.b16 %v1279, %v1263
        %v1296 = vpack.c.b16 %v1280, %v1264
        %v1297 = vpack.c.b16 %v1281, %v1265
        %v1298 = vpack.c.b16 %v1282, %v1266
        %v1299 = vpack.c.b16 %v1283, %v1267
        %v1300 = vpack.c.b16 %v1284, %v1268
        %v1301 = vpack.c.b16 %v1285, %v1269
        %v1302 = vpack.c.b16 %v1286, %v1270
        %v2343 = vunpack.c.l.b16 %v215
        %v2344 = vunpack.c.h.b16 %v215
        %v2345 = vunpack.c.l.b16 %v216
        %v2346 = vunpack.c.h.b16 %v216
        %v2347 = vunpack.c.l.b16 %v217
        %v2348 = vunpack.c.h.b16 %v217
        %v2349 = vunpack.c.l.b16 %v218
        %v2350 = vunpack.c.h.b16 %v218
        %v2351 = vunpack.c.l.b16 %v219
        %v2352 = vunpack.c.h.b16 %v219
        %v2353 = vunpack.c.l.b16 %v220
        %v2354 = vunpack.c.h.b16 %v220
        %v2355 = vunpack.c.l.b16 %v221
        %v2356 = vunpack.c.h.b16 %v221
        %v2357 = vunpack.c.l.b16 %v222
        %v2358 = vunpack.c.h.b16 %v222
        %v2359 = vunpack.c.l.b16 %v223
        %v2360 = vunpack.c.h.b16 %v223
        %v2361 = vunpack.c.l.b16 %v224
        %v2362 = vunpack.c.h.b16 %v224
        %v2363 = vunpack.c.l.b16 %v225
        %v2364 = vunpack.c.h.b16 %v225
        %v2365 = vunpack.c.l.b16 %v226
        %v2366 = vunpack.c.h.b16 %v226
        %v2367 = vunpack.c.l.b16 %v227
        %v2368 = vunpack.c.h.b16 %v227
        %v2369 = vunpack.c.l.b16 %v228
        %v2370 = vunpack.c.h.b16 %v228
        %v2371 = vunpack.c.l.b16 %v229
        %v2372 = vunpack.c.h.b16 %v229
        %v2373 = vunpack.c.l.b16 %v230
        %v2374 = vunpack.c.h.b16 %v230
        %v2375 = vunpack.c.l.b16 %v231
        %v2376 = vunpack.c.h.b16 %v231
        %v2377 = vunpack.c.l.b16 %v232
        %v2378 = vunpack.c.h.b16 %v232
        %v2379 = vunpack.c.l.b16 %v233
        %v2380 = vunpack.c.h.b16 %v233
        %v2381 = vunpack.c.l.b16 %v234
        %v2382 = vunpack.c.h.b16 %v234
        %v2383 = vunpack.c.l.b16 %v235
        %v2384 = vunpack.c.h.b16 %v235
        %v2385 = vunpack.c.l.b16 %v236
        %v2386 = vunpack.c.h.b16 %v236
        %v2387 = vunpack.c.l.b16 %v237
        %v2388 = vunpack.c.h.b16 %v237
        %v2389 = vunpack.c.l.b16 %v238
        %v2390 = vunpack.c.h.b16 %v238
        %v2391 = vunpack.c.l.b16 %v239
        %v2392 = vunpack.c.h.b16 %v239
        %v2393 = vunpack.c.l.b16 %v240
        %v2394 = vunpack.c.h.b16 %v240
        %v2395 = vunpack.c.l.b16 %v241
        %v2396 = vunpack.c.h.b16 %v241
        %v2397 = vunpack.c.l.b16 %v242
        %v2398 = vunpack.c.h.b16 %v242
        %v2399 = vunpack.c.l.b16 %v243
        %v2400 = vunpack.c.h.b16 %v243
        %v2401 = vunpack.c.l.b16 %v244
        %v2402 = vunpack.c.h.b16 %v244
        %v2403 = vunpack.c.l.b16 %v245
        %v2404 = vunpack.c.h.b16 %v245
        %v2405 = vunpack.c.l.b16 %v246
        %v2406 = vunpack.c.h.b16 %v246
        %v2407 = vunpack.c.l.b16 %v247
        %v2408 = vunpack.c.h.b16 %v247
        %v2409 = vunpack.c.l.b16 %v248
        %v2410 = vunpack.c.h.b16 %v248
        %v2411 = vunpack.c.l.b16 %v249
        %v2412 = vunpack.c.h.b16 %v249
        %v2413 = vunpack.c.l.b16 %v250
        %v2414 = vunpack.c.h.b16 %v250
        %v2415 = vunpack.c.l.b16 %v251
        %v2416 = vunpack.c.h.b16 %v251
        %v2417 = vunpack.c.l.b16 %v252
        %v2418 = vunpack.c.h.b16 %v252
        %v2419 = vunpack.c.l.b16 %v253
        %v2420 = vunpack.c.h.b16 %v253
        %v2421 = vunpack.c.l.b16 %v254
        %v2422 = vunpack.c.h.b16 %v254
        %v2423 = vunpack.c.l.b16 %v255
        %v2424 = vunpack.c.h.b16 %v255
        %v2425 = vunpack.c.l.b16 %v256
        %v2426 = vunpack.c.h.b16 %v256
        %v2427 = vunpack.c.l.b16 %v257
        %v2428 = vunpack.c.h.b16 %v257
        %v2429 = vunpack.c.l.b16 %v258
        %v2430 = vunpack.c.h.b16 %v258
        %v2431 = vunpack.c.l.b16 %v259
        %v2432 = vunpack.c.h.b16 %v259
        %v2433 = vunpack.c.l.b16 %v260
        %v2434 = vunpack.c.h.b16 %v260
        %v2435 = vunpack.c.l.b16 %v261
        %v2436 = vunpack.c.h.b16 %v261
        %v2437 = vunpack.c.l.b16 %v262
        %v2438 = vunpack.c.h.b16 %v262
        %v2439 = vunpack.c.l.b16 %v263
        %v2440 = vunpack.c.h.b16 %v263
        %v2441 = vunpack.c.l.b16 %v264
        %v2442 = vunpack.c.h.b16 %v264
        %v2443 = vunpack.c.l.b16 %v265
        %v2444 = vunpack.c.h.b16 %v265
        %v2445 = vunpack.c.l.b16 %v266
        %v2446 = vunpack.c.h.b16 %v266
        %v2447 = vunpack.c.l.b16 %v267
        %v2448 = vunpack.c.h.b16 %v267
        %v2449 = vunpack.c.l.b16 %v268
        %v2450 = vunpack.c.h.b16 %v268
        %v2451 = vunpack.c.l.b16 %v269
        %v2452 = vunpack.c.h.b16 %v269
        %v2453 = vunpack.c.l.b16 %v270
        %v2454 = vunpack.c.h.b16 %v270
        %v2455 = vunpack.c.l.b16 %v271
        %v2456 = vunpack.c.h.b16 %v271
        %v2457 = vunpack.c.l.b16 %v272
        %v2458 = vunpack.c.h.b16 %v272
        %v2459 = vunpack.c.l.b16 %v273
        %v2460 = vunpack.c.h.b16 %v273
        %v2461 = vunpack.c.l.b16 %v274
        %v2462 = vunpack.c.h.b16 %v274
        %v2463 = vunpack.c.l.b16 %v275
        %v2464 = vunpack.c.h.b16 %v275
        %v2465 = vunpack.c.l.b16 %v276
        %v2466 = vunpack.c.h.b16 %v276
        %v2467 = vunpack.c.l.b16 %v277
        %v2468 = vunpack.c.h.b16 %v277
        %v2469 = vunpack.c.l.b16 %v278
        %v2470 = vunpack.c.h.b16 %v278
        %v2471 = vunpack.c.l.b16 %v279
        %v2472 = vunpack.c.h.b16 %v279
        %v2473 = vunpack.c.l.b16 %v280
        %v2474 = vunpack.c.h.b16 %v280
        %v2475 = vunpack.c.l.b16 %v281
        %v2476 = vunpack.c.h.b16 %v281
        %v2477 = vunpack.c.l.b16 %v282
        %v2478 = vunpack.c.h.b16 %v282
        %v2479 = vunpack.c.l.b16 %v283
        %v2480 = vunpack.c.h.b16 %v283
        %v2481 = vunpack.c.l.b16 %v284
        %v2482 = vunpack.c.h.b16 %v284
        %v2483 = vunpack.c.l.b16 %v285
        %v2484 = vunpack.c.h.b16 %v285
        %v2485 = vunpack.c.l.b16 %v286
        %v2486 = vunpack.c.h.b16 %v286
        %v2487 = vunpack.c.l.b16 %v287
        %v2488 = vunpack.c.h.b16 %v287
        %v2489 = vunpack.c.l.b16 %v288
        %v2490 = vunpack.c.h.b16 %v288
        %v2491 = vunpack.c.l.b16 %v289
        %v2492 = vunpack.c.h.b16 %v289
        %v2493 = vunpack.c.l.b16 %v290
        %v2494 = vunpack.c.h.b16 %v290
        %v2495 = vunpack.c.l.b16 %v291
        %v2496 = vunpack.c.h.b16 %v291
        %v2497 = vunpack.c.l.b16 %v292
        %v2498 = vunpack.c.h.b16 %v292
        %v2499 = vunpack.c.l.b16 %v293
        %v2500 = vunpack.c.h.b16 %v293
        %v2501 = vunpack.c.l.b16 %v294
        %v2502 = vunpack.c.h.b16 %v294
        %v2503 = vunpack.c.l.b16 %v295
        %v2504 = vunpack.c.h.b16 %v295
        %v2505 = vunpack.c.l.b16 %v296
        %v2506 = vunpack.c.h.b16 %v296
        %v2507 = vunpack.c.l.b16 %v297
        %v2508 = vunpack.c.h.b16 %v297
        %v2509 = vunpack.c.l.b16 %v298
        %v2510 = vunpack.c.h.b16 %v298
        %v2511 = vunpack.c.l.b16 %v299
        %v2512 = vunpack.c.h.b16 %v299
        %v2513 = vunpack.c.l.b16 %v300
        %v2514 = vunpack.c.h.b16 %v300
        %v2515 = vunpack.c.l.b16 %v301
        %v2516 = vunpack.c.h.b16 %v301
        %v2517 = vunpack.c.l.b16 %v302
        %v2518 = vunpack.c.h.b16 %v302
        %v2519 = vunpack.c.l.b16 %v303
        %v2520 = vunpack.c.h.b16 %v303
        %v2521 = vunpack.c.l.b16 %v304
        %v2522 = vunpack.c.h.b16 %v304
        %v2523 = vunpack.c.l.b16 %v305
        %v2524 = vunpack.c.h.b16 %v305
        %v2525 = vunpack.c.l.b16 %v306
        %v2526 = vunpack.c.h.b16 %v306
        %v2527 = vunpack.c.l.b16 %v307
        %v2528 = vunpack.c.h.b16 %v307
        %v2529 = vunpack.c.l.b16 %v308
        %v2530 = vunpack.c.h.b16 %v308
        %v2531 = vunpack.c.l.b16 %v309
        %v2532 = vunpack.c.h.b16 %v309
        %v2533 = vunpack.c.l.b16 %v310
        %v2534 = vunpack.c.h.b16 %v310
        %v2535 = vunpack.c.l.b16 %v311
        %v2536 = vunpack.c.h.b16 %v311
        %v2537 = vunpack.c.l.b16 %v312
        %v2538 = vunpack.c.h.b16 %v312
        %v2539 = vunpack.c.l.b16 %v313
        %v2540 = vunpack.c.h.b16 %v313
        %v2541 = vunpack.c.l.b16 %v314
        %v2542 = vunpack.c.h.b16 %v314
        %v2543 = vunpack.c.l.b16 %v315
        %v2544 = vunpack.c.h.b16 %v315
        %v2545 = vunpack.c.l.b16 %v316
        %v2546 = vunpack.c.h.b16 %v316
        %v2547 = vunpack.c.l.b16 %v317
        %v2548 = vunpack.c.h.b16 %v317
        %v2549 = vunpack.c.l.b16 %v318
        %v2550 = vunpack.c.h.b16 %v318
        %v2551 = vunpack.c.l.b16 %v319
        %v2552 = vunpack.c.h.b16 %v319
        %v2553 = vunpack.c.l.b16 %v320
        %v2554 = vunpack.c.h.b16 %v320
        %v2555 = vunpack.c.l.b16 %v321
        %v2556 = vunpack.c.h.b16 %v321
        %v2557 = vunpack.c.l.b16 %v322
        %v2558 = vunpack.c.h.b16 %v322
        %v2559 = vunpack.c.l.b16 %v323
        %v2560 = vunpack.c.h.b16 %v323
        %v2561 = vunpack.c.l.b16 %v324
        %v2562 = vunpack.c.h.b16 %v324
        %v2563 = vunpack.c.l.b16 %v325
        %v2564 = vunpack.c.h.b16 %v325
        %v2565 = vunpack.c.l.b16 %v326
        %v2566 = vunpack.c.h.b16 %v326
        %v2567 = vunpack.c.l.b16 %v327
        %v2568 = vunpack.c.h.b16 %v327
        %v2569 = vunpack.c.l.b16 %v328
        %v2570 = vunpack.c.h.b16 %v328
        %v2571 = vunpack.c.l.b16 %v329
        %v2572 = vunpack.c.h.b16 %v329
        %v2573 = vunpack.c.l.b16 %v330
        %v2574 = vunpack.c.h.b16 %v330
        %v2575 = vunpack.c.l.b16 %v331
        %v2576 = vunpack.c.h.b16 %v331
        %v2577 = vunpack.c.l.b16 %v332
        %v2578 = vunpack.c.h.b16 %v332
        %v2579 = vunpack.c.l.b16 %v333
        %v2580 = vunpack.c.h.b16 %v333
        %v2581 = vunpack.c.l.b16 %v334
        %v2582 = vunpack.c.h.b16 %v334
        %v2583 = vunpack.c.l.b16 %v335
        %v2584 = vunpack.c.h.b16 %v335
        %v2585 = vunpack.c.l.b16 %v336
        %v2586 = vunpack.c.h.b16 %v336
        %v2587 = vunpack.c.l.b16 %v337
        %v2588 = vunpack.c.h.b16 %v337
        %v2589 = vunpack.c.l.b16 %v338
        %v2590 = vunpack.c.h.b16 %v338
        %v2591 = vunpack.c.l.b16 %v339
        %v2592 = vunpack.c.h.b16 %v339
        %v2593 = vunpack.c.l.b16 %v340
        %v2594 = vunpack.c.h.b16 %v340
        %v2595 = vunpack.c.l.b16 %v341
        %v2596 = vunpack.c.h.b16 %v341
        %v2597 = vunpack.c.l.b16 %v342
        %v2598 = vunpack.c.h.b16 %v342
        %v2599 = vunpack.c.l.b16 %v343
        %v2600 = vunpack.c.h.b16 %v343
        %v2601 = vunpack.c.l.b16 %v344
        %v2602 = vunpack.c.h.b16 %v344
        %v2603 = vunpack.c.l.b16 %v345
        %v2604 = vunpack.c.h.b16 %v345
        %v2605 = vunpack.c.l.b16 %v346
        %v2606 = vunpack.c.h.b16 %v346
        %v2607 = vunpack.c.l.b16 %v347
        %v2608 = vunpack.c.h.b16 %v347
        %v2609 = vunpack.c.l.b16 %v348
        %v2610 = vunpack.c.h.b16 %v348
        %v2611 = vunpack.c.l.b16 %v349
        %v2612 = vunpack.c.h.b16 %v349
        %v2613 = vunpack.c.l.b16 %v350
        %v2614 = vunpack.c.h.b16 %v350
        %v2615 = vunpack.c.l.b16 %v351
        %v2616 = vunpack.c.h.b16 %v351
        %v2617 = vunpack.c.l.b16 %v352
        %v2618 = vunpack.c.h.b16 %v352
        %v2619 = vunpack.c.l.b16 %v353
        %v2620 = vunpack.c.h.b16 %v353
        %v2621 = vunpack.c.l.b16 %v354
        %v2622 = vunpack.c.h.b16 %v354
        %v2623 = vunpack.c.l.b16 %v355
        %v2624 = vunpack.c.h.b16 %v355
        %v2625 = vunpack.c.l.b16 %v356
        %v2626 = vunpack.c.h.b16 %v356
        %v2627 = vunpack.c.l.b16 %v357
        %v2628 = vunpack.c.h.b16 %v357
        %v2629 = vunpack.c.l.b16 %v358
        %v2630 = vunpack.c.h.b16 %v358
        %v2631 = vunpack.c.l.b16 %v359
        %v2632 = vunpack.c.h.b16 %v359
        %v2633 = vunpack.c.l.b16 %v360
        %v2634 = vunpack.c.h.b16 %v360
        %v2635 = vunpack.c.l.b16 %v361
        %v2636 = vunpack.c.h.b16 %v361
        %v2637 = vunpack.c.l.b16 %v362
        %v2638 = vunpack.c.h.b16 %v362
        %v2639 = vunpack.c.l.b16 %v363
        %v2640 = vunpack.c.h.b16 %v363
        %v2641 = vunpack.c.l.b16 %v364
        %v2642 = vunpack.c.h.b16 %v364
        %v2643 = vunpack.c.l.b16 %v365
        %v2644 = vunpack.c.h.b16 %v365
        %v2645 = vunpack.c.l.b16 %v366
        %v2646 = vunpack.c.h.b16 %v366
        %v2647 = vunpack.c.l.b16 %v367
        %v2648 = vunpack.c.h.b16 %v367
        %v2649 = vunpack.c.l.b16 %v368
        %v2650 = vunpack.c.h.b16 %v368
        %v2651 = vunpack.c.l.b16 %v369
        %v2652 = vunpack.c.h.b16 %v369
        %v2653 = vunpack.c.l.b16 %v370
        %v2654 = vunpack.c.h.b16 %v370
        %v2655 = vunpack.c.l.b16 %v371
        %v2656 = vunpack.c.h.b16 %v371
        %v2657 = vunpack.c.l.b16 %v372
        %v2658 = vunpack.c.h.b16 %v372
        %v2659 = vunpack.c.l.b16 %v373
        %v2660 = vunpack.c.h.b16 %v373
        %v2661 = vunpack.c.l.b16 %v374
        %v2662 = vunpack.c.h.b16 %v374
        %v2663 = vunpack.c.l.b16 %v375
        %v2664 = vunpack.c.h.b16 %v375
        %v2665 = vunpack.c.l.b16 %v376
        %v2666 = vunpack.c.h.b16 %v376
        %v2667 = vunpack.c.l.b16 %v377
        %v2668 = vunpack.c.h.b16 %v377
        %v2669 = vunpack.c.l.b16 %v378
        %v2670 = vunpack.c.h.b16 %v378
        %v2671 = vunpack.c.l.b16 %v379
        %v2672 = vunpack.c.h.b16 %v379
        %v2673 = vunpack.c.l.b16 %v380
        %v2674 = vunpack.c.h.b16 %v380
        %v2675 = vunpack.c.l.b16 %v381
        %v2676 = vunpack.c.h.b16 %v381
        %v2677 = vunpack.c.l.b16 %v382
        %v2678 = vunpack.c.h.b16 %v382
        %v2679 = vunpack.c.l.b16 %v383
        %v2680 = vunpack.c.h.b16 %v383
        %v2681 = vunpack.c.l.b16 %v384
        %v2682 = vunpack.c.h.b16 %v384
        %v2683 = vunpack.c.l.b16 %v385
        %v2684 = vunpack.c.h.b16 %v385
        %v2685 = vunpack.c.l.b16 %v386
        %v2686 = vunpack.c.h.b16 %v386
        %v2687 = vunpack.c.l.b16 %v387
        %v2688 = vunpack.c.h.b16 %v387
        %v2689 = vunpack.c.l.b16 %v388
        %v2690 = vunpack.c.h.b16 %v388
        %v2691 = vunpack.c.l.b16 %v389
        %v2692 = vunpack.c.h.b16 %v389
        %v2693 = vunpack.c.l.b16 %v390
        %v2694 = vunpack.c.h.b16 %v390
        %v2695 = vunpack.c.l.b16 %v391
        %v2696 = vunpack.c.h.b16 %v391
        %v2697 = vunpack.c.l.b16 %v392
        %v2698 = vunpack.c.h.b16 %v392
        %v2699 = vunpack.c.l.b16 %v393
        %v2700 = vunpack.c.h.b16 %v393
        %v2701 = vunpack.c.l.b16 %v394
        %v2702 = vunpack.c.h.b16 %v394
        %v2703 = vunpack.c.l.b16 %v395
        %v2704 = vunpack.c.h.b16 %v395
        %v2705 = vunpack.c.l.b16 %v396
        %v2706 = vunpack.c.h.b16 %v396
        %v2707 = vunpack.c.l.b16 %v397
        %v2708 = vunpack.c.h.b16 %v397
        %v2709 = vunpack.c.l.b16 %v398
        %v2710 = vunpack.c.h.b16 %v398
        %v2711 = vunpack.c.l.b16 %v399
        %v2712 = vunpack.c.h.b16 %v399
        %v2713 = vunpack.c.l.b16 %v400
        %v2714 = vunpack.c.h.b16 %v400
        %v2715 = vunpack.c.l.b16 %v401
        %v2716 = vunpack.c.h.b16 %v401
        %v2717 = vunpack.c.l.b16 %v402
        %v2718 = vunpack.c.h.b16 %v402
        %v2719 = vunpack.c.l.b16 %v403
        %v2720 = vunpack.c.h.b16 %v403
        %v2721 = vunpack.c.l.b16 %v404
        %v2722 = vunpack.c.h.b16 %v404
        %v2723 = vunpack.c.l.b16 %v405
        %v2724 = vunpack.c.h.b16 %v405
        %v2725 = vunpack.c.l.b16 %v406
        %v2726 = vunpack.c.h.b16 %v406
        %v2727 = vunpack.c.l.b16 %v407
        %v2728 = vunpack.c.h.b16 %v407
        %v2729 = vunpack.c.l.b16 %v408
        %v2730 = vunpack.c.h.b16 %v408
        %v2731 = vunpack.c.l.b16 %v409
        %v2732 = vunpack.c.h.b16 %v409
        %v2733 = vunpack.c.l.b16 %v410
        %v2734 = vunpack.c.h.b16 %v410
        %v2735 = vunpack.c.l.b16 %v411
        %v2736 = vunpack.c.h.b16 %v411
        %v2737 = vunpack.c.l.b16 %v412
        %v2738 = vunpack.c.h.b16 %v412
        %v2739 = vunpack.c.l.b16 %v413
        %v2740 = vunpack.c.h.b16 %v413
        %v2741 = vunpack.c.l.b16 %v414
        %v2742 = vunpack.c.h.b16 %v414
        %v2743 = vunpack.c.l.b16 %v415
        %v2744 = vunpack.c.h.b16 %v415
        %v2745 = vunpack.c.l.b16 %v416
        %v2746 = vunpack.c.h.b16 %v416
        %v2747 = vunpack.c.l.b16 %v417
        %v2748 = vunpack.c.h.b16 %v417
        %v2749 = vunpack.c.l.b16 %v418
        %v2750 = vunpack.c.h.b16 %v418
        %v2751 = vunpack.c.l.b16 %v419
        %v2752 = vunpack.c.h.b16 %v419
        %v2753 = vunpack.c.l.b16 %v420
        %v2754 = vunpack.c.h.b16 %v420
        %v2755 = vunpack.c.l.b16 %v421
        %v2756 = vunpack.c.h.b16 %v421
        %v2757 = vunpack.c.l.b16 %v422
        %v2758 = vunpack.c.h.b16 %v422
        %v2759 = vunpack.c.l.b16 %v423
        %v2760 = vunpack.c.h.b16 %v423
        %v2761 = vunpack.c.l.b16 %v424
        %v2762 = vunpack.c.h.b16 %v424
        %v2763 = vunpack.c.l.b16 %v425
        %v2764 = vunpack.c.h.b16 %v425
        %v2765 = vunpack.c.l.b16 %v426
        %v2766 = vunpack.c.h.b16 %v426
        %v2767 = vunpack.c.l.b16 %v427
        %v2768 = vunpack.c.h.b16 %v427
        %v2769 = vunpack.c.l.b16 %v428
        %v2770 = vunpack.c.h.b16 %v428
        %v2771 = vunpack.c.l.b16 %v429
        %v2772 = vunpack.c.h.b16 %v429
        %v2773 = vunpack.c.l.b16 %v430
        %v2774 = vunpack.c.h.b16 %v430
        %v2775 = vunpack.c.l.b16 %v431
        %v2776 = vunpack.c.h.b16 %v431
        %v2777 = vunpack.c.l.b16 %v432
        %v2778 = vunpack.c.h.b16 %v432
        %v2779 = vunpack.c.l.b16 %v433
        %v2780 = vunpack.c.h.b16 %v433
        %v2781 = vunpack.c.l.b16 %v434
        %v2782 = vunpack.c.h.b16 %v434
        %v2783 = vunpack.c.l.b16 %v435
        %v2784 = vunpack.c.h.b16 %v435
        %v2785 = vunpack.c.l.b16 %v436
        %v2786 = vunpack.c.h.b16 %v436
        %v2787 = vunpack.c.l.b16 %v437
        %v2788 = vunpack.c.h.b16 %v437
        %v2789 = vunpack.c.l.b16 %v438
        %v2790 = vunpack.c.h.b16 %v438
        %v2791 = vunpack.c.l.b16 %v439
        %v2792 = vunpack.c.h.b16 %v439
        %v2793 = vunpack.c.l.b16 %v440
        %v2794 = vunpack.c.h.b16 %v440
        %v2795 = vunpack.c.l.b16 %v441
        %v2796 = vunpack.c.h.b16 %v441
        %v2797 = vunpack.c.l.b16 %v442
        %v2798 = vunpack.c.h.b16 %v442
        %v2799 = vunpack.c.l.b16 %v443
        %v2800 = vunpack.c.h.b16 %v443
        %v2801 = vunpack.c.l.b16 %v444
        %v2802 = vunpack.c.h.b16 %v444
        %v2803 = vunpack.c.l.b16 %v445
        %v2804 = vunpack.c.h.b16 %v445
        %v2805 = vunpack.c.l.b16 %v446
        %v2806 = vunpack.c.h.b16 %v446
        %v2807 = vunpack.c.l.b16 %v447
        %v2808 = vunpack.c.h.b16 %v447
        %v2809 = vunpack.c.l.b16 %v448
        %v2810 = vunpack.c.h.b16 %v448
        %v2811 = vunpack.c.l.b16 %v449
        %v2812 = vunpack.c.h.b16 %v449
        %v2813 = vunpack.c.l.b16 %v450
        %v2814 = vunpack.c.h.b16 %v450
        %v2815 = vunpack.c.l.b16 %v451
        %v2816 = vunpack.c.h.b16 %v451
        %v2817 = vunpack.c.l.b16 %v452
        %v2818 = vunpack.c.h.b16 %v452
        %v2819 = vunpack.c.l.b16 %v453
        %v2820 = vunpack.c.h.b16 %v453
        %v2821 = vunpack.c.l.b16 %v454
        %v2822 = vunpack.c.h.b16 %v454
        %v2823 = vunpack.c.l.b16 %v455
        %v2824 = vunpack.c.h.b16 %v455
        %v2825 = vunpack.c.l.b16 %v456
        %v2826 = vunpack.c.h.b16 %v456
        %v2827 = vunpack.c.l.b16 %v457
        %v2828 = vunpack.c.h.b16 %v457
        %v2829 = vunpack.c.l.b16 %v458
        %v2830 = vunpack.c.h.b16 %v458
        %v2831 = vunpack.c.l.b16 %v459
        %v2832 = vunpack.c.h.b16 %v459
        %v2833 = vunpack.c.l.b16 %v460
        %v2834 = vunpack.c.h.b16 %v460
        %v2835 = vunpack.c.l.b16 %v461
        %v2836 = vunpack.c.h.b16 %v461
        %v2837 = vunpack.c.l.b16 %v462
        %v2838 = vunpack.c.h.b16 %v462
        %v2839 = vunpack.c.l.b16 %v463
        %v2840 = vunpack.c.h.b16 %v463
        %v2841 = vunpack.c.l.b16 %v464
        %v2842 = vunpack.c.h.b16 %v464
        %v2843 = vunpack.c.l.b16 %v465
        %v2844 = vunpack.c.h.b16 %v465
        %v2845 = vunpack.c.l.b16 %v466
        %v2846 = vunpack.c.h.b16 %v466
        %v2847 = vunpack.c.l.b16 %v467
        %v2848 = vunpack.c.h.b16 %v467
        %v2849 = vunpack.c.l.b16 %v468
        %v2850 = vunpack.c.h.b16 %v468
        %v2851 = vunpack.c.l.b16 %v469
        %v2852 = vunpack.c.h.b16 %v469
        %v2853 = vunpack.c.l.b16 %v470
        %v2854 = vunpack.c.h.b16 %v470
        %v2855 = vunpack.c.l.b16 %v471
        %v2856 = vunpack.c.h.b16 %v471
        %v2857 = vunpack.c.l.b16 %v472
        %v2858 = vunpack.c.h.b16 %v472
        %v2859 = vunpack.c.l.b16 %v473
        %v2860 = vunpack.c.h.b16 %v473
        %v2861 = vunpack.c.l.b16 %v474
        %v2862 = vunpack.c.h.b16 %v474
        %v2863 = vunpack.c.l.b16 %v475
        %v2864 = vunpack.c.h.b16 %v475
        %v2865 = vunpack.c.l.b16 %v476
        %v2866 = vunpack.c.h.b16 %v476
        %v2867 = vunpack.c.l.b16 %v477
        %v2868 = vunpack.c.h.b16 %v477
        %v2869 = vunpack.c.l.b16 %v478
        %v2870 = vunpack.c.h.b16 %v478
        %v2871 = vunpack.c.l.b16 %v479
        %v2872 = vunpack.c.h.b16 %v479
        %v2873 = vunpack.c.l.b16 %v480
        %v2874 = vunpack.c.h.b16 %v480
        %v2875 = vunpack.c.l.b16 %v481
        %v2876 = vunpack.c.h.b16 %v481
        %v2877 = vunpack.c.l.b16 %v482
        %v2878 = vunpack.c.h.b16 %v482
        %v2879 = vunpack.c.l.b16 %v483
        %v2880 = vunpack.c.h.b16 %v483
        %v2881 = vunpack.c.l.b16 %v484
        %v2882 = vunpack.c.h.b16 %v484
        %v2883 = vunpack.c.l.b16 %v485
        %v2884 = vunpack.c.h.b16 %v485
        %v2885 = vunpack.c.l.b16 %v486
        %v2886 = vunpack.c.h.b16 %v486
        %v2887 = vunpack.c.l.b16 %v487
        %v2888 = vunpack.c.h.b16 %v487
        %v2889 = vunpack.c.l.b16 %v488
        %v2890 = vunpack.c.h.b16 %v488
        %v2891 = vunpack.c.l.b16 %v489
        %v2892 = vunpack.c.h.b16 %v489
        %v2893 = vunpack.c.l.b16 %v490
        %v2894 = vunpack.c.h.b16 %v490
        %v2895 = vunpack.c.l.b16 %v491
        %v2896 = vunpack.c.h.b16 %v491
        %v2897 = vunpack.c.l.b16 %v492
        %v2898 = vunpack.c.h.b16 %v492
        %v2899 = vunpack.c.l.b16 %v493
        %v2900 = vunpack.c.h.b16 %v493
        %v2901 = vunpack.c.l.b16 %v494
        %v2902 = vunpack.c.h.b16 %v494
        %v2903 = vunpack.c.l.b16 %v495
        %v2904 = vunpack.c.h.b16 %v495
        %v2905 = vunpack.c.l.b16 %v496
        %v2906 = vunpack.c.h.b16 %v496
        %v2907 = vunpack.c.l.b16 %v497
        %v2908 = vunpack.c.h.b16 %v497
        %v2909 = vunpack.c.l.b16 %v498
        %v2910 = vunpack.c.h.b16 %v498
        %v2911 = vunpack.c.l.b16 %v499
        %v2912 = vunpack.c.h.b16 %v499
        %v2913 = vunpack.c.l.b16 %v500
        %v2914 = vunpack.c.h.b16 %v500
        %v2915 = vunpack.c.l.b16 %v501
        %v2916 = vunpack.c.h.b16 %v501
        %v2917 = vunpack.c.l.b16 %v502
        %v2918 = vunpack.c.h.b16 %v502
        %v2919 = vunpack.c.l.b16 %v503
        %v2920 = vunpack.c.h.b16 %v503
        %v2921 = vunpack.c.l.b16 %v504
        %v2922 = vunpack.c.h.b16 %v504
        %v2923 = vunpack.c.l.b16 %v505
        %v2924 = vunpack.c.h.b16 %v505
        %v2925 = vunpack.c.l.b16 %v506
        %v2926 = vunpack.c.h.b16 %v506
        %v2927 = vunpack.c.l.b16 %v507
        %v2928 = vunpack.c.h.b16 %v507
        %v2929 = vunpack.c.l.b16 %v508
        %v2930 = vunpack.c.h.b16 %v508
        %v2931 = vunpack.c.l.b16 %v509
        %v2932 = vunpack.c.h.b16 %v509
        %v2933 = vunpack.c.l.b16 %v510
        %v2934 = vunpack.c.h.b16 %v510
        %v2935 = vunpack.c.l.b16 %v511
        %v2936 = vunpack.c.h.b16 %v511
        %v2937 = vunpack.c.l.b16 %v512
        %v2938 = vunpack.c.h.b16 %v512
        %v2939 = vunpack.c.l.b16 %v513
        %v2940 = vunpack.c.h.b16 %v513
        %v2941 = vunpack.c.l.b16 %v514
        %v2942 = vunpack.c.h.b16 %v514
        %v2943 = vunpack.c.l.b16 %v515
        %v2944 = vunpack.c.h.b16 %v515
        %v2945 = vunpack.c.l.b16 %v516
        %v2946 = vunpack.c.h.b16 %v516
        %v2947 = vunpack.c.l.b16 %v517
        %v2948 = vunpack.c.h.b16 %v517
        %v2949 = vunpack.c.l.b16 %v518
        %v2950 = vunpack.c.h.b16 %v518
        %v2951 = vunpack.c.l.b16 %v519
        %v2952 = vunpack.c.h.b16 %v519
        %v2953 = vunpack.c.l.b16 %v520
        %v2954 = vunpack.c.h.b16 %v520
        %v2955 = vunpack.c.l.b16 %v521
        %v2956 = vunpack.c.h.b16 %v521
        %v2957 = vunpack.c.l.b16 %v522
        %v2958 = vunpack.c.h.b16 %v522
        %v2959 = vunpack.c.l.b16 %v523
        %v2960 = vunpack.c.h.b16 %v523
        %v2961 = vunpack.c.l.b16 %v524
        %v2962 = vunpack.c.h.b16 %v524
        %v2963 = vunpack.c.l.b16 %v525
        %v2964 = vunpack.c.h.b16 %v525
        %v2965 = vunpack.c.l.b16 %v526
        %v2966 = vunpack.c.h.b16 %v526
        %v2967 = vunpack.c.l.b16 %v527
        %v2968 = vunpack.c.h.b16 %v527
        %v2969 = vunpack.c.l.b16 %v528
        %v2970 = vunpack.c.h.b16 %v528
        %v2971 = vunpack.c.l.b16 %v529
        %v2972 = vunpack.c.h.b16 %v529
        %v2973 = vunpack.c.l.b16 %v530
        %v2974 = vunpack.c.h.b16 %v530
        %v2975 = vunpack.c.l.b16 %v531
        %v2976 = vunpack.c.h.b16 %v531
        %v2977 = vunpack.c.l.b16 %v532
        %v2978 = vunpack.c.h.b16 %v532
        %v2979 = vunpack.c.l.b16 %v533
        %v2980 = vunpack.c.h.b16 %v533
        %v2981 = vunpack.c.l.b16 %v534
        %v2982 = vunpack.c.h.b16 %v534
        %v2983 = vunpack.c.l.b16 %v535
        %v2984 = vunpack.c.h.b16 %v535
        %v2985 = vunpack.c.l.b16 %v536
        %v2986 = vunpack.c.h.b16 %v536
        %v2987 = vunpack.c.l.b16 %v537
        %v2988 = vunpack.c.h.b16 %v537
        %v2989 = vunpack.c.l.b16 %v538
        %v2990 = vunpack.c.h.b16 %v538
        %v2991 = vunpack.c.l.b16 %v539
        %v2992 = vunpack.c.h.b16 %v539
        %v2993 = vunpack.c.l.b16 %v540
        %v2994 = vunpack.c.h.b16 %v540
        %v2995 = vunpack.c.l.b16 %v541
        %v2996 = vunpack.c.h.b16 %v541
        %v2997 = vunpack.c.l.b16 %v542
        %v2998 = vunpack.c.h.b16 %v542
        %v2999 = vunpack.c.l.b16 %v543
        %v3000 = vunpack.c.h.b16 %v543
        %v3001 = vunpack.c.l.b16 %v544
        %v3002 = vunpack.c.h.b16 %v544
        %v3003 = vunpack.c.l.b16 %v545
        %v3004 = vunpack.c.h.b16 %v545
        %v3005 = vunpack.c.l.b16 %v546
        %v3006 = vunpack.c.h.b16 %v546
        %v3007 = vunpack.c.l.b16 %v547
        %v3008 = vunpack.c.h.b16 %v547
        %v3009 = vunpack.c.l.b16 %v548
        %v3010 = vunpack.c.h.b16 %v548
        %v3011 = vunpack.c.l.b16 %v549
        %v3012 = vunpack.c.h.b16 %v549
        %v3013 = vunpack.c.l.b16 %v550
        %v3014 = vunpack.c.h.b16 %v550
        %v3015 = vunpack.c.l.b16 %v551
        %v3016 = vunpack.c.h.b16 %v551
        %v3017 = vunpack.c.l.b16 %v552
        %v3018 = vunpack.c.h.b16 %v552
        %v3019 = vunpack.c.l.b16 %v553
        %v3020 = vunpack.c.h.b16 %v553
        %v3021 = vunpack.c.l.b16 %v554
        %v3022 = vunpack.c.h.b16 %v554
        %v3023 = vunpack.c.l.b16 %v555
        %v3024 = vunpack.c.h.b16 %v555
        %v3025 = vunpack.c.l.b16 %v556
        %v3026 = vunpack.c.h.b16 %v556
        %v3027 = vunpack.c.l.b16 %v557
        %v3028 = vunpack.c.h.b16 %v557
        %v3029 = vunpack.c.l.b16 %v558
        %v3030 = vunpack.c.h.b16 %v558
        %v3031 = vunpack.c.l.b16 %v559
        %v3032 = vunpack.c.h.b16 %v559
        %v3033 = vunpack.c.l.b16 %v560
        %v3034 = vunpack.c.h.b16 %v560
        %v3035 = vunpack.c.l.b16 %v561
        %v3036 = vunpack.c.h.b16 %v561
        %v3037 = vunpack.c.l.b16 %v562
        %v3038 = vunpack.c.h.b16 %v562
        %v3039 = vunpack.c.l.b16 %v563
        %v3040 = vunpack.c.h.b16 %v563
        %v3041 = vunpack.c.l.b16 %v564
        %v3042 = vunpack.c.h.b16 %v564
        %v3043 = vunpack.c.l.b16 %v565
        %v3044 = vunpack.c.h.b16 %v565
        %v3045 = vunpack.c.l.b16 %v566
        %v3046 = vunpack.c.h.b16 %v566
        %v3047 = vunpack.c.l.b16 %v567
        %v3048 = vunpack.c.h.b16 %v567
        %v3049 = vunpack.c.l.b16 %v568
        %v3050 = vunpack.c.h.b16 %v568
        %v3051 = vunpack.c.l.b16 %v569
        %v3052 = vunpack.c.h.b16 %v569
        %v3053 = vunpack.c.l.b16 %v570
        %v3054 = vunpack.c.h.b16 %v570
        %v3055 = vunpack.c.l.b16 %v571
        %v3056 = vunpack.c.h.b16 %v571
        %v3057 = vunpack.c.l.b16 %v572
        %v3058 = vunpack.c.h.b16 %v572
        %v3059 = vunpack.c.l.b16 %v573
        %v3060 = vunpack.c.h.b16 %v573
        %v3061 = vunpack.c.l.b16 %v574
        %v3062 = vunpack.c.h.b16 %v574
        %v3063 = vunpack.c.l.b16 %v575
        %v3064 = vunpack.c.h.b16 %v575
        %v3065 = vunpack.c.l.b16 %v576
        %v3066 = vunpack.c.h.b16 %v576
        %v3067 = vunpack.c.l.b16 %v577
        %v3068 = vunpack.c.h.b16 %v577
        %v3069 = vunpack.c.l.b16 %v578
        %v3070 = vunpack.c.h.b16 %v578
        %v3071 = vunpack.c.l.b16 %v579
        %v3072 = vunpack.c.h.b16 %v579
        %v3073 = vunpack.c.l.b16 %v580
        %v3074 = vunpack.c.h.b16 %v580
        %v3075 = vunpack.c.l.b16 %v581
        %v3076 = vunpack.c.h.b16 %v581
        %v3077 = vunpack.c.l.b16 %v582
        %v3078 = vunpack.c.h.b16 %v582
        %v3079 = vunpack.c.l.b16 %v583
        %v3080 = vunpack.c.h.b16 %v583
        %v3081 = vunpack.c.l.b16 %v584
        %v3082 = vunpack.c.h.b16 %v584
        %v3083 = vunpack.c.l.b16 %v585
        %v3084 = vunpack.c.h.b16 %v585
        %v3085 = vunpack.c.l.b16 %v586
        %v3086 = vunpack.c.h.b16 %v586
        %v3087 = vunpack.c.l.b16 %v587
        %v3088 = vunpack.c.h.b16 %v587
        %v3089 = vunpack.c.l.b16 %v588
        %v3090 = vunpack.c.h.b16 %v588
        %v3091 = vunpack.c.l.b16 %v589
        %v3092 = vunpack.c.h.b16 %v589
        %v3093 = vunpack.c.l.b16 %v590
        %v3094 = vunpack.c.h.b16 %v590
        %v3095 = vunpack.c.l.b16 %v591
        %v3096 = vunpack.c.h.b16 %v591
        %v3097 = vunpack.c.l.b16 %v592
        %v3098 = vunpack.c.h.b16 %v592
        %v3099 = vunpack.c.l.b16 %v593
        %v3100 = vunpack.c.h.b16 %v593
        %v3101 = vunpack.c.l.b16 %v594
        %v3102 = vunpack.c.h.b16 %v594
        %v3103 = vunpack.c.l.b16 %v595
        %v3104 = vunpack.c.h.b16 %v595
        %v3105 = vunpack.c.l.b16 %v596
        %v3106 = vunpack.c.h.b16 %v596
        %v3107 = vunpack.c.l.b16 %v597
        %v3108 = vunpack.c.h.b16 %v597
        %v3109 = vunpack.c.l.b16 %v598
        %v3110 = vunpack.c.h.b16 %v598
        %v3111 = vunpack.c.l.b16 %v599
        %v3112 = vunpack.c.h.b16 %v599
        %v3113 = vunpack.c.l.b16 %v600
        %v3114 = vunpack.c.h.b16 %v600
        %v3115 = vunpack.c.l.b16 %v601
        %v3116 = vunpack.c.h.b16 %v601
        %v3117 = vunpack.c.l.b16 %v602
        %v3118 = vunpack.c.h.b16 %v602
        %v3119 = vunpack.c.l.b16 %v603
        %v3120 = vunpack.c.h.b16 %v603
        %v3121 = vunpack.c.l.b16 %v604
        %v3122 = vunpack.c.h.b16 %v604
        %v3123 = vunpack.c.l.b16 %v605
        %v3124 = vunpack.c.h.b16 %v605
        %v3125 = vunpack.c.l.b16 %v606
        %v3126 = vunpack.c.h.b16 %v606
        %v3127 = vunpack.c.l.b16 %v607
        %v3128 = vunpack.c.h.b16 %v607
        %v3129 = vunpack.c.l.b16 %v608
        %v3130 = vunpack.c.h.b16 %v608
        %v3131 = vunpack.c.l.b16 %v609
        %v3132 = vunpack.c.h.b16 %v609
        %v3133 = vunpack.c.l.b16 %v610
        %v3134 = vunpack.c.h.b16 %v610
        %v3135 = vunpack.c.l.b16 %v611
        %v3136 = vunpack.c.h.b16 %v611
        %v3137 = vunpack.c.l.b16 %v612
        %v3138 = vunpack.c.h.b16 %v612
        %v3139 = vunpack.c.l.b16 %v613
        %v3140 = vunpack.c.h.b16 %v613
        %v3141 = vunpack.c.l.b16 %v614
        %v3142 = vunpack.c.h.b16 %v614
        %v3143 = vunpack.c.l.b16 %v615
        %v3144 = vunpack.c.h.b16 %v615
        %v3145 = vunpack.c.l.b16 %v616
        %v3146 = vunpack.c.h.b16 %v616
        %v3147 = vunpack.c.l.b16 %v617
        %v3148 = vunpack.c.h.b16 %v617
        %v3149 = vunpack.c.l.b16 %v618
        %v3150 = vunpack.c.h.b16 %v618
        %v3151 = vunpack.c.l.b16 %v619
        %v3152 = vunpack.c.h.b16 %v619
        %v3153 = vunpack.c.l.b16 %v620
        %v3154 = vunpack.c.h.b16 %v620
        %v3155 = vunpack.c.l.b16 %v621
        %v3156 = vunpack.c.h.b16 %v621
        %v3157 = vunpack.c.l.b16 %v622
        %v3158 = vunpack.c.h.b16 %v622
        %v3159 = vunpack.c.l.b16 %v623
        %v3160 = vunpack.c.h.b16 %v623
        %v3161 = vunpack.c.l.b16 %v624
        %v3162 = vunpack.c.h.b16 %v624
        %v3163 = vunpack.c.l.b16 %v625
        %v3164 = vunpack.c.h.b16 %v625
        %v3165 = vunpack.c.l.b16 %v626
        %v3166 = vunpack.c.h.b16 %v626
        %v3167 = vunpack.c.l.b16 %v627
        %v3168 = vunpack.c.h.b16 %v627
        %v3169 = vunpack.c.l.b16 %v628
        %v3170 = vunpack.c.h.b16 %v628
        %v3171 = vunpack.c.l.b16 %v629
        %v3172 = vunpack.c.h.b16 %v629
        %v3173 = vunpack.c.l.b16 %v630
        %v3174 = vunpack.c.h.b16 %v630
        %v3175 = vunpack.c.l.b16 %v631
        %v3176 = vunpack.c.h.b16 %v631
        %v3177 = vunpack.c.l.b16 %v632
        %v3178 = vunpack.c.h.b16 %v632
        %v3179 = vunpack.c.l.b16 %v633
        %v3180 = vunpack.c.h.b16 %v633
        %v3181 = vunpack.c.l.b16 %v634
        %v3182 = vunpack.c.h.b16 %v634
        %v3183 = vunpack.c.l.b16 %v635
        %v3184 = vunpack.c.h.b16 %v635
        %v3185 = vunpack.c.l.b16 %v636
        %v3186 = vunpack.c.h.b16 %v636
        %v3187 = vunpack.c.l.b16 %v637
        %v3188 = vunpack.c.h.b16 %v637
        %v3189 = vunpack.c.l.b16 %v638
        %v3190 = vunpack.c.h.b16 %v638
        %v3191 = vunpack.c.l.b16 %v639
        %v3192 = vunpack.c.h.b16 %v639
        %v3193 = vunpack.c.l.b16 %v640
        %v3194 = vunpack.c.h.b16 %v640
        %v3195 = vunpack.c.l.b16 %v641
        %v3196 = vunpack.c.h.b16 %v641
        %v3197 = vunpack.c.l.b16 %v642
        %v3198 = vunpack.c.h.b16 %v642
        %v3199 = vunpack.c.l.b16 %v643
        %v3200 = vunpack.c.h.b16 %v643
        %v3201 = vunpack.c.l.b16 %v644
        %v3202 = vunpack.c.h.b16 %v644
        %v3203 = vunpack.c.l.b16 %v645
        %v3204 = vunpack.c.h.b16 %v645
        %v3205 = vunpack.c.l.b16 %v646
        %v3206 = vunpack.c.h.b16 %v646
        %v3207 = vunpack.c.l.b16 %v647
        %v3208 = vunpack.c.h.b16 %v647
        %v3209 = vunpack.c.l.b16 %v648
        %v3210 = vunpack.c.h.b16 %v648
        %v3211 = vunpack.c.l.b16 %v649
        %v3212 = vunpack.c.h.b16 %v649
        %v3213 = vunpack.c.l.b16 %v650
        %v3214 = vunpack.c.h.b16 %v650
        %v3215 = vunpack.c.l.b16 %v651
        %v3216 = vunpack.c.h.b16 %v651
        %v3217 = vunpack.c.l.b16 %v652
        %v3218 = vunpack.c.h.b16 %v652
        %v3219 = vunpack.c.l.b16 %v653
        %v3220 = vunpack.c.h.b16 %v653
        %v3221 = vunpack.c.l.b16 %v654
        %v3222 = vunpack.c.h.b16 %v654
        %v3223 = vunpack.c.l.b16 %v655
        %v3224 = vunpack.c.h.b16 %v655
        %v3225 = vunpack.c.l.b16 %v656
        %v3226 = vunpack.c.h.b16 %v656
        %v3227 = vunpack.c.l.b16 %v657
        %v3228 = vunpack.c.h.b16 %v657
        %v3229 = vunpack.c.l.b16 %v658
        %v3230 = vunpack.c.h.b16 %v658
        %v3231 = vunpack.c.l.b16 %v659
        %v3232 = vunpack.c.h.b16 %v659
        %v3233 = vunpack.c.l.b16 %v660
        %v3234 = vunpack.c.h.b16 %v660
        %v3235 = vunpack.c.l.b16 %v661
        %v3236 = vunpack.c.h.b16 %v661
        %v3237 = vunpack.c.l.b16 %v662
        %v3238 = vunpack.c.h.b16 %v662
        %v3239 = vunpack.c.l.b16 %v663
        %v3240 = vunpack.c.h.b16 %v663
        %v3241 = vunpack.c.l.b16 %v664
        %v3242 = vunpack.c.h.b16 %v664
        %v3243 = vunpack.c.l.b16 %v665
        %v3244 = vunpack.c.h.b16 %v665
        %v3245 = vunpack.c.l.b16 %v666
        %v3246 = vunpack.c.h.b16 %v666
        %v3247 = vunpack.c.l.b16 %v667
        %v3248 = vunpack.c.h.b16 %v667
        %v3249 = vunpack.c.l.b16 %v668
        %v3250 = vunpack.c.h.b16 %v668
        %v3251 = vunpack.c.l.b16 %v669
        %v3252 = vunpack.c.h.b16 %v669
        %v3253 = vunpack.c.l.b16 %v670
        %v3254 = vunpack.c.h.b16 %v670
        %v3255 = vunpack.c.l.b16 %v671
        %v3256 = vunpack.c.h.b16 %v671
        %v3257 = vunpack.c.l.b16 %v672
        %v3258 = vunpack.c.h.b16 %v672
        %v3259 = vunpack.c.l.b16 %v673
        %v3260 = vunpack.c.h.b16 %v673
        %v3261 = vunpack.c.l.b16 %v674
        %v3262 = vunpack.c.h.b16 %v674
        %v3263 = vunpack.c.l.b16 %v675
        %v3264 = vunpack.c.h.b16 %v675
        %v3265 = vunpack.c.l.b16 %v676
        %v3266 = vunpack.c.h.b16 %v676
        %v3267 = vunpack.c.l.b16 %v677
        %v3268 = vunpack.c.h.b16 %v677
        %v3269 = vunpack.c.l.b16 %v678
        %v3270 = vunpack.c.h.b16 %v678
        %v3271 = vunpack.c.l.b16 %v679
        %v3272 = vunpack.c.h.b16 %v679
        %v3273 = vunpack.c.l.b16 %v680
        %v3274 = vunpack.c.h.b16 %v680
        %v3275 = vunpack.c.l.b16 %v681
        %v3276 = vunpack.c.h.b16 %v681
        %v3277 = vunpack.c.l.b16 %v682
        %v3278 = vunpack.c.h.b16 %v682
        %v3279 = vunpack.c.l.b16 %v683
        %v3280 = vunpack.c.h.b16 %v683
        %v3281 = vunpack.c.l.b16 %v684
        %v3282 = vunpack.c.h.b16 %v684
        %v3283 = vunpack.c.l.b16 %v685
        %v3284 = vunpack.c.h.b16 %v685
        %v3285 = vunpack.c.l.b16 %v686
        %v3286 = vunpack.c.h.b16 %v686
        %v3287 = vunpack.c.l.b16 %v687
        %v3288 = vunpack.c.h.b16 %v687
        %v3289 = vunpack.c.l.b16 %v688
        %v3290 = vunpack.c.h.b16 %v688
        %v3291 = vunpack.c.l.b16 %v689
        %v3292 = vunpack.c.h.b16 %v689
        %v3293 = vunpack.c.l.b16 %v690
        %v3294 = vunpack.c.h.b16 %v690
        %v3295 = vunpack.c.l.b16 %v691
        %v3296 = vunpack.c.h.b16 %v691
        %v3297 = vunpack.c.l.b16 %v692
        %v3298 = vunpack.c.h.b16 %v692
        %v3299 = vunpack.c.l.b16 %v693
        %v3300 = vunpack.c.h.b16 %v693
        %v3301 = vunpack.c.l.b16 %v694
        %v3302 = vunpack.c.h.b16 %v694
        %v3303 = vunpack.c.l.b16 %v695
        %v3304 = vunpack.c.h.b16 %v695
        %v3305 = vunpack.c.l.b16 %v696
        %v3306 = vunpack.c.h.b16 %v696
        %v3307 = vunpack.c.l.b16 %v697
        %v3308 = vunpack.c.h.b16 %v697
        %v3309 = vunpack.c.l.b16 %v698
        %v3310 = vunpack.c.h.b16 %v698
        %v3311 = vunpack.c.l.b16 %v699
        %v3312 = vunpack.c.h.b16 %v699
        %v3313 = vunpack.c.l.b16 %v700
        %v3314 = vunpack.c.h.b16 %v700
        %v3315 = vunpack.c.l.b16 %v701
        %v3316 = vunpack.c.h.b16 %v701
        %v3317 = vunpack.c.l.b16 %v702
        %v3318 = vunpack.c.h.b16 %v702
        %v3319 = vunpack.c.l.b16 %v703
        %v3320 = vunpack.c.h.b16 %v703
        %v3321 = vunpack.c.l.b16 %v704
        %v3322 = vunpack.c.h.b16 %v704
        %v3323 = vunpack.c.l.b16 %v705
        %v3324 = vunpack.c.h.b16 %v705
        %v3325 = vunpack.c.l.b16 %v706
        %v3326 = vunpack.c.h.b16 %v706
        %v3327 = vunpack.c.l.b16 %v707
        %v3328 = vunpack.c.h.b16 %v707
        %v3329 = vunpack.c.l.b16 %v708
        %v3330 = vunpack.c.h.b16 %v708
        %v3331 = vunpack.c.l.b16 %v709
        %v3332 = vunpack.c.h.b16 %v709
        %v3333 = vunpack.c.l.b16 %v710
        %v3334 = vunpack.c.h.b16 %v710
        %v3335 = vunpack.c.l.b16 %v711
        %v3336 = vunpack.c.h.b16 %v711
        %v3337 = vunpack.c.l.b16 %v712
        %v3338 = vunpack.c.h.b16 %v712
        %v3339 = vunpack.c.l.b16 %v713
        %v3340 = vunpack.c.h.b16 %v713
        %v3341 = vunpack.c.l.b16 %v714
        %v3342 = vunpack.c.h.b16 %v714
        %v3343 = vunpack.c.l.b16 %v715
        %v3344 = vunpack.c.h.b16 %v715
        %v3345 = vunpack.c.l.b16 %v716
        %v3346 = vunpack.c.h.b16 %v716
        %v3347 = vunpack.c.l.b16 %v717
        %v3348 = vunpack.c.h.b16 %v717
        %v3349 = vunpack.c.l.b16 %v718
        %v3350 = vunpack.c.h.b16 %v718
        %v3351 = vunpack.c.l.b16 %v719
        %v3352 = vunpack.c.h.b16 %v719
        %v3353 = vunpack.c.l.b16 %v720
        %v3354 = vunpack.c.h.b16 %v720
        %v3355 = vunpack.c.l.b16 %v721
        %v3356 = vunpack.c.h.b16 %v721
        %v3357 = vunpack.c.l.b16 %v722
        %v3358 = vunpack.c.h.b16 %v722
        %v3359 = vunpack.c.l.b16 %v723
        %v3360 = vunpack.c.h.b16 %v723
        %v3361 = vunpack.c.l.b16 %v724
        %v3362 = vunpack.c.h.b16 %v724
        %v3363 = vunpack.c.l.b16 %v725
        %v3364 = vunpack.c.h.b16 %v725
        %v3365 = vunpack.c.l.b16 %v726
        %v3366 = vunpack.c.h.b16 %v726
        %v3367 = vunpack.c.l.b16 %v727
        %v3368 = vunpack.c.h.b16 %v727
        %v3369 = vunpack.c.l.b16 %v728
        %v3370 = vunpack.c.h.b16 %v728
        %v3371 = vunpack.c.l.b16 %v729
        %v3372 = vunpack.c.h.b16 %v729
        %v3373 = vunpack.c.l.b16 %v730
        %v3374 = vunpack.c.h.b16 %v730
        %v3375 = vunpack.c.l.b16 %v731
        %v3376 = vunpack.c.h.b16 %v731
        %v3377 = vunpack.c.l.b16 %v732
        %v3378 = vunpack.c.h.b16 %v732
        %v3379 = vunpack.c.l.b16 %v733
        %v3380 = vunpack.c.h.b16 %v733
        %v3381 = vunpack.c.l.b16 %v734
        %v3382 = vunpack.c.h.b16 %v734
        %v3383 = vunpack.c.l.b16 %v735
        %v3384 = vunpack.c.h.b16 %v735
        %v3385 = vunpack.c.l.b16 %v736
        %v3386 = vunpack.c.h.b16 %v736
        %v3387 = vunpack.c.l.b16 %v737
        %v3388 = vunpack.c.h.b16 %v737
        %v3389 = vunpack.c.l.b16 %v738
        %v3390 = vunpack.c.h.b16 %v738
        %v3391 = vunpack.c.l.b16 %v739
        %v3392 = vunpack.c.h.b16 %v739
        %v3393 = vunpack.c.l.b16 %v740
        %v3394 = vunpack.c.h.b16 %v740
        %v3395 = vunpack.c.l.b16 %v741
        %v3396 = vunpack.c.h.b16 %v741
        %v3397 = vunpack.c.l.b16 %v742
        %v3398 = vunpack.c.h.b16 %v742
        %v3399 = vunpack.c.l.b16 %v743
        %v3400 = vunpack.c.h.b16 %v743
        %v3401 = vunpack.c.l.b16 %v744
        %v3402 = vunpack.c.h.b16 %v744
        %v3403 = vunpack.c.l.b16 %v745
        %v3404 = vunpack.c.h.b16 %v745
        %v3405 = vunpack.c.l.b16 %v746
        %v3406 = vunpack.c.h.b16 %v746
        %v3407 = vunpack.c.l.b16 %v747
        %v3408 = vunpack.c.h.b16 %v747
        %v3409 = vunpack.c.l.b16 %v748
        %v3410 = vunpack.c.h.b16 %v748
        %v3411 = vunpack.c.l.b16 %v749
        %v3412 = vunpack.c.h.b16 %v749
        %v3413 = vunpack.c.l.b16 %v750
        %v3414 = vunpack.c.h.b16 %v750
        %v3415 = vunpack.c.l.b16 %v751
        %v3416 = vunpack.c.h.b16 %v751
        %v3417 = vunpack.c.l.b16 %v752
        %v3418 = vunpack.c.h.b16 %v752
        %v3419 = vunpack.c.l.b16 %v753
        %v3420 = vunpack.c.h.b16 %v753
        %v3421 = vunpack.c.l.b16 %v754
        %v3422 = vunpack.c.h.b16 %v754
        %v3423 = vunpack.c.l.b16 %v755
        %v3424 = vunpack.c.h.b16 %v755
        %v3425 = vunpack.c.l.b16 %v756
        %v3426 = vunpack.c.h.b16 %v756
        %v3427 = vunpack.c.l.b16 %v757
        %v3428 = vunpack.c.h.b16 %v757
        %v3429 = vunpack.c.l.b16 %v758
        %v3430 = vunpack.c.h.b16 %v758
        %v3431 = vunpack.c.l.b16 %v759
        %v3432 = vunpack.c.h.b16 %v759
        %v3433 = vunpack.c.l.b16 %v760
        %v3434 = vunpack.c.h.b16 %v760
        %v3435 = vunpack.c.l.b16 %v761
        %v3436 = vunpack.c.h.b16 %v761
        %v3437 = vunpack.c.l.b16 %v762
        %v3438 = vunpack.c.h.b16 %v762
        %v3439 = vunpack.c.l.b16 %v763
        %v3440 = vunpack.c.h.b16 %v763
        %v3441 = vunpack.c.l.b16 %v764
        %v3442 = vunpack.c.h.b16 %v764
        %v3443 = vunpack.c.l.b16 %v765
        %v3444 = vunpack.c.h.b16 %v765
        %v3445 = vunpack.c.l.b16 %v766
        %v3446 = vunpack.c.h.b16 %v766
        %v3447 = vunpack.c.l.b16 %v767
        %v3448 = vunpack.c.h.b16 %v767
        %v3449 = vunpack.c.l.b16 %v768
        %v3450 = vunpack.c.h.b16 %v768
        %v3451 = vunpack.c.l.b16 %v769
        %v3452 = vunpack.c.h.b16 %v769
        %v3453 = vunpack.c.l.b16 %v770
        %v3454 = vunpack.c.h.b16 %v770
        %v3455 = vunpack.c.l.b16 %v771
        %v3456 = vunpack.c.h.b16 %v771
        %v3457 = vunpack.c.l.b16 %v772
        %v3458 = vunpack.c.h.b16 %v772
        %v3459 = vunpack.c.l.b16 %v773
        %v3460 = vunpack.c.h.b16 %v773
        %v3461 = vunpack.c.l.b16 %v774
        %v3462 = vunpack.c.h.b16 %v774
        %v3463 = vunpack.c.l.b16 %v775
        %v3464 = vunpack.c.h.b16 %v775
        %v3465 = vunpack.c.l.b16 %v776
        %v3466 = vunpack.c.h.b16 %v776
        %v3467 = vunpack.c.l.b16 %v777
        %v3468 = vunpack.c.h.b16 %v777
        %v3469 = vunpack.c.l.b16 %v778
        %v3470 = vunpack.c.h.b16 %v778
        %v3471 = vunpack.c.l.b16 %v779
        %v3472 = vunpack.c.h.b16 %v779
        %v3473 = vunpack.c.l.b16 %v780
        %v3474 = vunpack.c.h.b16 %v780
        %v3475 = vunpack.c.l.b16 %v781
        %v3476 = vunpack.c.h.b16 %v781
        %v3477 = vunpack.c.l.b16 %v782
        %v3478 = vunpack.c.h.b16 %v782
        %v3479 = vunpack.c.l.b16 %v783
        %v3480 = vunpack.c.h.b16 %v783
        %v3481 = vunpack.c.l.b16 %v784
        %v3482 = vunpack.c.h.b16 %v784
        %v3483 = vunpack.c.l.b16 %v785
        %v3484 = vunpack.c.h.b16 %v785
        %v3485 = vunpack.c.l.b16 %v786
        %v3486 = vunpack.c.h.b16 %v786
        %v3487 = vunpack.c.l.b16 %v787
        %v3488 = vunpack.c.h.b16 %v787
        %v3489 = vunpack.c.l.b16 %v788
        %v3490 = vunpack.c.h.b16 %v788
        %v3491 = vunpack.c.l.b16 %v789
        %v3492 = vunpack.c.h.b16 %v789
        %v3493 = vunpack.c.l.b16 %v790
        %v3494 = vunpack.c.h.b16 %v790
        %v3495 = vunpack.c.l.b16 %v791
        %v3496 = vunpack.c.h.b16 %v791
        %v3497 = vunpack.c.l.b16 %v792
        %v3498 = vunpack.c.h.b16 %v792
        %v3499 = vunpack.c.l.b16 %v793
        %v3500 = vunpack.c.h.b16 %v793
        %v3501 = vunpack.c.l.b16 %v794
        %v3502 = vunpack.c.h.b16 %v794
        %v3503 = vunpack.c.l.b16 %v795
        %v3504 = vunpack.c.h.b16 %v795
        %v3505 = vunpack.c.l.b16 %v796
        %v3506 = vunpack.c.h.b16 %v796
        %v3507 = vunpack.c.l.b16 %v797
        %v3508 = vunpack.c.h.b16 %v797
        %v3509 = vunpack.c.l.b16 %v798
        %v3510 = vunpack.c.h.b16 %v798
        %v3511 = vunpack.c.l.b16 %v799
        %v3512 = vunpack.c.h.b16 %v799
        %v3513 = vunpack.c.l.b16 %v800
        %v3514 = vunpack.c.h.b16 %v800
        %v3515 = vunpack.c.l.b16 %v801
        %v3516 = vunpack.c.h.b16 %v801
        %v3517 = vunpack.c.l.b16 %v802
        %v3518 = vunpack.c.h.b16 %v802
        %v3519 = vunpack.c.l.b16 %v803
        %v3520 = vunpack.c.h.b16 %v803
        %v3521 = vunpack.c.l.b16 %v804
        %v3522 = vunpack.c.h.b16 %v804
        %v3523 = vunpack.c.l.b16 %v805
        %v3524 = vunpack.c.h.b16 %v805
        %v3525 = vunpack.c.l.b16 %v806
        %v3526 = vunpack.c.h.b16 %v806
        %v3527 = vunpack.c.l.b16 %v807
        %v3528 = vunpack.c.h.b16 %v807
        %v3529 = vunpack.c.l.b16 %v808
        %v3530 = vunpack.c.h.b16 %v808
        %v3531 = vunpack.c.l.b16 %v809
        %v3532 = vunpack.c.h.b16 %v809
        %v3533 = vunpack.c.l.b16 %v810
        %v3534 = vunpack.c.h.b16 %v810
        %v3535 = vunpack.c.l.b16 %v811
        %v3536 = vunpack.c.h.b16 %v811
        %v3537 = vunpack.c.l.b16 %v812
        %v3538 = vunpack.c.h.b16 %v812
        %v3539 = vunpack.c.l.b16 %v813
        %v3540 = vunpack.c.h.b16 %v813
        %v3541 = vunpack.c.l.b16 %v814
        %v3542 = vunpack.c.h.b16 %v814
        %v3543 = vunpack.c.l.b16 %v815
        %v3544 = vunpack.c.h.b16 %v815
        %v3545 = vunpack.c.l.b16 %v816
        %v3546 = vunpack.c.h.b16 %v816
        %v3547 = vunpack.c.l.b16 %v817
        %v3548 = vunpack.c.h.b16 %v817
        %v3549 = vunpack.c.l.b16 %v818
        %v3550 = vunpack.c.h.b16 %v818
        %v3551 = vunpack.c.l.b16 %v819
        %v3552 = vunpack.c.h.b16 %v819
        %v3553 = vunpack.c.l.b16 %v820
        %v3554 = vunpack.c.h.b16 %v820
        %v3555 = vunpack.c.l.b16 %v821
        %v3556 = vunpack.c.h.b16 %v821
        %v3557 = vunpack.c.l.b16 %v822
        %v3558 = vunpack.c.h.b16 %v822
        %v3559 = vunpack.c.l.b16 %v823
        %v3560 = vunpack.c.h.b16 %v823
        %v3561 = vunpack.c.l.b16 %v824
        %v3562 = vunpack.c.h.b16 %v824
        %v3563 = vunpack.c.l.b16 %v825
        %v3564 = vunpack.c.h.b16 %v825
        %v3565 = vunpack.c.l.b16 %v826
        %v3566 = vunpack.c.h.b16 %v826
        %v3567 = vunpack.c.l.b16 %v827
        %v3568 = vunpack.c.h.b16 %v827
        %v3569 = vunpack.c.l.b16 %v828
        %v3570 = vunpack.c.h.b16 %v828
        %v3571 = vunpack.c.l.b16 %v829
        %v3572 = vunpack.c.h.b16 %v829
        %v3573 = vunpack.c.l.b16 %v830
        %v3574 = vunpack.c.h.b16 %v830
        %v3575 = vunpack.c.l.b16 %v831
        %v3576 = vunpack.c.h.b16 %v831
        %v3577 = vunpack.c.l.b16 %v832
        %v3578 = vunpack.c.h.b16 %v832
        %v3579 = vunpack.c.l.b16 %v833
        %v3580 = vunpack.c.h.b16 %v833
        %v3581 = vunpack.c.l.b16 %v834
        %v3582 = vunpack.c.h.b16 %v834
        %v3583 = vunpack.c.l.b16 %v835
        %v3584 = vunpack.c.h.b16 %v835
        %v3585 = vunpack.c.l.b16 %v836
        %v3586 = vunpack.c.h.b16 %v836
        %v3587 = vunpack.c.l.b16 %v837
        %v3588 = vunpack.c.h.b16 %v837
        %v3589 = vunpack.c.l.b16 %v838
        %v3590 = vunpack.c.h.b16 %v838
        %v3591 = vunpack.c.l.b16 %v839
        %v3592 = vunpack.c.h.b16 %v839
        %v3593 = vunpack.c.l.b16 %v840
        %v3594 = vunpack.c.h.b16 %v840
        %v3595 = vunpack.c.l.b16 %v841
        %v3596 = vunpack.c.h.b16 %v841
        %v3597 = vunpack.c.l.b16 %v842
        %v3598 = vunpack.c.h.b16 %v842
        %v3599 = vunpack.c.l.b16 %v843
        %v3600 = vunpack.c.h.b16 %v843
        %v3601 = vunpack.c.l.b16 %v844
        %v3602 = vunpack.c.h.b16 %v844
        %v3603 = vunpack.c.l.b16 %v845
        %v3604 = vunpack.c.h.b16 %v845
        %v3605 = vunpack.c.l.b16 %v846
        %v3606 = vunpack.c.h.b16 %v846
        %v3607 = vunpack.c.l.b16 %v847
        %v3608 = vunpack.c.h.b16 %v847
        %v3609 = vunpack.c.l.b16 %v848
        %v3610 = vunpack.c.h.b16 %v848
        %v3611 = vunpack.c.l.b16 %v849
        %v3612 = vunpack.c.h.b16 %v849
        %v3613 = vunpack.c.l.b16 %v850
        %v3614 = vunpack.c.h.b16 %v850
        %v3615 = vunpack.c.l.b16 %v851
        %v3616 = vunpack.c.h.b16 %v851
        %v3617 = vunpack.c.l.b16 %v852
        %v3618 = vunpack.c.h.b16 %v852
        %v3619 = vunpack.c.l.b16 %v853
        %v3620 = vunpack.c.h.b16 %v853
        %v3621 = vunpack.c.l.b16 %v854
        %v3622 = vunpack.c.h.b16 %v854
        %v3623 = vunpack.c.l.b16 %v855
        %v3624 = vunpack.c.h.b16 %v855
        %v3625 = vunpack.c.l.b16 %v856
        %v3626 = vunpack.c.h.b16 %v856
        %v3627 = vunpack.c.l.b16 %v857
        %v3628 = vunpack.c.h.b16 %v857
        %v3629 = vunpack.c.l.b16 %v858
        %v3630 = vunpack.c.h.b16 %v858
        %v3631 = vunpack.c.l.b16 %v859
        %v3632 = vunpack.c.h.b16 %v859
        %v3633 = vunpack.c.l.b16 %v860
        %v3634 = vunpack.c.h.b16 %v860
        %v3635 = vunpack.c.l.b16 %v861
        %v3636 = vunpack.c.h.b16 %v861
        %v3637 = vunpack.c.l.b16 %v862
        %v3638 = vunpack.c.h.b16 %v862
        %v3639 = vunpack.c.l.b16 %v863
        %v3640 = vunpack.c.h.b16 %v863
        %v3641 = vunpack.c.l.b16 %v864
        %v3642 = vunpack.c.h.b16 %v864
        %v3643 = vunpack.c.l.b16 %v865
        %v3644 = vunpack.c.h.b16 %v865
        %v3645 = vunpack.c.l.b16 %v866
        %v3646 = vunpack.c.h.b16 %v866
        %v3647 = vunpack.c.l.b16 %v867
        %v3648 = vunpack.c.h.b16 %v867
        %v3649 = vunpack.c.l.b16 %v868
        %v3650 = vunpack.c.h.b16 %v868
        %v3651 = vunpack.c.l.b16 %v869
        %v3652 = vunpack.c.h.b16 %v869
        %v3653 = vunpack.c.l.b16 %v870
        %v3654 = vunpack.c.h.b16 %v870
        %v3655 = vunpack.c.l.b16 %v871
        %v3656 = vunpack.c.h.b16 %v871
        %v3657 = vunpack.c.l.b16 %v872
        %v3658 = vunpack.c.h.b16 %v872
        %v3659 = vunpack.c.l.b16 %v873
        %v3660 = vunpack.c.h.b16 %v873
        %v3661 = vunpack.c.l.b16 %v874
        %v3662 = vunpack.c.h.b16 %v874
        %v3663 = vunpack.c.l.b16 %v875
        %v3664 = vunpack.c.h.b16 %v875
        %v3665 = vunpack.c.l.b16 %v876
        %v3666 = vunpack.c.h.b16 %v876
        %v3667 = vunpack.c.l.b16 %v877
        %v3668 = vunpack.c.h.b16 %v877
        %v3669 = vunpack.c.l.b16 %v878
        %v3670 = vunpack.c.h.b16 %v878
        %v3671 = vunpack.c.l.b16 %v879
        %v3672 = vunpack.c.h.b16 %v879
        %v3673 = vunpack.c.l.b16 %v880
        %v3674 = vunpack.c.h.b16 %v880
        %v3675 = vunpack.c.l.b16 %v881
        %v3676 = vunpack.c.h.b16 %v881
        %v3677 = vunpack.c.l.b16 %v882
        %v3678 = vunpack.c.h.b16 %v882
        %v3679 = vunpack.c.l.b16 %v883
        %v3680 = vunpack.c.h.b16 %v883
        %v3681 = vunpack.c.l.b16 %v884
        %v3682 = vunpack.c.h.b16 %v884
        %v3683 = vunpack.c.l.b16 %v885
        %v3684 = vunpack.c.h.b16 %v885
        %v3685 = vunpack.c.l.b16 %v886
        %v3686 = vunpack.c.h.b16 %v886
        %v3687 = vunpack.c.l.b16 %v887
        %v3688 = vunpack.c.h.b16 %v887
        %v3689 = vunpack.c.l.b16 %v888
        %v3690 = vunpack.c.h.b16 %v888
        %v3691 = vunpack.c.l.b16 %v889
        %v3692 = vunpack.c.h.b16 %v889
        %v3693 = vunpack.c.l.b16 %v890
        %v3694 = vunpack.c.h.b16 %v890
        %v3695 = vunpack.c.l.b16 %v891
        %v3696 = vunpack.c.h.b16 %v891
        %v3697 = vunpack.c.l.b16 %v892
        %v3698 = vunpack.c.h.b16 %v892
        %v3699 = vunpack.c.l.b16 %v893
        %v3700 = vunpack.c.h.b16 %v893
        %v3701 = vunpack.c.l.b16 %v894
        %v3702 = vunpack.c.h.b16 %v894
        %v3703 = vunpack.c.l.b16 %v895
        %v3704 = vunpack.c.h.b16 %v895
        %v3705 = vunpack.c.l.b16 %v896
        %v3706 = vunpack.c.h.b16 %v896
        %v3707 = vunpack.c.l.b16 %v897
        %v3708 = vunpack.c.h.b16 %v897
        %v3709 = vunpack.c.l.b16 %v898
        %v3710 = vunpack.c.h.b16 %v898
        %v3711 = vunpack.c.l.b16 %v899
        %v3712 = vunpack.c.h.b16 %v899
        %v3713 = vunpack.c.l.b16 %v900
        %v3714 = vunpack.c.h.b16 %v900
        %v3715 = vunpack.c.l.b16 %v901
        %v3716 = vunpack.c.h.b16 %v901
        %v3717 = vunpack.c.l.b16 %v902
        %v3718 = vunpack.c.h.b16 %v902
        %v3719 = vunpack.c.l.b16 %v903
        %v3720 = vunpack.c.h.b16 %v903
        %v3721 = vunpack.c.l.b16 %v904
        %v3722 = vunpack.c.h.b16 %v904
        %v3723 = vunpack.c.l.b16 %v905
        %v3724 = vunpack.c.h.b16 %v905
        %v3725 = vunpack.c.l.b16 %v906
        %v3726 = vunpack.c.h.b16 %v906
        %v3727 = vunpack.c.l.b16 %v907
        %v3728 = vunpack.c.h.b16 %v907
        %v3729 = vunpack.c.l.b16 %v908
        %v3730 = vunpack.c.h.b16 %v908
        %v3731 = vunpack.c.l.b16 %v909
        %v3732 = vunpack.c.h.b16 %v909
        %v3733 = vunpack.c.l.b16 %v910
        %v3734 = vunpack.c.h.b16 %v910
        %v3735 = vunpack.c.l.b16 %v911
        %v3736 = vunpack.c.h.b16 %v911
        %v3737 = vunpack.c.l.b16 %v912
        %v3738 = vunpack.c.h.b16 %v912
        %v3739 = vunpack.c.l.b16 %v913
        %v3740 = vunpack.c.h.b16 %v913
        %v3741 = vunpack.c.l.b16 %v914
        %v3742 = vunpack.c.h.b16 %v914
        %v3743 = vunpack.c.l.b16 %v915
        %v3744 = vunpack.c.h.b16 %v915
        %v3745 = vunpack.c.l.b16 %v916
        %v3746 = vunpack.c.h.b16 %v916
        %v3747 = vunpack.c.l.b16 %v917
        %v3748 = vunpack.c.h.b16 %v917
        %v3749 = vunpack.c.l.b16 %v918
        %v3750 = vunpack.c.h.b16 %v918
        %v3751 = vunpack.c.l.b16 %v919
        %v3752 = vunpack.c.h.b16 %v919
        %v3753 = vunpack.c.l.b16 %v920
        %v3754 = vunpack.c.h.b16 %v920
        %v3755 = vunpack.c.l.b16 %v921
        %v3756 = vunpack.c.h.b16 %v921
        %v3757 = vunpack.c.l.b16 %v922
        %v3758 = vunpack.c.h.b16 %v922
        %v3759 = vunpack.c.l.b16 %v923
        %v3760 = vunpack.c.h.b16 %v923
        %v3761 = vunpack.c.l.b16 %v924
        %v3762 = vunpack.c.h.b16 %v924
        %v3763 = vunpack.c.l.b16 %v925
        %v3764 = vunpack.c.h.b16 %v925
        %v3765 = vunpack.c.l.b16 %v926
        %v3766 = vunpack.c.h.b16 %v926
        %v3767 = vunpack.c.l.b16 %v927
        %v3768 = vunpack.c.h.b16 %v927
        %v3769 = vunpack.c.l.b16 %v928
        %v3770 = vunpack.c.h.b16 %v928
        %v3771 = vunpack.c.l.b16 %v929
        %v3772 = vunpack.c.h.b16 %v929
        %v3773 = vunpack.c.l.b16 %v930
        %v3774 = vunpack.c.h.b16 %v930
        %v3775 = vunpack.c.l.b16 %v931
        %v3776 = vunpack.c.h.b16 %v931
        %v3777 = vunpack.c.l.b16 %v932
        %v3778 = vunpack.c.h.b16 %v932
        %v3779 = vunpack.c.l.b16 %v933
        %v3780 = vunpack.c.h.b16 %v933
        %v3781 = vunpack.c.l.b16 %v934
        %v3782 = vunpack.c.h.b16 %v934
        %v3783 = vunpack.c.l.b16 %v935
        %v3784 = vunpack.c.h.b16 %v935
        %v3785 = vunpack.c.l.b16 %v936
        %v3786 = vunpack.c.h.b16 %v936
        %v3787 = vunpack.c.l.b16 %v937
        %v3788 = vunpack.c.h.b16 %v937
        %v3789 = vunpack.c.l.b16 %v938
        %v3790 = vunpack.c.h.b16 %v938
        %v3791 = vunpack.c.l.b16 %v939
        %v3792 = vunpack.c.h.b16 %v939
        %v3793 = vunpack.c.l.b16 %v940
        %v3794 = vunpack.c.h.b16 %v940
        %v3795 = vunpack.c.l.b16 %v941
        %v3796 = vunpack.c.h.b16 %v941
        %v3797 = vunpack.c.l.b16 %v942
        %v3798 = vunpack.c.h.b16 %v942
        %v3799 = vunpack.c.l.b16 %v943
        %v3800 = vunpack.c.h.b16 %v943
        %v3801 = vunpack.c.l.b16 %v944
        %v3802 = vunpack.c.h.b16 %v944
        %v3803 = vunpack.c.l.b16 %v945
        %v3804 = vunpack.c.h.b16 %v945
        %v3805 = vunpack.c.l.b16 %v946
        %v3806 = vunpack.c.h.b16 %v946
        %v3807 = vunpack.c.l.b16 %v947
        %v3808 = vunpack.c.h.b16 %v947
        %v3809 = vunpack.c.l.b16 %v948
        %v3810 = vunpack.c.h.b16 %v948
        %v3811 = vunpack.c.l.b16 %v949
        %v3812 = vunpack.c.h.b16 %v949
        %v3813 = vunpack.c.l.b16 %v950
        %v3814 = vunpack.c.h.b16 %v950
        %v3815 = vunpack.c.l.b16 %v951
        %v3816 = vunpack.c.h.b16 %v951
        %v3817 = vunpack.c.l.b16 %v952
        %v3818 = vunpack.c.h.b16 %v952
        %v3819 = vunpack.c.l.b16 %v953
        %v3820 = vunpack.c.h.b16 %v953
        %v3821 = vunpack.c.l.b16 %v954
        %v3822 = vunpack.c.h.b16 %v954
        %v3823 = vunpack.c.l.b16 %v955
        %v3824 = vunpack.c.h.b16 %v955
        %v3825 = vunpack.c.l.b16 %v956
        %v3826 = vunpack.c.h.b16 %v956
        %v3827 = vunpack.c.l.b16 %v957
        %v3828 = vunpack.c.h.b16 %v957
        %v3829 = vunpack.c.l.b16 %v958
        %v3830 = vunpack.c.h.b16 %v958
        %v3831 = vunpack.c.l.b16 %v959
        %v3832 = vunpack.c.h.b16 %v959
        %v3833 = vunpack.c.l.b16 %v960
        %v3834 = vunpack.c.h.b16 %v960
        %v3835 = vunpack.c.l.b16 %v961
        %v3836 = vunpack.c.h.b16 %v961
        %v3837 = vunpack.c.l.b16 %v962
        %v3838 = vunpack.c.h.b16 %v962
        %v3839 = vunpack.c.l.b16 %v963
        %v3840 = vunpack.c.h.b16 %v963
        %v3841 = vunpack.c.l.b16 %v964
        %v3842 = vunpack.c.h.b16 %v964
        %v3843 = vunpack.c.l.b16 %v965
        %v3844 = vunpack.c.h.b16 %v965
        %v3845 = vunpack.c.l.b16 %v966
        %v3846 = vunpack.c.h.b16 %v966
        %v3847 = vunpack.c.l.b16 %v967
        %v3848 = vunpack.c.h.b16 %v967
        %v3849 = vunpack.c.l.b16 %v968
        %v3850 = vunpack.c.h.b16 %v968
        %v3851 = vunpack.c.l.b16 %v969
        %v3852 = vunpack.c.h.b16 %v969
        %v3853 = vunpack.c.l.b16 %v970
        %v3854 = vunpack.c.h.b16 %v970
        %v3855 = vunpack.c.l.b16 %v971
        %v3856 = vunpack.c.h.b16 %v971
        %v3857 = vunpack.c.l.b16 %v972
        %v3858 = vunpack.c.h.b16 %v972
        %v3859 = vunpack.c.l.b16 %v973
        %v3860 = vunpack.c.h.b16 %v973
        %v3861 = vunpack.c.l.b16 %v974
        %v3862 = vunpack.c.h.b16 %v974
        %v3863 = vunpack.c.l.b16 %v975
        %v3864 = vunpack.c.h.b16 %v975
        %v3865 = vunpack.c.l.b16 %v976
        %v3866 = vunpack.c.h.b16 %v976
        %v3867 = vunpack.c.l.b16 %v977
        %v3868 = vunpack.c.h.b16 %v977
        %v3869 = vunpack.c.l.b16 %v978
        %v3870 = vunpack.c.h.b16 %v978
        %v3871 = vunpack.c.l.b16 %v979
        %v3872 = vunpack.c.h.b16 %v979
        %v3873 = vunpack.c.l.b16 %v980
        %v3874 = vunpack.c.h.b16 %v980
        %v3875 = vunpack.c.l.b16 %v981
        %v3876 = vunpack.c.h.b16 %v981
        %v3877 = vunpack.c.l.b16 %v982
        %v3878 = vunpack.c.h.b16 %v982
        %v3879 = vunpack.c.l.b16 %v983
        %v3880 = vunpack.c.h.b16 %v983
        %v3881 = vunpack.c.l.b16 %v984
        %v3882 = vunpack.c.h.b16 %v984
        %v3883 = vunpack.c.l.b16 %v985
        %v3884 = vunpack.c.h.b16 %v985
        %v3885 = vunpack.c.l.b16 %v986
        %v3886 = vunpack.c.h.b16 %v986
        %v3887 = vunpack.c.l.b16 %v987
        %v3888 = vunpack.c.h.b16 %v987
        %v3889 = vunpack.c.l.b16 %v988
        %v3890 = vunpack.c.h.b16 %v988
        %v3891 = vunpack.c.l.b16 %v989
        %v3892 = vunpack.c.h.b16 %v989
        %v3893 = vunpack.c.l.b16 %v990
        %v3894 = vunpack.c.h.b16 %v990
        %v3895 = vunpack.c.l.b16 %v991
        %v3896 = vunpack.c.h.b16 %v991
        %v3897 = vunpack.c.l.b16 %v992
        %v3898 = vunpack.c.h.b16 %v992
        %v3899 = vunpack.c.l.b16 %v993
        %v3900 = vunpack.c.h.b16 %v993
        %v3901 = vunpack.c.l.b16 %v994
        %v3902 = vunpack.c.h.b16 %v994
        %v3903 = vunpack.c.l.b16 %v995
        %v3904 = vunpack.c.h.b16 %v995
        %v3905 = vunpack.c.l.b16 %v996
        %v3906 = vunpack.c.h.b16 %v996
        %v3907 = vunpack.c.l.b16 %v997
        %v3908 = vunpack.c.h.b16 %v997
        %v3909 = vunpack.c.l.b16 %v998
        %v3910 = vunpack.c.h.b16 %v998
        %v3911 = vunpack.c.l.b16 %v999
        %v3912 = vunpack.c.h.b16 %v999
        %v3913 = vunpack.c.l.b16 %v1000
        %v3914 = vunpack.c.h.b16 %v1000
        %v3915 = vunpack.c.l.b16 %v1001
        %v3916 = vunpack.c.h.b16 %v1001
        %v3917 = vunpack.c.l.b16 %v1002
        %v3918 = vunpack.c.h.b16 %v1002
        %v3919 = vunpack.c.l.b16 %v1003
        %v3920 = vunpack.c.h.b16 %v1003
        %v3921 = vunpack.c.l.b16 %v1004
        %v3922 = vunpack.c.h.b16 %v1004
        %v3923 = vunpack.c.l.b16 %v1005
        %v3924 = vunpack.c.h.b16 %v1005
        %v3925 = vunpack.c.l.b16 %v1006
        %v3926 = vunpack.c.h.b16 %v1006
        %v3927 = vunpack.c.l.b16 %v1007
        %v3928 = vunpack.c.h.b16 %v1007
        %v3929 = vunpack.c.l.b16 %v1008
        %v3930 = vunpack.c.h.b16 %v1008
        %v3931 = vunpack.c.l.b16 %v1009
        %v3932 = vunpack.c.h.b16 %v1009
        %v3933 = vunpack.c.l.b16 %v1010
        %v3934 = vunpack.c.h.b16 %v1010
        %v3935 = vunpack.c.l.b16 %v1011
        %v3936 = vunpack.c.h.b16 %v1011
        %v3937 = vunpack.c.l.b16 %v1012
        %v3938 = vunpack.c.h.b16 %v1012
        %v3939 = vunpack.c.l.b16 %v1013
        %v3940 = vunpack.c.h.b16 %v1013
        %v3941 = vunpack.c.l.b16 %v1014
        %v3942 = vunpack.c.h.b16 %v1014
        %v3943 = vunpack.c.l.b16 %v1015
        %v3944 = vunpack.c.h.b16 %v1015
        %v3945 = vunpack.c.l.b16 %v1016
        %v3946 = vunpack.c.h.b16 %v1016
        %v3947 = vunpack.c.l.b16 %v1017
        %v3948 = vunpack.c.h.b16 %v1017
        %v3949 = vunpack.c.l.b16 %v1018
        %v3950 = vunpack.c.h.b16 %v1018
        %v3951 = vunpack.c.l.b16 %v1019
        %v3952 = vunpack.c.h.b16 %v1019
        %v3953 = vunpack.c.l.b16 %v1020
        %v3954 = vunpack.c.h.b16 %v1020
        %v3955 = vunpack.c.l.b16 %v1021
        %v3956 = vunpack.c.h.b16 %v1021
        %v3957 = vunpack.c.l.b16 %v1022
        %v3958 = vunpack.c.h.b16 %v1022
        %v3959 = vunpack.c.l.b16 %v1023
        %v3960 = vunpack.c.h.b16 %v1023
        %v3961 = vunpack.c.l.b16 %v1024
        %v3962 = vunpack.c.h.b16 %v1024
        %v3963 = vunpack.c.l.b16 %v1025
        %v3964 = vunpack.c.h.b16 %v1025
        %v3965 = vunpack.c.l.b16 %v1026
        %v3966 = vunpack.c.h.b16 %v1026
        %v3967 = vunpack.c.l.b16 %v1027
        %v3968 = vunpack.c.h.b16 %v1027
        %v3969 = vunpack.c.l.b16 %v1028
        %v3970 = vunpack.c.h.b16 %v1028
        %v3971 = vunpack.c.l.b16 %v1029
        %v3972 = vunpack.c.h.b16 %v1029
        %v3973 = vunpack.c.l.b16 %v1030
        %v3974 = vunpack.c.h.b16 %v1030
        %v3975 = vunpack.c.l.b16 %v1031
        %v3976 = vunpack.c.h.b16 %v1031
        %v3977 = vunpack.c.l.b16 %v1032
        %v3978 = vunpack.c.h.b16 %v1032
        %v3979 = vunpack.c.l.b16 %v1033
        %v3980 = vunpack.c.h.b16 %v1033
        %v3981 = vunpack.c.l.b16 %v1034
        %v3982 = vunpack.c.h.b16 %v1034
        %v3983 = vunpack.c.l.b16 %v1035
        %v3984 = vunpack.c.h.b16 %v1035
        %v3985 = vunpack.c.l.b16 %v1036
        %v3986 = vunpack.c.h.b16 %v1036
        %v3987 = vunpack.c.l.b16 %v1037
        %v3988 = vunpack.c.h.b16 %v1037
        %v3989 = vunpack.c.l.b16 %v1038
        %v3990 = vunpack.c.h.b16 %v1038
        %v3991 = vunpack.c.l.b16 %v1039
        %v3992 = vunpack.c.h.b16 %v1039
        %v3993 = vunpack.c.l.b16 %v1040
        %v3994 = vunpack.c.h.b16 %v1040
        %v3995 = vunpack.c.l.b16 %v1041
        %v3996 = vunpack.c.h.b16 %v1041
        %v3997 = vunpack.c.l.b16 %v1042
        %v3998 = vunpack.c.h.b16 %v1042
        %v3999 = vunpack.c.l.b16 %v1043
        %v4000 = vunpack.c.h.b16 %v1043
        %v4001 = vunpack.c.l.b16 %v1044
        %v4002 = vunpack.c.h.b16 %v1044
        %v4003 = vunpack.c.l.b16 %v1045
        %v4004 = vunpack.c.h.b16 %v1045
        %v4005 = vunpack.c.l.b16 %v1046
        %v4006 = vunpack.c.h.b16 %v1046
        %v4007 = vunpack.c.l.b16 %v1047
        %v4008 = vunpack.c.h.b16 %v1047
        %v4009 = vunpack.c.l.b16 %v1048
        %v4010 = vunpack.c.h.b16 %v1048
        %v4011 = vunpack.c.l.b16 %v1049
        %v4012 = vunpack.c.h.b16 %v1049
        %v4013 = vunpack.c.l.b16 %v1050
        %v4014 = vunpack.c.h.b16 %v1050
        %v4015 = vunpack.c.l.b16 %v1051
        %v4016 = vunpack.c.h.b16 %v1051
        %v4017 = vunpack.c.l.b16 %v1052
        %v4018 = vunpack.c.h.b16 %v1052
        %v4019 = vunpack.c.l.b16 %v1053
        %v4020 = vunpack.c.h.b16 %v1053
        %v4021 = vunpack.c.l.b16 %v1054
        %v4022 = vunpack.c.h.b16 %v1054
        %v4023 = vunpack.c.l.b16 %v1055
        %v4024 = vunpack.c.h.b16 %v1055
        %v4025 = vunpack.c.l.b16 %v1056
        %v4026 = vunpack.c.h.b16 %v1056
        %v4027 = vunpack.c.l.b16 %v1057
        %v4028 = vunpack.c.h.b16 %v1057
        %v4029 = vunpack.c.l.b16 %v1058
        %v4030 = vunpack.c.h.b16 %v1058
        %v4031 = vunpack.c.l.b16 %v1059
        %v4032 = vunpack.c.h.b16 %v1059
        %v4033 = vunpack.c.l.b16 %v1060
        %v4034 = vunpack.c.h.b16 %v1060
        %v4035 = vunpack.c.l.b16 %v1061
        %v4036 = vunpack.c.h.b16 %v1061
        %v4037 = vunpack.c.l.b16 %v1062
        %v4038 = vunpack.c.h.b16 %v1062
        %v4039 = vunpack.c.l.b16 %v1063
        %v4040 = vunpack.c.h.b16 %v1063
        %v4041 = vunpack.c.l.b16 %v1064
        %v4042 = vunpack.c.h.b16 %v1064
        %v4043 = vunpack.c.l.b16 %v1065
        %v4044 = vunpack.c.h.b16 %v1065
        %v4045 = vunpack.c.l.b16 %v1066
        %v4046 = vunpack.c.h.b16 %v1066
        %v4047 = vunpack.c.l.b16 %v1067
        %v4048 = vunpack.c.h.b16 %v1067
        %v4049 = vunpack.c.l.b16 %v1068
        %v4050 = vunpack.c.h.b16 %v1068
        %v4051 = vunpack.c.l.b16 %v1069
        %v4052 = vunpack.c.h.b16 %v1069
        %v4053 = vunpack.c.l.b16 %v1070
        %v4054 = vunpack.c.h.b16 %v1070
        %v4055 = vunpack.c.l.b16 %v1071
        %v4056 = vunpack.c.h.b16 %v1071
        %v4057 = vunpack.c.l.b16 %v1072
        %v4058 = vunpack.c.h.b16 %v1072
        %v4059 = vunpack.c.l.b16 %v1073
        %v4060 = vunpack.c.h.b16 %v1073
        %v4061 = vunpack.c.l.b16 %v1074
        %v4062 = vunpack.c.h.b16 %v1074
        %v4063 = vunpack.c.l.b16 %v1075
        %v4064 = vunpack.c.h.b16 %v1075
        %v4065 = vunpack.c.l.b16 %v1076
        %v4066 = vunpack.c.h.b16 %v1076
        %v4067 = vunpack.c.l.b16 %v1077
        %v4068 = vunpack.c.h.b16 %v1077
        %v4069 = vunpack.c.l.b16 %v1078
        %v4070 = vunpack.c.h.b16 %v1078
        %v4071 = vunpack.c.l.b16 %v1079
        %v4072 = vunpack.c.h.b16 %v1079
        %v4073 = vunpack.c.l.b16 %v1080
        %v4074 = vunpack.c.h.b16 %v1080
        %v4075 = vunpack.c.l.b16 %v1081
        %v4076 = vunpack.c.h.b16 %v1081
        %v4077 = vunpack.c.l.b16 %v1082
        %v4078 = vunpack.c.h.b16 %v1082
        %v4079 = vunpack.c.l.b16 %v1083
        %v4080 = vunpack.c.h.b16 %v1083
        %v4081 = vunpack.c.l.b16 %v1084
        %v4082 = vunpack.c.h.b16 %v1084
        %v4083 = vunpack.c.l.b16 %v1085
        %v4084 = vunpack.c.h.b16 %v1085
        %v4085 = vunpack.c.l.b16 %v1086
        %v4086 = vunpack.c.h.b16 %v1086
        %v4087 = vunpack.c.l.b16 %v1087
        %v4088 = vunpack.c.h.b16 %v1087
        %v4089 = vunpack.c.l.b16 %v1088
        %v4090 = vunpack.c.h.b16 %v1088
        %v4091 = vunpack.c.l.b16 %v1089
        %v4092 = vunpack.c.h.b16 %v1089
        %v4093 = vunpack.c.l.b16 %v1090
        %v4094 = vunpack.c.h.b16 %v1090
        %v4095 = vunpack.c.l.b16 %v1091
        %v4096 = vunpack.c.h.b16 %v1091
        %v4097 = vunpack.c.l.b16 %v1092
        %v4098 = vunpack.c.h.b16 %v1092
        %v4099 = vunpack.c.l.b16 %v1093
        %v4100 = vunpack.c.h.b16 %v1093
        %v4101 = vunpack.c.l.b16 %v1094
        %v4102 = vunpack.c.h.b16 %v1094
        %v4103 = vunpack.c.l.b16 %v1095
        %v4104 = vunpack.c.h.b16 %v1095
        %v4105 = vunpack.c.l.b16 %v1096
        %v4106 = vunpack.c.h.b16 %v1096
        %v4107 = vunpack.c.l.b16 %v1097
        %v4108 = vunpack.c.h.b16 %v1097
        %v4109 = vunpack.c.l.b16 %v1098
        %v4110 = vunpack.c.h.b16 %v1098
        %v4111 = vunpack.c.l.b16 %v1099
        %v4112 = vunpack.c.h.b16 %v1099
        %v4113 = vunpack.c.l.b16 %v1100
        %v4114 = vunpack.c.h.b16 %v1100
        %v4115 = vunpack.c.l.b16 %v1101
        %v4116 = vunpack.c.h.b16 %v1101
        %v4117 = vunpack.c.l.b16 %v1102
        %v4118 = vunpack.c.h.b16 %v1102
        %v4119 = vunpack.c.l.b16 %v1103
        %v4120 = vunpack.c.h.b16 %v1103
        %v4121 = vunpack.c.l.b16 %v1104
        %v4122 = vunpack.c.h.b16 %v1104
        %v4123 = vunpack.c.l.b16 %v1105
        %v4124 = vunpack.c.h.b16 %v1105
        %v4125 = vunpack.c.l.b16 %v1106
        %v4126 = vunpack.c.h.b16 %v1106
        %v4127 = vunpack.c.l.b16 %v1107
        %v4128 = vunpack.c.h.b16 %v1107
        %v4129 = vunpack.c.l.b16 %v1108
        %v4130 = vunpack.c.h.b16 %v1108
        %v4131 = vunpack.c.l.b16 %v1109
        %v4132 = vunpack.c.h.b16 %v1109
        %v4133 = vunpack.c.l.b16 %v1110
        %v4134 = vunpack.c.h.b16 %v1110
        %v4135 = vunpack.c.l.b16 %v1111
        %v4136 = vunpack.c.h.b16 %v1111
        %v4137 = vunpack.c.l.b16 %v1112
        %v4138 = vunpack.c.h.b16 %v1112
        %v4139 = vunpack.c.l.b16 %v1113
        %v4140 = vunpack.c.h.b16 %v1113
        %v4141 = vunpack.c.l.b16 %v1114
        %v4142 = vunpack.c.h.b16 %v1114
        %v4143 = vunpack.c.l.b16 %v1115
        %v4144 = vunpack.c.h.b16 %v1115
        %v4145 = vunpack.c.l.b16 %v1116
        %v4146 = vunpack.c.h.b16 %v1116
        %v4147 = vunpack.c.l.b16 %v1117
        %v4148 = vunpack.c.h.b16 %v1117
        %v4149 = vunpack.c.l.b16 %v1118
        %v4150 = vunpack.c.h.b16 %v1118
        %v4151 = vunpack.c.l.b16 %v1119
        %v4152 = vunpack.c.h.b16 %v1119
        %v4153 = vunpack.c.l.b16 %v1120
        %v4154 = vunpack.c.h.b16 %v1120
        %v4155 = vunpack.c.l.b16 %v1121
        %v4156 = vunpack.c.h.b16 %v1121
        %v4157 = vunpack.c.l.b16 %v1122
        %v4158 = vunpack.c.h.b16 %v1122
        %v4159 = vunpack.c.l.b16 %v1123
        %v4160 = vunpack.c.h.b16 %v1123
        %v4161 = vunpack.c.l.b16 %v1124
        %v4162 = vunpack.c.h.b16 %v1124
        %v4163 = vunpack.c.l.b16 %v1125
        %v4164 = vunpack.c.h.b16 %v1125
        %v4165 = vunpack.c.l.b16 %v1126
        %v4166 = vunpack.c.h.b16 %v1126
        %v4167 = vunpack.c.l.b16 %v1127
        %v4168 = vunpack.c.h.b16 %v1127
        %v4169 = vunpack.c.l.b16 %v1128
        %v4170 = vunpack.c.h.b16 %v1128
        %v4171 = vunpack.c.l.b16 %v1129
        %v4172 = vunpack.c.h.b16 %v1129
        %v4173 = vunpack.c.l.b16 %v1130
        %v4174 = vunpack.c.h.b16 %v1130
        %v4175 = vunpack.c.l.b16 %v1131
        %v4176 = vunpack.c.h.b16 %v1131
        %v4177 = vunpack.c.l.b16 %v1132
        %v4178 = vunpack.c.h.b16 %v1132
        %v4179 = vunpack.c.l.b16 %v1133
        %v4180 = vunpack.c.h.b16 %v1133
        %v4181 = vunpack.c.l.b16 %v1134
        %v4182 = vunpack.c.h.b16 %v1134
        %v4183 = vunpack.c.l.b16 %v1135
        %v4184 = vunpack.c.h.b16 %v1135
        %v4185 = vunpack.c.l.b16 %v1136
        %v4186 = vunpack.c.h.b16 %v1136
        %v4187 = vunpack.c.l.b16 %v1137
        %v4188 = vunpack.c.h.b16 %v1137
        %v4189 = vunpack.c.l.b16 %v1138
        %v4190 = vunpack.c.h.b16 %v1138
        %v4191 = vunpack.c.l.b16 %v1139
        %v4192 = vunpack.c.h.b16 %v1139
        %v4193 = vunpack.c.l.b16 %v1140
        %v4194 = vunpack.c.h.b16 %v1140
        %v4195 = vunpack.c.l.b16 %v1141
        %v4196 = vunpack.c.h.b16 %v1141
        %v4197 = vunpack.c.l.b16 %v1142
        %v4198 = vunpack.c.h.b16 %v1142
        %v4199 = vunpack.c.l.b16 %v1143
        %v4200 = vunpack.c.h.b16 %v1143
        %v4201 = vunpack.c.l.b16 %v1144
        %v4202 = vunpack.c.h.b16 %v1144
        %v4203 = vunpack.c.l.b16 %v1145
        %v4204 = vunpack.c.h.b16 %v1145
        %v4205 = vunpack.c.l.b16 %v1146
        %v4206 = vunpack.c.h.b16 %v1146
        %v4207 = vunpack.c.l.b16 %v1147
        %v4208 = vunpack.c.h.b16 %v1147
        %v4209 = vunpack.c.l.b16 %v1148
        %v4210 = vunpack.c.h.b16 %v1148
        %v4211 = vunpack.c.l.b16 %v1149
        %v4212 = vunpack.c.h.b16 %v1149
        %v4213 = vunpack.c.l.b16 %v1150
        %v4214 = vunpack.c.h.b16 %v1150
        %v4215 = vunpack.c.l.b16 %v1151
        %v4216 = vunpack.c.h.b16 %v1151
        %v4217 = vunpack.c.l.b16 %v1152
        %v4218 = vunpack.c.h.b16 %v1152
        %v4219 = vunpack.c.l.b16 %v1153
        %v4220 = vunpack.c.h.b16 %v1153
        %v4221 = vunpack.c.l.b16 %v1154
        %v4222 = vunpack.c.h.b16 %v1154
        %v4223 = vunpack.c.l.b16 %v1155
        %v4224 = vunpack.c.h.b16 %v1155
        %v4225 = vunpack.c.l.b16 %v1156
        %v4226 = vunpack.c.h.b16 %v1156
        %v4227 = vunpack.c.l.b16 %v1157
        %v4228 = vunpack.c.h.b16 %v1157
        %v4229 = vunpack.c.l.b16 %v1158
        %v4230 = vunpack.c.h.b16 %v1158
        %v4231 = vunpack.c.l.b16 %v1159
        %v4232 = vunpack.c.h.b16 %v1159
        %v4233 = vunpack.c.l.b16 %v1160
        %v4234 = vunpack.c.h.b16 %v1160
        %v4235 = vunpack.c.l.b16 %v1161
        %v4236 = vunpack.c.h.b16 %v1161
        %v4237 = vunpack.c.l.b16 %v1162
        %v4238 = vunpack.c.h.b16 %v1162
        %v4239 = vunpack.c.l.b16 %v1163
        %v4240 = vunpack.c.h.b16 %v1163
        %v4241 = vunpack.c.l.b16 %v1164
        %v4242 = vunpack.c.h.b16 %v1164
        %v4243 = vunpack.c.l.b16 %v1165
        %v4244 = vunpack.c.h.b16 %v1165
        %v4245 = vunpack.c.l.b16 %v1166
        %v4246 = vunpack.c.h.b16 %v1166
        %v4247 = vunpack.c.l.b16 %v1167
        %v4248 = vunpack.c.h.b16 %v1167
        %v4249 = vunpack.c.l.b16 %v1168
        %v4250 = vunpack.c.h.b16 %v1168
        %v4251 = vunpack.c.l.b16 %v1169
        %v4252 = vunpack.c.h.b16 %v1169
        %v4253 = vunpack.c.l.b16 %v1170
        %v4254 = vunpack.c.h.b16 %v1170
        %v4255 = vunpack.c.l.b16 %v1171
        %v4256 = vunpack.c.h.b16 %v1171
        %v4257 = vunpack.c.l.b16 %v1172
        %v4258 = vunpack.c.h.b16 %v1172
        %v4259 = vunpack.c.l.b16 %v1173
        %v4260 = vunpack.c.h.b16 %v1173
        %v4261 = vunpack.c.l.b16 %v1174
        %v4262 = vunpack.c.h.b16 %v1174
        %v4263 = vunpack.c.l.b16 %v1175
        %v4264 = vunpack.c.h.b16 %v1175
        %v4265 = vunpack.c.l.b16 %v1176
        %v4266 = vunpack.c.h.b16 %v1176
        %v4267 = vunpack.c.l.b16 %v1177
        %v4268 = vunpack.c.h.b16 %v1177
        %v4269 = vunpack.c.l.b16 %v1178
        %v4270 = vunpack.c.h.b16 %v1178
        %v4271 = vunpack.c.l.b16 %v1179
        %v4272 = vunpack.c.h.b16 %v1179
        %v4273 = vunpack.c.l.b16 %v1180
        %v4274 = vunpack.c.h.b16 %v1180
        %v4275 = vunpack.c.l.b16 %v1181
        %v4276 = vunpack.c.h.b16 %v1181
        %v4277 = vunpack.c.l.b16 %v1182
        %v4278 = vunpack.c.h.b16 %v1182
        %v4279 = vunpack.c.l.b16 %v1183
        %v4280 = vunpack.c.h.b16 %v1183
        %v4281 = vunpack.c.l.b16 %v1184
        %v4282 = vunpack.c.h.b16 %v1184
        %v4283 = vunpack.c.l.b16 %v1185
        %v4284 = vunpack.c.h.b16 %v1185
        %v4285 = vunpack.c.l.b16 %v1186
        %v4286 = vunpack.c.h.b16 %v1186
        %v4287 = vunpack.c.l.b16 %v1187
        %v4288 = vunpack.c.h.b16 %v1187
        %v4289 = vunpack.c.l.b16 %v1188
        %v4290 = vunpack.c.h.b16 %v1188
        %v4291 = vunpack.c.l.b16 %v1189
        %v4292 = vunpack.c.h.b16 %v1189
        %v4293 = vunpack.c.l.b16 %v1190
        %v4294 = vunpack.c.h.b16 %v1190
        %v4295 = vunpack.c.l.b16 %v1191
        %v4296 = vunpack.c.h.b16 %v1191
        %v4297 = vunpack.c.l.b16 %v1192
        %v4298 = vunpack.c.h.b16 %v1192
        %v4299 = vunpack.c.l.b16 %v1193
        %v4300 = vunpack.c.h.b16 %v1193
        %v4301 = vunpack.c.l.b16 %v1194
        %v4302 = vunpack.c.h.b16 %v1194
        %v4303 = vunpack.c.l.b16 %v1195
        %v4304 = vunpack.c.h.b16 %v1195
        %v4305 = vunpack.c.l.b16 %v1196
        %v4306 = vunpack.c.h.b16 %v1196
        %v4307 = vunpack.c.l.b16 %v1197
        %v4308 = vunpack.c.h.b16 %v1197
        %v4309 = vunpack.c.l.b16 %v1198
        %v4310 = vunpack.c.h.b16 %v1198
        %v4311 = vunpack.c.l.b16 %v1199
        %v4312 = vunpack.c.h.b16 %v1199
        %v4313 = vunpack.c.l.b16 %v1200
        %v4314 = vunpack.c.h.b16 %v1200
        %v4315 = vunpack.c.l.b16 %v1201
        %v4316 = vunpack.c.h.b16 %v1201
        %v4317 = vunpack.c.l.b16 %v1202
        %v4318 = vunpack.c.h.b16 %v1202
        %v4319 = vunpack.c.l.b16 %v1203
        %v4320 = vunpack.c.h.b16 %v1203
        %v4321 = vunpack.c.l.b16 %v1204
        %v4322 = vunpack.c.h.b16 %v1204
        %v4323 = vunpack.c.l.b16 %v1205
        %v4324 = vunpack.c.h.b16 %v1205
        %v4325 = vunpack.c.l.b16 %v1206
        %v4326 = vunpack.c.h.b16 %v1206
        %v4327 = vunpack.c.l.b16 %v1207
        %v4328 = vunpack.c.h.b16 %v1207
        %v4329 = vunpack.c.l.b16 %v1208
        %v4330 = vunpack.c.h.b16 %v1208
        %v4331 = vunpack.c.l.b16 %v1209
        %v4332 = vunpack.c.h.b16 %v1209
        %v4333 = vunpack.c.l.b16 %v1210
        %v4334 = vunpack.c.h.b16 %v1210
        %v4335 = vunpack.c.l.b16 %v1211
        %v4336 = vunpack.c.h.b16 %v1211
        %v4337 = vunpack.c.l.b16 %v1212
        %v4338 = vunpack.c.h.b16 %v1212
        %v4339 = vunpack.c.l.b16 %v1213
        %v4340 = vunpack.c.h.b16 %v1213
        %v4341 = vunpack.c.l.b16 %v1214
        %v4342 = vunpack.c.h.b16 %v1214
        %v4343 = vunpack.c.l.b16 %v1215
        %v4344 = vunpack.c.h.b16 %v1215
        %v4345 = vunpack.c.l.b16 %v1216
        %v4346 = vunpack.c.h.b16 %v1216
        %v4347 = vunpack.c.l.b16 %v1217
        %v4348 = vunpack.c.h.b16 %v1217
        %v4349 = vunpack.c.l.b16 %v1218
        %v4350 = vunpack.c.h.b16 %v1218
        %v4351 = vunpack.c.l.b16 %v1219
        %v4352 = vunpack.c.h.b16 %v1219
        %v4353 = vunpack.c.l.b16 %v1220
        %v4354 = vunpack.c.h.b16 %v1220
        %v4355 = vunpack.c.l.b16 %v1221
        %v4356 = vunpack.c.h.b16 %v1221
        %v4357 = vunpack.c.l.b16 %v1222
        %v4358 = vunpack.c.h.b16 %v1222
        %v4359 = vunpack.c.l.b16 %v1223
        %v4360 = vunpack.c.h.b16 %v1223
        %v4361 = vunpack.c.l.b16 %v1224
        %v4362 = vunpack.c.h.b16 %v1224
        %v4363 = vunpack.c.l.b16 %v1225
        %v4364 = vunpack.c.h.b16 %v1225
        %v4365 = vunpack.c.l.b16 %v1226
        %v4366 = vunpack.c.h.b16 %v1226
        %v4367 = vunpack.c.l.b16 %v1227
        %v4368 = vunpack.c.h.b16 %v1227
        %v4369 = vunpack.c.l.b16 %v1228
        %v4370 = vunpack.c.h.b16 %v1228
        %v4371 = vunpack.c.l.b16 %v1229
        %v4372 = vunpack.c.h.b16 %v1229
        %v4373 = vunpack.c.l.b16 %v1230
        %v4374 = vunpack.c.h.b16 %v1230
        %v4375 = vunpack.c.l.b16 %v1231
        %v4376 = vunpack.c.h.b16 %v1231
        %v4377 = vunpack.c.l.b16 %v1232
        %v4378 = vunpack.c.h.b16 %v1232
        %v4379 = vunpack.c.l.b16 %v1233
        %v4380 = vunpack.c.h.b16 %v1233
        %v4381 = vunpack.c.l.b16 %v1234
        %v4382 = vunpack.c.h.b16 %v1234
        %v4383 = vunpack.c.l.b16 %v1235
        %v4384 = vunpack.c.h.b16 %v1235
        %v4385 = vunpack.c.l.b16 %v1236
        %v4386 = vunpack.c.h.b16 %v1236
        %v4387 = vunpack.c.l.b16 %v1237
        %v4388 = vunpack.c.h.b16 %v1237
        %v4389 = vunpack.c.l.b16 %v1238
        %v4390 = vunpack.c.h.b16 %v1238
        %v4391 = vpack.c.b16 %v2351, %v2343
        %v4392 = vpack.c.b16 %v2352, %v2344
        %v4393 = vpack.c.b16 %v2353, %v2345
        %v4394 = vpack.c.b16 %v2354, %v2346
        %v4395 = vpack.c.b16 %v2355, %v2347
        %v4396 = vpack.c.b16 %v2356, %v2348
        %v4397 = vpack.c.b16 %v2357, %v2349
        %v4398 = vpack.c.b16 %v2358, %v2350
        %v4399 = vpack.c.b16 %v2367, %v2359
        %v4400 = vpack.c.b16 %v2368, %v2360
        %v4401 = vpack.c.b16 %v2369, %v2361
        %v4402 = vpack.c.b16 %v2370, %v2362
        %v4403 = vpack.c.b16 %v2371, %v2363
        %v4404 = vpack.c.b16 %v2372, %v2364
        %v4405 = vpack.c.b16 %v2373, %v2365
        %v4406 = vpack.c.b16 %v2374, %v2366
        %v4407 = vpack.c.b16 %v2383, %v2375
        %v4408 = vpack.c.b16 %v2384, %v2376
        %v4409 = vpack.c.b16 %v2385, %v2377
        %v4410 = vpack.c.b16 %v2386, %v2378
        %v4411 = vpack.c.b16 %v2387, %v2379
        %v4412 = vpack.c.b16 %v2388, %v2380
        %v4413 = vpack.c.b16 %v2389, %v2381
        %v4414 = vpack.c.b16 %v2390, %v2382
        %v4415 = vpack.c.b16 %v2399, %v2391
        %v4416 = vpack.c.b16 %v2400, %v2392
        %v4417 = vpack.c.b16 %v2401, %v2393
        %v4418 = vpack.c.b16 %v2402, %v2394
        %v4419 = vpack.c.b16 %v2403, %v2395
        %v4420 = vpack.c.b16 %v2404, %v2396
        %v4421 = vpack.c.b16 %v2405, %v2397
        %v4422 = vpack.c.b16 %v2406, %v2398
        %v4423 = vpack.c.b16 %v2415, %v2407
        %v4424 = vpack.c.b16 %v2416, %v2408
        %v4425 = vpack.c.b16 %v2417, %v2409
        %v4426 = vpack.c.b16 %v2418, %v2410
        %v4427 = vpack.c.b16 %v2419, %v2411
        %v4428 = vpack.c.b16 %v2420, %v2412
        %v4429 = vpack.c.b16 %v2421, %v2413
        %v4430 = vpack.c.b16 %v2422, %v2414
        %v4431 = vpack.c.b16 %v2431, %v2423
        %v4432 = vpack.c.b16 %v2432, %v2424
        %v4433 = vpack.c.b16 %v2433, %v2425
        %v4434 = vpack.c.b16 %v2434, %v2426
        %v4435 = vpack.c.b16 %v2435, %v2427
        %v4436 = vpack.c.b16 %v2436, %v2428
        %v4437 = vpack.c.b16 %v2437, %v2429
        %v4438 = vpack.c.b16 %v2438, %v2430
        %v4439 = vpack.c.b16 %v2447, %v2439
        %v4440 = vpack.c.b16 %v2448, %v2440
        %v4441 = vpack.c.b16 %v2449, %v2441
        %v4442 = vpack.c.b16 %v2450, %v2442
        %v4443 = vpack.c.b16 %v2451, %v2443
        %v4444 = vpack.c.b16 %v2452, %v2444
        %v4445 = vpack.c.b16 %v2453, %v2445
        %v4446 = vpack.c.b16 %v2454, %v2446
        %v4447 = vpack.c.b16 %v2463, %v2455
        %v4448 = vpack.c.b16 %v2464, %v2456
        %v4449 = vpack.c.b16 %v2465, %v2457
        %v4450 = vpack.c.b16 %v2466, %v2458
        %v4451 = vpack.c.b16 %v2467, %v2459
        %v4452 = vpack.c.b16 %v2468, %v2460
        %v4453 = vpack.c.b16 %v2469, %v2461
        %v4454 = vpack.c.b16 %v2470, %v2462
        %v4455 = vpack.c.b16 %v2479, %v2471
        %v4456 = vpack.c.b16 %v2480, %v2472
        %v4457 = vpack.c.b16 %v2481, %v2473
        %v4458 = vpack.c.b16 %v2482, %v2474
        %v4459 = vpack.c.b16 %v2483, %v2475
        %v4460 = vpack.c.b16 %v2484, %v2476
        %v4461 = vpack.c.b16 %v2485, %v2477
        %v4462 = vpack.c.b16 %v2486, %v2478
        %v4463 = vpack.c.b16 %v2495, %v2487
        %v4464 = vpack.c.b16 %v2496, %v2488
        %v4465 = vpack.c.b16 %v2497, %v2489
        %v4466 = vpack.c.b16 %v2498, %v2490
        %v4467 = vpack.c.b16 %v2499, %v2491
        %v4468 = vpack.c.b16 %v2500, %v2492
        %v4469 = vpack.c.b16 %v2501, %v2493
        %v4470 = vpack.c.b16 %v2502, %v2494
        %v4471 = vpack.c.b16 %v2511, %v2503
        %v4472 = vpack.c.b16 %v2512, %v2504
        %v4473 = vpack.c.b16 %v2513, %v2505
        %v4474 = vpack.c.b16 %v2514, %v2506
        %v4475 = vpack.c.b16 %v2515, %v2507
        %v4476 = vpack.c.b16 %v2516, %v2508
        %v4477 = vpack.c.b16 %v2517, %v2509
        %v4478 = vpack.c.b16 %v2518, %v2510
        %v4479 = vpack.c.b16 %v2527, %v2519
        %v4480 = vpack.c.b16 %v2528, %v2520
        %v4481 = vpack.c.b16 %v2529, %v2521
        %v4482 = vpack.c.b16 %v2530, %v2522
        %v4483 = vpack.c.b16 %v2531, %v2523
        %v4484 = vpack.c.b16 %v2532, %v2524
        %v4485 = vpack.c.b16 %v2533, %v2525
        %v4486 = vpack.c.b16 %v2534, %v2526
        %v4487 = vpack.c.b16 %v2543, %v2535
        %v4488 = vpack.c.b16 %v2544, %v2536
        %v4489 = vpack.c.b16 %v2545, %v2537
        %v4490 = vpack.c.b16 %v2546, %v2538
        %v4491 = vpack.c.b16 %v2547, %v2539
        %v4492 = vpack.c.b16 %v2548, %v2540
        %v4493 = vpack.c.b16 %v2549, %v2541
        %v4494 = vpack.c.b16 %v2550, %v2542
        %v4495 = vpack.c.b16 %v2559, %v2551
        %v4496 = vpack.c.b16 %v2560, %v2552
        %v4497 = vpack.c.b16 %v2561, %v2553
        %v4498 = vpack.c.b16 %v2562, %v2554
        %v4499 = vpack.c.b16 %v2563, %v2555
        %v4500 = vpack.c.b16 %v2564, %v2556
        %v4501 = vpack.c.b16 %v2565, %v2557
        %v4502 = vpack.c.b16 %v2566, %v2558
        %v4503 = vpack.c.b16 %v2575, %v2567
        %v4504 = vpack.c.b16 %v2576, %v2568
        %v4505 = vpack.c.b16 %v2577, %v2569
        %v4506 = vpack.c.b16 %v2578, %v2570
        %v4507 = vpack.c.b16 %v2579, %v2571
        %v4508 = vpack.c.b16 %v2580, %v2572
        %v4509 = vpack.c.b16 %v2581, %v2573
        %v4510 = vpack.c.b16 %v2582, %v2574
        %v4511 = vpack.c.b16 %v2591, %v2583
        %v4512 = vpack.c.b16 %v2592, %v2584
        %v4513 = vpack.c.b16 %v2593, %v2585
        %v4514 = vpack.c.b16 %v2594, %v2586
        %v4515 = vpack.c.b16 %v2595, %v2587
        %v4516 = vpack.c.b16 %v2596, %v2588
        %v4517 = vpack.c.b16 %v2597, %v2589
        %v4518 = vpack.c.b16 %v2598, %v2590
        %v4519 = vpack.c.b16 %v2607, %v2599
        %v4520 = vpack.c.b16 %v2608, %v2600
        %v4521 = vpack.c.b16 %v2609, %v2601
        %v4522 = vpack.c.b16 %v2610, %v2602
        %v4523 = vpack.c.b16 %v2611, %v2603
        %v4524 = vpack.c.b16 %v2612, %v2604
        %v4525 = vpack.c.b16 %v2613, %v2605
        %v4526 = vpack.c.b16 %v2614, %v2606
        %v4527 = vpack.c.b16 %v2623, %v2615
        %v4528 = vpack.c.b16 %v2624, %v2616
        %v4529 = vpack.c.b16 %v2625, %v2617
        %v4530 = vpack.c.b16 %v2626, %v2618
        %v4531 = vpack.c.b16 %v2627, %v2619
        %v4532 = vpack.c.b16 %v2628, %v2620
        %v4533 = vpack.c.b16 %v2629, %v2621
        %v4534 = vpack.c.b16 %v2630, %v2622
        %v4535 = vpack.c.b16 %v2639, %v2631
        %v4536 = vpack.c.b16 %v2640, %v2632
        %v4537 = vpack.c.b16 %v2641, %v2633
        %v4538 = vpack.c.b16 %v2642, %v2634
        %v4539 = vpack.c.b16 %v2643, %v2635
        %v4540 = vpack.c.b16 %v2644, %v2636
        %v4541 = vpack.c.b16 %v2645, %v2637
        %v4542 = vpack.c.b16 %v2646, %v2638
        %v4543 = vpack.c.b16 %v2655, %v2647
        %v4544 = vpack.c.b16 %v2656, %v2648
        %v4545 = vpack.c.b16 %v2657, %v2649
        %v4546 = vpack.c.b16 %v2658, %v2650
        %v4547 = vpack.c.b16 %v2659, %v2651
        %v4548 = vpack.c.b16 %v2660, %v2652
        %v4549 = vpack.c.b16 %v2661, %v2653
        %v4550 = vpack.c.b16 %v2662, %v2654
        %v4551 = vpack.c.b16 %v2671, %v2663
        %v4552 = vpack.c.b16 %v2672, %v2664
        %v4553 = vpack.c.b16 %v2673, %v2665
        %v4554 = vpack.c.b16 %v2674, %v2666
        %v4555 = vpack.c.b16 %v2675, %v2667
        %v4556 = vpack.c.b16 %v2676, %v2668
        %v4557 = vpack.c.b16 %v2677, %v2669
        %v4558 = vpack.c.b16 %v2678, %v2670
        %v4559 = vpack.c.b16 %v2687, %v2679
        %v4560 = vpack.c.b16 %v2688, %v2680
        %v4561 = vpack.c.b16 %v2689, %v2681
        %v4562 = vpack.c.b16 %v2690, %v2682
        %v4563 = vpack.c.b16 %v2691, %v2683
        %v4564 = vpack.c.b16 %v2692, %v2684
        %v4565 = vpack.c.b16 %v2693, %v2685
        %v4566 = vpack.c.b16 %v2694, %v2686
        %v4567 = vpack.c.b16 %v2703, %v2695
        %v4568 = vpack.c.b16 %v2704, %v2696
        %v4569 = vpack.c.b16 %v2705, %v2697
        %v4570 = vpack.c.b16 %v2706, %v2698
        %v4571 = vpack.c.b16 %v2707, %v2699
        %v4572 = vpack.c.b16 %v2708, %v2700
        %v4573 = vpack.c.b16 %v2709, %v2701
        %v4574 = vpack.c.b16 %v2710, %v2702
        %v4575 = vpack.c.b16 %v2719, %v2711
        %v4576 = vpack.c.b16 %v2720, %v2712
        %v4577 = vpack.c.b16 %v2721, %v2713
        %v4578 = vpack.c.b16 %v2722, %v2714
        %v4579 = vpack.c.b16 %v2723, %v2715
        %v4580 = vpack.c.b16 %v2724, %v2716
        %v4581 = vpack.c.b16 %v2725, %v2717
        %v4582 = vpack.c.b16 %v2726, %v2718
        %v4583 = vpack.c.b16 %v2735, %v2727
        %v4584 = vpack.c.b16 %v2736, %v2728
        %v4585 = vpack.c.b16 %v2737, %v2729
        %v4586 = vpack.c.b16 %v2738, %v2730
        %v4587 = vpack.c.b16 %v2739, %v2731
        %v4588 = vpack.c.b16 %v2740, %v2732
        %v4589 = vpack.c.b16 %v2741, %v2733
        %v4590 = vpack.c.b16 %v2742, %v2734
        %v4591 = vpack.c.b16 %v2751, %v2743
        %v4592 = vpack.c.b16 %v2752, %v2744
        %v4593 = vpack.c.b16 %v2753, %v2745
        %v4594 = vpack.c.b16 %v2754, %v2746
        %v4595 = vpack.c.b16 %v2755, %v2747
        %v4596 = vpack.c.b16 %v2756, %v2748
        %v4597 = vpack.c.b16 %v2757, %v2749
        %v4598 = vpack.c.b16 %v2758, %v2750
        %v4599 = vpack.c.b16 %v2767, %v2759
        %v4600 = vpack.c.b16 %v2768, %v2760
        %v4601 = vpack.c.b16 %v2769, %v2761
        %v4602 = vpack.c.b16 %v2770, %v2762
        %v4603 = vpack.c.b16 %v2771, %v2763
        %v4604 = vpack.c.b16 %v2772, %v2764
        %v4605 = vpack.c.b16 %v2773, %v2765
        %v4606 = vpack.c.b16 %v2774, %v2766
        %v4607 = vpack.c.b16 %v2783, %v2775
        %v4608 = vpack.c.b16 %v2784, %v2776
        %v4609 = vpack.c.b16 %v2785, %v2777
        %v4610 = vpack.c.b16 %v2786, %v2778
        %v4611 = vpack.c.b16 %v2787, %v2779
        %v4612 = vpack.c.b16 %v2788, %v2780
        %v4613 = vpack.c.b16 %v2789, %v2781
        %v4614 = vpack.c.b16 %v2790, %v2782
        %v4615 = vpack.c.b16 %v2799, %v2791
        %v4616 = vpack.c.b16 %v2800, %v2792
        %v4617 = vpack.c.b16 %v2801, %v2793
        %v4618 = vpack.c.b16 %v2802, %v2794
        %v4619 = vpack.c.b16 %v2803, %v2795
        %v4620 = vpack.c.b16 %v2804, %v2796
        %v4621 = vpack.c.b16 %v2805, %v2797
        %v4622 = vpack.c.b16 %v2806, %v2798
        %v4623 = vpack.c.b16 %v2815, %v2807
        %v4624 = vpack.c.b16 %v2816, %v2808
        %v4625 = vpack.c.b16 %v2817, %v2809
        %v4626 = vpack.c.b16 %v2818, %v2810
        %v4627 = vpack.c.b16 %v2819, %v2811
        %v4628 = vpack.c.b16 %v2820, %v2812
        %v4629 = vpack.c.b16 %v2821, %v2813
        %v4630 = vpack.c.b16 %v2822, %v2814
        %v4631 = vpack.c.b16 %v2831, %v2823
        %v4632 = vpack.c.b16 %v2832, %v2824
        %v4633 = vpack.c.b16 %v2833, %v2825
        %v4634 = vpack.c.b16 %v2834, %v2826
        %v4635 = vpack.c.b16 %v2835, %v2827
        %v4636 = vpack.c.b16 %v2836, %v2828
        %v4637 = vpack.c.b16 %v2837, %v2829
        %v4638 = vpack.c.b16 %v2838, %v2830
        %v4639 = vpack.c.b16 %v2847, %v2839
        %v4640 = vpack.c.b16 %v2848, %v2840
        %v4641 = vpack.c.b16 %v2849, %v2841
        %v4642 = vpack.c.b16 %v2850, %v2842
        %v4643 = vpack.c.b16 %v2851, %v2843
        %v4644 = vpack.c.b16 %v2852, %v2844
        %v4645 = vpack.c.b16 %v2853, %v2845
        %v4646 = vpack.c.b16 %v2854, %v2846
        %v4647 = vpack.c.b16 %v2863, %v2855
        %v4648 = vpack.c.b16 %v2864, %v2856
        %v4649 = vpack.c.b16 %v2865, %v2857
        %v4650 = vpack.c.b16 %v2866, %v2858
        %v4651 = vpack.c.b16 %v2867, %v2859
        %v4652 = vpack.c.b16 %v2868, %v2860
        %v4653 = vpack.c.b16 %v2869, %v2861
        %v4654 = vpack.c.b16 %v2870, %v2862
        %v4655 = vpack.c.b16 %v2879, %v2871
        %v4656 = vpack.c.b16 %v2880, %v2872
        %v4657 = vpack.c.b16 %v2881, %v2873
        %v4658 = vpack.c.b16 %v2882, %v2874
        %v4659 = vpack.c.b16 %v2883, %v2875
        %v4660 = vpack.c.b16 %v2884, %v2876
        %v4661 = vpack.c.b16 %v2885, %v2877
        %v4662 = vpack.c.b16 %v2886, %v2878
        %v4663 = vpack.c.b16 %v2895, %v2887
        %v4664 = vpack.c.b16 %v2896, %v2888
        %v4665 = vpack.c.b16 %v2897, %v2889
        %v4666 = vpack.c.b16 %v2898, %v2890
        %v4667 = vpack.c.b16 %v2899, %v2891
        %v4668 = vpack.c.b16 %v2900, %v2892
        %v4669 = vpack.c.b16 %v2901, %v2893
        %v4670 = vpack.c.b16 %v2902, %v2894
        %v4671 = vpack.c.b16 %v2911, %v2903
        %v4672 = vpack.c.b16 %v2912, %v2904
        %v4673 = vpack.c.b16 %v2913, %v2905
        %v4674 = vpack.c.b16 %v2914, %v2906
        %v4675 = vpack.c.b16 %v2915, %v2907
        %v4676 = vpack.c.b16 %v2916, %v2908
        %v4677 = vpack.c.b16 %v2917, %v2909
        %v4678 = vpack.c.b16 %v2918, %v2910
        %v4679 = vpack.c.b16 %v2927, %v2919
        %v4680 = vpack.c.b16 %v2928, %v2920
        %v4681 = vpack.c.b16 %v2929, %v2921
        %v4682 = vpack.c.b16 %v2930, %v2922
        %v4683 = vpack.c.b16 %v2931, %v2923
        %v4684 = vpack.c.b16 %v2932, %v2924
        %v4685 = vpack.c.b16 %v2933, %v2925
        %v4686 = vpack.c.b16 %v2934, %v2926
        %v4687 = vpack.c.b16 %v2943, %v2935
        %v4688 = vpack.c.b16 %v2944, %v2936
        %v4689 = vpack.c.b16 %v2945, %v2937
        %v4690 = vpack.c.b16 %v2946, %v2938
        %v4691 = vpack.c.b16 %v2947, %v2939
        %v4692 = vpack.c.b16 %v2948, %v2940
        %v4693 = vpack.c.b16 %v2949, %v2941
        %v4694 = vpack.c.b16 %v2950, %v2942
        %v4695 = vpack.c.b16 %v2959, %v2951
        %v4696 = vpack.c.b16 %v2960, %v2952
        %v4697 = vpack.c.b16 %v2961, %v2953
        %v4698 = vpack.c.b16 %v2962, %v2954
        %v4699 = vpack.c.b16 %v2963, %v2955
        %v4700 = vpack.c.b16 %v2964, %v2956
        %v4701 = vpack.c.b16 %v2965, %v2957
        %v4702 = vpack.c.b16 %v2966, %v2958
        %v4703 = vpack.c.b16 %v2975, %v2967
        %v4704 = vpack.c.b16 %v2976, %v2968
        %v4705 = vpack.c.b16 %v2977, %v2969
        %v4706 = vpack.c.b16 %v2978, %v2970
        %v4707 = vpack.c.b16 %v2979, %v2971
        %v4708 = vpack.c.b16 %v2980, %v2972
        %v4709 = vpack.c.b16 %v2981, %v2973
        %v4710 = vpack.c.b16 %v2982, %v2974
        %v4711 = vpack.c.b16 %v2991, %v2983
        %v4712 = vpack.c.b16 %v2992, %v2984
        %v4713 = vpack.c.b16 %v2993, %v2985
        %v4714 = vpack.c.b16 %v2994, %v2986
        %v4715 = vpack.c.b16 %v2995, %v2987
        %v4716 = vpack.c.b16 %v2996, %v2988
        %v4717 = vpack.c.b16 %v2997, %v2989
        %v4718 = vpack.c.b16 %v2998, %v2990
        %v4719 = vpack.c.b16 %v3007, %v2999
        %v4720 = vpack.c.b16 %v3008, %v3000
        %v4721 = vpack.c.b16 %v3009, %v3001
        %v4722 = vpack.c.b16 %v3010, %v3002
        %v4723 = vpack.c.b16 %v3011, %v3003
        %v4724 = vpack.c.b16 %v3012, %v3004
        %v4725 = vpack.c.b16 %v3013, %v3005
        %v4726 = vpack.c.b16 %v3014, %v3006
        %v4727 = vpack.c.b16 %v3023, %v3015
        %v4728 = vpack.c.b16 %v3024, %v3016
        %v4729 = vpack.c.b16 %v3025, %v3017
        %v4730 = vpack.c.b16 %v3026, %v3018
        %v4731 = vpack.c.b16 %v3027, %v3019
        %v4732 = vpack.c.b16 %v3028, %v3020
        %v4733 = vpack.c.b16 %v3029, %v3021
        %v4734 = vpack.c.b16 %v3030, %v3022
        %v4735 = vpack.c.b16 %v3039, %v3031
        %v4736 = vpack.c.b16 %v3040, %v3032
        %v4737 = vpack.c.b16 %v3041, %v3033
        %v4738 = vpack.c.b16 %v3042, %v3034
        %v4739 = vpack.c.b16 %v3043, %v3035
        %v4740 = vpack.c.b16 %v3044, %v3036
        %v4741 = vpack.c.b16 %v3045, %v3037
        %v4742 = vpack.c.b16 %v3046, %v3038
        %v4743 = vpack.c.b16 %v3055, %v3047
        %v4744 = vpack.c.b16 %v3056, %v3048
        %v4745 = vpack.c.b16 %v3057, %v3049
        %v4746 = vpack.c.b16 %v3058, %v3050
        %v4747 = vpack.c.b16 %v3059, %v3051
        %v4748 = vpack.c.b16 %v3060, %v3052
        %v4749 = vpack.c.b16 %v3061, %v3053
        %v4750 = vpack.c.b16 %v3062, %v3054
        %v4751 = vpack.c.b16 %v3071, %v3063
        %v4752 = vpack.c.b16 %v3072, %v3064
        %v4753 = vpack.c.b16 %v3073, %v3065
        %v4754 = vpack.c.b16 %v3074, %v3066
        %v4755 = vpack.c.b16 %v3075, %v3067
        %v4756 = vpack.c.b16 %v3076, %v3068
        %v4757 = vpack.c.b16 %v3077, %v3069
        %v4758 = vpack.c.b16 %v3078, %v3070
        %v4759 = vpack.c.b16 %v3087, %v3079
        %v4760 = vpack.c.b16 %v3088, %v3080
        %v4761 = vpack.c.b16 %v3089, %v3081
        %v4762 = vpack.c.b16 %v3090, %v3082
        %v4763 = vpack.c.b16 %v3091, %v3083
        %v4764 = vpack.c.b16 %v3092, %v3084
        %v4765 = vpack.c.b16 %v3093, %v3085
        %v4766 = vpack.c.b16 %v3094, %v3086
        %v4767 = vpack.c.b16 %v3103, %v3095
        %v4768 = vpack.c.b16 %v3104, %v3096
        %v4769 = vpack.c.b16 %v3105, %v3097
        %v4770 = vpack.c.b16 %v3106, %v3098
        %v4771 = vpack.c.b16 %v3107, %v3099
        %v4772 = vpack.c.b16 %v3108, %v3100
        %v4773 = vpack.c.b16 %v3109, %v3101
        %v4774 = vpack.c.b16 %v3110, %v3102
        %v4775 = vpack.c.b16 %v3119, %v3111
        %v4776 = vpack.c.b16 %v3120, %v3112
        %v4777 = vpack.c.b16 %v3121, %v3113
        %v4778 = vpack.c.b16 %v3122, %v3114
        %v4779 = vpack.c.b16 %v3123, %v3115
        %v4780 = vpack.c.b16 %v3124, %v3116
        %v4781 = vpack.c.b16 %v3125, %v3117
        %v4782 = vpack.c.b16 %v3126, %v3118
        %v4783 = vpack.c.b16 %v3135, %v3127
        %v4784 = vpack.c.b16 %v3136, %v3128
        %v4785 = vpack.c.b16 %v3137, %v3129
        %v4786 = vpack.c.b16 %v3138, %v3130
        %v4787 = vpack.c.b16 %v3139, %v3131
        %v4788 = vpack.c.b16 %v3140, %v3132
        %v4789 = vpack.c.b16 %v3141, %v3133
        %v4790 = vpack.c.b16 %v3142, %v3134
        %v4791 = vpack.c.b16 %v3151, %v3143
        %v4792 = vpack.c.b16 %v3152, %v3144
        %v4793 = vpack.c.b16 %v3153, %v3145
        %v4794 = vpack.c.b16 %v3154, %v3146
        %v4795 = vpack.c.b16 %v3155, %v3147
        %v4796 = vpack.c.b16 %v3156, %v3148
        %v4797 = vpack.c.b16 %v3157, %v3149
        %v4798 = vpack.c.b16 %v3158, %v3150
        %v4799 = vpack.c.b16 %v3167, %v3159
        %v4800 = vpack.c.b16 %v3168, %v3160
        %v4801 = vpack.c.b16 %v3169, %v3161
        %v4802 = vpack.c.b16 %v3170, %v3162
        %v4803 = vpack.c.b16 %v3171, %v3163
        %v4804 = vpack.c.b16 %v3172, %v3164
        %v4805 = vpack.c.b16 %v3173, %v3165
        %v4806 = vpack.c.b16 %v3174, %v3166
        %v4807 = vpack.c.b16 %v3183, %v3175
        %v4808 = vpack.c.b16 %v3184, %v3176
        %v4809 = vpack.c.b16 %v3185, %v3177
        %v4810 = vpack.c.b16 %v3186, %v3178
        %v4811 = vpack.c.b16 %v3187, %v3179
        %v4812 = vpack.c.b16 %v3188, %v3180
        %v4813 = vpack.c.b16 %v3189, %v3181
        %v4814 = vpack.c.b16 %v3190, %v3182
        %v4815 = vpack.c.b16 %v3199, %v3191
        %v4816 = vpack.c.b16 %v3200, %v3192
        %v4817 = vpack.c.b16 %v3201, %v3193
        %v4818 = vpack.c.b16 %v3202, %v3194
        %v4819 = vpack.c.b16 %v3203, %v3195
        %v4820 = vpack.c.b16 %v3204, %v3196
        %v4821 = vpack.c.b16 %v3205, %v3197
        %v4822 = vpack.c.b16 %v3206, %v3198
        %v4823 = vpack.c.b16 %v3215, %v3207
        %v4824 = vpack.c.b16 %v3216, %v3208
        %v4825 = vpack.c.b16 %v3217, %v3209
        %v4826 = vpack.c.b16 %v3218, %v3210
        %v4827 = vpack.c.b16 %v3219, %v3211
        %v4828 = vpack.c.b16 %v3220, %v3212
        %v4829 = vpack.c.b16 %v3221, %v3213
        %v4830 = vpack.c.b16 %v3222, %v3214
        %v4831 = vpack.c.b16 %v3231, %v3223
        %v4832 = vpack.c.b16 %v3232, %v3224
        %v4833 = vpack.c.b16 %v3233, %v3225
        %v4834 = vpack.c.b16 %v3234, %v3226
        %v4835 = vpack.c.b16 %v3235, %v3227
        %v4836 = vpack.c.b16 %v3236, %v3228
        %v4837 = vpack.c.b16 %v3237, %v3229
        %v4838 = vpack.c.b16 %v3238, %v3230
        %v4839 = vpack.c.b16 %v3247, %v3239
        %v4840 = vpack.c.b16 %v3248, %v3240
        %v4841 = vpack.c.b16 %v3249, %v3241
        %v4842 = vpack.c.b16 %v3250, %v3242
        %v4843 = vpack.c.b16 %v3251, %v3243
        %v4844 = vpack.c.b16 %v3252, %v3244
        %v4845 = vpack.c.b16 %v3253, %v3245
        %v4846 = vpack.c.b16 %v3254, %v3246
        %v4847 = vpack.c.b16 %v3263, %v3255
        %v4848 = vpack.c.b16 %v3264, %v3256
        %v4849 = vpack.c.b16 %v3265, %v3257
        %v4850 = vpack.c.b16 %v3266, %v3258
        %v4851 = vpack.c.b16 %v3267, %v3259
        %v4852 = vpack.c.b16 %v3268, %v3260
        %v4853 = vpack.c.b16 %v3269, %v3261
        %v4854 = vpack.c.b16 %v3270, %v3262
        %v4855 = vpack.c.b16 %v3279, %v3271
        %v4856 = vpack.c.b16 %v3280, %v3272
        %v4857 = vpack.c.b16 %v3281, %v3273
        %v4858 = vpack.c.b16 %v3282, %v3274
        %v4859 = vpack.c.b16 %v3283, %v3275
        %v4860 = vpack.c.b16 %v3284, %v3276
        %v4861 = vpack.c.b16 %v3285, %v3277
        %v4862 = vpack.c.b16 %v3286, %v3278
        %v4863 = vpack.c.b16 %v3295, %v3287
        %v4864 = vpack.c.b16 %v3296, %v3288
        %v4865 = vpack.c.b16 %v3297, %v3289
        %v4866 = vpack.c.b16 %v3298, %v3290
        %v4867 = vpack.c.b16 %v3299, %v3291
        %v4868 = vpack.c.b16 %v3300, %v3292
        %v4869 = vpack.c.b16 %v3301, %v3293
        %v4870 = vpack.c.b16 %v3302, %v3294
        %v4871 = vpack.c.b16 %v3311, %v3303
        %v4872 = vpack.c.b16 %v3312, %v3304
        %v4873 = vpack.c.b16 %v3313, %v3305
        %v4874 = vpack.c.b16 %v3314, %v3306
        %v4875 = vpack.c.b16 %v3315, %v3307
        %v4876 = vpack.c.b16 %v3316, %v3308
        %v4877 = vpack.c.b16 %v3317, %v3309
        %v4878 = vpack.c.b16 %v3318, %v3310
        %v4879 = vpack.c.b16 %v3327, %v3319
        %v4880 = vpack.c.b16 %v3328, %v3320
        %v4881 = vpack.c.b16 %v3329, %v3321
        %v4882 = vpack.c.b16 %v3330, %v3322
        %v4883 = vpack.c.b16 %v3331, %v3323
        %v4884 = vpack.c.b16 %v3332, %v3324
        %v4885 = vpack.c.b16 %v3333, %v3325
        %v4886 = vpack.c.b16 %v3334, %v3326
        %v4887 = vpack.c.b16 %v3343, %v3335
        %v4888 = vpack.c.b16 %v3344, %v3336
        %v4889 = vpack.c.b16 %v3345, %v3337
        %v4890 = vpack.c.b16 %v3346, %v3338
        %v4891 = vpack.c.b16 %v3347, %v3339
        %v4892 = vpack.c.b16 %v3348, %v3340
        %v4893 = vpack.c.b16 %v3349, %v3341
        %v4894 = vpack.c.b16 %v3350, %v3342
        %v4895 = vpack.c.b16 %v3359, %v3351
        %v4896 = vpack.c.b16 %v3360, %v3352
        %v4897 = vpack.c.b16 %v3361, %v3353
        %v4898 = vpack.c.b16 %v3362, %v3354
        %v4899 = vpack.c.b16 %v3363, %v3355
        %v4900 = vpack.c.b16 %v3364, %v3356
        %v4901 = vpack.c.b16 %v3365, %v3357
        %v4902 = vpack.c.b16 %v3366, %v3358
        %v4903 = vpack.c.b16 %v3375, %v3367
        %v4904 = vpack.c.b16 %v3376, %v3368
        %v4905 = vpack.c.b16 %v3377, %v3369
        %v4906 = vpack.c.b16 %v3378, %v3370
        %v4907 = vpack.c.b16 %v3379, %v3371
        %v4908 = vpack.c.b16 %v3380, %v3372
        %v4909 = vpack.c.b16 %v3381, %v3373
        %v4910 = vpack.c.b16 %v3382, %v3374
        %v4911 = vpack.c.b16 %v3391, %v3383
        %v4912 = vpack.c.b16 %v3392, %v3384
        %v4913 = vpack.c.b16 %v3393, %v3385
        %v4914 = vpack.c.b16 %v3394, %v3386
        %v4915 = vpack.c.b16 %v3395, %v3387
        %v4916 = vpack.c.b16 %v3396, %v3388
        %v4917 = vpack.c.b16 %v3397, %v3389
        %v4918 = vpack.c.b16 %v3398, %v3390
        %v4919 = vpack.c.b16 %v3407, %v3399
        %v4920 = vpack.c.b16 %v3408, %v3400
        %v4921 = vpack.c.b16 %v3409, %v3401
        %v4922 = vpack.c.b16 %v3410, %v3402
        %v4923 = vpack.c.b16 %v3411, %v3403
        %v4924 = vpack.c.b16 %v3412, %v3404
        %v4925 = vpack.c.b16 %v3413, %v3405
        %v4926 = vpack.c.b16 %v3414, %v3406
        %v4927 = vpack.c.b16 %v3423, %v3415
        %v4928 = vpack.c.b16 %v3424, %v3416
        %v4929 = vpack.c.b16 %v3425, %v3417
        %v4930 = vpack.c.b16 %v3426, %v3418
        %v4931 = vpack.c.b16 %v3427, %v3419
        %v4932 = vpack.c.b16 %v3428, %v3420
        %v4933 = vpack.c.b16 %v3429, %v3421
        %v4934 = vpack.c.b16 %v3430, %v3422
        %v4935 = vpack.c.b16 %v3439, %v3431
        %v4936 = vpack.c.b16 %v3440, %v3432
        %v4937 = vpack.c.b16 %v3441, %v3433
        %v4938 = vpack.c.b16 %v3442, %v3434
        %v4939 = vpack.c.b16 %v3443, %v3435
        %v4940 = vpack.c.b16 %v3444, %v3436
        %v4941 = vpack.c.b16 %v3445, %v3437
        %v4942 = vpack.c.b16 %v3446, %v3438
        %v4943 = vpack.c.b16 %v3455, %v3447
        %v4944 = vpack.c.b16 %v3456, %v3448
        %v4945 = vpack.c.b16 %v3457, %v3449
        %v4946 = vpack.c.b16 %v3458, %v3450
        %v4947 = vpack.c.b16 %v3459, %v3451
        %v4948 = vpack.c.b16 %v3460, %v3452
        %v4949 = vpack.c.b16 %v3461, %v3453
        %v4950 = vpack.c.b16 %v3462, %v3454
        %v4951 = vpack.c.b16 %v3471, %v3463
        %v4952 = vpack.c.b16 %v3472, %v3464
        %v4953 = vpack.c.b16 %v3473, %v3465
        %v4954 = vpack.c.b16 %v3474, %v3466
        %v4955 = vpack.c.b16 %v3475, %v3467
        %v4956 = vpack.c.b16 %v3476, %v3468
        %v4957 = vpack.c.b16 %v3477, %v3469
        %v4958 = vpack.c.b16 %v3478, %v3470
        %v4959 = vpack.c.b16 %v3487, %v3479
        %v4960 = vpack.c.b16 %v3488, %v3480
        %v4961 = vpack.c.b16 %v3489, %v3481
        %v4962 = vpack.c.b16 %v3490, %v3482
        %v4963 = vpack.c.b16 %v3491, %v3483
        %v4964 = vpack.c.b16 %v3492, %v3484
        %v4965 = vpack.c.b16 %v3493, %v3485
        %v4966 = vpack.c.b16 %v3494, %v3486
        %v4967 = vpack.c.b16 %v3503, %v3495
        %v4968 = vpack.c.b16 %v3504, %v3496
        %v4969 = vpack.c.b16 %v3505, %v3497
        %v4970 = vpack.c.b16 %v3506, %v3498
        %v4971 = vpack.c.b16 %v3507, %v3499
        %v4972 = vpack.c.b16 %v3508, %v3500
        %v4973 = vpack.c.b16 %v3509, %v3501
        %v4974 = vpack.c.b16 %v3510, %v3502
        %v4975 = vpack.c.b16 %v3519, %v3511
        %v4976 = vpack.c.b16 %v3520, %v3512
        %v4977 = vpack.c.b16 %v3521, %v3513
        %v4978 = vpack.c.b16 %v3522, %v3514
        %v4979 = vpack.c.b16 %v3523, %v3515
        %v4980 = vpack.c.b16 %v3524, %v3516
        %v4981 = vpack.c.b16 %v3525, %v3517
        %v4982 = vpack.c.b16 %v3526, %v3518
        %v4983 = vpack.c.b16 %v3535, %v3527
        %v4984 = vpack.c.b16 %v3536, %v3528
        %v4985 = vpack.c.b16 %v3537, %v3529
        %v4986 = vpack.c.b16 %v3538, %v3530
        %v4987 = vpack.c.b16 %v3539, %v3531
        %v4988 = vpack.c.b16 %v3540, %v3532
        %v4989 = vpack.c.b16 %v3541, %v3533
        %v4990 = vpack.c.b16 %v3542, %v3534
        %v4991 = vpack.c.b16 %v3551, %v3543
        %v4992 = vpack.c.b16 %v3552, %v3544
        %v4993 = vpack.c.b16 %v3553, %v3545
        %v4994 = vpack.c.b16 %v3554, %v3546
        %v4995 = vpack.c.b16 %v3555, %v3547
        %v4996 = vpack.c.b16 %v3556, %v3548
        %v4997 = vpack.c.b16 %v3557, %v3549
        %v4998 = vpack.c.b16 %v3558, %v3550
        %v4999 = vpack.c.b16 %v3567, %v3559
        %v5000 = vpack.c.b16 %v3568, %v3560
        %v5001 = vpack.c.b16 %v3569, %v3561
        %v5002 = vpack.c.b16 %v3570, %v3562
        %v5003 = vpack.c.b16 %v3571, %v3563
        %v5004 = vpack.c.b16 %v3572, %v3564
        %v5005 = vpack.c.b16 %v3573, %v3565
        %v5006 = vpack.c.b16 %v3574, %v3566
        %v5007 = vpack.c.b16 %v3583, %v3575
        %v5008 = vpack.c.b16 %v3584, %v3576
        %v5009 = vpack.c.b16 %v3585, %v3577
        %v5010 = vpack.c.b16 %v3586, %v3578
        %v5011 = vpack.c.b16 %v3587, %v3579
        %v5012 = vpack.c.b16 %v3588, %v3580
        %v5013 = vpack.c.b16 %v3589, %v3581
        %v5014 = vpack.c.b16 %v3590, %v3582
        %v5015 = vpack.c.b16 %v3599, %v3591
        %v5016 = vpack.c.b16 %v3600, %v3592
        %v5017 = vpack.c.b16 %v3601, %v3593
        %v5018 = vpack.c.b16 %v3602, %v3594
        %v5019 = vpack.c.b16 %v3603, %v3595
        %v5020 = vpack.c.b16 %v3604, %v3596
        %v5021 = vpack.c.b16 %v3605, %v3597
        %v5022 = vpack.c.b16 %v3606, %v3598
        %v5023 = vpack.c.b16 %v3615, %v3607
        %v5024 = vpack.c.b16 %v3616, %v3608
        %v5025 = vpack.c.b16 %v3617, %v3609
        %v5026 = vpack.c.b16 %v3618, %v3610
        %v5027 = vpack.c.b16 %v3619, %v3611
        %v5028 = vpack.c.b16 %v3620, %v3612
        %v5029 = vpack.c.b16 %v3621, %v3613
        %v5030 = vpack.c.b16 %v3622, %v3614
        %v5031 = vpack.c.b16 %v3631, %v3623
        %v5032 = vpack.c.b16 %v3632, %v3624
        %v5033 = vpack.c.b16 %v3633, %v3625
        %v5034 = vpack.c.b16 %v3634, %v3626
        %v5035 = vpack.c.b16 %v3635, %v3627
        %v5036 = vpack.c.b16 %v3636, %v3628
        %v5037 = vpack.c.b16 %v3637, %v3629
        %v5038 = vpack.c.b16 %v3638, %v3630
        %v5039 = vpack.c.b16 %v3647, %v3639
        %v5040 = vpack.c.b16 %v3648, %v3640
        %v5041 = vpack.c.b16 %v3649, %v3641
        %v5042 = vpack.c.b16 %v3650, %v3642
        %v5043 = vpack.c.b16 %v3651, %v3643
        %v5044 = vpack.c.b16 %v3652, %v3644
        %v5045 = vpack.c.b16 %v3653, %v3645
        %v5046 = vpack.c.b16 %v3654, %v3646
        %v5047 = vpack.c.b16 %v3663, %v3655
        %v5048 = vpack.c.b16 %v3664, %v3656
        %v5049 = vpack.c.b16 %v3665, %v3657
        %v5050 = vpack.c.b16 %v3666, %v3658
        %v5051 = vpack.c.b16 %v3667, %v3659
        %v5052 = vpack.c.b16 %v3668, %v3660
        %v5053 = vpack.c.b16 %v3669, %v3661
        %v5054 = vpack.c.b16 %v3670, %v3662
        %v5055 = vpack.c.b16 %v3679, %v3671
        %v5056 = vpack.c.b16 %v3680, %v3672
        %v5057 = vpack.c.b16 %v3681, %v3673
        %v5058 = vpack.c.b16 %v3682, %v3674
        %v5059 = vpack.c.b16 %v3683, %v3675
        %v5060 = vpack.c.b16 %v3684, %v3676
        %v5061 = vpack.c.b16 %v3685, %v3677
        %v5062 = vpack.c.b16 %v3686, %v3678
        %v5063 = vpack.c.b16 %v3695, %v3687
        %v5064 = vpack.c.b16 %v3696, %v3688
        %v5065 = vpack.c.b16 %v3697, %v3689
        %v5066 = vpack.c.b16 %v3698, %v3690
        %v5067 = vpack.c.b16 %v3699, %v3691
        %v5068 = vpack.c.b16 %v3700, %v3692
        %v5069 = vpack.c.b16 %v3701, %v3693
        %v5070 = vpack.c.b16 %v3702, %v3694
        %v5071 = vpack.c.b16 %v3711, %v3703
        %v5072 = vpack.c.b16 %v3712, %v3704
        %v5073 = vpack.c.b16 %v3713, %v3705
        %v5074 = vpack.c.b16 %v3714, %v3706
        %v5075 = vpack.c.b16 %v3715, %v3707
        %v5076 = vpack.c.b16 %v3716, %v3708
        %v5077 = vpack.c.b16 %v3717, %v3709
        %v5078 = vpack.c.b16 %v3718, %v3710
        %v5079 = vpack.c.b16 %v3727, %v3719
        %v5080 = vpack.c.b16 %v3728, %v3720
        %v5081 = vpack.c.b16 %v3729, %v3721
        %v5082 = vpack.c.b16 %v3730, %v3722
        %v5083 = vpack.c.b16 %v3731, %v3723
        %v5084 = vpack.c.b16 %v3732, %v3724
        %v5085 = vpack.c.b16 %v3733, %v3725
        %v5086 = vpack.c.b16 %v3734, %v3726
        %v5087 = vpack.c.b16 %v3743, %v3735
        %v5088 = vpack.c.b16 %v3744, %v3736
        %v5089 = vpack.c.b16 %v3745, %v3737
        %v5090 = vpack.c.b16 %v3746, %v3738
        %v5091 = vpack.c.b16 %v3747, %v3739
        %v5092 = vpack.c.b16 %v3748, %v3740
        %v5093 = vpack.c.b16 %v3749, %v3741
        %v5094 = vpack.c.b16 %v3750, %v3742
        %v5095 = vpack.c.b16 %v3759, %v3751
        %v5096 = vpack.c.b16 %v3760, %v3752
        %v5097 = vpack.c.b16 %v3761, %v3753
        %v5098 = vpack.c.b16 %v3762, %v3754
        %v5099 = vpack.c.b16 %v3763, %v3755
        %v5100 = vpack.c.b16 %v3764, %v3756
        %v5101 = vpack.c.b16 %v3765, %v3757
        %v5102 = vpack.c.b16 %v3766, %v3758
        %v5103 = vpack.c.b16 %v3775, %v3767
        %v5104 = vpack.c.b16 %v3776, %v3768
        %v5105 = vpack.c.b16 %v3777, %v3769
        %v5106 = vpack.c.b16 %v3778, %v3770
        %v5107 = vpack.c.b16 %v3779, %v3771
        %v5108 = vpack.c.b16 %v3780, %v3772
        %v5109 = vpack.c.b16 %v3781, %v3773
        %v5110 = vpack.c.b16 %v3782, %v3774
        %v5111 = vpack.c.b16 %v3791, %v3783
        %v5112 = vpack.c.b16 %v3792, %v3784
        %v5113 = vpack.c.b16 %v3793, %v3785
        %v5114 = vpack.c.b16 %v3794, %v3786
        %v5115 = vpack.c.b16 %v3795, %v3787
        %v5116 = vpack.c.b16 %v3796, %v3788
        %v5117 = vpack.c.b16 %v3797, %v3789
        %v5118 = vpack.c.b16 %v3798, %v3790
        %v5119 = vpack.c.b16 %v3807, %v3799
        %v5120 = vpack.c.b16 %v3808, %v3800
        %v5121 = vpack.c.b16 %v3809, %v3801
        %v5122 = vpack.c.b16 %v3810, %v3802
        %v5123 = vpack.c.b16 %v3811, %v3803
        %v5124 = vpack.c.b16 %v3812, %v3804
        %v5125 = vpack.c.b16 %v3813, %v3805
        %v5126 = vpack.c.b16 %v3814, %v3806
        %v5127 = vpack.c.b16 %v3823, %v3815
        %v5128 = vpack.c.b16 %v3824, %v3816
        %v5129 = vpack.c.b16 %v3825, %v3817
        %v5130 = vpack.c.b16 %v3826, %v3818
        %v5131 = vpack.c.b16 %v3827, %v3819
        %v5132 = vpack.c.b16 %v3828, %v3820
        %v5133 = vpack.c.b16 %v3829, %v3821
        %v5134 = vpack.c.b16 %v3830, %v3822
        %v5135 = vpack.c.b16 %v3839, %v3831
        %v5136 = vpack.c.b16 %v3840, %v3832
        %v5137 = vpack.c.b16 %v3841, %v3833
        %v5138 = vpack.c.b16 %v3842, %v3834
        %v5139 = vpack.c.b16 %v3843, %v3835
        %v5140 = vpack.c.b16 %v3844, %v3836
        %v5141 = vpack.c.b16 %v3845, %v3837
        %v5142 = vpack.c.b16 %v3846, %v3838
        %v5143 = vpack.c.b16 %v3855, %v3847
        %v5144 = vpack.c.b16 %v3856, %v3848
        %v5145 = vpack.c.b16 %v3857, %v3849
        %v5146 = vpack.c.b16 %v3858, %v3850
        %v5147 = vpack.c.b16 %v3859, %v3851
        %v5148 = vpack.c.b16 %v3860, %v3852
        %v5149 = vpack.c.b16 %v3861, %v3853
        %v5150 = vpack.c.b16 %v3862, %v3854
        %v5151 = vpack.c.b16 %v3871, %v3863
        %v5152 = vpack.c.b16 %v3872, %v3864
        %v5153 = vpack.c.b16 %v3873, %v3865
        %v5154 = vpack.c.b16 %v3874, %v3866
        %v5155 = vpack.c.b16 %v3875, %v3867
        %v5156 = vpack.c.b16 %v3876, %v3868
        %v5157 = vpack.c.b16 %v3877, %v3869
        %v5158 = vpack.c.b16 %v3878, %v3870
        %v5159 = vpack.c.b16 %v3887, %v3879
        %v5160 = vpack.c.b16 %v3888, %v3880
        %v5161 = vpack.c.b16 %v3889, %v3881
        %v5162 = vpack.c.b16 %v3890, %v3882
        %v5163 = vpack.c.b16 %v3891, %v3883
        %v5164 = vpack.c.b16 %v3892, %v3884
        %v5165 = vpack.c.b16 %v3893, %v3885
        %v5166 = vpack.c.b16 %v3894, %v3886
        %v5167 = vpack.c.b16 %v3903, %v3895
        %v5168 = vpack.c.b16 %v3904, %v3896
        %v5169 = vpack.c.b16 %v3905, %v3897
        %v5170 = vpack.c.b16 %v3906, %v3898
        %v5171 = vpack.c.b16 %v3907, %v3899
        %v5172 = vpack.c.b16 %v3908, %v3900
        %v5173 = vpack.c.b16 %v3909, %v3901
        %v5174 = vpack.c.b16 %v3910, %v3902
        %v5175 = vpack.c.b16 %v3919, %v3911
        %v5176 = vpack.c.b16 %v3920, %v3912
        %v5177 = vpack.c.b16 %v3921, %v3913
        %v5178 = vpack.c.b16 %v3922, %v3914
        %v5179 = vpack.c.b16 %v3923, %v3915
        %v5180 = vpack.c.b16 %v3924, %v3916
        %v5181 = vpack.c.b16 %v3925, %v3917
        %v5182 = vpack.c.b16 %v3926, %v3918
        %v5183 = vpack.c.b16 %v3935, %v3927
        %v5184 = vpack.c.b16 %v3936, %v3928
        %v5185 = vpack.c.b16 %v3937, %v3929
        %v5186 = vpack.c.b16 %v3938, %v3930
        %v5187 = vpack.c.b16 %v3939, %v3931
        %v5188 = vpack.c.b16 %v3940, %v3932
        %v5189 = vpack.c.b16 %v3941, %v3933
        %v5190 = vpack.c.b16 %v3942, %v3934
        %v5191 = vpack.c.b16 %v3951, %v3943
        %v5192 = vpack.c.b16 %v3952, %v3944
        %v5193 = vpack.c.b16 %v3953, %v3945
        %v5194 = vpack.c.b16 %v3954, %v3946
        %v5195 = vpack.c.b16 %v3955, %v3947
        %v5196 = vpack.c.b16 %v3956, %v3948
        %v5197 = vpack.c.b16 %v3957, %v3949
        %v5198 = vpack.c.b16 %v3958, %v3950
        %v5199 = vpack.c.b16 %v3967, %v3959
        %v5200 = vpack.c.b16 %v3968, %v3960
        %v5201 = vpack.c.b16 %v3969, %v3961
        %v5202 = vpack.c.b16 %v3970, %v3962
        %v5203 = vpack.c.b16 %v3971, %v3963
        %v5204 = vpack.c.b16 %v3972, %v3964
        %v5205 = vpack.c.b16 %v3973, %v3965
        %v5206 = vpack.c.b16 %v3974, %v3966
        %v5207 = vpack.c.b16 %v3983, %v3975
        %v5208 = vpack.c.b16 %v3984, %v3976
        %v5209 = vpack.c.b16 %v3985, %v3977
        %v5210 = vpack.c.b16 %v3986, %v3978
        %v5211 = vpack.c.b16 %v3987, %v3979
        %v5212 = vpack.c.b16 %v3988, %v3980
        %v5213 = vpack.c.b16 %v3989, %v3981
        %v5214 = vpack.c.b16 %v3990, %v3982
        %v5215 = vpack.c.b16 %v3999, %v3991
        %v5216 = vpack.c.b16 %v4000, %v3992
        %v5217 = vpack.c.b16 %v4001, %v3993
        %v5218 = vpack.c.b16 %v4002, %v3994
        %v5219 = vpack.c.b16 %v4003, %v3995
        %v5220 = vpack.c.b16 %v4004, %v3996
        %v5221 = vpack.c.b16 %v4005, %v3997
        %v5222 = vpack.c.b16 %v4006, %v3998
        %v5223 = vpack.c.b16 %v4015, %v4007
        %v5224 = vpack.c.b16 %v4016, %v4008
        %v5225 = vpack.c.b16 %v4017, %v4009
        %v5226 = vpack.c.b16 %v4018, %v4010
        %v5227 = vpack.c.b16 %v4019, %v4011
        %v5228 = vpack.c.b16 %v4020, %v4012
        %v5229 = vpack.c.b16 %v4021, %v4013
        %v5230 = vpack.c.b16 %v4022, %v4014
        %v5231 = vpack.c.b16 %v4031, %v4023
        %v5232 = vpack.c.b16 %v4032, %v4024
        %v5233 = vpack.c.b16 %v4033, %v4025
        %v5234 = vpack.c.b16 %v4034, %v4026
        %v5235 = vpack.c.b16 %v4035, %v4027
        %v5236 = vpack.c.b16 %v4036, %v4028
        %v5237 = vpack.c.b16 %v4037, %v4029
        %v5238 = vpack.c.b16 %v4038, %v4030
        %v5239 = vpack.c.b16 %v4047, %v4039
        %v5240 = vpack.c.b16 %v4048, %v4040
        %v5241 = vpack.c.b16 %v4049, %v4041
        %v5242 = vpack.c.b16 %v4050, %v4042
        %v5243 = vpack.c.b16 %v4051, %v4043
        %v5244 = vpack.c.b16 %v4052, %v4044
        %v5245 = vpack.c.b16 %v4053, %v4045
        %v5246 = vpack.c.b16 %v4054, %v4046
        %v5247 = vpack.c.b16 %v4063, %v4055
        %v5248 = vpack.c.b16 %v4064, %v4056
        %v5249 = vpack.c.b16 %v4065, %v4057
        %v5250 = vpack.c.b16 %v4066, %v4058
        %v5251 = vpack.c.b16 %v4067, %v4059
        %v5252 = vpack.c.b16 %v4068, %v4060
        %v5253 = vpack.c.b16 %v4069, %v4061
        %v5254 = vpack.c.b16 %v4070, %v4062
        %v5255 = vpack.c.b16 %v4079, %v4071
        %v5256 = vpack.c.b16 %v4080, %v4072
        %v5257 = vpack.c.b16 %v4081, %v4073
        %v5258 = vpack.c.b16 %v4082, %v4074
        %v5259 = vpack.c.b16 %v4083, %v4075
        %v5260 = vpack.c.b16 %v4084, %v4076
        %v5261 = vpack.c.b16 %v4085, %v4077
        %v5262 = vpack.c.b16 %v4086, %v4078
        %v5263 = vpack.c.b16 %v4095, %v4087
        %v5264 = vpack.c.b16 %v4096, %v4088
        %v5265 = vpack.c.b16 %v4097, %v4089
        %v5266 = vpack.c.b16 %v4098, %v4090
        %v5267 = vpack.c.b16 %v4099, %v4091
        %v5268 = vpack.c.b16 %v4100, %v4092
        %v5269 = vpack.c.b16 %v4101, %v4093
        %v5270 = vpack.c.b16 %v4102, %v4094
        %v5271 = vpack.c.b16 %v4111, %v4103
        %v5272 = vpack.c.b16 %v4112, %v4104
        %v5273 = vpack.c.b16 %v4113, %v4105
        %v5274 = vpack.c.b16 %v4114, %v4106
        %v5275 = vpack.c.b16 %v4115, %v4107
        %v5276 = vpack.c.b16 %v4116, %v4108
        %v5277 = vpack.c.b16 %v4117, %v4109
        %v5278 = vpack.c.b16 %v4118, %v4110
        %v5279 = vpack.c.b16 %v4127, %v4119
        %v5280 = vpack.c.b16 %v4128, %v4120
        %v5281 = vpack.c.b16 %v4129, %v4121
        %v5282 = vpack.c.b16 %v4130, %v4122
        %v5283 = vpack.c.b16 %v4131, %v4123
        %v5284 = vpack.c.b16 %v4132, %v4124
        %v5285 = vpack.c.b16 %v4133, %v4125
        %v5286 = vpack.c.b16 %v4134, %v4126
        %v5287 = vpack.c.b16 %v4143, %v4135
        %v5288 = vpack.c.b16 %v4144, %v4136
        %v5289 = vpack.c.b16 %v4145, %v4137
        %v5290 = vpack.c.b16 %v4146, %v4138
        %v5291 = vpack.c.b16 %v4147, %v4139
        %v5292 = vpack.c.b16 %v4148, %v4140
        %v5293 = vpack.c.b16 %v4149, %v4141
        %v5294 = vpack.c.b16 %v4150, %v4142
        %v5295 = vpack.c.b16 %v4159, %v4151
        %v5296 = vpack.c.b16 %v4160, %v4152
        %v5297 = vpack.c.b16 %v4161, %v4153
        %v5298 = vpack.c.b16 %v4162, %v4154
        %v5299 = vpack.c.b16 %v4163, %v4155
        %v5300 = vpack.c.b16 %v4164, %v4156
        %v5301 = vpack.c.b16 %v4165, %v4157
        %v5302 = vpack.c.b16 %v4166, %v4158
        %v5303 = vpack.c.b16 %v4175, %v4167
        %v5304 = vpack.c.b16 %v4176, %v4168
        %v5305 = vpack.c.b16 %v4177, %v4169
        %v5306 = vpack.c.b16 %v4178, %v4170
        %v5307 = vpack.c.b16 %v4179, %v4171
        %v5308 = vpack.c.b16 %v4180, %v4172
        %v5309 = vpack.c.b16 %v4181, %v4173
        %v5310 = vpack.c.b16 %v4182, %v4174
        %v5311 = vpack.c.b16 %v4191, %v4183
        %v5312 = vpack.c.b16 %v4192, %v4184
        %v5313 = vpack.c.b16 %v4193, %v4185
        %v5314 = vpack.c.b16 %v4194, %v4186
        %v5315 = vpack.c.b16 %v4195, %v4187
        %v5316 = vpack.c.b16 %v4196, %v4188
        %v5317 = vpack.c.b16 %v4197, %v4189
        %v5318 = vpack.c.b16 %v4198, %v4190
        %v5319 = vpack.c.b16 %v4207, %v4199
        %v5320 = vpack.c.b16 %v4208, %v4200
        %v5321 = vpack.c.b16 %v4209, %v4201
        %v5322 = vpack.c.b16 %v4210, %v4202
        %v5323 = vpack.c.b16 %v4211, %v4203
        %v5324 = vpack.c.b16 %v4212, %v4204
        %v5325 = vpack.c.b16 %v4213, %v4205
        %v5326 = vpack.c.b16 %v4214, %v4206
        %v5327 = vpack.c.b16 %v4223, %v4215
        %v5328 = vpack.c.b16 %v4224, %v4216
        %v5329 = vpack.c.b16 %v4225, %v4217
        %v5330 = vpack.c.b16 %v4226, %v4218
        %v5331 = vpack.c.b16 %v4227, %v4219
        %v5332 = vpack.c.b16 %v4228, %v4220
        %v5333 = vpack.c.b16 %v4229, %v4221
        %v5334 = vpack.c.b16 %v4230, %v4222
        %v5335 = vpack.c.b16 %v4239, %v4231
        %v5336 = vpack.c.b16 %v4240, %v4232
        %v5337 = vpack.c.b16 %v4241, %v4233
        %v5338 = vpack.c.b16 %v4242, %v4234
        %v5339 = vpack.c.b16 %v4243, %v4235
        %v5340 = vpack.c.b16 %v4244, %v4236
        %v5341 = vpack.c.b16 %v4245, %v4237
        %v5342 = vpack.c.b16 %v4246, %v4238
        %v5343 = vpack.c.b16 %v4255, %v4247
        %v5344 = vpack.c.b16 %v4256, %v4248
        %v5345 = vpack.c.b16 %v4257, %v4249
        %v5346 = vpack.c.b16 %v4258, %v4250
        %v5347 = vpack.c.b16 %v4259, %v4251
        %v5348 = vpack.c.b16 %v4260, %v4252
        %v5349 = vpack.c.b16 %v4261, %v4253
        %v5350 = vpack.c.b16 %v4262, %v4254
        %v5351 = vpack.c.b16 %v4271, %v4263
        %v5352 = vpack.c.b16 %v4272, %v4264
        %v5353 = vpack.c.b16 %v4273, %v4265
        %v5354 = vpack.c.b16 %v4274, %v4266
        %v5355 = vpack.c.b16 %v4275, %v4267
        %v5356 = vpack.c.b16 %v4276, %v4268
        %v5357 = vpack.c.b16 %v4277, %v4269
        %v5358 = vpack.c.b16 %v4278, %v4270
        %v5359 = vpack.c.b16 %v4287, %v4279
        %v5360 = vpack.c.b16 %v4288, %v4280
        %v5361 = vpack.c.b16 %v4289, %v4281
        %v5362 = vpack.c.b16 %v4290, %v4282
        %v5363 = vpack.c.b16 %v4291, %v4283
        %v5364 = vpack.c.b16 %v4292, %v4284
        %v5365 = vpack.c.b16 %v4293, %v4285
        %v5366 = vpack.c.b16 %v4294, %v4286
        %v5367 = vpack.c.b16 %v4303, %v4295
        %v5368 = vpack.c.b16 %v4304, %v4296
        %v5369 = vpack.c.b16 %v4305, %v4297
        %v5370 = vpack.c.b16 %v4306, %v4298
        %v5371 = vpack.c.b16 %v4307, %v4299
        %v5372 = vpack.c.b16 %v4308, %v4300
        %v5373 = vpack.c.b16 %v4309, %v4301
        %v5374 = vpack.c.b16 %v4310, %v4302
        %v5375 = vpack.c.b16 %v4319, %v4311
        %v5376 = vpack.c.b16 %v4320, %v4312
        %v5377 = vpack.c.b16 %v4321, %v4313
        %v5378 = vpack.c.b16 %v4322, %v4314
        %v5379 = vpack.c.b16 %v4323, %v4315
        %v5380 = vpack.c.b16 %v4324, %v4316
        %v5381 = vpack.c.b16 %v4325, %v4317
        %v5382 = vpack.c.b16 %v4326, %v4318
        %v5383 = vpack.c.b16 %v4335, %v4327
        %v5384 = vpack.c.b16 %v4336, %v4328
        %v5385 = vpack.c.b16 %v4337, %v4329
        %v5386 = vpack.c.b16 %v4338, %v4330
        %v5387 = vpack.c.b16 %v4339, %v4331
        %v5388 = vpack.c.b16 %v4340, %v4332
        %v5389 = vpack.c.b16 %v4341, %v4333
        %v5390 = vpack.c.b16 %v4342, %v4334
        %v5391 = vpack.c.b16 %v4351, %v4343
        %v5392 = vpack.c.b16 %v4352, %v4344
        %v5393 = vpack.c.b16 %v4353, %v4345
        %v5394 = vpack.c.b16 %v4354, %v4346
        %v5395 = vpack.c.b16 %v4355, %v4347
        %v5396 = vpack.c.b16 %v4356, %v4348
        %v5397 = vpack.c.b16 %v4357, %v4349
        %v5398 = vpack.c.b16 %v4358, %v4350
        %v5399 = vpack.c.b16 %v4367, %v4359
        %v5400 = vpack.c.b16 %v4368, %v4360
        %v5401 = vpack.c.b16 %v4369, %v4361
        %v5402 = vpack.c.b16 %v4370, %v4362
        %v5403 = vpack.c.b16 %v4371, %v4363
        %v5404 = vpack.c.b16 %v4372, %v4364
        %v5405 = vpack.c.b16 %v4373, %v4365
        %v5406 = vpack.c.b16 %v4374, %v4366
        %v5407 = vpack.c.b16 %v4383, %v4375
        %v5408 = vpack.c.b16 %v4384, %v4376
        %v5409 = vpack.c.b16 %v4385, %v4377
        %v5410 = vpack.c.b16 %v4386, %v4378
        %v5411 = vpack.c.b16 %v4387, %v4379
        %v5412 = vpack.c.b16 %v4388, %v4380
        %v5413 = vpack.c.b16 %v4389, %v4381
        %v5414 = vpack.c.b16 %v4390, %v4382
        %6439 = vmatprep.subr.bf16.mxu0 %v4448
        %6440 = vmatpush1.bf16.msra.mxu0 %v4447
        %6441 = vmatprep.subr.bf16.mxu0 %v4440
        %6442 = vmatpush1.bf16.msra.mxu0 %v4439
        %6443 = vmatprep.subr.bf16.mxu0 %v4432
        %6444 = vmatpush1.bf16.msra.mxu0 %v4431
        %6445 = vmatprep.subr.bf16.mxu0 %v4424
        %6446 = vmatpush1.bf16.msra.mxu0 %v4423
        %6447 = vmatprep.subr.bf16.mxu0 %v4416
        %6448 = vmatpush1.bf16.msra.mxu0 %v4415
        %6449 = vmatprep.subr.bf16.mxu0 %v4408
        %6450 = vmatpush1.bf16.msra.mxu0 %v4407
        %6451 = vmatprep.subr.bf16.mxu0 %v4400
        %6452 = vmatpush1.bf16.msra.mxu0 %v4399
        %6453 = vmatprep.subr.bf16.mxu0 %v4392
        %6454 = vmatpush1.bf16.msra.mxu0 %v4391
        %6455 = vmatprep.subr.bf16.mxu0 %v4512
        %6456 = vmatpush2.bf16.msra.mxu0 %v4511
        %6457 = vmatprep.subr.bf16.mxu0 %v4504
        %6458 = vmatpush2.bf16.msra.mxu0 %v4503
        %6459 = vmatprep.subr.bf16.mxu0 %v4496
        %6460 = vmatpush2.bf16.msra.mxu0 %v4495
        %6461 = vmatprep.subr.bf16.mxu0 %v4488
        %6462 = vmatpush2.bf16.msra.mxu0 %v4487
        %6463 = vmatprep.subr.bf16.mxu0 %v4480
        %6464 = vmatpush2.bf16.msra.mxu0 %v4479
        %6465 = vmatprep.subr.bf16.mxu0 %v4472
        %6466 = vmatpush2.bf16.msra.mxu0 %v4471
        %6467 = vmatprep.subr.bf16.mxu0 %v4464
        %6468 = vmatpush2.bf16.msra.mxu0 %v4463
        %6469 = vmatprep.subr.bf16.mxu0 %v4456
        %6470 = vmatpush2.bf16.msra.mxu0 %v4455
        %6471 = vmatprep.mubr.bf16.mxu0 %v1288
        %6472 = vmatmul.mubr.bf16.gmra.mxu0 %v1287
        %v6473 = vpop.f32.mrf.mxu0
        %v6474 = vadd.f32 0.0, %v6473
        %v6475 = vpop.f32.mrf.mxu0
        %v6476 = vadd.f32 0.0, %v6475
        %v6477 = vpop.f32.mrf.mxu0
        %v6478 = vadd.f32 0.0, %v6477
        %v6479 = vpop.f32.mrf.mxu0
        %v6480 = vadd.f32 0.0, %v6479
        %6481 = vdwg.mxu0
        %6482 = vmatprep.subr.bf16.mxu0 %v4576
        %6483 = vmatpush1.bf16.msra.mxu0 %v4575
        %6484 = vmatprep.subr.bf16.mxu0 %v4568
        %6485 = vmatpush1.bf16.msra.mxu0 %v4567
        %6486 = vmatprep.subr.bf16.mxu0 %v4560
        %6487 = vmatpush1.bf16.msra.mxu0 %v4559
        %6488 = vmatprep.subr.bf16.mxu0 %v4552
        %6489 = vmatpush1.bf16.msra.mxu0 %v4551
        %6490 = vmatprep.subr.bf16.mxu0 %v4544
        %6491 = vmatpush1.bf16.msra.mxu0 %v4543
        %6492 = vmatprep.subr.bf16.mxu0 %v4536
        %6493 = vmatpush1.bf16.msra.mxu0 %v4535
        %6494 = vmatprep.subr.bf16.mxu0 %v4528
        %6495 = vmatpush1.bf16.msra.mxu0 %v4527
        %6496 = vmatprep.subr.bf16.mxu0 %v4520
        %6497 = vmatpush1.bf16.msra.mxu0 %v4519
        %6498 = vmatprep.subr.bf16.mxu0 %v4640
        %6499 = vmatpush2.bf16.msra.mxu0 %v4639
        %6500 = vmatprep.subr.bf16.mxu0 %v4632
        %6501 = vmatpush2.bf16.msra.mxu0 %v4631
        %6502 = vmatprep.subr.bf16.mxu0 %v4624
        %6503 = vmatpush2.bf16.msra.mxu0 %v4623
        %6504 = vmatprep.subr.bf16.mxu0 %v4616
        %6505 = vmatpush2.bf16.msra.mxu0 %v4615
        %6506 = vmatprep.subr.bf16.mxu0 %v4608
        %6507 = vmatpush2.bf16.msra.mxu0 %v4607
        %6508 = vmatprep.subr.bf16.mxu0 %v4600
        %6509 = vmatpush2.bf16.msra.mxu0 %v4599
        %6510 = vmatprep.subr.bf16.mxu0 %v4592
        %6511 = vmatpush2.bf16.msra.mxu0 %v4591
        %6512 = vmatprep.subr.bf16.mxu0 %v4584
        %6513 = vmatpush2.bf16.msra.mxu0 %v4583
        %6514 = vmatprep.mubr.bf16.mxu0 %v1290
        %6515 = vmatmul.mubr.bf16.gmra.mxu0 %v1289
        %v6516 = vpop.f32.mrf.mxu0
        %v6517 = vadd.f32 %v6474, %v6516
        %v6518 = vpop.f32.mrf.mxu0
        %v6519 = vadd.f32 %v6476, %v6518
        %v6520 = vpop.f32.mrf.mxu0
        %v6521 = vadd.f32 %v6478, %v6520
        %v6522 = vpop.f32.mrf.mxu0
        %v6523 = vadd.f32 %v6480, %v6522
        %6524 = vdwg.mxu0
        %6525 = vmatprep.subr.bf16.mxu0 %v4704
        %6526 = vmatpush1.bf16.msra.mxu0 %v4703
        %6527 = vmatprep.subr.bf16.mxu0 %v4696
        %6528 = vmatpush1.bf16.msra.mxu0 %v4695
        %6529 = vmatprep.subr.bf16.mxu0 %v4688
        %6530 = vmatpush1.bf16.msra.mxu0 %v4687
        %6531 = vmatprep.subr.bf16.mxu0 %v4680
        %6532 = vmatpush1.bf16.msra.mxu0 %v4679
        %6533 = vmatprep.subr.bf16.mxu0 %v4672
        %6534 = vmatpush1.bf16.msra.mxu0 %v4671
        %6535 = vmatprep.subr.bf16.mxu0 %v4664
        %6536 = vmatpush1.bf16.msra.mxu0 %v4663
        %6537 = vmatprep.subr.bf16.mxu0 %v4656
        %6538 = vmatpush1.bf16.msra.mxu0 %v4655
        %6539 = vmatprep.subr.bf16.mxu0 %v4648
        %6540 = vmatpush1.bf16.msra.mxu0 %v4647
        %6541 = vmatprep.subr.bf16.mxu0 %v4768
        %6542 = vmatpush2.bf16.msra.mxu0 %v4767
        %6543 = vmatprep.subr.bf16.mxu0 %v4760
        %6544 = vmatpush2.bf16.msra.mxu0 %v4759
        %6545 = vmatprep.subr.bf16.mxu0 %v4752
        %6546 = vmatpush2.bf16.msra.mxu0 %v4751
        %6547 = vmatprep.subr.bf16.mxu0 %v4744
        %6548 = vmatpush2.bf16.msra.mxu0 %v4743
        %6549 = vmatprep.subr.bf16.mxu0 %v4736
        %6550 = vmatpush2.bf16.msra.mxu0 %v4735
        %6551 = vmatprep.subr.bf16.mxu0 %v4728
        %6552 = vmatpush2.bf16.msra.mxu0 %v4727
        %6553 = vmatprep.subr.bf16.mxu0 %v4720
        %6554 = vmatpush2.bf16.msra.mxu0 %v4719
        %6555 = vmatprep.subr.bf16.mxu0 %v4712
        %6556 = vmatpush2.bf16.msra.mxu0 %v4711
        %6557 = vmatprep.mubr.bf16.mxu0 %v1292
        %6558 = vmatmul.mubr.bf16.gmra.mxu0 %v1291
        %v6559 = vpop.f32.mrf.mxu0
        %v6560 = vadd.f32 %v6517, %v6559
        %v6561 = vpop.f32.mrf.mxu0
        %v6562 = vadd.f32 %v6519, %v6561
        %v6563 = vpop.f32.mrf.mxu0
        %v6564 = vadd.f32 %v6521, %v6563
        %v6565 = vpop.f32.mrf.mxu0
        %v6566 = vadd.f32 %v6523, %v6565
        %6567 = vdwg.mxu0
        %6568 = vmatprep.subr.bf16.mxu0 %v4832
        %6569 = vmatpush1.bf16.msra.mxu0 %v4831
        %6570 = vmatprep.subr.bf16.mxu0 %v4824
        %6571 = vmatpush1.bf16.msra.mxu0 %v4823
        %6572 = vmatprep.subr.bf16.mxu0 %v4816
        %6573 = vmatpush1.bf16.msra.mxu0 %v4815
        %6574 = vmatprep.subr.bf16.mxu0 %v4808
        %6575 = vmatpush1.bf16.msra.mxu0 %v4807
        %6576 = vmatprep.subr.bf16.mxu0 %v4800
        %6577 = vmatpush1.bf16.msra.mxu0 %v4799
        %6578 = vmatprep.subr.bf16.mxu0 %v4792
        %6579 = vmatpush1.bf16.msra.mxu0 %v4791
        %6580 = vmatprep.subr.bf16.mxu0 %v4784
        %6581 = vmatpush1.bf16.msra.mxu0 %v4783
        %6582 = vmatprep.subr.bf16.mxu0 %v4776
        %6583 = vmatpush1.bf16.msra.mxu0 %v4775
        %6584 = vmatprep.subr.bf16.mxu0 %v4896
        %6585 = vmatpush2.bf16.msra.mxu0 %v4895
        %6586 = vmatprep.subr.bf16.mxu0 %v4888
        %6587 = vmatpush2.bf16.msra.mxu0 %v4887
        %6588 = vmatprep.subr.bf16.mxu0 %v4880
        %6589 = vmatpush2.bf16.msra.mxu0 %v4879
        %6590 = vmatprep.subr.bf16.mxu0 %v4872
        %6591 = vmatpush2.bf16.msra.mxu0 %v4871
        %6592 = vmatprep.subr.bf16.mxu0 %v4864
        %6593 = vmatpush2.bf16.msra.mxu0 %v4863
        %6594 = vmatprep.subr.bf16.mxu0 %v4856
        %6595 = vmatpush2.bf16.msra.mxu0 %v4855
        %6596 = vmatprep.subr.bf16.mxu0 %v4848
        %6597 = vmatpush2.bf16.msra.mxu0 %v4847
        %6598 = vmatprep.subr.bf16.mxu0 %v4840
        %6599 = vmatpush2.bf16.msra.mxu0 %v4839
        %6600 = vmatprep.mubr.bf16.mxu0 %v1294
        %6601 = vmatmul.mubr.bf16.gmra.mxu0 %v1293
        %v6602 = vpop.f32.mrf.mxu0
        %v6603 = vadd.f32 %v6560, %v6602
        %v6604 = vpop.f32.mrf.mxu0
        %v6605 = vadd.f32 %v6562, %v6604
        %v6606 = vpop.f32.mrf.mxu0
        %v6607 = vadd.f32 %v6564, %v6606
        %v6608 = vpop.f32.mrf.mxu0
        %v6609 = vadd.f32 %v6566, %v6608
        %6610 = vdwg.mxu0
        %6611 = vmatprep.subr.bf16.mxu0 %v4960
        %6612 = vmatpush1.bf16.msra.mxu0 %v4959
        %6613 = vmatprep.subr.bf16.mxu0 %v4952
        %6614 = vmatpush1.bf16.msra.mxu0 %v4951
        %6615 = vmatprep.subr.bf16.mxu0 %v4944
        %6616 = vmatpush1.bf16.msra.mxu0 %v4943
        %6617 = vmatprep.subr.bf16.mxu0 %v4936
        %6618 = vmatpush1.bf16.msra.mxu0 %v4935
        %6619 = vmatprep.subr.bf16.mxu0 %v4928
        %6620 = vmatpush1.bf16.msra.mxu0 %v4927
        %6621 = vmatprep.subr.bf16.mxu0 %v4920
        %6622 = vmatpush1.bf16.msra.mxu0 %v4919
        %6623 = vmatprep.subr.bf16.mxu0 %v4912
        %6624 = vmatpush1.bf16.msra.mxu0 %v4911
        %6625 = vmatprep.subr.bf16.mxu0 %v4904
        %6626 = vmatpush1.bf16.msra.mxu0 %v4903
        %6627 = vmatprep.subr.bf16.mxu0 %v5024
        %6628 = vmatpush2.bf16.msra.mxu0 %v5023
        %6629 = vmatprep.subr.bf16.mxu0 %v5016
        %6630 = vmatpush2.bf16.msra.mxu0 %v5015
        %6631 = vmatprep.subr.bf16.mxu0 %v5008
        %6632 = vmatpush2.bf16.msra.mxu0 %v5007
        %6633 = vmatprep.subr.bf16.mxu0 %v5000
        %6634 = vmatpush2.bf16.msra.mxu0 %v4999
        %6635 = vmatprep.subr.bf16.mxu0 %v4992
        %6636 = vmatpush2.bf16.msra.mxu0 %v4991
        %6637 = vmatprep.subr.bf16.mxu0 %v4984
        %6638 = vmatpush2.bf16.msra.mxu0 %v4983
        %6639 = vmatprep.subr.bf16.mxu0 %v4976
        %6640 = vmatpush2.bf16.msra.mxu0 %v4975
        %6641 = vmatprep.subr.bf16.mxu0 %v4968
        %6642 = vmatpush2.bf16.msra.mxu0 %v4967
        %6643 = vmatprep.mubr.bf16.mxu0 %v1296
        %6644 = vmatmul.mubr.bf16.gmra.mxu0 %v1295
        %v6645 = vpop.f32.mrf.mxu0
        %v6646 = vadd.f32 %v6603, %v6645
        %v6647 = vpop.f32.mrf.mxu0
        %v6648 = vadd.f32 %v6605, %v6647
        %v6649 = vpop.f32.mrf.mxu0
        %v6650 = vadd.f32 %v6607, %v6649
        %v6651 = vpop.f32.mrf.mxu0
        %v6652 = vadd.f32 %v6609, %v6651
        %6653 = vdwg.mxu0
        %6654 = vmatprep.subr.bf16.mxu0 %v5088
        %6655 = vmatpush1.bf16.msra.mxu0 %v5087
        %6656 = vmatprep.subr.bf16.mxu0 %v5080
        %6657 = vmatpush1.bf16.msra.mxu0 %v5079
        %6658 = vmatprep.subr.bf16.mxu0 %v5072
        %6659 = vmatpush1.bf16.msra.mxu0 %v5071
        %6660 = vmatprep.subr.bf16.mxu0 %v5064
        %6661 = vmatpush1.bf16.msra.mxu0 %v5063
        %6662 = vmatprep.subr.bf16.mxu0 %v5056
        %6663 = vmatpush1.bf16.msra.mxu0 %v5055
        %6664 = vmatprep.subr.bf16.mxu0 %v5048
        %6665 = vmatpush1.bf16.msra.mxu0 %v5047
        %6666 = vmatprep.subr.bf16.mxu0 %v5040
        %6667 = vmatpush1.bf16.msra.mxu0 %v5039
        %6668 = vmatprep.subr.bf16.mxu0 %v5032
        %6669 = vmatpush1.bf16.msra.mxu0 %v5031
        %6670 = vmatprep.subr.bf16.mxu0 %v5152
        %6671 = vmatpush2.bf16.msra.mxu0 %v5151
        %6672 = vmatprep.subr.bf16.mxu0 %v5144
        %6673 = vmatpush2.bf16.msra.mxu0 %v5143
        %6674 = vmatprep.subr.bf16.mxu0 %v5136
        %6675 = vmatpush2.bf16.msra.mxu0 %v5135
        %6676 = vmatprep.subr.bf16.mxu0 %v5128
        %6677 = vmatpush2.bf16.msra.mxu0 %v5127
        %6678 = vmatprep.subr.bf16.mxu0 %v5120
        %6679 = vmatpush2.bf16.msra.mxu0 %v5119
        %6680 = vmatprep.subr.bf16.mxu0 %v5112
        %6681 = vmatpush2.bf16.msra.mxu0 %v5111
        %6682 = vmatprep.subr.bf16.mxu0 %v5104
        %6683 = vmatpush2.bf16.msra.mxu0 %v5103
        %6684 = vmatprep.subr.bf16.mxu0 %v5096
        %6685 = vmatpush2.bf16.msra.mxu0 %v5095
        %6686 = vmatprep.mubr.bf16.mxu0 %v1298
        %6687 = vmatmul.mubr.bf16.gmra.mxu0 %v1297
        %v6688 = vpop.f32.mrf.mxu0
        %v6689 = vadd.f32 %v6646, %v6688
        %v6690 = vpop.f32.mrf.mxu0
        %v6691 = vadd.f32 %v6648, %v6690
        %v6692 = vpop.f32.mrf.mxu0
        %v6693 = vadd.f32 %v6650, %v6692
        %v6694 = vpop.f32.mrf.mxu0
        %v6695 = vadd.f32 %v6652, %v6694
        %6696 = vdwg.mxu0
        %6697 = vmatprep.subr.bf16.mxu0 %v5216
        %6698 = vmatpush1.bf16.msra.mxu0 %v5215
        %6699 = vmatprep.subr.bf16.mxu0 %v5208
        %6700 = vmatpush1.bf16.msra.mxu0 %v5207
        %6701 = vmatprep.subr.bf16.mxu0 %v5200
        %6702 = vmatpush1.bf16.msra.mxu0 %v5199
        %6703 = vmatprep.subr.bf16.mxu0 %v5192
        %6704 = vmatpush1.bf16.msra.mxu0 %v5191
        %6705 = vmatprep.subr.bf16.mxu0 %v5184
        %6706 = vmatpush1.bf16.msra.mxu0 %v5183
        %6707 = vmatprep.subr.bf16.mxu0 %v5176
        %6708 = vmatpush1.bf16.msra.mxu0 %v5175
        %6709 = vmatprep.subr.bf16.mxu0 %v5168
        %6710 = vmatpush1.bf16.msra.mxu0 %v5167
        %6711 = vmatprep.subr.bf16.mxu0 %v5160
        %6712 = vmatpush1.bf16.msra.mxu0 %v5159
        %6713 = vmatprep.subr.bf16.mxu0 %v5280
        %6714 = vmatpush2.bf16.msra.mxu0 %v5279
        %6715 = vmatprep.subr.bf16.mxu0 %v5272
        %6716 = vmatpush2.bf16.msra.mxu0 %v5271
        %6717 = vmatprep.subr.bf16.mxu0 %v5264
        %6718 = vmatpush2.bf16.msra.mxu0 %v5263
        %6719 = vmatprep.subr.bf16.mxu0 %v5256
        %6720 = vmatpush2.bf16.msra.mxu0 %v5255
        %6721 = vmatprep.subr.bf16.mxu0 %v5248
        %6722 = vmatpush2.bf16.msra.mxu0 %v5247
        %6723 = vmatprep.subr.bf16.mxu0 %v5240
        %6724 = vmatpush2.bf16.msra.mxu0 %v5239
        %6725 = vmatprep.subr.bf16.mxu0 %v5232
        %6726 = vmatpush2.bf16.msra.mxu0 %v5231
        %6727 = vmatprep.subr.bf16.mxu0 %v5224
        %6728 = vmatpush2.bf16.msra.mxu0 %v5223
        %6729 = vmatprep.mubr.bf16.mxu0 %v1300
        %6730 = vmatmul.mubr.bf16.gmra.mxu0 %v1299
        %v6731 = vpop.f32.mrf.mxu0
        %v6732 = vadd.f32 %v6689, %v6731
        %v6733 = vpop.f32.mrf.mxu0
        %v6734 = vadd.f32 %v6691, %v6733
        %v6735 = vpop.f32.mrf.mxu0
        %v6736 = vadd.f32 %v6693, %v6735
        %v6737 = vpop.f32.mrf.mxu0
        %v6738 = vadd.f32 %v6695, %v6737
        %6739 = vdwg.mxu0
        %6740 = vmatprep.subr.bf16.mxu0 %v5344
        %6741 = vmatpush1.bf16.msra.mxu0 %v5343
        %6742 = vmatprep.subr.bf16.mxu0 %v5336
        %6743 = vmatpush1.bf16.msra.mxu0 %v5335
        %6744 = vmatprep.subr.bf16.mxu0 %v5328
        %6745 = vmatpush1.bf16.msra.mxu0 %v5327
        %6746 = vmatprep.subr.bf16.mxu0 %v5320
        %6747 = vmatpush1.bf16.msra.mxu0 %v5319
        %6748 = vmatprep.subr.bf16.mxu0 %v5312
        %6749 = vmatpush1.bf16.msra.mxu0 %v5311
        %6750 = vmatprep.subr.bf16.mxu0 %v5304
        %6751 = vmatpush1.bf16.msra.mxu0 %v5303
        %6752 = vmatprep.subr.bf16.mxu0 %v5296
        %6753 = vmatpush1.bf16.msra.mxu0 %v5295
        %6754 = vmatprep.subr.bf16.mxu0 %v5288
        %6755 = vmatpush1.bf16.msra.mxu0 %v5287
        %6756 = vmatprep.subr.bf16.mxu0 %v5408
        %6757 = vmatpush2.bf16.msra.mxu0 %v5407
        %6758 = vmatprep.subr.bf16.mxu0 %v5400
        %6759 = vmatpush2.bf16.msra.mxu0 %v5399
        %6760 = vmatprep.subr.bf16.mxu0 %v5392
        %6761 = vmatpush2.bf16.msra.mxu0 %v5391
        %6762 = vmatprep.subr.bf16.mxu0 %v5384
        %6763 = vmatpush2.bf16.msra.mxu0 %v5383
        %6764 = vmatprep.subr.bf16.mxu0 %v5376
        %6765 = vmatpush2.bf16.msra.mxu0 %v5375
        %6766 = vmatprep.subr.bf16.mxu0 %v5368
        %6767 = vmatpush2.bf16.msra.mxu0 %v5367
        %6768 = vmatprep.subr.bf16.mxu0 %v5360
        %6769 = vmatpush2.bf16.msra.mxu0 %v5359
        %6770 = vmatprep.subr.bf16.mxu0 %v5352
        %6771 = vmatpush2.bf16.msra.mxu0 %v5351
        %6772 = vmatprep.mubr.bf16.mxu0 %v1302
        %6773 = vmatmul.mubr.bf16.gmra.mxu0 %v1301
        %v6774 = vpop.f32.mrf.mxu0
        %v6775 = vadd.f32 %v6732, %v6774
        %v6776 = vpop.f32.mrf.mxu0
        %v6777 = vadd.f32 %v6734, %v6776
        %v6778 = vpop.f32.mrf.mxu0
        %v6779 = vadd.f32 %v6736, %v6778
        %v6780 = vpop.f32.mrf.mxu0
        %v6781 = vadd.f32 %v6738, %v6780
        %6782 = vdwg.mxu0
        %6783 = vmatprep.subr.bf16.mxu0 %v4450
        %6784 = vmatpush1.bf16.msra.mxu0 %v4449
        %6785 = vmatprep.subr.bf16.mxu0 %v4442
        %6786 = vmatpush1.bf16.msra.mxu0 %v4441
        %6787 = vmatprep.subr.bf16.mxu0 %v4434
        %6788 = vmatpush1.bf16.msra.mxu0 %v4433
        %6789 = vmatprep.subr.bf16.mxu0 %v4426
        %6790 = vmatpush1.bf16.msra.mxu0 %v4425
        %6791 = vmatprep.subr.bf16.mxu0 %v4418
        %6792 = vmatpush1.bf16.msra.mxu0 %v4417
        %6793 = vmatprep.subr.bf16.mxu0 %v4410
        %6794 = vmatpush1.bf16.msra.mxu0 %v4409
        %6795 = vmatprep.subr.bf16.mxu0 %v4402
        %6796 = vmatpush1.bf16.msra.mxu0 %v4401
        %6797 = vmatprep.subr.bf16.mxu0 %v4394
        %6798 = vmatpush1.bf16.msra.mxu0 %v4393
        %6799 = vmatprep.subr.bf16.mxu0 %v4514
        %6800 = vmatpush2.bf16.msra.mxu0 %v4513
        %6801 = vmatprep.subr.bf16.mxu0 %v4506
        %6802 = vmatpush2.bf16.msra.mxu0 %v4505
        %6803 = vmatprep.subr.bf16.mxu0 %v4498
        %6804 = vmatpush2.bf16.msra.mxu0 %v4497
        %6805 = vmatprep.subr.bf16.mxu0 %v4490
        %6806 = vmatpush2.bf16.msra.mxu0 %v4489
        %6807 = vmatprep.subr.bf16.mxu0 %v4482
        %6808 = vmatpush2.bf16.msra.mxu0 %v4481
        %6809 = vmatprep.subr.bf16.mxu0 %v4474
        %6810 = vmatpush2.bf16.msra.mxu0 %v4473
        %6811 = vmatprep.subr.bf16.mxu0 %v4466
        %6812 = vmatpush2.bf16.msra.mxu0 %v4465
        %6813 = vmatprep.subr.bf16.mxu0 %v4458
        %6814 = vmatpush2.bf16.msra.mxu0 %v4457
        %6815 = vmatprep.mubr.bf16.mxu0 %v1288
        %6816 = vmatmul.mubr.bf16.gmra.mxu0 %v1287
        %v6817 = vpop.f32.mrf.mxu0
        %v6818 = vadd.f32 0.0, %v6817
        %v6819 = vpop.f32.mrf.mxu0
        %v6820 = vadd.f32 0.0, %v6819
        %v6821 = vpop.f32.mrf.mxu0
        %v6822 = vadd.f32 0.0, %v6821
        %v6823 = vpop.f32.mrf.mxu0
        %v6824 = vadd.f32 0.0, %v6823
        %6825 = vdwg.mxu0
        %6826 = vmatprep.subr.bf16.mxu0 %v4578
        %6827 = vmatpush1.bf16.msra.mxu0 %v4577
        %6828 = vmatprep.subr.bf16.mxu0 %v4570
        %6829 = vmatpush1.bf16.msra.mxu0 %v4569
        %6830 = vmatprep.subr.bf16.mxu0 %v4562
        %6831 = vmatpush1.bf16.msra.mxu0 %v4561
        %6832 = vmatprep.subr.bf16.mxu0 %v4554
        %6833 = vmatpush1.bf16.msra.mxu0 %v4553
        %6834 = vmatprep.subr.bf16.mxu0 %v4546
        %6835 = vmatpush1.bf16.msra.mxu0 %v4545
        %6836 = vmatprep.subr.bf16.mxu0 %v4538
        %6837 = vmatpush1.bf16.msra.mxu0 %v4537
        %6838 = vmatprep.subr.bf16.mxu0 %v4530
        %6839 = vmatpush1.bf16.msra.mxu0 %v4529
        %6840 = vmatprep.subr.bf16.mxu0 %v4522
        %6841 = vmatpush1.bf16.msra.mxu0 %v4521
        %6842 = vmatprep.subr.bf16.mxu0 %v4642
        %6843 = vmatpush2.bf16.msra.mxu0 %v4641
        %6844 = vmatprep.subr.bf16.mxu0 %v4634
        %6845 = vmatpush2.bf16.msra.mxu0 %v4633
        %6846 = vmatprep.subr.bf16.mxu0 %v4626
        %6847 = vmatpush2.bf16.msra.mxu0 %v4625
        %6848 = vmatprep.subr.bf16.mxu0 %v4618
        %6849 = vmatpush2.bf16.msra.mxu0 %v4617
        %6850 = vmatprep.subr.bf16.mxu0 %v4610
        %6851 = vmatpush2.bf16.msra.mxu0 %v4609
        %6852 = vmatprep.subr.bf16.mxu0 %v4602
        %6853 = vmatpush2.bf16.msra.mxu0 %v4601
        %6854 = vmatprep.subr.bf16.mxu0 %v4594
        %6855 = vmatpush2.bf16.msra.mxu0 %v4593
        %6856 = vmatprep.subr.bf16.mxu0 %v4586
        %6857 = vmatpush2.bf16.msra.mxu0 %v4585
        %6858 = vmatprep.mubr.bf16.mxu0 %v1290
        %6859 = vmatmul.mubr.bf16.gmra.mxu0 %v1289
        %v6860 = vpop.f32.mrf.mxu0
        %v6861 = vadd.f32 %v6818, %v6860
        %v6862 = vpop.f32.mrf.mxu0
        %v6863 = vadd.f32 %v6820, %v6862
        %v6864 = vpop.f32.mrf.mxu0
        %v6865 = vadd.f32 %v6822, %v6864
        %v6866 = vpop.f32.mrf.mxu0
        %v6867 = vadd.f32 %v6824, %v6866
        %6868 = vdwg.mxu0
        %6869 = vmatprep.subr.bf16.mxu0 %v4706
        %6870 = vmatpush1.bf16.msra.mxu0 %v4705
        %6871 = vmatprep.subr.bf16.mxu0 %v4698
        %6872 = vmatpush1.bf16.msra.mxu0 %v4697
        %6873 = vmatprep.subr.bf16.mxu0 %v4690
        %6874 = vmatpush1.bf16.msra.mxu0 %v4689
        %6875 = vmatprep.subr.bf16.mxu0 %v4682
        %6876 = vmatpush1.bf16.msra.mxu0 %v4681
        %6877 = vmatprep.subr.bf16.mxu0 %v4674
        %6878 = vmatpush1.bf16.msra.mxu0 %v4673
        %6879 = vmatprep.subr.bf16.mxu0 %v4666
        %6880 = vmatpush1.bf16.msra.mxu0 %v4665
        %6881 = vmatprep.subr.bf16.mxu0 %v4658
        %6882 = vmatpush1.bf16.msra.mxu0 %v4657
        %6883 = vmatprep.subr.bf16.mxu0 %v4650
        %6884 = vmatpush1.bf16.msra.mxu0 %v4649
        %6885 = vmatprep.subr.bf16.mxu0 %v4770
        %6886 = vmatpush2.bf16.msra.mxu0 %v4769
        %6887 = vmatprep.subr.bf16.mxu0 %v4762
        %6888 = vmatpush2.bf16.msra.mxu0 %v4761
        %6889 = vmatprep.subr.bf16.mxu0 %v4754
        %6890 = vmatpush2.bf16.msra.mxu0 %v4753
        %6891 = vmatprep.subr.bf16.mxu0 %v4746
        %6892 = vmatpush2.bf16.msra.mxu0 %v4745
        %6893 = vmatprep.subr.bf16.mxu0 %v4738
        %6894 = vmatpush2.bf16.msra.mxu0 %v4737
        %6895 = vmatprep.subr.bf16.mxu0 %v4730
        %6896 = vmatpush2.bf16.msra.mxu0 %v4729
        %6897 = vmatprep.subr.bf16.mxu0 %v4722
        %6898 = vmatpush2.bf16.msra.mxu0 %v4721
        %6899 = vmatprep.subr.bf16.mxu0 %v4714
        %6900 = vmatpush2.bf16.msra.mxu0 %v4713
        %6901 = vmatprep.mubr.bf16.mxu0 %v1292
        %6902 = vmatmul.mubr.bf16.gmra.mxu0 %v1291
        %v6903 = vpop.f32.mrf.mxu0
        %v6904 = vadd.f32 %v6861, %v6903
        %v6905 = vpop.f32.mrf.mxu0
        %v6906 = vadd.f32 %v6863, %v6905
        %v6907 = vpop.f32.mrf.mxu0
        %v6908 = vadd.f32 %v6865, %v6907
        %v6909 = vpop.f32.mrf.mxu0
        %v6910 = vadd.f32 %v6867, %v6909
        %6911 = vdwg.mxu0
        %6912 = vmatprep.subr.bf16.mxu0 %v4834
        %6913 = vmatpush1.bf16.msra.mxu0 %v4833
        %6914 = vmatprep.subr.bf16.mxu0 %v4826
        %6915 = vmatpush1.bf16.msra.mxu0 %v4825
        %6916 = vmatprep.subr.bf16.mxu0 %v4818
        %6917 = vmatpush1.bf16.msra.mxu0 %v4817
        %6918 = vmatprep.subr.bf16.mxu0 %v4810
        %6919 = vmatpush1.bf16.msra.mxu0 %v4809
        %6920 = vmatprep.subr.bf16.mxu0 %v4802
        %6921 = vmatpush1.bf16.msra.mxu0 %v4801
        %6922 = vmatprep.subr.bf16.mxu0 %v4794
        %6923 = vmatpush1.bf16.msra.mxu0 %v4793
        %6924 = vmatprep.subr.bf16.mxu0 %v4786
        %6925 = vmatpush1.bf16.msra.mxu0 %v4785
        %6926 = vmatprep.subr.bf16.mxu0 %v4778
        %6927 = vmatpush1.bf16.msra.mxu0 %v4777
        %6928 = vmatprep.subr.bf16.mxu0 %v4898
        %6929 = vmatpush2.bf16.msra.mxu0 %v4897
        %6930 = vmatprep.subr.bf16.mxu0 %v4890
        %6931 = vmatpush2.bf16.msra.mxu0 %v4889
        %6932 = vmatprep.subr.bf16.mxu0 %v4882
        %6933 = vmatpush2.bf16.msra.mxu0 %v4881
        %6934 = vmatprep.subr.bf16.mxu0 %v4874
        %6935 = vmatpush2.bf16.msra.mxu0 %v4873
        %6936 = vmatprep.subr.bf16.mxu0 %v4866
        %6937 = vmatpush2.bf16.msra.mxu0 %v4865
        %6938 = vmatprep.subr.bf16.mxu0 %v4858
        %6939 = vmatpush2.bf16.msra.mxu0 %v4857
        %6940 = vmatprep.subr.bf16.mxu0 %v4850
        %6941 = vmatpush2.bf16.msra.mxu0 %v4849
        %6942 = vmatprep.subr.bf16.mxu0 %v4842
        %6943 = vmatpush2.bf16.msra.mxu0 %v4841
        %6944 = vmatprep.mubr.bf16.mxu0 %v1294
        %6945 = vmatmul.mubr.bf16.gmra.mxu0 %v1293
        %v6946 = vpop.f32.mrf.mxu0
        %v6947 = vadd.f32 %v6904, %v6946
        %v6948 = vpop.f32.mrf.mxu0
        %v6949 = vadd.f32 %v6906, %v6948
        %v6950 = vpop.f32.mrf.mxu0
        %v6951 = vadd.f32 %v6908, %v6950
        %v6952 = vpop.f32.mrf.mxu0
        %v6953 = vadd.f32 %v6910, %v6952
        %6954 = vdwg.mxu0
        %6955 = vmatprep.subr.bf16.mxu0 %v4962
        %6956 = vmatpush1.bf16.msra.mxu0 %v4961
        %6957 = vmatprep.subr.bf16.mxu0 %v4954
        %6958 = vmatpush1.bf16.msra.mxu0 %v4953
        %6959 = vmatprep.subr.bf16.mxu0 %v4946
        %6960 = vmatpush1.bf16.msra.mxu0 %v4945
        %6961 = vmatprep.subr.bf16.mxu0 %v4938
        %6962 = vmatpush1.bf16.msra.mxu0 %v4937
        %6963 = vmatprep.subr.bf16.mxu0 %v4930
        %6964 = vmatpush1.bf16.msra.mxu0 %v4929
        %6965 = vmatprep.subr.bf16.mxu0 %v4922
        %6966 = vmatpush1.bf16.msra.mxu0 %v4921
        %6967 = vmatprep.subr.bf16.mxu0 %v4914
        %6968 = vmatpush1.bf16.msra.mxu0 %v4913
        %6969 = vmatprep.subr.bf16.mxu0 %v4906
        %6970 = vmatpush1.bf16.msra.mxu0 %v4905
        %6971 = vmatprep.subr.bf16.mxu0 %v5026
        %6972 = vmatpush2.bf16.msra.mxu0 %v5025
        %6973 = vmatprep.subr.bf16.mxu0 %v5018
        %6974 = vmatpush2.bf16.msra.mxu0 %v5017
        %6975 = vmatprep.subr.bf16.mxu0 %v5010
        %6976 = vmatpush2.bf16.msra.mxu0 %v5009
        %6977 = vmatprep.subr.bf16.mxu0 %v5002
        %6978 = vmatpush2.bf16.msra.mxu0 %v5001
        %6979 = vmatprep.subr.bf16.mxu0 %v4994
        %6980 = vmatpush2.bf16.msra.mxu0 %v4993
        %6981 = vmatprep.subr.bf16.mxu0 %v4986
        %6982 = vmatpush2.bf16.msra.mxu0 %v4985
        %6983 = vmatprep.subr.bf16.mxu0 %v4978
        %6984 = vmatpush2.bf16.msra.mxu0 %v4977
        %6985 = vmatprep.subr.bf16.mxu0 %v4970
        %6986 = vmatpush2.bf16.msra.mxu0 %v4969
        %6987 = vmatprep.mubr.bf16.mxu0 %v1296
        %6988 = vmatmul.mubr.bf16.gmra.mxu0 %v1295
        %v6989 = vpop.f32.mrf.mxu0
        %v6990 = vadd.f32 %v6947, %v6989
        %v6991 = vpop.f32.mrf.mxu0
        %v6992 = vadd.f32 %v6949, %v6991
        %v6993 = vpop.f32.mrf.mxu0
        %v6994 = vadd.f32 %v6951, %v6993
        %v6995 = vpop.f32.mrf.mxu0
        %v6996 = vadd.f32 %v6953, %v6995
        %6997 = vdwg.mxu0
        %6998 = vmatprep.subr.bf16.mxu0 %v5090
        %6999 = vmatpush1.bf16.msra.mxu0 %v5089
        %7000 = vmatprep.subr.bf16.mxu0 %v5082
        %7001 = vmatpush1.bf16.msra.mxu0 %v5081
        %7002 = vmatprep.subr.bf16.mxu0 %v5074
        %7003 = vmatpush1.bf16.msra.mxu0 %v5073
        %7004 = vmatprep.subr.bf16.mxu0 %v5066
        %7005 = vmatpush1.bf16.msra.mxu0 %v5065
        %7006 = vmatprep.subr.bf16.mxu0 %v5058
        %7007 = vmatpush1.bf16.msra.mxu0 %v5057
        %7008 = vmatprep.subr.bf16.mxu0 %v5050
        %7009 = vmatpush1.bf16.msra.mxu0 %v5049
        %7010 = vmatprep.subr.bf16.mxu0 %v5042
        %7011 = vmatpush1.bf16.msra.mxu0 %v5041
        %7012 = vmatprep.subr.bf16.mxu0 %v5034
        %7013 = vmatpush1.bf16.msra.mxu0 %v5033
        %7014 = vmatprep.subr.bf16.mxu0 %v5154
        %7015 = vmatpush2.bf16.msra.mxu0 %v5153
        %7016 = vmatprep.subr.bf16.mxu0 %v5146
        %7017 = vmatpush2.bf16.msra.mxu0 %v5145
        %7018 = vmatprep.subr.bf16.mxu0 %v5138
        %7019 = vmatpush2.bf16.msra.mxu0 %v5137
        %7020 = vmatprep.subr.bf16.mxu0 %v5130
        %7021 = vmatpush2.bf16.msra.mxu0 %v5129
        %7022 = vmatprep.subr.bf16.mxu0 %v5122
        %7023 = vmatpush2.bf16.msra.mxu0 %v5121
        %7024 = vmatprep.subr.bf16.mxu0 %v5114
        %7025 = vmatpush2.bf16.msra.mxu0 %v5113
        %7026 = vmatprep.subr.bf16.mxu0 %v5106
        %7027 = vmatpush2.bf16.msra.mxu0 %v5105
        %7028 = vmatprep.subr.bf16.mxu0 %v5098
        %7029 = vmatpush2.bf16.msra.mxu0 %v5097
        %7030 = vmatprep.mubr.bf16.mxu0 %v1298
        %7031 = vmatmul.mubr.bf16.gmra.mxu0 %v1297
        %v7032 = vpop.f32.mrf.mxu0
        %v7033 = vadd.f32 %v6990, %v7032
        %v7034 = vpop.f32.mrf.mxu0
        %v7035 = vadd.f32 %v6992, %v7034
        %v7036 = vpop.f32.mrf.mxu0
        %v7037 = vadd.f32 %v6994, %v7036
        %v7038 = vpop.f32.mrf.mxu0
        %v7039 = vadd.f32 %v6996, %v7038
        %7040 = vdwg.mxu0
        %7041 = vmatprep.subr.bf16.mxu0 %v5218
        %7042 = vmatpush1.bf16.msra.mxu0 %v5217
        %7043 = vmatprep.subr.bf16.mxu0 %v5210
        %7044 = vmatpush1.bf16.msra.mxu0 %v5209
        %7045 = vmatprep.subr.bf16.mxu0 %v5202
        %7046 = vmatpush1.bf16.msra.mxu0 %v5201
        %7047 = vmatprep.subr.bf16.mxu0 %v5194
        %7048 = vmatpush1.bf16.msra.mxu0 %v5193
        %7049 = vmatprep.subr.bf16.mxu0 %v5186
        %7050 = vmatpush1.bf16.msra.mxu0 %v5185
        %7051 = vmatprep.subr.bf16.mxu0 %v5178
        %7052 = vmatpush1.bf16.msra.mxu0 %v5177
        %7053 = vmatprep.subr.bf16.mxu0 %v5170
        %7054 = vmatpush1.bf16.msra.mxu0 %v5169
        %7055 = vmatprep.subr.bf16.mxu0 %v5162
        %7056 = vmatpush1.bf16.msra.mxu0 %v5161
        %7057 = vmatprep.subr.bf16.mxu0 %v5282
        %7058 = vmatpush2.bf16.msra.mxu0 %v5281
        %7059 = vmatprep.subr.bf16.mxu0 %v5274
        %7060 = vmatpush2.bf16.msra.mxu0 %v5273
        %7061 = vmatprep.subr.bf16.mxu0 %v5266
        %7062 = vmatpush2.bf16.msra.mxu0 %v5265
        %7063 = vmatprep.subr.bf16.mxu0 %v5258
        %7064 = vmatpush2.bf16.msra.mxu0 %v5257
        %7065 = vmatprep.subr.bf16.mxu0 %v5250
        %7066 = vmatpush2.bf16.msra.mxu0 %v5249
        %7067 = vmatprep.subr.bf16.mxu0 %v5242
        %7068 = vmatpush2.bf16.msra.mxu0 %v5241
        %7069 = vmatprep.subr.bf16.mxu0 %v5234
        %7070 = vmatpush2.bf16.msra.mxu0 %v5233
        %7071 = vmatprep.subr.bf16.mxu0 %v5226
        %7072 = vmatpush2.bf16.msra.mxu0 %v5225
        %7073 = vmatprep.mubr.bf16.mxu0 %v1300
        %7074 = vmatmul.mubr.bf16.gmra.mxu0 %v1299
        %v7075 = vpop.f32.mrf.mxu0
        %v7076 = vadd.f32 %v7033, %v7075
        %v7077 = vpop.f32.mrf.mxu0
        %v7078 = vadd.f32 %v7035, %v7077
        %v7079 = vpop.f32.mrf.mxu0
        %v7080 = vadd.f32 %v7037, %v7079
        %v7081 = vpop.f32.mrf.mxu0
        %v7082 = vadd.f32 %v7039, %v7081
        %7083 = vdwg.mxu0
        %7084 = vmatprep.subr.bf16.mxu0 %v5346
        %7085 = vmatpush1.bf16.msra.mxu0 %v5345
        %7086 = vmatprep.subr.bf16.mxu0 %v5338
        %7087 = vmatpush1.bf16.msra.mxu0 %v5337
        %7088 = vmatprep.subr.bf16.mxu0 %v5330
        %7089 = vmatpush1.bf16.msra.mxu0 %v5329
        %7090 = vmatprep.subr.bf16.mxu0 %v5322
        %7091 = vmatpush1.bf16.msra.mxu0 %v5321
        %7092 = vmatprep.subr.bf16.mxu0 %v5314
        %7093 = vmatpush1.bf16.msra.mxu0 %v5313
        %7094 = vmatprep.subr.bf16.mxu0 %v5306
        %7095 = vmatpush1.bf16.msra.mxu0 %v5305
        %7096 = vmatprep.subr.bf16.mxu0 %v5298
        %7097 = vmatpush1.bf16.msra.mxu0 %v5297
        %7098 = vmatprep.subr.bf16.mxu0 %v5290
        %7099 = vmatpush1.bf16.msra.mxu0 %v5289
        %7100 = vmatprep.subr.bf16.mxu0 %v5410
        %7101 = vmatpush2.bf16.msra.mxu0 %v5409
        %7102 = vmatprep.subr.bf16.mxu0 %v5402
        %7103 = vmatpush2.bf16.msra.mxu0 %v5401
        %7104 = vmatprep.subr.bf16.mxu0 %v5394
        %7105 = vmatpush2.bf16.msra.mxu0 %v5393
        %7106 = vmatprep.subr.bf16.mxu0 %v5386
        %7107 = vmatpush2.bf16.msra.mxu0 %v5385
        %7108 = vmatprep.subr.bf16.mxu0 %v5378
        %7109 = vmatpush2.bf16.msra.mxu0 %v5377
        %7110 = vmatprep.subr.bf16.mxu0 %v5370
        %7111 = vmatpush2.bf16.msra.mxu0 %v5369
        %7112 = vmatprep.subr.bf16.mxu0 %v5362
        %7113 = vmatpush2.bf16.msra.mxu0 %v5361
        %7114 = vmatprep.subr.bf16.mxu0 %v5354
        %7115 = vmatpush2.bf16.msra.mxu0 %v5353
        %7116 = vmatprep.mubr.bf16.mxu0 %v1302
        %7117 = vmatmul.mubr.bf16.gmra.mxu0 %v1301
        %v7118 = vpop.f32.mrf.mxu0
        %v7119 = vadd.f32 %v7076, %v7118
        %v7120 = vpop.f32.mrf.mxu0
        %v7121 = vadd.f32 %v7078, %v7120
        %v7122 = vpop.f32.mrf.mxu0
        %v7123 = vadd.f32 %v7080, %v7122
        %v7124 = vpop.f32.mrf.mxu0
        %v7125 = vadd.f32 %v7082, %v7124
        %7126 = vdwg.mxu0
        %7127 = vmatprep.subr.bf16.mxu0 %v4452
        %7128 = vmatpush1.bf16.msra.mxu0 %v4451
        %7129 = vmatprep.subr.bf16.mxu0 %v4444
        %7130 = vmatpush1.bf16.msra.mxu0 %v4443
        %7131 = vmatprep.subr.bf16.mxu0 %v4436
        %7132 = vmatpush1.bf16.msra.mxu0 %v4435
        %7133 = vmatprep.subr.bf16.mxu0 %v4428
        %7134 = vmatpush1.bf16.msra.mxu0 %v4427
        %7135 = vmatprep.subr.bf16.mxu0 %v4420
        %7136 = vmatpush1.bf16.msra.mxu0 %v4419
        %7137 = vmatprep.subr.bf16.mxu0 %v4412
        %7138 = vmatpush1.bf16.msra.mxu0 %v4411
        %7139 = vmatprep.subr.bf16.mxu0 %v4404
        %7140 = vmatpush1.bf16.msra.mxu0 %v4403
        %7141 = vmatprep.subr.bf16.mxu0 %v4396
        %7142 = vmatpush1.bf16.msra.mxu0 %v4395
        %7143 = vmatprep.subr.bf16.mxu0 %v4516
        %7144 = vmatpush2.bf16.msra.mxu0 %v4515
        %7145 = vmatprep.subr.bf16.mxu0 %v4508
        %7146 = vmatpush2.bf16.msra.mxu0 %v4507
        %7147 = vmatprep.subr.bf16.mxu0 %v4500
        %7148 = vmatpush2.bf16.msra.mxu0 %v4499
        %7149 = vmatprep.subr.bf16.mxu0 %v4492
        %7150 = vmatpush2.bf16.msra.mxu0 %v4491
        %7151 = vmatprep.subr.bf16.mxu0 %v4484
        %7152 = vmatpush2.bf16.msra.mxu0 %v4483
        %7153 = vmatprep.subr.bf16.mxu0 %v4476
        %7154 = vmatpush2.bf16.msra.mxu0 %v4475
        %7155 = vmatprep.subr.bf16.mxu0 %v4468
        %7156 = vmatpush2.bf16.msra.mxu0 %v4467
        %7157 = vmatprep.subr.bf16.mxu0 %v4460
        %7158 = vmatpush2.bf16.msra.mxu0 %v4459
        %7159 = vmatprep.mubr.bf16.mxu0 %v1288
        %7160 = vmatmul.mubr.bf16.gmra.mxu0 %v1287
        %v7161 = vpop.f32.mrf.mxu0
        %v7162 = vadd.f32 0.0, %v7161
        %v7163 = vpop.f32.mrf.mxu0
        %v7164 = vadd.f32 0.0, %v7163
        %v7165 = vpop.f32.mrf.mxu0
        %v7166 = vadd.f32 0.0, %v7165
        %v7167 = vpop.f32.mrf.mxu0
        %v7168 = vadd.f32 0.0, %v7167
        %7169 = vdwg.mxu0
        %7170 = vmatprep.subr.bf16.mxu0 %v4580
        %7171 = vmatpush1.bf16.msra.mxu0 %v4579
        %7172 = vmatprep.subr.bf16.mxu0 %v4572
        %7173 = vmatpush1.bf16.msra.mxu0 %v4571
        %7174 = vmatprep.subr.bf16.mxu0 %v4564
        %7175 = vmatpush1.bf16.msra.mxu0 %v4563
        %7176 = vmatprep.subr.bf16.mxu0 %v4556
        %7177 = vmatpush1.bf16.msra.mxu0 %v4555
        %7178 = vmatprep.subr.bf16.mxu0 %v4548
        %7179 = vmatpush1.bf16.msra.mxu0 %v4547
        %7180 = vmatprep.subr.bf16.mxu0 %v4540
        %7181 = vmatpush1.bf16.msra.mxu0 %v4539
        %7182 = vmatprep.subr.bf16.mxu0 %v4532
        %7183 = vmatpush1.bf16.msra.mxu0 %v4531
        %7184 = vmatprep.subr.bf16.mxu0 %v4524
        %7185 = vmatpush1.bf16.msra.mxu0 %v4523
        %7186 = vmatprep.subr.bf16.mxu0 %v4644
        %7187 = vmatpush2.bf16.msra.mxu0 %v4643
        %7188 = vmatprep.subr.bf16.mxu0 %v4636
        %7189 = vmatpush2.bf16.msra.mxu0 %v4635
        %7190 = vmatprep.subr.bf16.mxu0 %v4628
        %7191 = vmatpush2.bf16.msra.mxu0 %v4627
        %7192 = vmatprep.subr.bf16.mxu0 %v4620
        %7193 = vmatpush2.bf16.msra.mxu0 %v4619
        %7194 = vmatprep.subr.bf16.mxu0 %v4612
        %7195 = vmatpush2.bf16.msra.mxu0 %v4611
        %7196 = vmatprep.subr.bf16.mxu0 %v4604
        %7197 = vmatpush2.bf16.msra.mxu0 %v4603
        %7198 = vmatprep.subr.bf16.mxu0 %v4596
        %7199 = vmatpush2.bf16.msra.mxu0 %v4595
        %7200 = vmatprep.subr.bf16.mxu0 %v4588
        %7201 = vmatpush2.bf16.msra.mxu0 %v4587
        %7202 = vmatprep.mubr.bf16.mxu0 %v1290
        %7203 = vmatmul.mubr.bf16.gmra.mxu0 %v1289
        %v7204 = vpop.f32.mrf.mxu0
        %v7205 = vadd.f32 %v7162, %v7204
        %v7206 = vpop.f32.mrf.mxu0
        %v7207 = vadd.f32 %v7164, %v7206
        %v7208 = vpop.f32.mrf.mxu0
        %v7209 = vadd.f32 %v7166, %v7208
        %v7210 = vpop.f32.mrf.mxu0
        %v7211 = vadd.f32 %v7168, %v7210
        %7212 = vdwg.mxu0
        %7213 = vmatprep.subr.bf16.mxu0 %v4708
        %7214 = vmatpush1.bf16.msra.mxu0 %v4707
        %7215 = vmatprep.subr.bf16.mxu0 %v4700
        %7216 = vmatpush1.bf16.msra.mxu0 %v4699
        %7217 = vmatprep.subr.bf16.mxu0 %v4692
        %7218 = vmatpush1.bf16.msra.mxu0 %v4691
        %7219 = vmatprep.subr.bf16.mxu0 %v4684
        %7220 = vmatpush1.bf16.msra.mxu0 %v4683
        %7221 = vmatprep.subr.bf16.mxu0 %v4676
        %7222 = vmatpush1.bf16.msra.mxu0 %v4675
        %7223 = vmatprep.subr.bf16.mxu0 %v4668
        %7224 = vmatpush1.bf16.msra.mxu0 %v4667
        %7225 = vmatprep.subr.bf16.mxu0 %v4660
        %7226 = vmatpush1.bf16.msra.mxu0 %v4659
        %7227 = vmatprep.subr.bf16.mxu0 %v4652
        %7228 = vmatpush1.bf16.msra.mxu0 %v4651
        %7229 = vmatprep.subr.bf16.mxu0 %v4772
        %7230 = vmatpush2.bf16.msra.mxu0 %v4771
        %7231 = vmatprep.subr.bf16.mxu0 %v4764
        %7232 = vmatpush2.bf16.msra.mxu0 %v4763
        %7233 = vmatprep.subr.bf16.mxu0 %v4756
        %7234 = vmatpush2.bf16.msra.mxu0 %v4755
        %7235 = vmatprep.subr.bf16.mxu0 %v4748
        %7236 = vmatpush2.bf16.msra.mxu0 %v4747
        %7237 = vmatprep.subr.bf16.mxu0 %v4740
        %7238 = vmatpush2.bf16.msra.mxu0 %v4739
        %7239 = vmatprep.subr.bf16.mxu0 %v4732
        %7240 = vmatpush2.bf16.msra.mxu0 %v4731
        %7241 = vmatprep.subr.bf16.mxu0 %v4724
        %7242 = vmatpush2.bf16.msra.mxu0 %v4723
        %7243 = vmatprep.subr.bf16.mxu0 %v4716
        %7244 = vmatpush2.bf16.msra.mxu0 %v4715
        %7245 = vmatprep.mubr.bf16.mxu0 %v1292
        %7246 = vmatmul.mubr.bf16.gmra.mxu0 %v1291
        %v7247 = vpop.f32.mrf.mxu0
        %v7248 = vadd.f32 %v7205, %v7247
        %v7249 = vpop.f32.mrf.mxu0
        %v7250 = vadd.f32 %v7207, %v7249
        %v7251 = vpop.f32.mrf.mxu0
        %v7252 = vadd.f32 %v7209, %v7251
        %v7253 = vpop.f32.mrf.mxu0
        %v7254 = vadd.f32 %v7211, %v7253
        %7255 = vdwg.mxu0
        %7256 = vmatprep.subr.bf16.mxu0 %v4836
        %7257 = vmatpush1.bf16.msra.mxu0 %v4835
        %7258 = vmatprep.subr.bf16.mxu0 %v4828
        %7259 = vmatpush1.bf16.msra.mxu0 %v4827
        %7260 = vmatprep.subr.bf16.mxu0 %v4820
        %7261 = vmatpush1.bf16.msra.mxu0 %v4819
        %7262 = vmatprep.subr.bf16.mxu0 %v4812
        %7263 = vmatpush1.bf16.msra.mxu0 %v4811
        %7264 = vmatprep.subr.bf16.mxu0 %v4804
        %7265 = vmatpush1.bf16.msra.mxu0 %v4803
        %7266 = vmatprep.subr.bf16.mxu0 %v4796
        %7267 = vmatpush1.bf16.msra.mxu0 %v4795
        %7268 = vmatprep.subr.bf16.mxu0 %v4788
        %7269 = vmatpush1.bf16.msra.mxu0 %v4787
        %7270 = vmatprep.subr.bf16.mxu0 %v4780
        %7271 = vmatpush1.bf16.msra.mxu0 %v4779
        %7272 = vmatprep.subr.bf16.mxu0 %v4900
        %7273 = vmatpush2.bf16.msra.mxu0 %v4899
        %7274 = vmatprep.subr.bf16.mxu0 %v4892
        %7275 = vmatpush2.bf16.msra.mxu0 %v4891
        %7276 = vmatprep.subr.bf16.mxu0 %v4884
        %7277 = vmatpush2.bf16.msra.mxu0 %v4883
        %7278 = vmatprep.subr.bf16.mxu0 %v4876
        %7279 = vmatpush2.bf16.msra.mxu0 %v4875
        %7280 = vmatprep.subr.bf16.mxu0 %v4868
        %7281 = vmatpush2.bf16.msra.mxu0 %v4867
        %7282 = vmatprep.subr.bf16.mxu0 %v4860
        %7283 = vmatpush2.bf16.msra.mxu0 %v4859
        %7284 = vmatprep.subr.bf16.mxu0 %v4852
        %7285 = vmatpush2.bf16.msra.mxu0 %v4851
        %7286 = vmatprep.subr.bf16.mxu0 %v4844
        %7287 = vmatpush2.bf16.msra.mxu0 %v4843
        %7288 = vmatprep.mubr.bf16.mxu0 %v1294
        %7289 = vmatmul.mubr.bf16.gmra.mxu0 %v1293
        %v7290 = vpop.f32.mrf.mxu0
        %v7291 = vadd.f32 %v7248, %v7290
        %v7292 = vpop.f32.mrf.mxu0
        %v7293 = vadd.f32 %v7250, %v7292
        %v7294 = vpop.f32.mrf.mxu0
        %v7295 = vadd.f32 %v7252, %v7294
        %v7296 = vpop.f32.mrf.mxu0
        %v7297 = vadd.f32 %v7254, %v7296
        %7298 = vdwg.mxu0
        %7299 = vmatprep.subr.bf16.mxu0 %v4964
        %7300 = vmatpush1.bf16.msra.mxu0 %v4963
        %7301 = vmatprep.subr.bf16.mxu0 %v4956
        %7302 = vmatpush1.bf16.msra.mxu0 %v4955
        %7303 = vmatprep.subr.bf16.mxu0 %v4948
        %7304 = vmatpush1.bf16.msra.mxu0 %v4947
        %7305 = vmatprep.subr.bf16.mxu0 %v4940
        %7306 = vmatpush1.bf16.msra.mxu0 %v4939
        %7307 = vmatprep.subr.bf16.mxu0 %v4932
        %7308 = vmatpush1.bf16.msra.mxu0 %v4931
        %7309 = vmatprep.subr.bf16.mxu0 %v4924
        %7310 = vmatpush1.bf16.msra.mxu0 %v4923
        %7311 = vmatprep.subr.bf16.mxu0 %v4916
        %7312 = vmatpush1.bf16.msra.mxu0 %v4915
        %7313 = vmatprep.subr.bf16.mxu0 %v4908
        %7314 = vmatpush1.bf16.msra.mxu0 %v4907
        %7315 = vmatprep.subr.bf16.mxu0 %v5028
        %7316 = vmatpush2.bf16.msra.mxu0 %v5027
        %7317 = vmatprep.subr.bf16.mxu0 %v5020
        %7318 = vmatpush2.bf16.msra.mxu0 %v5019
        %7319 = vmatprep.subr.bf16.mxu0 %v5012
        %7320 = vmatpush2.bf16.msra.mxu0 %v5011
        %7321 = vmatprep.subr.bf16.mxu0 %v5004
        %7322 = vmatpush2.bf16.msra.mxu0 %v5003
        %7323 = vmatprep.subr.bf16.mxu0 %v4996
        %7324 = vmatpush2.bf16.msra.mxu0 %v4995
        %7325 = vmatprep.subr.bf16.mxu0 %v4988
        %7326 = vmatpush2.bf16.msra.mxu0 %v4987
        %7327 = vmatprep.subr.bf16.mxu0 %v4980
        %7328 = vmatpush2.bf16.msra.mxu0 %v4979
        %7329 = vmatprep.subr.bf16.mxu0 %v4972
        %7330 = vmatpush2.bf16.msra.mxu0 %v4971
        %7331 = vmatprep.mubr.bf16.mxu0 %v1296
        %7332 = vmatmul.mubr.bf16.gmra.mxu0 %v1295
        %v7333 = vpop.f32.mrf.mxu0
        %v7334 = vadd.f32 %v7291, %v7333
        %v7335 = vpop.f32.mrf.mxu0
        %v7336 = vadd.f32 %v7293, %v7335
        %v7337 = vpop.f32.mrf.mxu0
        %v7338 = vadd.f32 %v7295, %v7337
        %v7339 = vpop.f32.mrf.mxu0
        %v7340 = vadd.f32 %v7297, %v7339
        %7341 = vdwg.mxu0
        %7342 = vmatprep.subr.bf16.mxu0 %v5092
        %7343 = vmatpush1.bf16.msra.mxu0 %v5091
        %7344 = vmatprep.subr.bf16.mxu0 %v5084
        %7345 = vmatpush1.bf16.msra.mxu0 %v5083
        %7346 = vmatprep.subr.bf16.mxu0 %v5076
        %7347 = vmatpush1.bf16.msra.mxu0 %v5075
        %7348 = vmatprep.subr.bf16.mxu0 %v5068
        %7349 = vmatpush1.bf16.msra.mxu0 %v5067
        %7350 = vmatprep.subr.bf16.mxu0 %v5060
        %7351 = vmatpush1.bf16.msra.mxu0 %v5059
        %7352 = vmatprep.subr.bf16.mxu0 %v5052
        %7353 = vmatpush1.bf16.msra.mxu0 %v5051
        %7354 = vmatprep.subr.bf16.mxu0 %v5044
        %7355 = vmatpush1.bf16.msra.mxu0 %v5043
        %7356 = vmatprep.subr.bf16.mxu0 %v5036
        %7357 = vmatpush1.bf16.msra.mxu0 %v5035
        %7358 = vmatprep.subr.bf16.mxu0 %v5156
        %7359 = vmatpush2.bf16.msra.mxu0 %v5155
        %7360 = vmatprep.subr.bf16.mxu0 %v5148
        %7361 = vmatpush2.bf16.msra.mxu0 %v5147
        %7362 = vmatprep.subr.bf16.mxu0 %v5140
        %7363 = vmatpush2.bf16.msra.mxu0 %v5139
        %7364 = vmatprep.subr.bf16.mxu0 %v5132
        %7365 = vmatpush2.bf16.msra.mxu0 %v5131
        %7366 = vmatprep.subr.bf16.mxu0 %v5124
        %7367 = vmatpush2.bf16.msra.mxu0 %v5123
        %7368 = vmatprep.subr.bf16.mxu0 %v5116
        %7369 = vmatpush2.bf16.msra.mxu0 %v5115
        %7370 = vmatprep.subr.bf16.mxu0 %v5108
        %7371 = vmatpush2.bf16.msra.mxu0 %v5107
        %7372 = vmatprep.subr.bf16.mxu0 %v5100
        %7373 = vmatpush2.bf16.msra.mxu0 %v5099
        %7374 = vmatprep.mubr.bf16.mxu0 %v1298
        %7375 = vmatmul.mubr.bf16.gmra.mxu0 %v1297
        %v7376 = vpop.f32.mrf.mxu0
        %v7377 = vadd.f32 %v7334, %v7376
        %v7378 = vpop.f32.mrf.mxu0
        %v7379 = vadd.f32 %v7336, %v7378
        %v7380 = vpop.f32.mrf.mxu0
        %v7381 = vadd.f32 %v7338, %v7380
        %v7382 = vpop.f32.mrf.mxu0
        %v7383 = vadd.f32 %v7340, %v7382
        %7384 = vdwg.mxu0
        %7385 = vmatprep.subr.bf16.mxu0 %v5220
        %7386 = vmatpush1.bf16.msra.mxu0 %v5219
        %7387 = vmatprep.subr.bf16.mxu0 %v5212
        %7388 = vmatpush1.bf16.msra.mxu0 %v5211
        %7389 = vmatprep.subr.bf16.mxu0 %v5204
        %7390 = vmatpush1.bf16.msra.mxu0 %v5203
        %7391 = vmatprep.subr.bf16.mxu0 %v5196
        %7392 = vmatpush1.bf16.msra.mxu0 %v5195
        %7393 = vmatprep.subr.bf16.mxu0 %v5188
        %7394 = vmatpush1.bf16.msra.mxu0 %v5187
        %7395 = vmatprep.subr.bf16.mxu0 %v5180
        %7396 = vmatpush1.bf16.msra.mxu0 %v5179
        %7397 = vmatprep.subr.bf16.mxu0 %v5172
        %7398 = vmatpush1.bf16.msra.mxu0 %v5171
        %7399 = vmatprep.subr.bf16.mxu0 %v5164
        %7400 = vmatpush1.bf16.msra.mxu0 %v5163
        %7401 = vmatprep.subr.bf16.mxu0 %v5284
        %7402 = vmatpush2.bf16.msra.mxu0 %v5283
        %7403 = vmatprep.subr.bf16.mxu0 %v5276
        %7404 = vmatpush2.bf16.msra.mxu0 %v5275
        %7405 = vmatprep.subr.bf16.mxu0 %v5268
        %7406 = vmatpush2.bf16.msra.mxu0 %v5267
        %7407 = vmatprep.subr.bf16.mxu0 %v5260
        %7408 = vmatpush2.bf16.msra.mxu0 %v5259
        %7409 = vmatprep.subr.bf16.mxu0 %v5252
        %7410 = vmatpush2.bf16.msra.mxu0 %v5251
        %7411 = vmatprep.subr.bf16.mxu0 %v5244
        %7412 = vmatpush2.bf16.msra.mxu0 %v5243
        %7413 = vmatprep.subr.bf16.mxu0 %v5236
        %7414 = vmatpush2.bf16.msra.mxu0 %v5235
        %7415 = vmatprep.subr.bf16.mxu0 %v5228
        %7416 = vmatpush2.bf16.msra.mxu0 %v5227
        %7417 = vmatprep.mubr.bf16.mxu0 %v1300
        %7418 = vmatmul.mubr.bf16.gmra.mxu0 %v1299
        %v7419 = vpop.f32.mrf.mxu0
        %v7420 = vadd.f32 %v7377, %v7419
        %v7421 = vpop.f32.mrf.mxu0
        %v7422 = vadd.f32 %v7379, %v7421
        %v7423 = vpop.f32.mrf.mxu0
        %v7424 = vadd.f32 %v7381, %v7423
        %v7425 = vpop.f32.mrf.mxu0
        %v7426 = vadd.f32 %v7383, %v7425
        %7427 = vdwg.mxu0
        %7428 = vmatprep.subr.bf16.mxu0 %v5348
        %7429 = vmatpush1.bf16.msra.mxu0 %v5347
        %7430 = vmatprep.subr.bf16.mxu0 %v5340
        %7431 = vmatpush1.bf16.msra.mxu0 %v5339
        %7432 = vmatprep.subr.bf16.mxu0 %v5332
        %7433 = vmatpush1.bf16.msra.mxu0 %v5331
        %7434 = vmatprep.subr.bf16.mxu0 %v5324
        %7435 = vmatpush1.bf16.msra.mxu0 %v5323
        %7436 = vmatprep.subr.bf16.mxu0 %v5316
        %7437 = vmatpush1.bf16.msra.mxu0 %v5315
        %7438 = vmatprep.subr.bf16.mxu0 %v5308
        %7439 = vmatpush1.bf16.msra.mxu0 %v5307
        %7440 = vmatprep.subr.bf16.mxu0 %v5300
        %7441 = vmatpush1.bf16.msra.mxu0 %v5299
        %7442 = vmatprep.subr.bf16.mxu0 %v5292
        %7443 = vmatpush1.bf16.msra.mxu0 %v5291
        %7444 = vmatprep.subr.bf16.mxu0 %v5412
        %7445 = vmatpush2.bf16.msra.mxu0 %v5411
        %7446 = vmatprep.subr.bf16.mxu0 %v5404
        %7447 = vmatpush2.bf16.msra.mxu0 %v5403
        %7448 = vmatprep.subr.bf16.mxu0 %v5396
        %7449 = vmatpush2.bf16.msra.mxu0 %v5395
        %7450 = vmatprep.subr.bf16.mxu0 %v5388
        %7451 = vmatpush2.bf16.msra.mxu0 %v5387
        %7452 = vmatprep.subr.bf16.mxu0 %v5380
        %7453 = vmatpush2.bf16.msra.mxu0 %v5379
        %7454 = vmatprep.subr.bf16.mxu0 %v5372
        %7455 = vmatpush2.bf16.msra.mxu0 %v5371
        %7456 = vmatprep.subr.bf16.mxu0 %v5364
        %7457 = vmatpush2.bf16.msra.mxu0 %v5363
        %7458 = vmatprep.subr.bf16.mxu0 %v5356
        %7459 = vmatpush2.bf16.msra.mxu0 %v5355
        %7460 = vmatprep.mubr.bf16.mxu0 %v1302
        %7461 = vmatmul.mubr.bf16.gmra.mxu0 %v1301
        %v7462 = vpop.f32.mrf.mxu0
        %v7463 = vadd.f32 %v7420, %v7462
        %v7464 = vpop.f32.mrf.mxu0
        %v7465 = vadd.f32 %v7422, %v7464
        %v7466 = vpop.f32.mrf.mxu0
        %v7467 = vadd.f32 %v7424, %v7466
        %v7468 = vpop.f32.mrf.mxu0
        %v7469 = vadd.f32 %v7426, %v7468
        %7470 = vdwg.mxu0
        %7471 = vmatprep.subr.bf16.mxu0 %v4454
        %7472 = vmatpush1.bf16.msra.mxu0 %v4453
        %7473 = vmatprep.subr.bf16.mxu0 %v4446
        %7474 = vmatpush1.bf16.msra.mxu0 %v4445
        %7475 = vmatprep.subr.bf16.mxu0 %v4438
        %7476 = vmatpush1.bf16.msra.mxu0 %v4437
        %7477 = vmatprep.subr.bf16.mxu0 %v4430
        %7478 = vmatpush1.bf16.msra.mxu0 %v4429
        %7479 = vmatprep.subr.bf16.mxu0 %v4422
        %7480 = vmatpush1.bf16.msra.mxu0 %v4421
        %7481 = vmatprep.subr.bf16.mxu0 %v4414
        %7482 = vmatpush1.bf16.msra.mxu0 %v4413
        %7483 = vmatprep.subr.bf16.mxu0 %v4406
        %7484 = vmatpush1.bf16.msra.mxu0 %v4405
        %7485 = vmatprep.subr.bf16.mxu0 %v4398
        %7486 = vmatpush1.bf16.msra.mxu0 %v4397
        %7487 = vmatprep.subr.bf16.mxu0 %v4518
        %7488 = vmatpush2.bf16.msra.mxu0 %v4517
        %7489 = vmatprep.subr.bf16.mxu0 %v4510
        %7490 = vmatpush2.bf16.msra.mxu0 %v4509
        %7491 = vmatprep.subr.bf16.mxu0 %v4502
        %7492 = vmatpush2.bf16.msra.mxu0 %v4501
        %7493 = vmatprep.subr.bf16.mxu0 %v4494
        %7494 = vmatpush2.bf16.msra.mxu0 %v4493
        %7495 = vmatprep.subr.bf16.mxu0 %v4486
        %7496 = vmatpush2.bf16.msra.mxu0 %v4485
        %7497 = vmatprep.subr.bf16.mxu0 %v4478
        %7498 = vmatpush2.bf16.msra.mxu0 %v4477
        %7499 = vmatprep.subr.bf16.mxu0 %v4470
        %7500 = vmatpush2.bf16.msra.mxu0 %v4469
        %7501 = vmatprep.subr.bf16.mxu0 %v4462
        %7502 = vmatpush2.bf16.msra.mxu0 %v4461
        %7503 = vmatprep.mubr.bf16.mxu0 %v1288
        %7504 = vmatmul.mubr.bf16.gmra.mxu0 %v1287
        %v7505 = vpop.f32.mrf.mxu0
        %v7506 = vadd.f32 0.0, %v7505
        %v7507 = vpop.f32.mrf.mxu0
        %v7508 = vadd.f32 0.0, %v7507
        %v7509 = vpop.f32.mrf.mxu0
        %v7510 = vadd.f32 0.0, %v7509
        %v7511 = vpop.f32.mrf.mxu0
        %v7512 = vadd.f32 0.0, %v7511
        %7513 = vdwg.mxu0
        %7514 = vmatprep.subr.bf16.mxu0 %v4582
        %7515 = vmatpush1.bf16.msra.mxu0 %v4581
        %7516 = vmatprep.subr.bf16.mxu0 %v4574
        %7517 = vmatpush1.bf16.msra.mxu0 %v4573
        %7518 = vmatprep.subr.bf16.mxu0 %v4566
        %7519 = vmatpush1.bf16.msra.mxu0 %v4565
        %7520 = vmatprep.subr.bf16.mxu0 %v4558
        %7521 = vmatpush1.bf16.msra.mxu0 %v4557
        %7522 = vmatprep.subr.bf16.mxu0 %v4550
        %7523 = vmatpush1.bf16.msra.mxu0 %v4549
        %7524 = vmatprep.subr.bf16.mxu0 %v4542
        %7525 = vmatpush1.bf16.msra.mxu0 %v4541
        %7526 = vmatprep.subr.bf16.mxu0 %v4534
        %7527 = vmatpush1.bf16.msra.mxu0 %v4533
        %7528 = vmatprep.subr.bf16.mxu0 %v4526
        %7529 = vmatpush1.bf16.msra.mxu0 %v4525
        %7530 = vmatprep.subr.bf16.mxu0 %v4646
        %7531 = vmatpush2.bf16.msra.mxu0 %v4645
        %7532 = vmatprep.subr.bf16.mxu0 %v4638
        %7533 = vmatpush2.bf16.msra.mxu0 %v4637
        %7534 = vmatprep.subr.bf16.mxu0 %v4630
        %7535 = vmatpush2.bf16.msra.mxu0 %v4629
        %7536 = vmatprep.subr.bf16.mxu0 %v4622
        %7537 = vmatpush2.bf16.msra.mxu0 %v4621
        %7538 = vmatprep.subr.bf16.mxu0 %v4614
        %7539 = vmatpush2.bf16.msra.mxu0 %v4613
        %7540 = vmatprep.subr.bf16.mxu0 %v4606
        %7541 = vmatpush2.bf16.msra.mxu0 %v4605
        %7542 = vmatprep.subr.bf16.mxu0 %v4598
        %7543 = vmatpush2.bf16.msra.mxu0 %v4597
        %7544 = vmatprep.subr.bf16.mxu0 %v4590
        %7545 = vmatpush2.bf16.msra.mxu0 %v4589
        %7546 = vmatprep.mubr.bf16.mxu0 %v1290
        %7547 = vmatmul.mubr.bf16.gmra.mxu0 %v1289
        %v7548 = vpop.f32.mrf.mxu0
        %v7549 = vadd.f32 %v7506, %v7548
        %v7550 = vpop.f32.mrf.mxu0
        %v7551 = vadd.f32 %v7508, %v7550
        %v7552 = vpop.f32.mrf.mxu0
        %v7553 = vadd.f32 %v7510, %v7552
        %v7554 = vpop.f32.mrf.mxu0
        %v7555 = vadd.f32 %v7512, %v7554
        %7556 = vdwg.mxu0
        %7557 = vmatprep.subr.bf16.mxu0 %v4710
        %7558 = vmatpush1.bf16.msra.mxu0 %v4709
        %7559 = vmatprep.subr.bf16.mxu0 %v4702
        %7560 = vmatpush1.bf16.msra.mxu0 %v4701
        %7561 = vmatprep.subr.bf16.mxu0 %v4694
        %7562 = vmatpush1.bf16.msra.mxu0 %v4693
        %7563 = vmatprep.subr.bf16.mxu0 %v4686
        %7564 = vmatpush1.bf16.msra.mxu0 %v4685
        %7565 = vmatprep.subr.bf16.mxu0 %v4678
        %7566 = vmatpush1.bf16.msra.mxu0 %v4677
        %7567 = vmatprep.subr.bf16.mxu0 %v4670
        %7568 = vmatpush1.bf16.msra.mxu0 %v4669
        %7569 = vmatprep.subr.bf16.mxu0 %v4662
        %7570 = vmatpush1.bf16.msra.mxu0 %v4661
        %7571 = vmatprep.subr.bf16.mxu0 %v4654
        %7572 = vmatpush1.bf16.msra.mxu0 %v4653
        %7573 = vmatprep.subr.bf16.mxu0 %v4774
        %7574 = vmatpush2.bf16.msra.mxu0 %v4773
        %7575 = vmatprep.subr.bf16.mxu0 %v4766
        %7576 = vmatpush2.bf16.msra.mxu0 %v4765
        %7577 = vmatprep.subr.bf16.mxu0 %v4758
        %7578 = vmatpush2.bf16.msra.mxu0 %v4757
        %7579 = vmatprep.subr.bf16.mxu0 %v4750
        %7580 = vmatpush2.bf16.msra.mxu0 %v4749
        %7581 = vmatprep.subr.bf16.mxu0 %v4742
        %7582 = vmatpush2.bf16.msra.mxu0 %v4741
        %7583 = vmatprep.subr.bf16.mxu0 %v4734
        %7584 = vmatpush2.bf16.msra.mxu0 %v4733
        %7585 = vmatprep.subr.bf16.mxu0 %v4726
        %7586 = vmatpush2.bf16.msra.mxu0 %v4725
        %7587 = vmatprep.subr.bf16.mxu0 %v4718
        %7588 = vmatpush2.bf16.msra.mxu0 %v4717
        %7589 = vmatprep.mubr.bf16.mxu0 %v1292
        %7590 = vmatmul.mubr.bf16.gmra.mxu0 %v1291
        %v7591 = vpop.f32.mrf.mxu0
        %v7592 = vadd.f32 %v7549, %v7591
        %v7593 = vpop.f32.mrf.mxu0
        %v7594 = vadd.f32 %v7551, %v7593
        %v7595 = vpop.f32.mrf.mxu0
        %v7596 = vadd.f32 %v7553, %v7595
        %v7597 = vpop.f32.mrf.mxu0
        %v7598 = vadd.f32 %v7555, %v7597
        %7599 = vdwg.mxu0
        %7600 = vmatprep.subr.bf16.mxu0 %v4838
        %7601 = vmatpush1.bf16.msra.mxu0 %v4837
        %7602 = vmatprep.subr.bf16.mxu0 %v4830
        %7603 = vmatpush1.bf16.msra.mxu0 %v4829
        %7604 = vmatprep.subr.bf16.mxu0 %v4822
        %7605 = vmatpush1.bf16.msra.mxu0 %v4821
        %7606 = vmatprep.subr.bf16.mxu0 %v4814
        %7607 = vmatpush1.bf16.msra.mxu0 %v4813
        %7608 = vmatprep.subr.bf16.mxu0 %v4806
        %7609 = vmatpush1.bf16.msra.mxu0 %v4805
        %7610 = vmatprep.subr.bf16.mxu0 %v4798
        %7611 = vmatpush1.bf16.msra.mxu0 %v4797
        %7612 = vmatprep.subr.bf16.mxu0 %v4790
        %7613 = vmatpush1.bf16.msra.mxu0 %v4789
        %7614 = vmatprep.subr.bf16.mxu0 %v4782
        %7615 = vmatpush1.bf16.msra.mxu0 %v4781
        %7616 = vmatprep.subr.bf16.mxu0 %v4902
        %7617 = vmatpush2.bf16.msra.mxu0 %v4901
        %7618 = vmatprep.subr.bf16.mxu0 %v4894
        %7619 = vmatpush2.bf16.msra.mxu0 %v4893
        %7620 = vmatprep.subr.bf16.mxu0 %v4886
        %7621 = vmatpush2.bf16.msra.mxu0 %v4885
        %7622 = vmatprep.subr.bf16.mxu0 %v4878
        %7623 = vmatpush2.bf16.msra.mxu0 %v4877
        %7624 = vmatprep.subr.bf16.mxu0 %v4870
        %7625 = vmatpush2.bf16.msra.mxu0 %v4869
        %7626 = vmatprep.subr.bf16.mxu0 %v4862
        %7627 = vmatpush2.bf16.msra.mxu0 %v4861
        %7628 = vmatprep.subr.bf16.mxu0 %v4854
        %7629 = vmatpush2.bf16.msra.mxu0 %v4853
        %7630 = vmatprep.subr.bf16.mxu0 %v4846
        %7631 = vmatpush2.bf16.msra.mxu0 %v4845
        %7632 = vmatprep.mubr.bf16.mxu0 %v1294
        %7633 = vmatmul.mubr.bf16.gmra.mxu0 %v1293
        %v7634 = vpop.f32.mrf.mxu0
        %v7635 = vadd.f32 %v7592, %v7634
        %v7636 = vpop.f32.mrf.mxu0
        %v7637 = vadd.f32 %v7594, %v7636
        %v7638 = vpop.f32.mrf.mxu0
        %v7639 = vadd.f32 %v7596, %v7638
        %v7640 = vpop.f32.mrf.mxu0
        %v7641 = vadd.f32 %v7598, %v7640
        %7642 = vdwg.mxu0
        %7643 = vmatprep.subr.bf16.mxu0 %v4966
        %7644 = vmatpush1.bf16.msra.mxu0 %v4965
        %7645 = vmatprep.subr.bf16.mxu0 %v4958
        %7646 = vmatpush1.bf16.msra.mxu0 %v4957
        %7647 = vmatprep.subr.bf16.mxu0 %v4950
        %7648 = vmatpush1.bf16.msra.mxu0 %v4949
        %7649 = vmatprep.subr.bf16.mxu0 %v4942
        %7650 = vmatpush1.bf16.msra.mxu0 %v4941
        %7651 = vmatprep.subr.bf16.mxu0 %v4934
        %7652 = vmatpush1.bf16.msra.mxu0 %v4933
        %7653 = vmatprep.subr.bf16.mxu0 %v4926
        %7654 = vmatpush1.bf16.msra.mxu0 %v4925
        %7655 = vmatprep.subr.bf16.mxu0 %v4918
        %7656 = vmatpush1.bf16.msra.mxu0 %v4917
        %7657 = vmatprep.subr.bf16.mxu0 %v4910
        %7658 = vmatpush1.bf16.msra.mxu0 %v4909
        %7659 = vmatprep.subr.bf16.mxu0 %v5030
        %7660 = vmatpush2.bf16.msra.mxu0 %v5029
        %7661 = vmatprep.subr.bf16.mxu0 %v5022
        %7662 = vmatpush2.bf16.msra.mxu0 %v5021
        %7663 = vmatprep.subr.bf16.mxu0 %v5014
        %7664 = vmatpush2.bf16.msra.mxu0 %v5013
        %7665 = vmatprep.subr.bf16.mxu0 %v5006
        %7666 = vmatpush2.bf16.msra.mxu0 %v5005
        %7667 = vmatprep.subr.bf16.mxu0 %v4998
        %7668 = vmatpush2.bf16.msra.mxu0 %v4997
        %7669 = vmatprep.subr.bf16.mxu0 %v4990
        %7670 = vmatpush2.bf16.msra.mxu0 %v4989
        %7671 = vmatprep.subr.bf16.mxu0 %v4982
        %7672 = vmatpush2.bf16.msra.mxu0 %v4981
        %7673 = vmatprep.subr.bf16.mxu0 %v4974
        %7674 = vmatpush2.bf16.msra.mxu0 %v4973
        %7675 = vmatprep.mubr.bf16.mxu0 %v1296
        %7676 = vmatmul.mubr.bf16.gmra.mxu0 %v1295
        %v7677 = vpop.f32.mrf.mxu0
        %v7678 = vadd.f32 %v7635, %v7677
        %v7679 = vpop.f32.mrf.mxu0
        %v7680 = vadd.f32 %v7637, %v7679
        %v7681 = vpop.f32.mrf.mxu0
        %v7682 = vadd.f32 %v7639, %v7681
        %v7683 = vpop.f32.mrf.mxu0
        %v7684 = vadd.f32 %v7641, %v7683
        %7685 = vdwg.mxu0
        %7686 = vmatprep.subr.bf16.mxu0 %v5094
        %7687 = vmatpush1.bf16.msra.mxu0 %v5093
        %7688 = vmatprep.subr.bf16.mxu0 %v5086
        %7689 = vmatpush1.bf16.msra.mxu0 %v5085
        %7690 = vmatprep.subr.bf16.mxu0 %v5078
        %7691 = vmatpush1.bf16.msra.mxu0 %v5077
        %7692 = vmatprep.subr.bf16.mxu0 %v5070
        %7693 = vmatpush1.bf16.msra.mxu0 %v5069
        %7694 = vmatprep.subr.bf16.mxu0 %v5062
        %7695 = vmatpush1.bf16.msra.mxu0 %v5061
        %7696 = vmatprep.subr.bf16.mxu0 %v5054
        %7697 = vmatpush1.bf16.msra.mxu0 %v5053
        %7698 = vmatprep.subr.bf16.mxu0 %v5046
        %7699 = vmatpush1.bf16.msra.mxu0 %v5045
        %7700 = vmatprep.subr.bf16.mxu0 %v5038
        %7701 = vmatpush1.bf16.msra.mxu0 %v5037
        %7702 = vmatprep.subr.bf16.mxu0 %v5158
        %7703 = vmatpush2.bf16.msra.mxu0 %v5157
        %7704 = vmatprep.subr.bf16.mxu0 %v5150
        %7705 = vmatpush2.bf16.msra.mxu0 %v5149
        %7706 = vmatprep.subr.bf16.mxu0 %v5142
        %7707 = vmatpush2.bf16.msra.mxu0 %v5141
        %7708 = vmatprep.subr.bf16.mxu0 %v5134
        %7709 = vmatpush2.bf16.msra.mxu0 %v5133
        %7710 = vmatprep.subr.bf16.mxu0 %v5126
        %7711 = vmatpush2.bf16.msra.mxu0 %v5125
        %7712 = vmatprep.subr.bf16.mxu0 %v5118
        %7713 = vmatpush2.bf16.msra.mxu0 %v5117
        %7714 = vmatprep.subr.bf16.mxu0 %v5110
        %7715 = vmatpush2.bf16.msra.mxu0 %v5109
        %7716 = vmatprep.subr.bf16.mxu0 %v5102
        %7717 = vmatpush2.bf16.msra.mxu0 %v5101
        %7718 = vmatprep.mubr.bf16.mxu0 %v1298
        %7719 = vmatmul.mubr.bf16.gmra.mxu0 %v1297
        %v7720 = vpop.f32.mrf.mxu0
        %v7721 = vadd.f32 %v7678, %v7720
        %v7722 = vpop.f32.mrf.mxu0
        %v7723 = vadd.f32 %v7680, %v7722
        %v7724 = vpop.f32.mrf.mxu0
        %v7725 = vadd.f32 %v7682, %v7724
        %v7726 = vpop.f32.mrf.mxu0
        %v7727 = vadd.f32 %v7684, %v7726
        %7728 = vdwg.mxu0
        %7729 = vmatprep.subr.bf16.mxu0 %v5222
        %7730 = vmatpush1.bf16.msra.mxu0 %v5221
        %7731 = vmatprep.subr.bf16.mxu0 %v5214
        %7732 = vmatpush1.bf16.msra.mxu0 %v5213
        %7733 = vmatprep.subr.bf16.mxu0 %v5206
        %7734 = vmatpush1.bf16.msra.mxu0 %v5205
        %7735 = vmatprep.subr.bf16.mxu0 %v5198
        %7736 = vmatpush1.bf16.msra.mxu0 %v5197
        %7737 = vmatprep.subr.bf16.mxu0 %v5190
        %7738 = vmatpush1.bf16.msra.mxu0 %v5189
        %7739 = vmatprep.subr.bf16.mxu0 %v5182
        %7740 = vmatpush1.bf16.msra.mxu0 %v5181
        %7741 = vmatprep.subr.bf16.mxu0 %v5174
        %7742 = vmatpush1.bf16.msra.mxu0 %v5173
        %7743 = vmatprep.subr.bf16.mxu0 %v5166
        %7744 = vmatpush1.bf16.msra.mxu0 %v5165
        %7745 = vmatprep.subr.bf16.mxu0 %v5286
        %7746 = vmatpush2.bf16.msra.mxu0 %v5285
        %7747 = vmatprep.subr.bf16.mxu0 %v5278
        %7748 = vmatpush2.bf16.msra.mxu0 %v5277
        %7749 = vmatprep.subr.bf16.mxu0 %v5270
        %7750 = vmatpush2.bf16.msra.mxu0 %v5269
        %7751 = vmatprep.subr.bf16.mxu0 %v5262
        %7752 = vmatpush2.bf16.msra.mxu0 %v5261
        %7753 = vmatprep.subr.bf16.mxu0 %v5254
        %7754 = vmatpush2.bf16.msra.mxu0 %v5253
        %7755 = vmatprep.subr.bf16.mxu0 %v5246
        %7756 = vmatpush2.bf16.msra.mxu0 %v5245
        %7757 = vmatprep.subr.bf16.mxu0 %v5238
        %7758 = vmatpush2.bf16.msra.mxu0 %v5237
        %7759 = vmatprep.subr.bf16.mxu0 %v5230
        %7760 = vmatpush2.bf16.msra.mxu0 %v5229
        %7761 = vmatprep.mubr.bf16.mxu0 %v1300
        %7762 = vmatmul.mubr.bf16.gmra.mxu0 %v1299
        %v7763 = vpop.f32.mrf.mxu0
        %v7764 = vadd.f32 %v7721, %v7763
        %v7765 = vpop.f32.mrf.mxu0
        %v7766 = vadd.f32 %v7723, %v7765
        %v7767 = vpop.f32.mrf.mxu0
        %v7768 = vadd.f32 %v7725, %v7767
        %v7769 = vpop.f32.mrf.mxu0
        %v7770 = vadd.f32 %v7727, %v7769
        %7771 = vdwg.mxu0
        %7772 = vmatprep.subr.bf16.mxu0 %v5350
        %7773 = vmatpush1.bf16.msra.mxu0 %v5349
        %7774 = vmatprep.subr.bf16.mxu0 %v5342
        %7775 = vmatpush1.bf16.msra.mxu0 %v5341
        %7776 = vmatprep.subr.bf16.mxu0 %v5334
        %7777 = vmatpush1.bf16.msra.mxu0 %v5333
        %7778 = vmatprep.subr.bf16.mxu0 %v5326
        %7779 = vmatpush1.bf16.msra.mxu0 %v5325
        %7780 = vmatprep.subr.bf16.mxu0 %v5318
        %7781 = vmatpush1.bf16.msra.mxu0 %v5317
        %7782 = vmatprep.subr.bf16.mxu0 %v5310
        %7783 = vmatpush1.bf16.msra.mxu0 %v5309
        %7784 = vmatprep.subr.bf16.mxu0 %v5302
        %7785 = vmatpush1.bf16.msra.mxu0 %v5301
        %7786 = vmatprep.subr.bf16.mxu0 %v5294
        %7787 = vmatpush1.bf16.msra.mxu0 %v5293
        %7788 = vmatprep.subr.bf16.mxu0 %v5414
        %7789 = vmatpush2.bf16.msra.mxu0 %v5413
        %7790 = vmatprep.subr.bf16.mxu0 %v5406
        %7791 = vmatpush2.bf16.msra.mxu0 %v5405
        %7792 = vmatprep.subr.bf16.mxu0 %v5398
        %7793 = vmatpush2.bf16.msra.mxu0 %v5397
        %7794 = vmatprep.subr.bf16.mxu0 %v5390
        %7795 = vmatpush2.bf16.msra.mxu0 %v5389
        %7796 = vmatprep.subr.bf16.mxu0 %v5382
        %7797 = vmatpush2.bf16.msra.mxu0 %v5381
        %7798 = vmatprep.subr.bf16.mxu0 %v5374
        %7799 = vmatpush2.bf16.msra.mxu0 %v5373
        %7800 = vmatprep.subr.bf16.mxu0 %v5366
        %7801 = vmatpush2.bf16.msra.mxu0 %v5365
        %7802 = vmatprep.subr.bf16.mxu0 %v5358
        %7803 = vmatpush2.bf16.msra.mxu0 %v5357
        %7804 = vmatprep.mubr.bf16.mxu0 %v1302
        %7805 = vmatmul.mubr.bf16.gmra.mxu0 %v1301
        %v7806 = vpop.f32.mrf.mxu0
        %v7807 = vadd.f32 %v7764, %v7806
        %v7808 = vpop.f32.mrf.mxu0
        %v7809 = vadd.f32 %v7766, %v7808
        %v7810 = vpop.f32.mrf.mxu0
        %v7811 = vadd.f32 %v7768, %v7810
        %v7812 = vpop.f32.mrf.mxu0
        %v7813 = vadd.f32 %v7770, %v7812
        %7814 = vdwg.mxu0
        %7815 = vst [vmem:[%s189] sm:$0xff] %v6775
        %7816 = vst [vmem:[%s189 + $0x8] sm:$0xff] %v6777
        %7817 = vst [vmem:[%s189 + $0x10] sm:$0xff] %v7119
        %7818 = vst [vmem:[%s189 + $0x18] sm:$0xff] %v7121
        %7819 = vst [vmem:[%s189 + $0x20] sm:$0xff] %v7463
        %7820 = vst [vmem:[%s189 + $0x28] sm:$0xff] %v7465
        %7821 = vst [vmem:[%s189 + $0x30] sm:$0xff] %v7807
        %7822 = vst [vmem:[%s189 + $0x38] sm:$0xff] %v7809
        %7823 = vst [vmem:[%s189 + $0x40] sm:$0xff] %v6779
        %7824 = vst [vmem:[%s189 + $0x48] sm:$0xff] %v6781
        %7825 = vst [vmem:[%s189 + $0x50] sm:$0xff] %v7123
        %7826 = vst [vmem:[%s189 + $0x58] sm:$0xff] %v7125
        %7827 = vst [vmem:[%s189 + $0x60] sm:$0xff] %v7467
        %7828 = vst [vmem:[%s189 + $0x68] sm:$0xff] %v7469
        %7829 = vst [vmem:[%s189 + $0x70] sm:$0xff] %v7811
        %7830 = vst [vmem:[%s189 + $0x78] sm:$0xff] %v7813
        %s7831 = sand.u32 %s90, 1
        %s7832 = sand.u32 %s90, 1
        %s7833 = smul.addr %s7832, 128
        %s7834 = scalar_lea.vmem [#allocation4], %s7833
        // Predicated region
        $region33: #{_fused_forward.1} parent=27 // pred_check
          %p7835 = pneg %p100
        $region34: #{_fused_forward.1} parent=27 // pred_check_branch
          %7837 = sbr.rel (%p7835) target = $region36
        $region35: #{_fused_forward.1} parent=27 // pred_region
          %s7838 = smul.u32 2, %s20
          %s7839 = smul.u32 8, %s21
          %s7840 = smul.addr %s7838, 64
          %s7841 = sadd.s32 %s7839, %s7840
          %s7842 = smul.addr %s7841, 8
          %s7843 = scalar_lea.vmem %s2, %s7842
          // Predicated region
          $region37: #{_fused_forward.1} parent=35 // pred_check
            _
          $region38: #{_fused_forward.1} parent=35 // pred_check_branch
            %7845 = sbr.rel (0) target = $region40
          $region39: #{_fused_forward.1} parent=35 // pred_region
            // Predicated region
            $region41: #{_fused_forward.1} parent=39 // pred_check
              _
            $region42: #{_fused_forward.1} parent=39 // pred_check_branch
              %7847 = sbr.rel (0) target = $region44
            $region43: #{_fused_forward.1} parent=39 // pred_region
              loop: start=0, step=1, limit=1
              $region45: #{_fused_forward.1} parent=43 // loop_pre_header
                _
              $region46: #{_fused_forward.1} parent=43 // loop_header
                %s7849 = sphi 0, %s7853
                %p7850 = scmp.ge.s32.totalorder %s7849, 1
                %s7854 = sphi %s7834, %s7834
                %s7855 = sphi %s7843, %s7843
              $region47: #{_fused_forward.1} parent=43 // loop_header_branch
                %7852 = sbr.rel (%p7850) target = $region51
              $region48: #{_fused_forward.1} parent=43 // loop_body
                %v7856 = vld [vmem:[%s7854] sm:$0xff]
                %7857 = vst [vmem:[%s7855] sm:$0xff] %v7856
                %v7858 = vld [vmem:[%s7854 + $0x8] sm:$0xff]
                %7859 = vst [vmem:[%s7855 + $0x8] sm:$0xff] %v7858
                %v7860 = vld [vmem:[%s7854 + $0x10] sm:$0xff]
                %7861 = vst [vmem:[%s7855 + $0x10] sm:$0xff] %v7860
                %v7862 = vld [vmem:[%s7854 + $0x18] sm:$0xff]
                %7863 = vst [vmem:[%s7855 + $0x18] sm:$0xff] %v7862
                %v7864 = vld [vmem:[%s7854 + $0x20] sm:$0xff]
                %7865 = vst [vmem:[%s7855 + $0x20] sm:$0xff] %v7864
                %v7866 = vld [vmem:[%s7854 + $0x28] sm:$0xff]
                %7867 = vst [vmem:[%s7855 + $0x28] sm:$0xff] %v7866
                %v7868 = vld [vmem:[%s7854 + $0x30] sm:$0xff]
                %7869 = vst [vmem:[%s7855 + $0x30] sm:$0xff] %v7868
                %v7870 = vld [vmem:[%s7854 + $0x38] sm:$0xff]
                %7871 = vst [vmem:[%s7855 + $0x38] sm:$0xff] %v7870
                %v7872 = vld [vmem:[%s7854 + $0x40] sm:$0xff]
                %7873 = vst [vmem:[%s7855 + $0x200] sm:$0xff] %v7872
                %v7874 = vld [vmem:[%s7854 + $0x48] sm:$0xff]
                %7875 = vst [vmem:[%s7855 + $0x208] sm:$0xff] %v7874
                %v7876 = vld [vmem:[%s7854 + $0x50] sm:$0xff]
                %7877 = vst [vmem:[%s7855 + $0x210] sm:$0xff] %v7876
                %v7878 = vld [vmem:[%s7854 + $0x58] sm:$0xff]
                %7879 = vst [vmem:[%s7855 + $0x218] sm:$0xff] %v7878
                %v7880 = vld [vmem:[%s7854 + $0x60] sm:$0xff]
                %7881 = vst [vmem:[%s7855 + $0x220] sm:$0xff] %v7880
                %v7882 = vld [vmem:[%s7854 + $0x68] sm:$0xff]
                %7883 = vst [vmem:[%s7855 + $0x228] sm:$0xff] %v7882
                %v7884 = vld [vmem:[%s7854 + $0x70] sm:$0xff]
                %7885 = vst [vmem:[%s7855 + $0x230] sm:$0xff] %v7884
                %v7886 = vld [vmem:[%s7854 + $0x78] sm:$0xff]
                %7887 = vst [vmem:[%s7855 + $0x238] sm:$0xff] %v7886
              $region49: #{_fused_forward.1} parent=43 // loop_footer
                %s7853 = sadd.s32 1, %s7849
              $region50: #{_fused_forward.1} parent=43 // loop_footer_branch
                %7848 = sbr.rel target = $region46
              $region51: #{_fused_forward.1} parent=43 // loop_exit
                _
            $region44: #{_fused_forward.1} parent=39 // pred_fallthru
              _
            // Predicated region
            $region52: #{_fused_forward.1} parent=39 // pred_check
              _
            $region53: #{_fused_forward.1} parent=39 // pred_check_branch
              %7889 = sbr.rel target = $region55
            $region54: #{_fused_forward.1} parent=39 // pred_region
              _
            $region55: #{_fused_forward.1} parent=39 // pred_fallthru
              _
          $region40: #{_fused_forward.1} parent=35 // pred_fallthru
            _
          %7890 = vnop
        $region36: #{_fused_forward.1} parent=27 // pred_fallthru
          _
      $region28: #{_fused_forward.1} parent=5 // pred_fallthru
        _
      %p7891 = scmp.le.s32.totalorder 2, %s11
      // Predicated region
      $region56: #{_fused_forward.1} parent=5 // pred_check
        %p7892 = pneg %p7891
      $region57: #{_fused_forward.1} parent=5 // pred_check_branch
        %7894 = sbr.rel (%p7892) target = $region59
      $region58: #{_fused_forward.1} parent=5 // pred_region
        %s7895 = ssub.s32 %s11, 2
        // Predicated region
        $region60: #{_fused_forward.1} parent=58 // pred_check
          %p7896 = pneg %p106
        $region61: #{_fused_forward.1} parent=58 // pred_check_branch
          %7898 = sbr.rel (%p7896) target = $region63
        $region62: #{_fused_forward.1} parent=58 // pred_region
          %s7899 = sand.u32 %s91, 1
          %s7900 = sand.u32 %s91, 1
          %s7901 = smul.addr %s7900, 128
          %s7902 = scalar_lea.vmem [#allocation4], %s7901
        $region63: #{_fused_forward.1} parent=58 // pred_fallthru
          _
      $region59: #{_fused_forward.1} parent=5 // pred_fallthru
        _
    $region6: #{_fused_forward.1} parent=1 // loop_footer
      %s15 = sadd.s32 1, %s11
    $region7: #{_fused_forward.1} parent=1 // loop_footer_branch
      %10 = sbr.rel target = $region3
    $region8: #{_fused_forward.1} parent=1 // loop_exit
      _
    %7903 = vsyncpa [#allocation3], 1
    %s7904 = scalar_lea.sflag [#allocation3], 1
    %7905 = vsyncpa %s7904, 1

</llo_original>
